<compile_context>
chip_gen: v7x
topology: tpu7x:2x2x1
jax: 0.10.0
libtpu: 0.0.40
codegen_flags: <defaults>
</compile_context>

<pallas_src>
import functools

import jax
import jax.numpy as jnp
from jax import lax
from jax.experimental import pallas as pl
from jax.experimental.pallas import tpu as pltpu


# =============================================================================
# Fused ConvLSTM layer kernel (both directions, whole sequence)
# =============================================================================
def _blstm_layer_kernel(x_ref, w_ref, b_ref, h_ref,
                        xpad_ref, hpad_ref, patch_ref, c_ref,
                        *, B, H, W, Cin, Ch):
    """Grid = (direction, time).  Direction axis is parallel, time is the
    serial recurrence.

        gates = conv3x3(cat([x_t, h_{t-1}], ch), W, pad=1) + b
        i,f,o = sigmoid(...), g = tanh(...)
        c_t   = f*c_{t-1} + i*g ;  h_t = o*tanh(c_t)

    x_ref    : (B, H, W, Cin)          frame t of direction d (f32 or bf16)
    w_ref    : (1, 9*(Cin+Ch), 4*Ch)   bf16, tap-major / channel-minor rows,
                                       channels ordered [x..., h...]
    b_ref    : (1, 1, 4*Ch)            f32
    h_ref    : (B, H, W, Ch)           output h_t (f32 or bf16)
    xpad_ref : (B, H+2, W+2, Cin) f32  VMEM scratch, x with zero 1-px halo
    hpad_ref : (B, H+2, W+2, Ch)  f32  VMEM scratch, h_{t-1} with zero halo
    patch_ref: (M, 9*(Cin+Ch))    bf16 VMEM scratch, im2col patch
    c_ref    : (M, Ch)            f32  VMEM scratch, cell state
    """
    M = B * H * W
    C = Cin + Ch
    t = pl.program_id(1)

    # Per-direction re-init (the halo of the pad scratches stays zero forever;
    # only the interior is rewritten each step).
    @pl.when(t == 0)
    def _init():
        xpad_ref[...] = jnp.zeros_like(xpad_ref)
        hpad_ref[...] = jnp.zeros_like(hpad_ref)
        c_ref[...] = jnp.zeros_like(c_ref)

    xpad_ref[:, 1:H + 1, 1:W + 1, :] = x_ref[...].astype(jnp.float32)

    xp = xpad_ref[...]
    hp = hpad_ref[...]
    # im2col: one store per (tap, source) into the persistent bf16 patch
    # instead of an 18-way lane-shifting concatenate.  Column layout matches a
    # torch conv weight over cat([x, h]) reshaped (3,3,C,4Ch) -> (9C, 4Ch).
    for k in range(9):
        dy, dx = divmod(k, 3)
        off = k * C
        patch_ref[:, off:off + Cin] = (
            xp[:, dy:dy + H, dx:dx + W, :].reshape(M, Cin).astype(jnp.bfloat16))
        patch_ref[:, off + Cin:off + C] = (
            hp[:, dy:dy + H, dx:dx + W, :].reshape(M, Ch).astype(jnp.bfloat16))

    # Single large-K MXU matmul (K = 9*(Cin+Ch)), f32 accumulation.
    gates = jnp.dot(patch_ref[...], w_ref[0],
                    preferred_element_type=jnp.float32) + b_ref[0]  # (M, 4Ch)

    # Lane-denser nonlinearity: one sigmoid over the 3*Ch-wide i/f/o slab.
    sig = jax.nn.sigmoid(gates[:, :3 * Ch])
    g = jnp.tanh(gates[:, 3 * Ch:])
    i = sig[:, 0:Ch]
    f = sig[:, Ch:2 * Ch]
    o = sig[:, 2 * Ch:3 * Ch]

    c_new = f * c_ref[...] + i * g
    h_new = o * jnp.tanh(c_new)

    c_ref[...] = c_new
    h4 = h_new.reshape(B, H, W, Ch)
    hpad_ref[:, 1:H + 1, 1:W + 1, :] = h4
    h_ref[...] = h4.astype(h_ref.dtype)


# =============================================================================
# pallas_call builder (cached per shape / output dtype)
# =============================================================================
@functools.lru_cache(maxsize=None)
def _blstm_layer_call(T, B, H, W, Cin, Ch, out_dtype_name):
    M = B * H * W
    C = Cin + Ch
    out_dtype = jnp.dtype(out_dtype_name)
    kernel = functools.partial(_blstm_layer_kernel, B=B, H=H, W=W,
                               Cin=Cin, Ch=Ch)
    return pl.pallas_call(
        kernel,
        # Row order of dim 0: direction-major, then time, then batch.
        out_shape=jax.ShapeDtypeStruct((2 * T * B, H, W, Ch), out_dtype),
        grid=(2, T),
        in_specs=[
            # x_{d,t}: block of B frames at row (d*T + t)*B
            pl.BlockSpec((B, H, W, Cin), lambda d, t: (d * T + t, 0, 0, 0)),
            # per-direction weights / bias, resident across the time axis
            pl.BlockSpec((1, 9 * C, 4 * Ch), lambda d, t: (d, 0, 0)),
            pl.BlockSpec((1, 1, 4 * Ch), lambda d, t: (d, 0, 0)),
        ],
        out_specs=pl.BlockSpec((B, H, W, Ch), lambda d, t: (d * T + t, 0, 0, 0)),
        scratch_shapes=[
            pltpu.VMEM((B, H + 2, W + 2, Cin), jnp.float32),   # padded x_t
            pltpu.VMEM((B, H + 2, W + 2, Ch), jnp.float32),    # padded h_{t-1}
            pltpu.VMEM((M, 9 * C), jnp.bfloat16),              # im2col patch
            pltpu.VMEM((M, Ch), jnp.float32),                  # cell state c
        ],
        compiler_params=pltpu.CompilerParams(
            # direction axis parallel (v7x: one TC per direction),
            # time axis is the serial recurrence.
            dimension_semantics=("parallel", "arbitrary")),
    )


# =============================================================================
# Wrappers (JAX glue: layout transposes only)
# =============================================================================
def conv_blstm_forward(xforward, xreverse, params):
    """ConvBLSTM.forward.  xforward/xreverse: (B, T, C, H, W) f32
    (batch_first, as in the module's docstring).
    Returns (B, T, hidden_dim, H, W): forward channels then time-reversed
    reverse channels, matching torch.cat((y_out_fwd, y_out_rev), dim=2)."""
    Ch = params['hidden_per_dir']
    B, T, Cin0, H, W = xforward.shape
    num_layers = len(params['w'])

    # (2, B, T, C, H, W) -> (2, T, B, H, W, C) -> (2*T*B, H, W, C)
    x = jnp.stack([xforward, xreverse], axis=0)
    x = jnp.transpose(x, (0, 2, 1, 4, 5, 3))
    cur = x.reshape(2 * T * B, H, W, Cin0)

    for l in range(num_layers):
        Cin = cur.shape[-1]
        last = (l == num_layers - 1)
        out_dtype = 'float32' if last else 'bfloat16'   # bf16 inter-layer HBM
        cur = _blstm_layer_call(T, B, H, W, Cin, Ch, out_dtype)(
            cur, params['w'][l].astype(jnp.bfloat16), params['b'][l])

    y = cur.reshape(2, T, B, H, W, Ch).astype(jnp.float32)
    y_fwd = y[0]                       # (T, B, H, W, Ch)
    y_rev = y[1, ::-1]                 # reversed_idx over time
    ycat = jnp.concatenate([y_fwd, y_rev], axis=-1)       # (T, B, H, W, 2Ch)
    return jnp.transpose(ycat, (1, 0, 4, 2, 3))           # (B, T, 2Ch, H, W)


# =============================================================================
# Deterministic parameter init
# (gate order i, f, o, g along the 4*Ch output axis, like torch.split;
#  weight rows: tap-major, channel-minor, channels = [x..., h...])
# =============================================================================
def init_params(key, input_dim, hidden_dim, num_layers):
    Ch = hidden_dim // 2               # hidden channels per direction
    ws, bs = [], []
    cin = input_dim
    keys = jax.random.split(key, num_layers)
    for l in range(num_layers):
        C = cin + Ch
        kw, kb = jax.random.split(keys[l], 2)
        ws.append(jax.random.normal(kw, (2, 9 * C, 4 * Ch), jnp.float32) * 0.1)
        bs.append(jax.random.normal(kb, (2, 1, 4 * Ch), jnp.float32) * 0.1)
        cin = Ch
    return {'hidden_per_dir': Ch, 'w': ws, 'b': bs}


# =============================================================================
# Pure-JAX reference (f32, HIGHEST precision) for correctness check
# =============================================================================
def _conv_blstm_ref(xf, xr, params):
    Ch = params['hidden_per_dir']
    B, T, _, H, W = xf.shape
    dn = ('NHWC', 'HWIO', 'NHWC')
    x = jnp.stack([xf, xr], axis=0)
    x = jnp.transpose(x, (0, 2, 1, 4, 5, 3))     # (2, T, B, H, W, C)

    outs_dir = []
    for d in range(2):
        cur = x[d]
        for l in range(len(params['w'])):
            Cin = cur.shape[-1]
            C = Cin + Ch
            w = params['w'][l][d].reshape(3, 3, C, 4 * Ch)
            b = params['b'][l][d].reshape(1, 1, 1, 4 * Ch)
            h = jnp.zeros((B, H, W, Ch), jnp.float32)
            c = jnp.zeros((B, H, W, Ch), jnp.float32)
            hs = []
            for t in range(T):
                comb = jnp.concatenate([cur[t], h], axis=-1)
                g = lax.conv_general_dilated(
                    comb, w, (1, 1), ((1, 1), (1, 1)), dimension_numbers=dn,
                    precision=lax.Precision.HIGHEST) + b
                i = jax.nn.sigmoid(g[..., 0:Ch])
                f = jax.nn.sigmoid(g[..., Ch:2 * Ch])
                o = jax.nn.sigmoid(g[..., 2 * Ch:3 * Ch])
                gg = jnp.tanh(g[..., 3 * Ch:])
                c = f * c + i * gg
                h = o * jnp.tanh(c)
                hs.append(h)
            cur = jnp.stack(hs, axis=0)
        outs_dir.append(cur)

    y_fwd = outs_dir[0]
    y_rev = outs_dir[1][::-1]
    ycat = jnp.concatenate([y_fwd, y_rev], axis=-1)
    return jnp.transpose(ycat, (1, 0, 4, 2, 3))


# =============================================================================
if __name__ == "__main__":
    # Small shapes consistent with the module: batch=2, seq=8, in-channels=4,
    # 16x16 spatial, hidden_dim=64 -> 32 per direction, gate width 4*32 = 128
    # (lane-dense), 2 stacked ConvLSTM layers per direction, 3x3 kernel, bias.
    B, T, C, H, W = 2, 8, 4, 16, 16
    hidden_dim = 64
    num_layers = 2

    key = jax.random.PRNGKey(0)
    kp, kf, kr = jax.random.split(key, 3)
    params = init_params(kp, C, hidden_dim, num_layers)
    xf = jax.random.normal(kf, (B, T, C, H, W), jnp.float32)
    xr = jax.random.normal(kr, (B, T, C, H, W), jnp.float32)

    out = jax.block_until_ready(conv_blstm_forward(xf, xr, params))
    assert out.shape == (B, T, hidden_dim, H, W)
    assert bool(jnp.all(jnp.isfinite(out)))

    ref = _conv_blstm_ref(xf, xr, params)
    err = float(jnp.max(jnp.abs(out - ref)))
    assert err < 5e-2, f"Pallas ConvBLSTM mismatch vs reference: max|err|={err}"

    print("KERNEL_OK")
</pallas_src>

<mosaic_0001>
module attributes {stable_mosaic.version = 11 : i64} {
  func.func @_blstm_layer_kernel(%arg0: i32, %arg1: i32, %arg2: memref<2x16x16x4xf32, #tpu.memory_space<vmem>>, %arg3: memref<1x324x128xbf16, #tpu.memory_space<vmem>>, %arg4: memref<1x1x128xf32, #tpu.memory_space<vmem>>, %arg5: memref<2x16x16x32xbf16, #tpu.memory_space<vmem>>, %arg6: memref<2x18x18x4xf32, #tpu.memory_space<vmem>>, %arg7: memref<2x18x18x32xf32, #tpu.memory_space<vmem>>, %arg8: memref<512x324xbf16, #tpu.memory_space<vmem>>, %arg9: memref<512x32xf32, #tpu.memory_space<vmem>>) attributes {dimension_semantics = [#tpu.dimension_semantics<parallel>, #tpu.dimension_semantics<arbitrary>], iteration_bounds = array<i64: 2, 8>, scalar_prefetch = 0 : i64, scratch_operands = 4 : i64, tpu.core_type = #tpu.core_type<tc>, window_params = [{transform_indices = @transform_0, window_bounds = array<i64: 2, 16, 16, 4>}, {transform_indices = @transform_1, window_bounds = array<i64: 1, 324, 128>}, {transform_indices = @transform_2, window_bounds = array<i64: 1, 1, 128>}, {transform_indices = @transform_3, window_bounds = array<i64: 2, 16, 16, 32>}]} {
    %c0_i32 = arith.constant 0 : i32
    %0 = arith.cmpi eq, %arg1, %c0_i32 : i32
    %1 = arith.extui %0 : i1 to i32
    %c0_i32_0 = arith.constant 0 : i32
    %2 = arith.cmpi ne, %1, %c0_i32_0 : i32
    scf.if %2 {
      %cst_55 = arith.constant 0.000000e+00 : f32
      %109 = vector.broadcast %cst_55 : f32 to vector<2x18x18x4xf32>
      %c0_56 = arith.constant 0 : index
      %c0_57 = arith.constant 0 : index
      %c0_58 = arith.constant 0 : index
      %c0_59 = arith.constant 0 : index
      %110 = vector.load %arg6[%c0_56, %c0_57, %c0_58, %c0_59] : memref<2x18x18x4xf32, #tpu.memory_space<vmem>>, vector<2x18x18x4xf32>
      tpu.vector_store %arg6[%c0_56, %c0_57, %c0_58, %c0_59], %109 {strides = array<i32>} : memref<2x18x18x4xf32, #tpu.memory_space<vmem>>, vector<2x18x18x4xf32>,
      %cst_60 = arith.constant 0.000000e+00 : f32
      %111 = vector.broadcast %cst_60 : f32 to vector<2x18x18x32xf32>
      %c0_61 = arith.constant 0 : index
      %c0_62 = arith.constant 0 : index
      %c0_63 = arith.constant 0 : index
      %c0_64 = arith.constant 0 : index
      %112 = vector.load %arg7[%c0_61, %c0_62, %c0_63, %c0_64] : memref<2x18x18x32xf32, #tpu.memory_space<vmem>>, vector<2x18x18x32xf32>
      tpu.vector_store %arg7[%c0_61, %c0_62, %c0_63, %c0_64], %111 {strides = array<i32>} : memref<2x18x18x32xf32, #tpu.memory_space<vmem>>, vector<2x18x18x32xf32>,
      %cst_65 = arith.constant 0.000000e+00 : f32
      %113 = vector.broadcast %cst_65 : f32 to vector<512x32xf32>
      %c0_66 = arith.constant 0 : index
      %c0_67 = arith.constant 0 : index
      %114 = vector.load %arg9[%c0_66, %c0_67] : memref<512x32xf32, #tpu.memory_space<vmem>>, vector<512x32xf32>
      tpu.vector_store %arg9[%c0_66, %c0_67], %113 {strides = array<i32>} : memref<512x32xf32, #tpu.memory_space<vmem>>, vector<512x32xf32>,
    } else {
    }
    %c0 = arith.constant 0 : index
    %c0_1 = arith.constant 0 : index
    %c0_2 = arith.constant 0 : index
    %c0_3 = arith.constant 0 : index
    %3 = vector.load %arg2[%c0, %c0_1, %c0_2, %c0_3] : memref<2x16x16x4xf32, #tpu.memory_space<vmem>>, vector<2x16x16x4xf32>
    %c0_4 = arith.constant 0 : index
    %c1 = arith.constant 1 : index
    %c1_5 = arith.constant 1 : index
    %c0_6 = arith.constant 0 : index
    %4 = vector.load %arg6[%c0_4, %c1, %c1_5, %c0_6] : memref<2x18x18x4xf32, #tpu.memory_space<vmem>>, vector<2x16x16x4xf32>
    tpu.vector_store %arg6[%c0_4, %c1, %c1_5, %c0_6], %3 {strides = array<i32>} : memref<2x18x18x4xf32, #tpu.memory_space<vmem>>, vector<2x16x16x4xf32>,
    %c0_7 = arith.constant 0 : index
    %c0_8 = arith.constant 0 : index
    %c0_9 = arith.constant 0 : index
    %c0_10 = arith.constant 0 : index
    %5 = vector.load %arg6[%c0_7, %c0_8, %c0_9, %c0_10] : memref<2x18x18x4xf32, #tpu.memory_space<vmem>>, vector<2x18x18x4xf32>
    %c0_11 = arith.constant 0 : index
    %c0_12 = arith.constant 0 : index
    %c0_13 = arith.constant 0 : index
    %c0_14 = arith.constant 0 : index
    %6 = vector.load %arg7[%c0_11, %c0_12, %c0_13, %c0_14] : memref<2x18x18x32xf32, #tpu.memory_space<vmem>>, vector<2x18x18x32xf32>
    %7 = vector.extract_strided_slice %5 {offsets = [0, 0, 0, 0], sizes = [2, 16, 16, 4], strides = [1, 1, 1, 1]} : vector<2x18x18x4xf32> to vector<2x16x16x4xf32>
    %8 = vector.shape_cast %7 : vector<2x16x16x4xf32> to vector<512x4xf32>
    %9 = arith.truncf %8 : vector<512x4xf32> to vector<512x4xbf16>
    %c0_15 = arith.constant 0 : index
    %c0_16 = arith.constant 0 : index
    %10 = vector.load %arg8[%c0_15, %c0_16] : memref<512x324xbf16, #tpu.memory_space<vmem>>, vector<512x4xbf16>
    tpu.vector_store %arg8[%c0_15, %c0_16], %9 {strides = array<i32>} : memref<512x324xbf16, #tpu.memory_space<vmem>>, vector<512x4xbf16>,
    %11 = vector.extract_strided_slice %6 {offsets = [0, 0, 0, 0], sizes = [2, 16, 16, 32], strides = [1, 1, 1, 1]} : vector<2x18x18x32xf32> to vector<2x16x16x32xf32>
    %12 = vector.shape_cast %11 : vector<2x16x16x32xf32> to vector<512x32xf32>
    %13 = arith.truncf %12 : vector<512x32xf32> to vector<512x32xbf16>
    %c0_17 = arith.constant 0 : index
    %c4 = arith.constant 4 : index
    %14 = vector.load %arg8[%c0_17, %c4] : memref<512x324xbf16, #tpu.memory_space<vmem>>, vector<512x32xbf16>
    tpu.vector_store %arg8[%c0_17, %c4], %13 {strides = array<i32>} : memref<512x324xbf16, #tpu.memory_space<vmem>>, vector<512x32xbf16>,
    %15 = vector.extract_strided_slice %5 {offsets = [0, 0, 1, 0], sizes = [2, 16, 16, 4], strides = [1, 1, 1, 1]} : vector<2x18x18x4xf32> to vector<2x16x16x4xf32>
    %16 = vector.shape_cast %15 : vector<2x16x16x4xf32> to vector<512x4xf32>
    %17 = arith.truncf %16 : vector<512x4xf32> to vector<512x4xbf16>
    %c0_18 = arith.constant 0 : index
    %c36 = arith.constant 36 : index
    %18 = vector.load %arg8[%c0_18, %c36] : memref<512x324xbf16, #tpu.memory_space<vmem>>, vector<512x4xbf16>
    tpu.vector_store %arg8[%c0_18, %c36], %17 {strides = array<i32>} : memref<512x324xbf16, #tpu.memory_space<vmem>>, vector<512x4xbf16>,
    %19 = vector.extract_strided_slice %6 {offsets = [0, 0, 1, 0], sizes = [2, 16, 16, 32], strides = [1, 1, 1, 1]} : vector<2x18x18x32xf32> to vector<2x16x16x32xf32>
    %20 = vector.shape_cast %19 : vector<2x16x16x32xf32> to vector<512x32xf32>
    %21 = arith.truncf %20 : vector<512x32xf32> to vector<512x32xbf16>
    %c0_19 = arith.constant 0 : index
    %c40 = arith.constant 40 : index
    %22 = vector.load %arg8[%c0_19, %c40] : memref<512x324xbf16, #tpu.memory_space<vmem>>, vector<512x32xbf16>
    tpu.vector_store %arg8[%c0_19, %c40], %21 {strides = array<i32>} : memref<512x324xbf16, #tpu.memory_space<vmem>>, vector<512x32xbf16>,
    %23 = vector.extract_strided_slice %5 {offsets = [0, 0, 2, 0], sizes = [2, 16, 16, 4], strides = [1, 1, 1, 1]} : vector<2x18x18x4xf32> to vector<2x16x16x4xf32>
    %24 = vector.shape_cast %23 : vector<2x16x16x4xf32> to vector<512x4xf32>
    %25 = arith.truncf %24 : vector<512x4xf32> to vector<512x4xbf16>
    %c0_20 = arith.constant 0 : index
    %c72 = arith.constant 72 : index
    %26 = vector.load %arg8[%c0_20, %c72] : memref<512x324xbf16, #tpu.memory_space<vmem>>, vector<512x4xbf16>
    tpu.vector_store %arg8[%c0_20, %c72], %25 {strides = array<i32>} : memref<512x324xbf16, #tpu.memory_space<vmem>>, vector<512x4xbf16>,
    %27 = vector.extract_strided_slice %6 {offsets = [0, 0, 2, 0], sizes = [2, 16, 16, 32], strides = [1, 1, 1, 1]} : vector<2x18x18x32xf32> to vector<2x16x16x32xf32>
    %28 = vector.shape_cast %27 : vector<2x16x16x32xf32> to vector<512x32xf32>
    %29 = arith.truncf %28 : vector<512x32xf32> to vector<512x32xbf16>
    %c0_21 = arith.constant 0 : index
    %c76 = arith.constant 76 : index
    %30 = vector.load %arg8[%c0_21, %c76] : memref<512x324xbf16, #tpu.memory_space<vmem>>, vector<512x32xbf16>
    tpu.vector_store %arg8[%c0_21, %c76], %29 {strides = array<i32>} : memref<512x324xbf16, #tpu.memory_space<vmem>>, vector<512x32xbf16>,
    %31 = vector.extract_strided_slice %5 {offsets = [0, 1, 0, 0], sizes = [2, 16, 16, 4], strides = [1, 1, 1, 1]} : vector<2x18x18x4xf32> to vector<2x16x16x4xf32>
    %32 = vector.shape_cast %31 : vector<2x16x16x4xf32> to vector<512x4xf32>
    %33 = arith.truncf %32 : vector<512x4xf32> to vector<512x4xbf16>
    %c0_22 = arith.constant 0 : index
    %c108 = arith.constant 108 : index
    %34 = vector.load %arg8[%c0_22, %c108] : memref<512x324xbf16, #tpu.memory_space<vmem>>, vector<512x4xbf16>
    tpu.vector_store %arg8[%c0_22, %c108], %33 {strides = array<i32>} : memref<512x324xbf16, #tpu.memory_space<vmem>>, vector<512x4xbf16>,
    %35 = vector.extract_strided_slice %6 {offsets = [0, 1, 0, 0], sizes = [2, 16, 16, 32], strides = [1, 1, 1, 1]} : vector<2x18x18x32xf32> to vector<2x16x16x32xf32>
    %36 = vector.shape_cast %35 : vector<2x16x16x32xf32> to vector<512x32xf32>
    %37 = arith.truncf %36 : vector<512x32xf32> to vector<512x32xbf16>
    %c0_23 = arith.constant 0 : index
    %c112 = arith.constant 112 : index
    %38 = vector.load %arg8[%c0_23, %c112] : memref<512x324xbf16, #tpu.memory_space<vmem>>, vector<512x32xbf16>
    tpu.vector_store %arg8[%c0_23, %c112], %37 {strides = array<i32>} : memref<512x324xbf16, #tpu.memory_space<vmem>>, vector<512x32xbf16>,
    %39 = vector.extract_strided_slice %5 {offsets = [0, 1, 1, 0], sizes = [2, 16, 16, 4], strides = [1, 1, 1, 1]} : vector<2x18x18x4xf32> to vector<2x16x16x4xf32>
    %40 = vector.shape_cast %39 : vector<2x16x16x4xf32> to vector<512x4xf32>
    %41 = arith.truncf %40 : vector<512x4xf32> to vector<512x4xbf16>
    %c0_24 = arith.constant 0 : index
    %c144 = arith.constant 144 : index
    %42 = vector.load %arg8[%c0_24, %c144] : memref<512x324xbf16, #tpu.memory_space<vmem>>, vector<512x4xbf16>
    tpu.vector_store %arg8[%c0_24, %c144], %41 {strides = array<i32>} : memref<512x324xbf16, #tpu.memory_space<vmem>>, vector<512x4xbf16>,
    %43 = vector.extract_strided_slice %6 {offsets = [0, 1, 1, 0], sizes = [2, 16, 16, 32], strides = [1, 1, 1, 1]} : vector<2x18x18x32xf32> to vector<2x16x16x32xf32>
    %44 = vector.shape_cast %43 : vector<2x16x16x32xf32> to vector<512x32xf32>
    %45 = arith.truncf %44 : vector<512x32xf32> to vector<512x32xbf16>
    %c0_25 = arith.constant 0 : index
    %c148 = arith.constant 148 : index
    %46 = vector.load %arg8[%c0_25, %c148] : memref<512x324xbf16, #tpu.memory_space<vmem>>, vector<512x32xbf16>
    tpu.vector_store %arg8[%c0_25, %c148], %45 {strides = array<i32>} : memref<512x324xbf16, #tpu.memory_space<vmem>>, vector<512x32xbf16>,
    %47 = vector.extract_strided_slice %5 {offsets = [0, 1, 2, 0], sizes = [2, 16, 16, 4], strides = [1, 1, 1, 1]} : vector<2x18x18x4xf32> to vector<2x16x16x4xf32>
    %48 = vector.shape_cast %47 : vector<2x16x16x4xf32> to vector<512x4xf32>
    %49 = arith.truncf %48 : vector<512x4xf32> to vector<512x4xbf16>
    %c0_26 = arith.constant 0 : index
    %c180 = arith.constant 180 : index
    %50 = vector.load %arg8[%c0_26, %c180] : memref<512x324xbf16, #tpu.memory_space<vmem>>, vector<512x4xbf16>
    tpu.vector_store %arg8[%c0_26, %c180], %49 {strides = array<i32>} : memref<512x324xbf16, #tpu.memory_space<vmem>>, vector<512x4xbf16>,
    %51 = vector.extract_strided_slice %6 {offsets = [0, 1, 2, 0], sizes = [2, 16, 16, 32], strides = [1, 1, 1, 1]} : vector<2x18x18x32xf32> to vector<2x16x16x32xf32>
    %52 = vector.shape_cast %51 : vector<2x16x16x32xf32> to vector<512x32xf32>
    %53 = arith.truncf %52 : vector<512x32xf32> to vector<512x32xbf16>
    %c0_27 = arith.constant 0 : index
    %c184 = arith.constant 184 : index
    %54 = vector.load %arg8[%c0_27, %c184] : memref<512x324xbf16, #tpu.memory_space<vmem>>, vector<512x32xbf16>
    tpu.vector_store %arg8[%c0_27, %c184], %53 {strides = array<i32>} : memref<512x324xbf16, #tpu.memory_space<vmem>>, vector<512x32xbf16>,
    %55 = vector.extract_strided_slice %5 {offsets = [0, 2, 0, 0], sizes = [2, 16, 16, 4], strides = [1, 1, 1, 1]} : vector<2x18x18x4xf32> to vector<2x16x16x4xf32>
    %56 = vector.shape_cast %55 : vector<2x16x16x4xf32> to vector<512x4xf32>
    %57 = arith.truncf %56 : vector<512x4xf32> to vector<512x4xbf16>
    %c0_28 = arith.constant 0 : index
    %c216 = arith.constant 216 : index
    %58 = vector.load %arg8[%c0_28, %c216] : memref<512x324xbf16, #tpu.memory_space<vmem>>, vector<512x4xbf16>
    tpu.vector_store %arg8[%c0_28, %c216], %57 {strides = array<i32>} : memref<512x324xbf16, #tpu.memory_space<vmem>>, vector<512x4xbf16>,
    %59 = vector.extract_strided_slice %6 {offsets = [0, 2, 0, 0], sizes = [2, 16, 16, 32], strides = [1, 1, 1, 1]} : vector<2x18x18x32xf32> to vector<2x16x16x32xf32>
    %60 = vector.shape_cast %59 : vector<2x16x16x32xf32> to vector<512x32xf32>
    %61 = arith.truncf %60 : vector<512x32xf32> to vector<512x32xbf16>
    %c0_29 = arith.constant 0 : index
    %c220 = arith.constant 220 : index
    %62 = vector.load %arg8[%c0_29, %c220] : memref<512x324xbf16, #tpu.memory_space<vmem>>, vector<512x32xbf16>
    tpu.vector_store %arg8[%c0_29, %c220], %61 {strides = array<i32>} : memref<512x324xbf16, #tpu.memory_space<vmem>>, vector<512x32xbf16>,
    %63 = vector.extract_strided_slice %5 {offsets = [0, 2, 1, 0], sizes = [2, 16, 16, 4], strides = [1, 1, 1, 1]} : vector<2x18x18x4xf32> to vector<2x16x16x4xf32>
    %64 = vector.shape_cast %63 : vector<2x16x16x4xf32> to vector<512x4xf32>
    %65 = arith.truncf %64 : vector<512x4xf32> to vector<512x4xbf16>
    %c0_30 = arith.constant 0 : index
    %c252 = arith.constant 252 : index
    %66 = vector.load %arg8[%c0_30, %c252] : memref<512x324xbf16, #tpu.memory_space<vmem>>, vector<512x4xbf16>
    tpu.vector_store %arg8[%c0_30, %c252], %65 {strides = array<i32>} : memref<512x324xbf16, #tpu.memory_space<vmem>>, vector<512x4xbf16>,
    %67 = vector.extract_strided_slice %6 {offsets = [0, 2, 1, 0], sizes = [2, 16, 16, 32], strides = [1, 1, 1, 1]} : vector<2x18x18x32xf32> to vector<2x16x16x32xf32>
    %68 = vector.shape_cast %67 : vector<2x16x16x32xf32> to vector<512x32xf32>
    %69 = arith.truncf %68 : vector<512x32xf32> to vector<512x32xbf16>
    %c0_31 = arith.constant 0 : index
    %c256 = arith.constant 256 : index
    %70 = vector.load %arg8[%c0_31, %c256] : memref<512x324xbf16, #tpu.memory_space<vmem>>, vector<512x32xbf16>
    tpu.vector_store %arg8[%c0_31, %c256], %69 {strides = array<i32>} : memref<512x324xbf16, #tpu.memory_space<vmem>>, vector<512x32xbf16>,
    %71 = vector.extract_strided_slice %5 {offsets = [0, 2, 2, 0], sizes = [2, 16, 16, 4], strides = [1, 1, 1, 1]} : vector<2x18x18x4xf32> to vector<2x16x16x4xf32>
    %72 = vector.shape_cast %71 : vector<2x16x16x4xf32> to vector<512x4xf32>
    %73 = arith.truncf %72 : vector<512x4xf32> to vector<512x4xbf16>
    %c0_32 = arith.constant 0 : index
    %c288 = arith.constant 288 : index
    %74 = vector.load %arg8[%c0_32, %c288] : memref<512x324xbf16, #tpu.memory_space<vmem>>, vector<512x4xbf16>
    tpu.vector_store %arg8[%c0_32, %c288], %73 {strides = array<i32>} : memref<512x324xbf16, #tpu.memory_space<vmem>>, vector<512x4xbf16>,
    %75 = vector.extract_strided_slice %6 {offsets = [0, 2, 2, 0], sizes = [2, 16, 16, 32], strides = [1, 1, 1, 1]} : vector<2x18x18x32xf32> to vector<2x16x16x32xf32>
    %76 = vector.shape_cast %75 : vector<2x16x16x32xf32> to vector<512x32xf32>
    %77 = arith.truncf %76 : vector<512x32xf32> to vector<512x32xbf16>
    %c0_33 = arith.constant 0 : index
    %c292 = arith.constant 292 : index
    %78 = vector.load %arg8[%c0_33, %c292] : memref<512x324xbf16, #tpu.memory_space<vmem>>, vector<512x32xbf16>
    tpu.vector_store %arg8[%c0_33, %c292], %77 {strides = array<i32>} : memref<512x324xbf16, #tpu.memory_space<vmem>>, vector<512x32xbf16>,
    %c0_34 = arith.constant 0 : index
    %c0_35 = arith.constant 0 : index
    %79 = vector.load %arg8[%c0_34, %c0_35] : memref<512x324xbf16, #tpu.memory_space<vmem>>, vector<512x324xbf16>
    %c0_36 = arith.constant 0 : index
    %c0_37 = arith.constant 0 : index
    %c0_38 = arith.constant 0 : index
    %80 = vector.load %arg3[%c0_36, %c0_37, %c0_38] : memref<1x324x128xbf16, #tpu.memory_space<vmem>>, vector<1x324x128xbf16>
    %81 = vector.shape_cast %80 : vector<1x324x128xbf16> to vector<324x128xbf16>
    %cst = arith.constant dense<0.000000e+00> : vector<512x128xf32>
    %82 = tpu.matmul %79, %81, %cst {dimension_numbers = #tpu.dot_dimension_numbers<[1], [0], [0], [1], [0, 0, 1, 1], [], []>} : vector<512x324xbf16>, vector<324x128xbf16>, vector<512x128xf32> -> vector<512x128xf32>
    %c0_39 = arith.constant 0 : index
    %c0_40 = arith.constant 0 : index
    %c0_41 = arith.constant 0 : index
    %83 = vector.load %arg4[%c0_39, %c0_40, %c0_41] : memref<1x1x128xf32, #tpu.memory_space<vmem>>, vector<1x1x128xf32>
    %84 = vector.shape_cast %83 : vector<1x1x128xf32> to vector<1x128xf32>
    %85 = vector.broadcast %84 : vector<1x128xf32> to vector<512x128xf32>
    %86 = arith.addf %82, %85 : vector<512x128xf32>
    %87 = vector.extract_strided_slice %86 {offsets = [0, 0], sizes = [512, 96], strides = [1, 1]} : vector<512x128xf32> to vector<512x96xf32>
    %88 = arith.negf %87 : vector<512x96xf32>
    %89 = math.exp %88 : vector<512x96xf32>
    %cst_42 = arith.constant 1.000000e+00 : f32
    %90 = vector.broadcast %cst_42 : f32 to vector<512x96xf32>
    %91 = arith.addf %90, %89 : vector<512x96xf32>
    %92 = arith.divf %90, %91 : vector<512x96xf32>
    %93 = vector.extract_strided_slice %86 {offsets = [0, 96], sizes = [512, 32], strides = [1, 1]} : vector<512x128xf32> to vector<512x32xf32>
    %94 = math.tanh %93 : vector<512x32xf32>
    %95 = vector.extract_strided_slice %92 {offsets = [0, 0], sizes = [512, 32], strides = [1, 1]} : vector<512x96xf32> to vector<512x32xf32>
    %96 = vector.extract_strided_slice %92 {offsets = [0, 32], sizes = [512, 32], strides = [1, 1]} : vector<512x96xf32> to vector<512x32xf32>
    %97 = vector.extract_strided_slice %92 {offsets = [0, 64], sizes = [512, 32], strides = [1, 1]} : vector<512x96xf32> to vector<512x32xf32>
    %c0_43 = arith.constant 0 : index
    %c0_44 = arith.constant 0 : index
    %98 = vector.load %arg9[%c0_43, %c0_44] : memref<512x32xf32, #tpu.memory_space<vmem>>, vector<512x32xf32>
    %99 = arith.mulf %96, %98 : vector<512x32xf32>
    %100 = arith.mulf %95, %94 : vector<512x32xf32>
    %101 = arith.addf %99, %100 : vector<512x32xf32>
    %102 = math.tanh %101 : vector<512x32xf32>
    %103 = arith.mulf %97, %102 : vector<512x32xf32>
    %c0_45 = arith.constant 0 : index
    %c0_46 = arith.constant 0 : index
    %104 = vector.load %arg9[%c0_45, %c0_46] : memref<512x32xf32, #tpu.memory_space<vmem>>, vector<512x32xf32>
    tpu.vector_store %arg9[%c0_45, %c0_46], %101 {strides = array<i32>} : memref<512x32xf32, #tpu.memory_space<vmem>>, vector<512x32xf32>,
    %105 = vector.shape_cast %103 : vector<512x32xf32> to vector<2x16x16x32xf32>
    %c0_47 = arith.constant 0 : index
    %c1_48 = arith.constant 1 : index
    %c1_49 = arith.constant 1 : index
    %c0_50 = arith.constant 0 : index
    %106 = vector.load %arg7[%c0_47, %c1_48, %c1_49, %c0_50] : memref<2x18x18x32xf32, #tpu.memory_space<vmem>>, vector<2x16x16x32xf32>
    tpu.vector_store %arg7[%c0_47, %c1_48, %c1_49, %c0_50], %105 {strides = array<i32>} : memref<2x18x18x32xf32, #tpu.memory_space<vmem>>, vector<2x16x16x32xf32>,
    %107 = arith.truncf %105 : vector<2x16x16x32xf32> to vector<2x16x16x32xbf16>
    %c0_51 = arith.constant 0 : index
    %c0_52 = arith.constant 0 : index
    %c0_53 = arith.constant 0 : index
    %c0_54 = arith.constant 0 : index
    %108 = vector.load %arg5[%c0_51, %c0_52, %c0_53, %c0_54] : memref<2x16x16x32xbf16, #tpu.memory_space<vmem>>, vector<2x16x16x32xbf16>
    tpu.vector_store %arg5[%c0_51, %c0_52, %c0_53, %c0_54], %107 {strides = array<i32>} : memref<2x16x16x32xbf16, #tpu.memory_space<vmem>>, vector<2x16x16x32xbf16>,
    return
  }
  func.func @transform_0(%arg0: i32, %arg1: i32) -> (i32, i32, i32, i32) {
    %c8_i32 = arith.constant 8 : i32
    %0 = arith.muli %arg0, %c8_i32 : i32
    %1 = arith.addi %0, %arg1 : i32
    %c0_i32 = arith.constant 0 : i32
    %c0_i32_0 = arith.constant 0 : i32
    %c0_i32_1 = arith.constant 0 : i32
    %c0_i32_2 = arith.constant 0 : i32
    return %1, %c0_i32, %c0_i32_0, %c0_i32_1 : i32, i32, i32, i32
  }
  func.func @transform_1(%arg0: i32, %arg1: i32) -> (i32, i32, i32) {
    %c0_i32 = arith.constant 0 : i32
    %c0_i32_0 = arith.constant 0 : i32
    %c0_i32_1 = arith.constant 0 : i32
    return %arg0, %c0_i32, %c0_i32_0 : i32, i32, i32
  }
  func.func @transform_2(%arg0: i32, %arg1: i32) -> (i32, i32, i32) {
    %c0_i32 = arith.constant 0 : i32
    %c0_i32_0 = arith.constant 0 : i32
    %c0_i32_1 = arith.constant 0 : i32
    return %arg0, %c0_i32, %c0_i32_0 : i32, i32, i32
  }
  func.func @transform_3(%arg0: i32, %arg1: i32) -> (i32, i32, i32, i32) {
    %c8_i32 = arith.constant 8 : i32
    %0 = arith.muli %arg0, %c8_i32 : i32
    %1 = arith.addi %0, %arg1 : i32
    %c0_i32 = arith.constant 0 : i32
    %c0_i32_0 = arith.constant 0 : i32
    %c0_i32_1 = arith.constant 0 : i32
    %c0_i32_2 = arith.constant 0 : i32
    return %1, %c0_i32, %c0_i32_0, %c0_i32_1 : i32, i32, i32, i32
  }
}

</mosaic_0001>

<llo_original>
// kernel: tpu_custom_call.1
$region0: #{tpu_custom_call.1}
  #allocation0 [shape = 'u32[]', space=smem, size = 0x4, offset = 0x4, fixed_abs, tag = 'smem constant byte address 0x4 - core index']
  #allocation1 [shape = 'u32[144,128]{1,0:T(1,128)}', space=vmem, size = 0x12000, scoped, tag = 'internal scratch']
  #allocation2 [shape = 'f32[2,18,18,4]{3,2,1,0:T(8,128)}', space=vmem, size = 0x6c000, scoped, tag = 'scratch operand']
  #allocation3 [shape = 'f32[2,18,18,32]{3,2,1,0:T(8,128)}', space=vmem, size = 0x6c000, scoped, tag = 'scratch operand']
  #allocation4 [shape = 'bf16[512,324]{1,0:T(16,128)(2,1)}', space=vmem, size = 0x60000, scoped, tag = 'scratch operand']
  #allocation5 [shape = 'f32[512,32]{1,0:T(8,128)}', space=vmem, size = 0x40000, scoped, tag = 'scratch operand']
  %s0 = inlined_call_operand.vmem [shape: f32[32,16,16,4], index: 0, kind: input, shape index: {}]
  %s1 = inlined_call_operand.vmem [shape: bf16[2,324,128], index: 1, kind: input, shape index: {}]
  %s2 = inlined_call_operand.vmem [shape: f32[2,1,128], index: 2, kind: input, shape index: {}]
  %s3 = inlined_call_operand.hbm [shape: bf16[32,16,16,32], index: 3, kind: output, shape index: {}]
  %s4 = sld [smem:[#allocation0]]
  $region49: #{tpu_custom_call.1} parent=0
    _
  %s6 = ssub.s32 1, %s4
  %s7 = scalar_select 0, %s6, %s4
  $region1: #{tpu_custom_call.1} parent=0
    #allocation6 [shape = 'u8[262144]{0}', space=vmem, size = 0x40000, scoped, tag = 'output window, operand 0']
    #allocation7 [shape = 's32[2]{0}', space=sflag, size = 0x8, scoped, tag = 'scoped memory for tpu_custom_call.1']
    %8 = vsyncpa [#allocation7], 0
    %s9 = scalar_lea.sflag [#allocation7], 1
    %10 = vsyncpa %s9, 0
    loop: start=0, step=1, limit=18
    $region2: #{tpu_custom_call.1} parent=1 // loop_pre_header
      _
    $region3: #{tpu_custom_call.1} parent=1 // loop_header
      %s12 = sphi 0, %s16
      %p13 = scmp.ge.s32.totalorder %s12, 18
      %s19 = sphi 0, %s31
      %s20 = sphi 0, %s27
      %s21 = sphi 0, %s19
      %s22 = sphi 0, %s20
      %s23 = sphi 0, %s21
      %s24 = sphi 0, %s22
      %s38 = sphi 0, %s40
      %s41 = sphi 0, %s38
      %s42 = sphi 0, %s41
      %s58 = sphi 0, %s42
      %s64 = sphi 0, %s66
      %s67 = sphi 0, %s64
      %s68 = sphi 0, %s67
      %s84 = sphi 0, %s68
      %s90 = sphi 0, %s92
      %s93 = sphi 0, %s90
      %s94 = sphi 0, %s93
      %s110 = sphi 0, %s94
      %s120 = sphi 0, %s122
      %s123 = sphi 0, %s120
      %s124 = sphi 0, %s123
      %s140 = sphi 0, %s124
    $region4: #{tpu_custom_call.1} parent=1 // loop_header_branch
      %15 = sbr.rel (%p13) target = $region8
    $region5: #{tpu_custom_call.1} parent=1 // loop_body
      %s17 = ssub.s32 %s12, 1
      %s18 = ssub.s32 %s12, 2
      %s25 = sadd.s32 1, %s20
      %p26 = scmp.ge.s32.totalorder %s25, 8
      %s27 = scalar_select %p26, 0, %s25
      %s28 = sadd.s32 1, %s19
      %s29 = scalar_select %p26, %s28, %s19
      %p30 = scmp.ge.s32.totalorder %s29, 2
      %s31 = scalar_select %p30, 0, %s29
      %s32 = smul.u32 %s19, 8
      %s33 = sadd.s32 %s32, %s20
      %s34 = smul.u32 %s31, 8
      %s35 = sadd.s32 %s34, %s27
      %s36 = ssub.s32 %s33, %s35
      %p37 = scmp.eq.s32.totalorder %s36, 0
      %s39 = sadd.s32 %s38, 1
      %s40 = scalar_select %p37, %s38, %s39
      %p43 = pneg %p37
      %p44 = scmp.eq.s32.totalorder %s12, 15
      %p45 = por %p43, %p44
      %p46 = scmp.ne.s32.totalorder %s38, %s41
      %p47 = scmp.eq.s32.totalorder %s12, 0
      %p48 = por %p46, %p47
      %p49 = scmp.ne.s32.totalorder %s38, %s41
      %p50 = scmp.eq.s32.totalorder %s17, 15
      %p51 = por %p49, %p50
      %p52 = scmp.ne.s32.totalorder %s41, %s42
      %p53 = scmp.eq.s32.totalorder %s17, 0
      %p54 = por %p52, %p53
      %p55 = scmp.ne.s32.totalorder %s41, %s42
      %p56 = scmp.eq.s32.totalorder %s18, 15
      %p57 = por %p55, %p56
      %p59 = scmp.ne.s32.totalorder %s42, %s58
      %p60 = scmp.eq.s32.totalorder %s18, 0
      %p61 = por %p59, %p60
      %s62 = ssub.s32 %s19, %s31
      %p63 = scmp.eq.s32.totalorder %s62, 0
      %s65 = sadd.s32 %s64, 1
      %s66 = scalar_select %p63, %s64, %s65
      %p69 = pneg %p63
      %p70 = scmp.eq.s32.totalorder %s12, 15
      %p71 = por %p69, %p70
      %p72 = scmp.ne.s32.totalorder %s64, %s67
      %p73 = scmp.eq.s32.totalorder %s12, 0
      %p74 = por %p72, %p73
      %p75 = scmp.ne.s32.totalorder %s64, %s67
      %p76 = scmp.eq.s32.totalorder %s17, 15
      %p77 = por %p75, %p76
      %p78 = scmp.ne.s32.totalorder %s67, %s68
      %p79 = scmp.eq.s32.totalorder %s17, 0
      %p80 = por %p78, %p79
      %p81 = scmp.ne.s32.totalorder %s67, %s68
      %p82 = scmp.eq.s32.totalorder %s18, 15
      %p83 = por %p81, %p82
      %p85 = scmp.ne.s32.totalorder %s68, %s84
      %p86 = scmp.eq.s32.totalorder %s18, 0
      %p87 = por %p85, %p86
      %s88 = ssub.s32 %s19, %s31
      %p89 = scmp.eq.s32.totalorder %s88, 0
      %s91 = sadd.s32 %s90, 1
      %s92 = scalar_select %p89, %s90, %s91
      %p95 = pneg %p89
      %p96 = scmp.eq.s32.totalorder %s12, 15
      %p97 = por %p95, %p96
      %p98 = scmp.ne.s32.totalorder %s90, %s93
      %p99 = scmp.eq.s32.totalorder %s12, 0
      %p100 = por %p98, %p99
      %p101 = scmp.ne.s32.totalorder %s90, %s93
      %p102 = scmp.eq.s32.totalorder %s17, 15
      %p103 = por %p101, %p102
      %p104 = scmp.ne.s32.totalorder %s93, %s94
      %p105 = scmp.eq.s32.totalorder %s17, 0
      %p106 = por %p104, %p105
      %p107 = scmp.ne.s32.totalorder %s93, %s94
      %p108 = scmp.eq.s32.totalorder %s18, 15
      %p109 = por %p107, %p108
      %p111 = scmp.ne.s32.totalorder %s94, %s110
      %p112 = scmp.eq.s32.totalorder %s18, 0
      %p113 = por %p111, %p112
      %s114 = smul.u32 %s19, 8
      %s115 = sadd.s32 %s114, %s20
      %s116 = smul.u32 %s31, 8
      %s117 = sadd.s32 %s116, %s27
      %s118 = ssub.s32 %s115, %s117
      %p119 = scmp.eq.s32.totalorder %s118, 0
      %s121 = sadd.s32 %s120, 1
      %s122 = scalar_select %p119, %s120, %s121
      %p125 = pneg %p119
      %p126 = scmp.eq.s32.totalorder %s12, 15
      %p127 = por %p125, %p126
      %p128 = scmp.ne.s32.totalorder %s120, %s123
      %p129 = scmp.eq.s32.totalorder %s12, 0
      %p130 = por %p128, %p129
      %p131 = scmp.ne.s32.totalorder %s120, %s123
      %p132 = scmp.eq.s32.totalorder %s17, 15
      %p133 = por %p131, %p132
      %p134 = scmp.ne.s32.totalorder %s123, %s124
      %p135 = scmp.eq.s32.totalorder %s17, 0
      %p136 = por %p134, %p135
      %p137 = scmp.ne.s32.totalorder %s123, %s124
      %p138 = scmp.eq.s32.totalorder %s18, 15
      %p139 = por %p137, %p138
      %p141 = scmp.ne.s32.totalorder %s124, %s140
      %p142 = scmp.eq.s32.totalorder %s18, 0
      %p143 = por %p141, %p142
      %p144 = scmp.le.s32.totalorder 1, %s12
      %p145 = scmp.lt.s32.totalorder %s12, 17
      %p146 = pnand %p144, %p145
      %p147 = pneg %p146
      // Predicated region
      $region9: #{tpu_custom_call.1} parent=5 // pred_check
        _
      $region10: #{tpu_custom_call.1} parent=5 // pred_check_branch
        %149 = sbr.rel (%p146) target = $region12
      $region11: #{tpu_custom_call.1} parent=5 // pred_region
        %s150 = ssub.s32 %s12, 1
      $region12: #{tpu_custom_call.1} parent=5 // pred_fallthru
        _
      %p151 = scmp.lt.s32.totalorder %s12, 16
      // Predicated region
      $region13: #{tpu_custom_call.1} parent=5 // pred_check
        %p152 = pneg %p151
      $region14: #{tpu_custom_call.1} parent=5 // pred_check_branch
        %154 = sbr.rel (%p152) target = $region16
      $region15: #{tpu_custom_call.1} parent=5 // pred_region
        // Predicated region
        $region17: #{tpu_custom_call.1} parent=15 // pred_check
          %p155 = pneg %p48
        $region18: #{tpu_custom_call.1} parent=15 // pred_check_branch
          %157 = sbr.rel (%p155) target = $region20
        $region19: #{tpu_custom_call.1} parent=15 // pred_region
          %s158 = smul.u32 %s19, 8
          %s159 = sadd.s32 %s158, %s20
          %s160 = smul.u32 2, %s159
          %p161 = scmp.lt.s32.totalorder %s160, 31
          %s162 = scalar_select %p161, %s160, 31
          %s163 = smul.addr %s162, 32
          %s164 = smul.addr %s163, 8
          %s165 = scalar_lea.vmem %s0, %s164
          %s166 = smul.u32 %s19, 8
          %s167 = sadd.s32 %s166, %s20
          %s168 = smul.u32 2, %s167
        $region20: #{tpu_custom_call.1} parent=15 // pred_fallthru
          _
        // Predicated region
        $region21: #{tpu_custom_call.1} parent=15 // pred_check
          %p169 = pneg %p74
        $region22: #{tpu_custom_call.1} parent=15 // pred_check_branch
          %171 = sbr.rel (%p169) target = $region24
        $region23: #{tpu_custom_call.1} parent=15 // pred_region
          %p172 = scmp.lt.s32.totalorder %s19, 1
          %s173 = scalar_select %p172, %s19, 1
          %s174 = smul.addr %s173, 41
          %s175 = smul.addr %s174, 4
          %s176 = scalar_lea.vmem %s1, %s175
        $region24: #{tpu_custom_call.1} parent=15 // pred_fallthru
          _
        // Predicated region
        $region25: #{tpu_custom_call.1} parent=15 // pred_check
          %p177 = pneg %p100
        $region26: #{tpu_custom_call.1} parent=15 // pred_check_branch
          %179 = sbr.rel (%p177) target = $region28
        $region27: #{tpu_custom_call.1} parent=15 // pred_region
          %p180 = scmp.lt.s32.totalorder %s19, 1
          %s181 = scalar_select %p180, %s19, 1
          %s182 = scalar_lea.vmem %s2, %s181
        $region28: #{tpu_custom_call.1} parent=15 // pred_fallthru
          _
      $region16: #{tpu_custom_call.1} parent=5 // pred_fallthru
        _
      %p183 = scmp.le.s32.totalorder 1, %s12
      %p184 = scmp.lt.s32.totalorder %s12, 17
      %p185 = pnand %p183, %p184
      %p186 = pneg %p185
      // Predicated region
      $region29: #{tpu_custom_call.1} parent=5 // pred_check
        _
      $region30: #{tpu_custom_call.1} parent=5 // pred_check_branch
        %188 = sbr.rel (%p185) target = $region32
      $region31: #{tpu_custom_call.1} parent=5 // pred_region
        %s189 = ssub.s32 %s12, 1
        %s190 = smul.u32 %s21, 8
        %s191 = sadd.s32 %s190, %s22
        %s192 = smul.u32 2, %s191
        %p193 = scmp.lt.s32.totalorder %s192, 31
        %s194 = scalar_select %p193, %s192, 31
        %s195 = smul.addr %s194, 32
        %s196 = smul.addr %s195, 8
        %s197 = scalar_lea.vmem %s0, %s196
        %p198 = pneg %p54
        %p199 = pneg %p51
        %p200 = scmp.lt.s32.totalorder %s21, 1
        %s201 = scalar_select %p200, %s21, 1
        %s202 = smul.addr %s201, 41
        %s203 = smul.addr %s202, 4
        %s204 = scalar_lea.vmem %s1, %s203
        %p205 = pneg %p80
        %p206 = pneg %p77
        %p207 = scmp.lt.s32.totalorder %s21, 1
        %s208 = scalar_select %p207, %s21, 1
        %s209 = scalar_lea.vmem %s2, %s208
        %p210 = pneg %p106
        %p211 = pneg %p103
        %p212 = pneg %p136
        %p213 = pneg %p133
        %s214 = sand.u32 %s123, 1
        %s215 = scalar_lea.sflag [#allocation7], %s214
        %s216 = sand.u32 %s123, 1
        %s217 = smul.addr %s216, 256
        %s218 = scalar_lea.vmem [#allocation6], %s217
        %s219 = smul.u32 %s21, 8
        %s220 = sadd.s32 %s219, %s22
        %s221 = smul.u32 2, %s220
        %p222 = scmp.lt.s32.totalorder %s221, 31
        %s223 = scalar_select %p222, %s221, 31
        %s224 = smul.addr %s223, 32
        %s225 = smul.addr %s224, 8
        %s226 = scalar_lea.vmem %s0, %s225
        %s227 = smul.u32 %s21, 8
        %s228 = sadd.s32 %s227, %s22
        %s229 = smul.u32 2, %s228
        %p230 = scmp.lt.s32.totalorder %s21, 1
        %s231 = scalar_select %p230, %s21, 1
        %s232 = smul.addr %s231, 41
        %s233 = smul.addr %s232, 4
        %s234 = scalar_lea.vmem %s1, %s233
        %p235 = scmp.lt.s32.totalorder %s21, 1
        %s236 = scalar_select %p235, %s21, 1
        %s237 = scalar_lea.vmem %s2, %s236
        %s238 = smul.u32 %s21, 8
        %s239 = sadd.s32 %s238, %s22
        %s240 = smul.u32 2, %s239
        %p242 = scmp.eq.s32.totalorder %s22, 0
        // Predicated region
        $region33: #{tpu_custom_call.1} parent=31 // pred_check
          %p243 = pneg %p242
        $region34: #{tpu_custom_call.1} parent=31 // pred_check_branch
          %245 = sbr.rel (%p243) target = $region36
        $region35: #{tpu_custom_call.1} parent=31 // pred_region
          %vm246 = vcmask 31744
          %247 = vst.msk [vmem:[#allocation2] sm:$0xff] %vm246, 0.0
          %248 = vst.msk [vmem:[#allocation2 + $0x8] sm:$0xff] %vm246, 0.0
          %vm249 = vcmask 25600
          %250 = vst.msk [vmem:[#allocation2 + $0x10] sm:$0x3] %vm249, 0.0
          %251 = vst.msk [vmem:[#allocation2 + $0x18] sm:$0xff] %vm246, 0.0
          %252 = vst.msk [vmem:[#allocation2 + $0x20] sm:$0xff] %vm246, 0.0
          %253 = vst.msk [vmem:[#allocation2 + $0x28] sm:$0x3] %vm249, 0.0
          %254 = vst.msk [vmem:[#allocation2 + $0x30] sm:$0xff] %vm246, 0.0
          %255 = vst.msk [vmem:[#allocation2 + $0x38] sm:$0xff] %vm246, 0.0
          %256 = vst.msk [vmem:[#allocation2 + $0x40] sm:$0x3] %vm249, 0.0
          %257 = vst.msk [vmem:[#allocation2 + $0x48] sm:$0xff] %vm246, 0.0
          %258 = vst.msk [vmem:[#allocation2 + $0x50] sm:$0xff] %vm246, 0.0
          %259 = vst.msk [vmem:[#allocation2 + $0x58] sm:$0x3] %vm249, 0.0
          %260 = vst.msk [vmem:[#allocation2 + $0x60] sm:$0xff] %vm246, 0.0
          %261 = vst.msk [vmem:[#allocation2 + $0x68] sm:$0xff] %vm246, 0.0
          %262 = vst.msk [vmem:[#allocation2 + $0x70] sm:$0x3] %vm249, 0.0
          %263 = vst.msk [vmem:[#allocation2 + $0x78] sm:$0xff] %vm246, 0.0
          %264 = vst.msk [vmem:[#allocation2 + $0x80] sm:$0xff] %vm246, 0.0
          %265 = vst.msk [vmem:[#allocation2 + $0x88] sm:$0x3] %vm249, 0.0
          %266 = vst.msk [vmem:[#allocation2 + $0x90] sm:$0xff] %vm246, 0.0
          %267 = vst.msk [vmem:[#allocation2 + $0x98] sm:$0xff] %vm246, 0.0
          %268 = vst.msk [vmem:[#allocation2 + $0xa0] sm:$0x3] %vm249, 0.0
          %269 = vst.msk [vmem:[#allocation2 + $0xa8] sm:$0xff] %vm246, 0.0
          %270 = vst.msk [vmem:[#allocation2 + $0xb0] sm:$0xff] %vm246, 0.0
          %271 = vst.msk [vmem:[#allocation2 + $0xb8] sm:$0x3] %vm249, 0.0
          %272 = vst.msk [vmem:[#allocation2 + $0xc0] sm:$0xff] %vm246, 0.0
          %273 = vst.msk [vmem:[#allocation2 + $0xc8] sm:$0xff] %vm246, 0.0
          %274 = vst.msk [vmem:[#allocation2 + $0xd0] sm:$0x3] %vm249, 0.0
          %275 = vst.msk [vmem:[#allocation2 + $0xd8] sm:$0xff] %vm246, 0.0
          %276 = vst.msk [vmem:[#allocation2 + $0xe0] sm:$0xff] %vm246, 0.0
          %277 = vst.msk [vmem:[#allocation2 + $0xe8] sm:$0x3] %vm249, 0.0
          %278 = vst.msk [vmem:[#allocation2 + $0xf0] sm:$0xff] %vm246, 0.0
          %279 = vst.msk [vmem:[#allocation2 + $0xf8] sm:$0xff] %vm246, 0.0
          %280 = vst.msk [vmem:[#allocation2 + $0x100] sm:$0x3] %vm249, 0.0
          %281 = vst.msk [vmem:[#allocation2 + $0x108] sm:$0xff] %vm246, 0.0
          %282 = vst.msk [vmem:[#allocation2 + $0x110] sm:$0xff] %vm246, 0.0
          %283 = vst.msk [vmem:[#allocation2 + $0x118] sm:$0x3] %vm249, 0.0
          %284 = vst.msk [vmem:[#allocation2 + $0x120] sm:$0xff] %vm246, 0.0
          %285 = vst.msk [vmem:[#allocation2 + $0x128] sm:$0xff] %vm246, 0.0
          %286 = vst.msk [vmem:[#allocation2 + $0x130] sm:$0x3] %vm249, 0.0
          %287 = vst.msk [vmem:[#allocation2 + $0x138] sm:$0xff] %vm246, 0.0
          %288 = vst.msk [vmem:[#allocation2 + $0x140] sm:$0xff] %vm246, 0.0
          %289 = vst.msk [vmem:[#allocation2 + $0x148] sm:$0x3] %vm249, 0.0
          %290 = vst.msk [vmem:[#allocation2 + $0x150] sm:$0xff] %vm246, 0.0
          %291 = vst.msk [vmem:[#allocation2 + $0x158] sm:$0xff] %vm246, 0.0
          %292 = vst.msk [vmem:[#allocation2 + $0x160] sm:$0x3] %vm249, 0.0
          %293 = vst.msk [vmem:[#allocation2 + $0x168] sm:$0xff] %vm246, 0.0
          %294 = vst.msk [vmem:[#allocation2 + $0x170] sm:$0xff] %vm246, 0.0
          %295 = vst.msk [vmem:[#allocation2 + $0x178] sm:$0x3] %vm249, 0.0
          %296 = vst.msk [vmem:[#allocation2 + $0x180] sm:$0xff] %vm246, 0.0
          %297 = vst.msk [vmem:[#allocation2 + $0x188] sm:$0xff] %vm246, 0.0
          %298 = vst.msk [vmem:[#allocation2 + $0x190] sm:$0x3] %vm249, 0.0
          %299 = vst.msk [vmem:[#allocation2 + $0x198] sm:$0xff] %vm246, 0.0
          %300 = vst.msk [vmem:[#allocation2 + $0x1a0] sm:$0xff] %vm246, 0.0
          %301 = vst.msk [vmem:[#allocation2 + $0x1a8] sm:$0x3] %vm249, 0.0
          %302 = vst.msk [vmem:[#allocation2 + $0x1b0] sm:$0xff] %vm246, 0.0
          %303 = vst.msk [vmem:[#allocation2 + $0x1b8] sm:$0xff] %vm246, 0.0
          %304 = vst.msk [vmem:[#allocation2 + $0x1c0] sm:$0x3] %vm249, 0.0
          %305 = vst.msk [vmem:[#allocation2 + $0x1c8] sm:$0xff] %vm246, 0.0
          %306 = vst.msk [vmem:[#allocation2 + $0x1d0] sm:$0xff] %vm246, 0.0
          %307 = vst.msk [vmem:[#allocation2 + $0x1d8] sm:$0x3] %vm249, 0.0
          %308 = vst.msk [vmem:[#allocation2 + $0x1e0] sm:$0xff] %vm246, 0.0
          %309 = vst.msk [vmem:[#allocation2 + $0x1e8] sm:$0xff] %vm246, 0.0
          %310 = vst.msk [vmem:[#allocation2 + $0x1f0] sm:$0x3] %vm249, 0.0
          %311 = vst.msk [vmem:[#allocation2 + $0x1f8] sm:$0xff] %vm246, 0.0
          %312 = vst.msk [vmem:[#allocation2 + $0x200] sm:$0xff] %vm246, 0.0
          %313 = vst.msk [vmem:[#allocation2 + $0x208] sm:$0x3] %vm249, 0.0
          %314 = vst.msk [vmem:[#allocation2 + $0x210] sm:$0xff] %vm246, 0.0
          %315 = vst.msk [vmem:[#allocation2 + $0x218] sm:$0xff] %vm246, 0.0
          %316 = vst.msk [vmem:[#allocation2 + $0x220] sm:$0x3] %vm249, 0.0
          %317 = vst.msk [vmem:[#allocation2 + $0x228] sm:$0xff] %vm246, 0.0
          %318 = vst.msk [vmem:[#allocation2 + $0x230] sm:$0xff] %vm246, 0.0
          %319 = vst.msk [vmem:[#allocation2 + $0x238] sm:$0x3] %vm249, 0.0
          %320 = vst.msk [vmem:[#allocation2 + $0x240] sm:$0xff] %vm246, 0.0
          %321 = vst.msk [vmem:[#allocation2 + $0x248] sm:$0xff] %vm246, 0.0
          %322 = vst.msk [vmem:[#allocation2 + $0x250] sm:$0x3] %vm249, 0.0
          %323 = vst.msk [vmem:[#allocation2 + $0x258] sm:$0xff] %vm246, 0.0
          %324 = vst.msk [vmem:[#allocation2 + $0x260] sm:$0xff] %vm246, 0.0
          %325 = vst.msk [vmem:[#allocation2 + $0x268] sm:$0x3] %vm249, 0.0
          %326 = vst.msk [vmem:[#allocation2 + $0x270] sm:$0xff] %vm246, 0.0
          %327 = vst.msk [vmem:[#allocation2 + $0x278] sm:$0xff] %vm246, 0.0
          %328 = vst.msk [vmem:[#allocation2 + $0x280] sm:$0x3] %vm249, 0.0
          %329 = vst.msk [vmem:[#allocation2 + $0x288] sm:$0xff] %vm246, 0.0
          %330 = vst.msk [vmem:[#allocation2 + $0x290] sm:$0xff] %vm246, 0.0
          %331 = vst.msk [vmem:[#allocation2 + $0x298] sm:$0x3] %vm249, 0.0
          %332 = vst.msk [vmem:[#allocation2 + $0x2a0] sm:$0xff] %vm246, 0.0
          %333 = vst.msk [vmem:[#allocation2 + $0x2a8] sm:$0xff] %vm246, 0.0
          %334 = vst.msk [vmem:[#allocation2 + $0x2b0] sm:$0x3] %vm249, 0.0
          %335 = vst.msk [vmem:[#allocation2 + $0x2b8] sm:$0xff] %vm246, 0.0
          %336 = vst.msk [vmem:[#allocation2 + $0x2c0] sm:$0xff] %vm246, 0.0
          %337 = vst.msk [vmem:[#allocation2 + $0x2c8] sm:$0x3] %vm249, 0.0
          %338 = vst.msk [vmem:[#allocation2 + $0x2d0] sm:$0xff] %vm246, 0.0
          %339 = vst.msk [vmem:[#allocation2 + $0x2d8] sm:$0xff] %vm246, 0.0
          %340 = vst.msk [vmem:[#allocation2 + $0x2e0] sm:$0x3] %vm249, 0.0
          %341 = vst.msk [vmem:[#allocation2 + $0x2e8] sm:$0xff] %vm246, 0.0
          %342 = vst.msk [vmem:[#allocation2 + $0x2f0] sm:$0xff] %vm246, 0.0
          %343 = vst.msk [vmem:[#allocation2 + $0x2f8] sm:$0x3] %vm249, 0.0
          %344 = vst.msk [vmem:[#allocation2 + $0x300] sm:$0xff] %vm246, 0.0
          %345 = vst.msk [vmem:[#allocation2 + $0x308] sm:$0xff] %vm246, 0.0
          %346 = vst.msk [vmem:[#allocation2 + $0x310] sm:$0x3] %vm249, 0.0
          %347 = vst.msk [vmem:[#allocation2 + $0x318] sm:$0xff] %vm246, 0.0
          %348 = vst.msk [vmem:[#allocation2 + $0x320] sm:$0xff] %vm246, 0.0
          %349 = vst.msk [vmem:[#allocation2 + $0x328] sm:$0x3] %vm249, 0.0
          %350 = vst.msk [vmem:[#allocation2 + $0x330] sm:$0xff] %vm246, 0.0
          %351 = vst.msk [vmem:[#allocation2 + $0x338] sm:$0xff] %vm246, 0.0
          %352 = vst.msk [vmem:[#allocation2 + $0x340] sm:$0x3] %vm249, 0.0
          %353 = vst.msk [vmem:[#allocation2 + $0x348] sm:$0xff] %vm246, 0.0
          %354 = vst.msk [vmem:[#allocation2 + $0x350] sm:$0xff] %vm246, 0.0
          %355 = vst.msk [vmem:[#allocation2 + $0x358] sm:$0x3] %vm249, 0.0
          %vm356 = vcmask 261120
          %357 = vst.msk [vmem:[#allocation3] sm:$0xff] %vm356, 0.0
          %358 = vst.msk [vmem:[#allocation3 + $0x8] sm:$0xff] %vm356, 0.0
          %vm359 = vcmask 254976
          %360 = vst.msk [vmem:[#allocation3 + $0x10] sm:$0x3] %vm359, 0.0
          %361 = vst.msk [vmem:[#allocation3 + $0x18] sm:$0xff] %vm356, 0.0
          %362 = vst.msk [vmem:[#allocation3 + $0x20] sm:$0xff] %vm356, 0.0
          %363 = vst.msk [vmem:[#allocation3 + $0x28] sm:$0x3] %vm359, 0.0
          %364 = vst.msk [vmem:[#allocation3 + $0x30] sm:$0xff] %vm356, 0.0
          %365 = vst.msk [vmem:[#allocation3 + $0x38] sm:$0xff] %vm356, 0.0
          %366 = vst.msk [vmem:[#allocation3 + $0x40] sm:$0x3] %vm359, 0.0
          %367 = vst.msk [vmem:[#allocation3 + $0x48] sm:$0xff] %vm356, 0.0
          %368 = vst.msk [vmem:[#allocation3 + $0x50] sm:$0xff] %vm356, 0.0
          %369 = vst.msk [vmem:[#allocation3 + $0x58] sm:$0x3] %vm359, 0.0
          %370 = vst.msk [vmem:[#allocation3 + $0x60] sm:$0xff] %vm356, 0.0
          %371 = vst.msk [vmem:[#allocation3 + $0x68] sm:$0xff] %vm356, 0.0
          %372 = vst.msk [vmem:[#allocation3 + $0x70] sm:$0x3] %vm359, 0.0
          %373 = vst.msk [vmem:[#allocation3 + $0x78] sm:$0xff] %vm356, 0.0
          %374 = vst.msk [vmem:[#allocation3 + $0x80] sm:$0xff] %vm356, 0.0
          %375 = vst.msk [vmem:[#allocation3 + $0x88] sm:$0x3] %vm359, 0.0
          %376 = vst.msk [vmem:[#allocation3 + $0x90] sm:$0xff] %vm356, 0.0
          %377 = vst.msk [vmem:[#allocation3 + $0x98] sm:$0xff] %vm356, 0.0
          %378 = vst.msk [vmem:[#allocation3 + $0xa0] sm:$0x3] %vm359, 0.0
          %379 = vst.msk [vmem:[#allocation3 + $0xa8] sm:$0xff] %vm356, 0.0
          %380 = vst.msk [vmem:[#allocation3 + $0xb0] sm:$0xff] %vm356, 0.0
          %381 = vst.msk [vmem:[#allocation3 + $0xb8] sm:$0x3] %vm359, 0.0
          %382 = vst.msk [vmem:[#allocation3 + $0xc0] sm:$0xff] %vm356, 0.0
          %383 = vst.msk [vmem:[#allocation3 + $0xc8] sm:$0xff] %vm356, 0.0
          %384 = vst.msk [vmem:[#allocation3 + $0xd0] sm:$0x3] %vm359, 0.0
          %385 = vst.msk [vmem:[#allocation3 + $0xd8] sm:$0xff] %vm356, 0.0
          %386 = vst.msk [vmem:[#allocation3 + $0xe0] sm:$0xff] %vm356, 0.0
          %387 = vst.msk [vmem:[#allocation3 + $0xe8] sm:$0x3] %vm359, 0.0
          %388 = vst.msk [vmem:[#allocation3 + $0xf0] sm:$0xff] %vm356, 0.0
          %389 = vst.msk [vmem:[#allocation3 + $0xf8] sm:$0xff] %vm356, 0.0
          %390 = vst.msk [vmem:[#allocation3 + $0x100] sm:$0x3] %vm359, 0.0
          %391 = vst.msk [vmem:[#allocation3 + $0x108] sm:$0xff] %vm356, 0.0
          %392 = vst.msk [vmem:[#allocation3 + $0x110] sm:$0xff] %vm356, 0.0
          %393 = vst.msk [vmem:[#allocation3 + $0x118] sm:$0x3] %vm359, 0.0
          %394 = vst.msk [vmem:[#allocation3 + $0x120] sm:$0xff] %vm356, 0.0
          %395 = vst.msk [vmem:[#allocation3 + $0x128] sm:$0xff] %vm356, 0.0
          %396 = vst.msk [vmem:[#allocation3 + $0x130] sm:$0x3] %vm359, 0.0
          %397 = vst.msk [vmem:[#allocation3 + $0x138] sm:$0xff] %vm356, 0.0
          %398 = vst.msk [vmem:[#allocation3 + $0x140] sm:$0xff] %vm356, 0.0
          %399 = vst.msk [vmem:[#allocation3 + $0x148] sm:$0x3] %vm359, 0.0
          %400 = vst.msk [vmem:[#allocation3 + $0x150] sm:$0xff] %vm356, 0.0
          %401 = vst.msk [vmem:[#allocation3 + $0x158] sm:$0xff] %vm356, 0.0
          %402 = vst.msk [vmem:[#allocation3 + $0x160] sm:$0x3] %vm359, 0.0
          %403 = vst.msk [vmem:[#allocation3 + $0x168] sm:$0xff] %vm356, 0.0
          %404 = vst.msk [vmem:[#allocation3 + $0x170] sm:$0xff] %vm356, 0.0
          %405 = vst.msk [vmem:[#allocation3 + $0x178] sm:$0x3] %vm359, 0.0
          %406 = vst.msk [vmem:[#allocation3 + $0x180] sm:$0xff] %vm356, 0.0
          %407 = vst.msk [vmem:[#allocation3 + $0x188] sm:$0xff] %vm356, 0.0
          %408 = vst.msk [vmem:[#allocation3 + $0x190] sm:$0x3] %vm359, 0.0
          %409 = vst.msk [vmem:[#allocation3 + $0x198] sm:$0xff] %vm356, 0.0
          %410 = vst.msk [vmem:[#allocation3 + $0x1a0] sm:$0xff] %vm356, 0.0
          %411 = vst.msk [vmem:[#allocation3 + $0x1a8] sm:$0x3] %vm359, 0.0
          %412 = vst.msk [vmem:[#allocation3 + $0x1b0] sm:$0xff] %vm356, 0.0
          %413 = vst.msk [vmem:[#allocation3 + $0x1b8] sm:$0xff] %vm356, 0.0
          %414 = vst.msk [vmem:[#allocation3 + $0x1c0] sm:$0x3] %vm359, 0.0
          %415 = vst.msk [vmem:[#allocation3 + $0x1c8] sm:$0xff] %vm356, 0.0
          %416 = vst.msk [vmem:[#allocation3 + $0x1d0] sm:$0xff] %vm356, 0.0
          %417 = vst.msk [vmem:[#allocation3 + $0x1d8] sm:$0x3] %vm359, 0.0
          %418 = vst.msk [vmem:[#allocation3 + $0x1e0] sm:$0xff] %vm356, 0.0
          %419 = vst.msk [vmem:[#allocation3 + $0x1e8] sm:$0xff] %vm356, 0.0
          %420 = vst.msk [vmem:[#allocation3 + $0x1f0] sm:$0x3] %vm359, 0.0
          %421 = vst.msk [vmem:[#allocation3 + $0x1f8] sm:$0xff] %vm356, 0.0
          %422 = vst.msk [vmem:[#allocation3 + $0x200] sm:$0xff] %vm356, 0.0
          %423 = vst.msk [vmem:[#allocation3 + $0x208] sm:$0x3] %vm359, 0.0
          %424 = vst.msk [vmem:[#allocation3 + $0x210] sm:$0xff] %vm356, 0.0
          %425 = vst.msk [vmem:[#allocation3 + $0x218] sm:$0xff] %vm356, 0.0
          %426 = vst.msk [vmem:[#allocation3 + $0x220] sm:$0x3] %vm359, 0.0
          %427 = vst.msk [vmem:[#allocation3 + $0x228] sm:$0xff] %vm356, 0.0
          %428 = vst.msk [vmem:[#allocation3 + $0x230] sm:$0xff] %vm356, 0.0
          %429 = vst.msk [vmem:[#allocation3 + $0x238] sm:$0x3] %vm359, 0.0
          %430 = vst.msk [vmem:[#allocation3 + $0x240] sm:$0xff] %vm356, 0.0
          %431 = vst.msk [vmem:[#allocation3 + $0x248] sm:$0xff] %vm356, 0.0
          %432 = vst.msk [vmem:[#allocation3 + $0x250] sm:$0x3] %vm359, 0.0
          %433 = vst.msk [vmem:[#allocation3 + $0x258] sm:$0xff] %vm356, 0.0
          %434 = vst.msk [vmem:[#allocation3 + $0x260] sm:$0xff] %vm356, 0.0
          %435 = vst.msk [vmem:[#allocation3 + $0x268] sm:$0x3] %vm359, 0.0
          %436 = vst.msk [vmem:[#allocation3 + $0x270] sm:$0xff] %vm356, 0.0
          %437 = vst.msk [vmem:[#allocation3 + $0x278] sm:$0xff] %vm356, 0.0
          %438 = vst.msk [vmem:[#allocation3 + $0x280] sm:$0x3] %vm359, 0.0
          %439 = vst.msk [vmem:[#allocation3 + $0x288] sm:$0xff] %vm356, 0.0
          %440 = vst.msk [vmem:[#allocation3 + $0x290] sm:$0xff] %vm356, 0.0
          %441 = vst.msk [vmem:[#allocation3 + $0x298] sm:$0x3] %vm359, 0.0
          %442 = vst.msk [vmem:[#allocation3 + $0x2a0] sm:$0xff] %vm356, 0.0
          %443 = vst.msk [vmem:[#allocation3 + $0x2a8] sm:$0xff] %vm356, 0.0
          %444 = vst.msk [vmem:[#allocation3 + $0x2b0] sm:$0x3] %vm359, 0.0
          %445 = vst.msk [vmem:[#allocation3 + $0x2b8] sm:$0xff] %vm356, 0.0
          %446 = vst.msk [vmem:[#allocation3 + $0x2c0] sm:$0xff] %vm356, 0.0
          %447 = vst.msk [vmem:[#allocation3 + $0x2c8] sm:$0x3] %vm359, 0.0
          %448 = vst.msk [vmem:[#allocation3 + $0x2d0] sm:$0xff] %vm356, 0.0
          %449 = vst.msk [vmem:[#allocation3 + $0x2d8] sm:$0xff] %vm356, 0.0
          %450 = vst.msk [vmem:[#allocation3 + $0x2e0] sm:$0x3] %vm359, 0.0
          %451 = vst.msk [vmem:[#allocation3 + $0x2e8] sm:$0xff] %vm356, 0.0
          %452 = vst.msk [vmem:[#allocation3 + $0x2f0] sm:$0xff] %vm356, 0.0
          %453 = vst.msk [vmem:[#allocation3 + $0x2f8] sm:$0x3] %vm359, 0.0
          %454 = vst.msk [vmem:[#allocation3 + $0x300] sm:$0xff] %vm356, 0.0
          %455 = vst.msk [vmem:[#allocation3 + $0x308] sm:$0xff] %vm356, 0.0
          %456 = vst.msk [vmem:[#allocation3 + $0x310] sm:$0x3] %vm359, 0.0
          %457 = vst.msk [vmem:[#allocation3 + $0x318] sm:$0xff] %vm356, 0.0
          %458 = vst.msk [vmem:[#allocation3 + $0x320] sm:$0xff] %vm356, 0.0
          %459 = vst.msk [vmem:[#allocation3 + $0x328] sm:$0x3] %vm359, 0.0
          %460 = vst.msk [vmem:[#allocation3 + $0x330] sm:$0xff] %vm356, 0.0
          %461 = vst.msk [vmem:[#allocation3 + $0x338] sm:$0xff] %vm356, 0.0
          %462 = vst.msk [vmem:[#allocation3 + $0x340] sm:$0x3] %vm359, 0.0
          %463 = vst.msk [vmem:[#allocation3 + $0x348] sm:$0xff] %vm356, 0.0
          %464 = vst.msk [vmem:[#allocation3 + $0x350] sm:$0xff] %vm356, 0.0
          %465 = vst.msk [vmem:[#allocation3 + $0x358] sm:$0x3] %vm359, 0.0
          %466 = vst.msk [vmem:[#allocation5] sm:$0xff] %vm356, 0.0
          %467 = vst.msk [vmem:[#allocation5 + $0x8] sm:$0xff] %vm356, 0.0
          %468 = vst.msk [vmem:[#allocation5 + $0x10] sm:$0xff] %vm356, 0.0
          %469 = vst.msk [vmem:[#allocation5 + $0x18] sm:$0xff] %vm356, 0.0
          %470 = vst.msk [vmem:[#allocation5 + $0x20] sm:$0xff] %vm356, 0.0
          %471 = vst.msk [vmem:[#allocation5 + $0x28] sm:$0xff] %vm356, 0.0
          %472 = vst.msk [vmem:[#allocation5 + $0x30] sm:$0xff] %vm356, 0.0
          %473 = vst.msk [vmem:[#allocation5 + $0x38] sm:$0xff] %vm356, 0.0
          %474 = vst.msk [vmem:[#allocation5 + $0x40] sm:$0xff] %vm356, 0.0
          %475 = vst.msk [vmem:[#allocation5 + $0x48] sm:$0xff] %vm356, 0.0
          %476 = vst.msk [vmem:[#allocation5 + $0x50] sm:$0xff] %vm356, 0.0
          %477 = vst.msk [vmem:[#allocation5 + $0x58] sm:$0xff] %vm356, 0.0
          %478 = vst.msk [vmem:[#allocation5 + $0x60] sm:$0xff] %vm356, 0.0
          %479 = vst.msk [vmem:[#allocation5 + $0x68] sm:$0xff] %vm356, 0.0
          %480 = vst.msk [vmem:[#allocation5 + $0x70] sm:$0xff] %vm356, 0.0
          %481 = vst.msk [vmem:[#allocation5 + $0x78] sm:$0xff] %vm356, 0.0
          %482 = vst.msk [vmem:[#allocation5 + $0x80] sm:$0xff] %vm356, 0.0
          %483 = vst.msk [vmem:[#allocation5 + $0x88] sm:$0xff] %vm356, 0.0
          %484 = vst.msk [vmem:[#allocation5 + $0x90] sm:$0xff] %vm356, 0.0
          %485 = vst.msk [vmem:[#allocation5 + $0x98] sm:$0xff] %vm356, 0.0
          %486 = vst.msk [vmem:[#allocation5 + $0xa0] sm:$0xff] %vm356, 0.0
          %487 = vst.msk [vmem:[#allocation5 + $0xa8] sm:$0xff] %vm356, 0.0
          %488 = vst.msk [vmem:[#allocation5 + $0xb0] sm:$0xff] %vm356, 0.0
          %489 = vst.msk [vmem:[#allocation5 + $0xb8] sm:$0xff] %vm356, 0.0
          %490 = vst.msk [vmem:[#allocation5 + $0xc0] sm:$0xff] %vm356, 0.0
          %491 = vst.msk [vmem:[#allocation5 + $0xc8] sm:$0xff] %vm356, 0.0
          %492 = vst.msk [vmem:[#allocation5 + $0xd0] sm:$0xff] %vm356, 0.0
          %493 = vst.msk [vmem:[#allocation5 + $0xd8] sm:$0xff] %vm356, 0.0
          %494 = vst.msk [vmem:[#allocation5 + $0xe0] sm:$0xff] %vm356, 0.0
          %495 = vst.msk [vmem:[#allocation5 + $0xe8] sm:$0xff] %vm356, 0.0
          %496 = vst.msk [vmem:[#allocation5 + $0xf0] sm:$0xff] %vm356, 0.0
          %497 = vst.msk [vmem:[#allocation5 + $0xf8] sm:$0xff] %vm356, 0.0
          %498 = vst.msk [vmem:[#allocation5 + $0x100] sm:$0xff] %vm356, 0.0
          %499 = vst.msk [vmem:[#allocation5 + $0x108] sm:$0xff] %vm356, 0.0
          %500 = vst.msk [vmem:[#allocation5 + $0x110] sm:$0xff] %vm356, 0.0
          %501 = vst.msk [vmem:[#allocation5 + $0x118] sm:$0xff] %vm356, 0.0
          %502 = vst.msk [vmem:[#allocation5 + $0x120] sm:$0xff] %vm356, 0.0
          %503 = vst.msk [vmem:[#allocation5 + $0x128] sm:$0xff] %vm356, 0.0
          %504 = vst.msk [vmem:[#allocation5 + $0x130] sm:$0xff] %vm356, 0.0
          %505 = vst.msk [vmem:[#allocation5 + $0x138] sm:$0xff] %vm356, 0.0
          %506 = vst.msk [vmem:[#allocation5 + $0x140] sm:$0xff] %vm356, 0.0
          %507 = vst.msk [vmem:[#allocation5 + $0x148] sm:$0xff] %vm356, 0.0
          %508 = vst.msk [vmem:[#allocation5 + $0x150] sm:$0xff] %vm356, 0.0
          %509 = vst.msk [vmem:[#allocation5 + $0x158] sm:$0xff] %vm356, 0.0
          %510 = vst.msk [vmem:[#allocation5 + $0x160] sm:$0xff] %vm356, 0.0
          %511 = vst.msk [vmem:[#allocation5 + $0x168] sm:$0xff] %vm356, 0.0
          %512 = vst.msk [vmem:[#allocation5 + $0x170] sm:$0xff] %vm356, 0.0
          %513 = vst.msk [vmem:[#allocation5 + $0x178] sm:$0xff] %vm356, 0.0
          %514 = vst.msk [vmem:[#allocation5 + $0x180] sm:$0xff] %vm356, 0.0
          %515 = vst.msk [vmem:[#allocation5 + $0x188] sm:$0xff] %vm356, 0.0
          %516 = vst.msk [vmem:[#allocation5 + $0x190] sm:$0xff] %vm356, 0.0
          %517 = vst.msk [vmem:[#allocation5 + $0x198] sm:$0xff] %vm356, 0.0
          %518 = vst.msk [vmem:[#allocation5 + $0x1a0] sm:$0xff] %vm356, 0.0
          %519 = vst.msk [vmem:[#allocation5 + $0x1a8] sm:$0xff] %vm356, 0.0
          %520 = vst.msk [vmem:[#allocation5 + $0x1b0] sm:$0xff] %vm356, 0.0
          %521 = vst.msk [vmem:[#allocation5 + $0x1b8] sm:$0xff] %vm356, 0.0
          %522 = vst.msk [vmem:[#allocation5 + $0x1c0] sm:$0xff] %vm356, 0.0
          %523 = vst.msk [vmem:[#allocation5 + $0x1c8] sm:$0xff] %vm356, 0.0
          %524 = vst.msk [vmem:[#allocation5 + $0x1d0] sm:$0xff] %vm356, 0.0
          %525 = vst.msk [vmem:[#allocation5 + $0x1d8] sm:$0xff] %vm356, 0.0
          %526 = vst.msk [vmem:[#allocation5 + $0x1e0] sm:$0xff] %vm356, 0.0
          %527 = vst.msk [vmem:[#allocation5 + $0x1e8] sm:$0xff] %vm356, 0.0
          %528 = vst.msk [vmem:[#allocation5 + $0x1f0] sm:$0xff] %vm356, 0.0
          %529 = vst.msk [vmem:[#allocation5 + $0x1f8] sm:$0xff] %vm356, 0.0
        $region36: #{tpu_custom_call.1} parent=31 // pred_fallthru
          _
        %v530 = vld [vmem:[%s226] sm:$0xff]
        %v531 = vld [vmem:[%s226 + $0x8] sm:$0xff]
        %v532 = vld [vmem:[%s226 + $0x10] sm:$0xff]
        %v533 = vld [vmem:[%s226 + $0x18] sm:$0xff]
        %v534 = vld [vmem:[%s226 + $0x20] sm:$0xff]
        %v535 = vld [vmem:[%s226 + $0x28] sm:$0xff]
        %v536 = vld [vmem:[%s226 + $0x30] sm:$0xff]
        %v537 = vld [vmem:[%s226 + $0x38] sm:$0xff]
        %v538 = vld [vmem:[%s226 + $0x40] sm:$0xff]
        %v539 = vld [vmem:[%s226 + $0x48] sm:$0xff]
        %v540 = vld [vmem:[%s226 + $0x50] sm:$0xff]
        %v541 = vld [vmem:[%s226 + $0x58] sm:$0xff]
        %v542 = vld [vmem:[%s226 + $0x60] sm:$0xff]
        %v543 = vld [vmem:[%s226 + $0x68] sm:$0xff]
        %v544 = vld [vmem:[%s226 + $0x70] sm:$0xff]
        %v545 = vld [vmem:[%s226 + $0x78] sm:$0xff]
        %v546 = vld [vmem:[%s226 + $0x80] sm:$0xff]
        %v547 = vld [vmem:[%s226 + $0x88] sm:$0xff]
        %v548 = vld [vmem:[%s226 + $0x90] sm:$0xff]
        %v549 = vld [vmem:[%s226 + $0x98] sm:$0xff]
        %v550 = vld [vmem:[%s226 + $0xa0] sm:$0xff]
        %v551 = vld [vmem:[%s226 + $0xa8] sm:$0xff]
        %v552 = vld [vmem:[%s226 + $0xb0] sm:$0xff]
        %v553 = vld [vmem:[%s226 + $0xb8] sm:$0xff]
        %v554 = vld [vmem:[%s226 + $0xc0] sm:$0xff]
        %v555 = vld [vmem:[%s226 + $0xc8] sm:$0xff]
        %v556 = vld [vmem:[%s226 + $0xd0] sm:$0xff]
        %v557 = vld [vmem:[%s226 + $0xd8] sm:$0xff]
        %v558 = vld [vmem:[%s226 + $0xe0] sm:$0xff]
        %v559 = vld [vmem:[%s226 + $0xe8] sm:$0xff]
        %v560 = vld [vmem:[%s226 + $0xf0] sm:$0xff]
        %v561 = vld [vmem:[%s226 + $0xf8] sm:$0xff]
        %v562 = vld [vmem:[%s226 + $0x100] sm:$0xff]
        %v563 = vld [vmem:[%s226 + $0x108] sm:$0xff]
        %v564 = vld [vmem:[%s226 + $0x110] sm:$0xff]
        %v565 = vld [vmem:[%s226 + $0x118] sm:$0xff]
        %v566 = vld [vmem:[%s226 + $0x120] sm:$0xff]
        %v567 = vld [vmem:[%s226 + $0x128] sm:$0xff]
        %v568 = vld [vmem:[%s226 + $0x130] sm:$0xff]
        %v569 = vld [vmem:[%s226 + $0x138] sm:$0xff]
        %v570 = vld [vmem:[%s226 + $0x140] sm:$0xff]
        %v571 = vld [vmem:[%s226 + $0x148] sm:$0xff]
        %v572 = vld [vmem:[%s226 + $0x150] sm:$0xff]
        %v573 = vld [vmem:[%s226 + $0x158] sm:$0xff]
        %v574 = vld [vmem:[%s226 + $0x160] sm:$0xff]
        %v575 = vld [vmem:[%s226 + $0x168] sm:$0xff]
        %v576 = vld [vmem:[%s226 + $0x170] sm:$0xff]
        %v577 = vld [vmem:[%s226 + $0x178] sm:$0xff]
        %v578 = vld [vmem:[%s226 + $0x180] sm:$0xff]
        %v579 = vld [vmem:[%s226 + $0x188] sm:$0xff]
        %v580 = vld [vmem:[%s226 + $0x190] sm:$0xff]
        %v581 = vld [vmem:[%s226 + $0x198] sm:$0xff]
        %v582 = vld [vmem:[%s226 + $0x1a0] sm:$0xff]
        %v583 = vld [vmem:[%s226 + $0x1a8] sm:$0xff]
        %v584 = vld [vmem:[%s226 + $0x1b0] sm:$0xff]
        %v585 = vld [vmem:[%s226 + $0x1b8] sm:$0xff]
        %v586 = vld [vmem:[%s226 + $0x1c0] sm:$0xff]
        %v587 = vld [vmem:[%s226 + $0x1c8] sm:$0xff]
        %v588 = vld [vmem:[%s226 + $0x1d0] sm:$0xff]
        %v589 = vld [vmem:[%s226 + $0x1d8] sm:$0xff]
        %v590 = vld [vmem:[%s226 + $0x1e0] sm:$0xff]
        %v591 = vld [vmem:[%s226 + $0x1e8] sm:$0xff]
        %v592 = vld [vmem:[%s226 + $0x1f0] sm:$0xff]
        %v593 = vld [vmem:[%s226 + $0x1f8] sm:$0xff]
        %s594 = scalar_lea.vmem [#allocation2], 24
        %vm595 = vcmask 31744
        %596 = vst.msk [vmem:[%s594 + $0x1] sm:$0xff] %vm595, %v530
        %597 = vst.msk [vmem:[%s594 + $0x9] sm:$0xff] %vm595, %v531
        %598 = vst.msk [vmem:[%s594 + $0x19] sm:$0xff] %vm595, %v532
        %599 = vst.msk [vmem:[%s594 + $0x21] sm:$0xff] %vm595, %v533
        %600 = vst.msk [vmem:[%s594 + $0x31] sm:$0xff] %vm595, %v534
        %601 = vst.msk [vmem:[%s594 + $0x39] sm:$0xff] %vm595, %v535
        %602 = vst.msk [vmem:[%s594 + $0x49] sm:$0xff] %vm595, %v536
        %603 = vst.msk [vmem:[%s594 + $0x51] sm:$0xff] %vm595, %v537
        %604 = vst.msk [vmem:[%s594 + $0x61] sm:$0xff] %vm595, %v538
        %605 = vst.msk [vmem:[%s594 + $0x69] sm:$0xff] %vm595, %v539
        %606 = vst.msk [vmem:[%s594 + $0x79] sm:$0xff] %vm595, %v540
        %607 = vst.msk [vmem:[%s594 + $0x81] sm:$0xff] %vm595, %v541
        %608 = vst.msk [vmem:[%s594 + $0x91] sm:$0xff] %vm595, %v542
        %609 = vst.msk [vmem:[%s594 + $0x99] sm:$0xff] %vm595, %v543
        %610 = vst.msk [vmem:[%s594 + $0xa9] sm:$0xff] %vm595, %v544
        %611 = vst.msk [vmem:[%s594 + $0xb1] sm:$0xff] %vm595, %v545
        %612 = vst.msk [vmem:[%s594 + $0xc1] sm:$0xff] %vm595, %v546
        %613 = vst.msk [vmem:[%s594 + $0xc9] sm:$0xff] %vm595, %v547
        %614 = vst.msk [vmem:[%s594 + $0xd9] sm:$0xff] %vm595, %v548
        %615 = vst.msk [vmem:[%s594 + $0xe1] sm:$0xff] %vm595, %v549
        %616 = vst.msk [vmem:[%s594 + $0xf1] sm:$0xff] %vm595, %v550
        %617 = vst.msk [vmem:[%s594 + $0xf9] sm:$0xff] %vm595, %v551
        %618 = vst.msk [vmem:[%s594 + $0x109] sm:$0xff] %vm595, %v552
        %619 = vst.msk [vmem:[%s594 + $0x111] sm:$0xff] %vm595, %v553
        %620 = vst.msk [vmem:[%s594 + $0x121] sm:$0xff] %vm595, %v554
        %621 = vst.msk [vmem:[%s594 + $0x129] sm:$0xff] %vm595, %v555
        %622 = vst.msk [vmem:[%s594 + $0x139] sm:$0xff] %vm595, %v556
        %623 = vst.msk [vmem:[%s594 + $0x141] sm:$0xff] %vm595, %v557
        %624 = vst.msk [vmem:[%s594 + $0x151] sm:$0xff] %vm595, %v558
        %625 = vst.msk [vmem:[%s594 + $0x159] sm:$0xff] %vm595, %v559
        %626 = vst.msk [vmem:[%s594 + $0x169] sm:$0xff] %vm595, %v560
        %627 = vst.msk [vmem:[%s594 + $0x171] sm:$0xff] %vm595, %v561
        %628 = vst.msk [vmem:[%s594 + $0x1b1] sm:$0xff] %vm595, %v562
        %629 = vst.msk [vmem:[%s594 + $0x1b9] sm:$0xff] %vm595, %v563
        %630 = vst.msk [vmem:[%s594 + $0x1c9] sm:$0xff] %vm595, %v564
        %631 = vst.msk [vmem:[%s594 + $0x1d1] sm:$0xff] %vm595, %v565
        %632 = vst.msk [vmem:[%s594 + $0x1e1] sm:$0xff] %vm595, %v566
        %633 = vst.msk [vmem:[%s594 + $0x1e9] sm:$0xff] %vm595, %v567
        %634 = vst.msk [vmem:[%s594 + $0x1f9] sm:$0xff] %vm595, %v568
        %635 = vst.msk [vmem:[%s594 + $0x201] sm:$0xff] %vm595, %v569
        %636 = vst.msk [vmem:[%s594 + $0x211] sm:$0xff] %vm595, %v570
        %637 = vst.msk [vmem:[%s594 + $0x219] sm:$0xff] %vm595, %v571
        %638 = vst.msk [vmem:[%s594 + $0x229] sm:$0xff] %vm595, %v572
        %639 = vst.msk [vmem:[%s594 + $0x231] sm:$0xff] %vm595, %v573
        %640 = vst.msk [vmem:[%s594 + $0x241] sm:$0xff] %vm595, %v574
        %641 = vst.msk [vmem:[%s594 + $0x249] sm:$0xff] %vm595, %v575
        %642 = vst.msk [vmem:[%s594 + $0x259] sm:$0xff] %vm595, %v576
        %643 = vst.msk [vmem:[%s594 + $0x261] sm:$0xff] %vm595, %v577
        %644 = vst.msk [vmem:[%s594 + $0x271] sm:$0xff] %vm595, %v578
        %645 = vst.msk [vmem:[%s594 + $0x279] sm:$0xff] %vm595, %v579
        %646 = vst.msk [vmem:[%s594 + $0x289] sm:$0xff] %vm595, %v580
        %647 = vst.msk [vmem:[%s594 + $0x291] sm:$0xff] %vm595, %v581
        %648 = vst.msk [vmem:[%s594 + $0x2a1] sm:$0xff] %vm595, %v582
        %649 = vst.msk [vmem:[%s594 + $0x2a9] sm:$0xff] %vm595, %v583
        %650 = vst.msk [vmem:[%s594 + $0x2b9] sm:$0xff] %vm595, %v584
        %651 = vst.msk [vmem:[%s594 + $0x2c1] sm:$0xff] %vm595, %v585
        %652 = vst.msk [vmem:[%s594 + $0x2d1] sm:$0xff] %vm595, %v586
        %653 = vst.msk [vmem:[%s594 + $0x2d9] sm:$0xff] %vm595, %v587
        %654 = vst.msk [vmem:[%s594 + $0x2e9] sm:$0xff] %vm595, %v588
        %655 = vst.msk [vmem:[%s594 + $0x2f1] sm:$0xff] %vm595, %v589
        %656 = vst.msk [vmem:[%s594 + $0x301] sm:$0xff] %vm595, %v590
        %657 = vst.msk [vmem:[%s594 + $0x309] sm:$0xff] %vm595, %v591
        %658 = vst.msk [vmem:[%s594 + $0x319] sm:$0xff] %vm595, %v592
        %659 = vst.msk [vmem:[%s594 + $0x321] sm:$0xff] %vm595, %v593
        %v660 = vld [vmem:[#allocation2] sm:$0xff]
        %v661 = vld [vmem:[#allocation2 + $0x8] sm:$0xff]
        %v662 = vld [vmem:[#allocation2 + $0x10] sm:$0x3]
        %v663 = vld [vmem:[#allocation2 + $0x18] sm:$0xff]
        %v664 = vld [vmem:[#allocation2 + $0x20] sm:$0xff]
        %v665 = vld [vmem:[#allocation2 + $0x28] sm:$0x3]
        %v666 = vld [vmem:[#allocation2 + $0x30] sm:$0xff]
        %v667 = vld [vmem:[#allocation2 + $0x38] sm:$0xff]
        %v668 = vld [vmem:[#allocation2 + $0x40] sm:$0x3]
        %v669 = vld [vmem:[#allocation2 + $0x48] sm:$0xff]
        %v670 = vld [vmem:[#allocation2 + $0x50] sm:$0xff]
        %v671 = vld [vmem:[#allocation2 + $0x58] sm:$0x3]
        %v672 = vld [vmem:[#allocation2 + $0x60] sm:$0xff]
        %v673 = vld [vmem:[#allocation2 + $0x68] sm:$0xff]
        %v674 = vld [vmem:[#allocation2 + $0x70] sm:$0x3]
        %v675 = vld [vmem:[#allocation2 + $0x78] sm:$0xff]
        %v676 = vld [vmem:[#allocation2 + $0x80] sm:$0xff]
        %v677 = vld [vmem:[#allocation2 + $0x88] sm:$0x3]
        %v678 = vld [vmem:[#allocation2 + $0x90] sm:$0xff]
        %v679 = vld [vmem:[#allocation2 + $0x98] sm:$0xff]
        %v680 = vld [vmem:[#allocation2 + $0xa0] sm:$0x3]
        %v681 = vld [vmem:[#allocation2 + $0xa8] sm:$0xff]
        %v682 = vld [vmem:[#allocation2 + $0xb0] sm:$0xff]
        %v683 = vld [vmem:[#allocation2 + $0xb8] sm:$0x3]
        %v684 = vld [vmem:[#allocation2 + $0xc0] sm:$0xff]
        %v685 = vld [vmem:[#allocation2 + $0xc8] sm:$0xff]
        %v686 = vld [vmem:[#allocation2 + $0xd0] sm:$0x3]
        %v687 = vld [vmem:[#allocation2 + $0xd8] sm:$0xff]
        %v688 = vld [vmem:[#allocation2 + $0xe0] sm:$0xff]
        %v689 = vld [vmem:[#allocation2 + $0xe8] sm:$0x3]
        %v690 = vld [vmem:[#allocation2 + $0xf0] sm:$0xff]
        %v691 = vld [vmem:[#allocation2 + $0xf8] sm:$0xff]
        %v692 = vld [vmem:[#allocation2 + $0x100] sm:$0x3]
        %v693 = vld [vmem:[#allocation2 + $0x108] sm:$0xff]
        %v694 = vld [vmem:[#allocation2 + $0x110] sm:$0xff]
        %v695 = vld [vmem:[#allocation2 + $0x118] sm:$0x3]
        %v696 = vld [vmem:[#allocation2 + $0x120] sm:$0xff]
        %v697 = vld [vmem:[#allocation2 + $0x128] sm:$0xff]
        %v698 = vld [vmem:[#allocation2 + $0x130] sm:$0x3]
        %v699 = vld [vmem:[#allocation2 + $0x138] sm:$0xff]
        %v700 = vld [vmem:[#allocation2 + $0x140] sm:$0xff]
        %v701 = vld [vmem:[#allocation2 + $0x148] sm:$0x3]
        %v702 = vld [vmem:[#allocation2 + $0x150] sm:$0xff]
        %v703 = vld [vmem:[#allocation2 + $0x158] sm:$0xff]
        %v704 = vld [vmem:[#allocation2 + $0x160] sm:$0x3]
        %v705 = vld [vmem:[#allocation2 + $0x168] sm:$0xff]
        %v706 = vld [vmem:[#allocation2 + $0x170] sm:$0xff]
        %v707 = vld [vmem:[#allocation2 + $0x178] sm:$0x3]
        %v708 = vld [vmem:[#allocation2 + $0x180] sm:$0xff]
        %v709 = vld [vmem:[#allocation2 + $0x188] sm:$0xff]
        %v710 = vld [vmem:[#allocation2 + $0x190] sm:$0x3]
        %v711 = vld [vmem:[#allocation2 + $0x198] sm:$0xff]
        %v712 = vld [vmem:[#allocation2 + $0x1a0] sm:$0xff]
        %v713 = vld [vmem:[#allocation2 + $0x1a8] sm:$0x3]
        %v714 = vld [vmem:[#allocation2 + $0x1b0] sm:$0xff]
        %v715 = vld [vmem:[#allocation2 + $0x1b8] sm:$0xff]
        %v716 = vld [vmem:[#allocation2 + $0x1c0] sm:$0x3]
        %v717 = vld [vmem:[#allocation2 + $0x1c8] sm:$0xff]
        %v718 = vld [vmem:[#allocation2 + $0x1d0] sm:$0xff]
        %v719 = vld [vmem:[#allocation2 + $0x1d8] sm:$0x3]
        %v720 = vld [vmem:[#allocation2 + $0x1e0] sm:$0xff]
        %v721 = vld [vmem:[#allocation2 + $0x1e8] sm:$0xff]
        %v722 = vld [vmem:[#allocation2 + $0x1f0] sm:$0x3]
        %v723 = vld [vmem:[#allocation2 + $0x1f8] sm:$0xff]
        %v724 = vld [vmem:[#allocation2 + $0x200] sm:$0xff]
        %v725 = vld [vmem:[#allocation2 + $0x208] sm:$0x3]
        %v726 = vld [vmem:[#allocation2 + $0x210] sm:$0xff]
        %v727 = vld [vmem:[#allocation2 + $0x218] sm:$0xff]
        %v728 = vld [vmem:[#allocation2 + $0x220] sm:$0x3]
        %v729 = vld [vmem:[#allocation2 + $0x228] sm:$0xff]
        %v730 = vld [vmem:[#allocation2 + $0x230] sm:$0xff]
        %v731 = vld [vmem:[#allocation2 + $0x238] sm:$0x3]
        %v732 = vld [vmem:[#allocation2 + $0x240] sm:$0xff]
        %v733 = vld [vmem:[#allocation2 + $0x248] sm:$0xff]
        %v734 = vld [vmem:[#allocation2 + $0x250] sm:$0x3]
        %v735 = vld [vmem:[#allocation2 + $0x258] sm:$0xff]
        %v736 = vld [vmem:[#allocation2 + $0x260] sm:$0xff]
        %v737 = vld [vmem:[#allocation2 + $0x268] sm:$0x3]
        %v738 = vld [vmem:[#allocation2 + $0x270] sm:$0xff]
        %v739 = vld [vmem:[#allocation2 + $0x278] sm:$0xff]
        %v740 = vld [vmem:[#allocation2 + $0x280] sm:$0x3]
        %v741 = vld [vmem:[#allocation2 + $0x288] sm:$0xff]
        %v742 = vld [vmem:[#allocation2 + $0x290] sm:$0xff]
        %v743 = vld [vmem:[#allocation2 + $0x298] sm:$0x3]
        %v744 = vld [vmem:[#allocation2 + $0x2a0] sm:$0xff]
        %v745 = vld [vmem:[#allocation2 + $0x2a8] sm:$0xff]
        %v746 = vld [vmem:[#allocation2 + $0x2b0] sm:$0x3]
        %v747 = vld [vmem:[#allocation2 + $0x2b8] sm:$0xff]
        %v748 = vld [vmem:[#allocation2 + $0x2c0] sm:$0xff]
        %v749 = vld [vmem:[#allocation2 + $0x2c8] sm:$0x3]
        %v750 = vld [vmem:[#allocation2 + $0x2d0] sm:$0xff]
        %v751 = vld [vmem:[#allocation2 + $0x2d8] sm:$0xff]
        %v752 = vld [vmem:[#allocation2 + $0x2e0] sm:$0x3]
        %v753 = vld [vmem:[#allocation2 + $0x2e8] sm:$0xff]
        %v754 = vld [vmem:[#allocation2 + $0x2f0] sm:$0xff]
        %v755 = vld [vmem:[#allocation2 + $0x2f8] sm:$0x3]
        %v756 = vld [vmem:[#allocation2 + $0x300] sm:$0xff]
        %v757 = vld [vmem:[#allocation2 + $0x308] sm:$0xff]
        %v758 = vld [vmem:[#allocation2 + $0x310] sm:$0x3]
        %v759 = vld [vmem:[#allocation2 + $0x318] sm:$0xff]
        %v760 = vld [vmem:[#allocation2 + $0x320] sm:$0xff]
        %v761 = vld [vmem:[#allocation2 + $0x328] sm:$0x3]
        %v762 = vld [vmem:[#allocation2 + $0x330] sm:$0xff]
        %v763 = vld [vmem:[#allocation2 + $0x338] sm:$0xff]
        %v764 = vld [vmem:[#allocation2 + $0x340] sm:$0x3]
        %v765 = vld [vmem:[#allocation2 + $0x348] sm:$0xff]
        %v766 = vld [vmem:[#allocation2 + $0x350] sm:$0xff]
        %v767 = vld [vmem:[#allocation2 + $0x358] sm:$0x3]
        %v768 = vld [vmem:[#allocation3] sm:$0xff]
        %v769 = vld [vmem:[#allocation3 + $0x8] sm:$0xff]
        %v770 = vld [vmem:[#allocation3 + $0x10] sm:$0x3]
        %v771 = vld [vmem:[#allocation3 + $0x18] sm:$0xff]
        %v772 = vld [vmem:[#allocation3 + $0x20] sm:$0xff]
        %v773 = vld [vmem:[#allocation3 + $0x28] sm:$0x3]
        %v774 = vld [vmem:[#allocation3 + $0x30] sm:$0xff]
        %v775 = vld [vmem:[#allocation3 + $0x38] sm:$0xff]
        %v776 = vld [vmem:[#allocation3 + $0x40] sm:$0x3]
        %v777 = vld [vmem:[#allocation3 + $0x48] sm:$0xff]
        %v778 = vld [vmem:[#allocation3 + $0x50] sm:$0xff]
        %v779 = vld [vmem:[#allocation3 + $0x58] sm:$0x3]
        %v780 = vld [vmem:[#allocation3 + $0x60] sm:$0xff]
        %v781 = vld [vmem:[#allocation3 + $0x68] sm:$0xff]
        %v782 = vld [vmem:[#allocation3 + $0x70] sm:$0x3]
        %v783 = vld [vmem:[#allocation3 + $0x78] sm:$0xff]
        %v784 = vld [vmem:[#allocation3 + $0x80] sm:$0xff]
        %v785 = vld [vmem:[#allocation3 + $0x88] sm:$0x3]
        %v786 = vld [vmem:[#allocation3 + $0x90] sm:$0xff]
        %v787 = vld [vmem:[#allocation3 + $0x98] sm:$0xff]
        %v788 = vld [vmem:[#allocation3 + $0xa0] sm:$0x3]
        %v789 = vld [vmem:[#allocation3 + $0xa8] sm:$0xff]
        %v790 = vld [vmem:[#allocation3 + $0xb0] sm:$0xff]
        %v791 = vld [vmem:[#allocation3 + $0xb8] sm:$0x3]
        %v792 = vld [vmem:[#allocation3 + $0xc0] sm:$0xff]
        %v793 = vld [vmem:[#allocation3 + $0xc8] sm:$0xff]
        %v794 = vld [vmem:[#allocation3 + $0xd0] sm:$0x3]
        %v795 = vld [vmem:[#allocation3 + $0xd8] sm:$0xff]
        %v796 = vld [vmem:[#allocation3 + $0xe0] sm:$0xff]
        %v797 = vld [vmem:[#allocation3 + $0xe8] sm:$0x3]
        %v798 = vld [vmem:[#allocation3 + $0xf0] sm:$0xff]
        %v799 = vld [vmem:[#allocation3 + $0xf8] sm:$0xff]
        %v800 = vld [vmem:[#allocation3 + $0x100] sm:$0x3]
        %v801 = vld [vmem:[#allocation3 + $0x108] sm:$0xff]
        %v802 = vld [vmem:[#allocation3 + $0x110] sm:$0xff]
        %v803 = vld [vmem:[#allocation3 + $0x118] sm:$0x3]
        %v804 = vld [vmem:[#allocation3 + $0x120] sm:$0xff]
        %v805 = vld [vmem:[#allocation3 + $0x128] sm:$0xff]
        %v806 = vld [vmem:[#allocation3 + $0x130] sm:$0x3]
        %v807 = vld [vmem:[#allocation3 + $0x138] sm:$0xff]
        %v808 = vld [vmem:[#allocation3 + $0x140] sm:$0xff]
        %v809 = vld [vmem:[#allocation3 + $0x148] sm:$0x3]
        %v810 = vld [vmem:[#allocation3 + $0x150] sm:$0xff]
        %v811 = vld [vmem:[#allocation3 + $0x158] sm:$0xff]
        %v812 = vld [vmem:[#allocation3 + $0x160] sm:$0x3]
        %v813 = vld [vmem:[#allocation3 + $0x168] sm:$0xff]
        %v814 = vld [vmem:[#allocation3 + $0x170] sm:$0xff]
        %v815 = vld [vmem:[#allocation3 + $0x178] sm:$0x3]
        %v816 = vld [vmem:[#allocation3 + $0x180] sm:$0xff]
        %v817 = vld [vmem:[#allocation3 + $0x188] sm:$0xff]
        %v818 = vld [vmem:[#allocation3 + $0x190] sm:$0x3]
        %v819 = vld [vmem:[#allocation3 + $0x198] sm:$0xff]
        %v820 = vld [vmem:[#allocation3 + $0x1a0] sm:$0xff]
        %v821 = vld [vmem:[#allocation3 + $0x1a8] sm:$0x3]
        %v822 = vld [vmem:[#allocation3 + $0x1b0] sm:$0xff]
        %v823 = vld [vmem:[#allocation3 + $0x1b8] sm:$0xff]
        %v824 = vld [vmem:[#allocation3 + $0x1c0] sm:$0x3]
        %v825 = vld [vmem:[#allocation3 + $0x1c8] sm:$0xff]
        %v826 = vld [vmem:[#allocation3 + $0x1d0] sm:$0xff]
        %v827 = vld [vmem:[#allocation3 + $0x1d8] sm:$0x3]
        %v828 = vld [vmem:[#allocation3 + $0x1e0] sm:$0xff]
        %v829 = vld [vmem:[#allocation3 + $0x1e8] sm:$0xff]
        %v830 = vld [vmem:[#allocation3 + $0x1f0] sm:$0x3]
        %v831 = vld [vmem:[#allocation3 + $0x1f8] sm:$0xff]
        %v832 = vld [vmem:[#allocation3 + $0x200] sm:$0xff]
        %v833 = vld [vmem:[#allocation3 + $0x208] sm:$0x3]
        %v834 = vld [vmem:[#allocation3 + $0x210] sm:$0xff]
        %v835 = vld [vmem:[#allocation3 + $0x218] sm:$0xff]
        %v836 = vld [vmem:[#allocation3 + $0x220] sm:$0x3]
        %v837 = vld [vmem:[#allocation3 + $0x228] sm:$0xff]
        %v838 = vld [vmem:[#allocation3 + $0x230] sm:$0xff]
        %v839 = vld [vmem:[#allocation3 + $0x238] sm:$0x3]
        %v840 = vld [vmem:[#allocation3 + $0x240] sm:$0xff]
        %v841 = vld [vmem:[#allocation3 + $0x248] sm:$0xff]
        %v842 = vld [vmem:[#allocation3 + $0x250] sm:$0x3]
        %v843 = vld [vmem:[#allocation3 + $0x258] sm:$0xff]
        %v844 = vld [vmem:[#allocation3 + $0x260] sm:$0xff]
        %v845 = vld [vmem:[#allocation3 + $0x268] sm:$0x3]
        %v846 = vld [vmem:[#allocation3 + $0x270] sm:$0xff]
        %v847 = vld [vmem:[#allocation3 + $0x278] sm:$0xff]
        %v848 = vld [vmem:[#allocation3 + $0x280] sm:$0x3]
        %v849 = vld [vmem:[#allocation3 + $0x288] sm:$0xff]
        %v850 = vld [vmem:[#allocation3 + $0x290] sm:$0xff]
        %v851 = vld [vmem:[#allocation3 + $0x298] sm:$0x3]
        %v852 = vld [vmem:[#allocation3 + $0x2a0] sm:$0xff]
        %v853 = vld [vmem:[#allocation3 + $0x2a8] sm:$0xff]
        %v854 = vld [vmem:[#allocation3 + $0x2b0] sm:$0x3]
        %v855 = vld [vmem:[#allocation3 + $0x2b8] sm:$0xff]
        %v856 = vld [vmem:[#allocation3 + $0x2c0] sm:$0xff]
        %v857 = vld [vmem:[#allocation3 + $0x2c8] sm:$0x3]
        %v858 = vld [vmem:[#allocation3 + $0x2d0] sm:$0xff]
        %v859 = vld [vmem:[#allocation3 + $0x2d8] sm:$0xff]
        %v860 = vld [vmem:[#allocation3 + $0x2e0] sm:$0x3]
        %v861 = vld [vmem:[#allocation3 + $0x2e8] sm:$0xff]
        %v862 = vld [vmem:[#allocation3 + $0x2f0] sm:$0xff]
        %v863 = vld [vmem:[#allocation3 + $0x2f8] sm:$0x3]
        %v864 = vld [vmem:[#allocation3 + $0x300] sm:$0xff]
        %v865 = vld [vmem:[#allocation3 + $0x308] sm:$0xff]
        %v866 = vld [vmem:[#allocation3 + $0x310] sm:$0x3]
        %v867 = vld [vmem:[#allocation3 + $0x318] sm:$0xff]
        %v868 = vld [vmem:[#allocation3 + $0x320] sm:$0xff]
        %v869 = vld [vmem:[#allocation3 + $0x328] sm:$0x3]
        %v870 = vld [vmem:[#allocation3 + $0x330] sm:$0xff]
        %v871 = vld [vmem:[#allocation3 + $0x338] sm:$0xff]
        %v872 = vld [vmem:[#allocation3 + $0x340] sm:$0x3]
        %v873 = vld [vmem:[#allocation3 + $0x348] sm:$0xff]
        %v874 = vld [vmem:[#allocation3 + $0x350] sm:$0xff]
        %v875 = vld [vmem:[#allocation3 + $0x358] sm:$0x3]
        %v876 = vpack.c.bf16 %v661, %v660
        %v877 = vpack.c.bf16 %v664, %v663
        %v878 = vpack.c.bf16 %v667, %v666
        %v879 = vpack.c.bf16 %v670, %v669
        %v880 = vpack.c.bf16 %v673, %v672
        %v881 = vpack.c.bf16 %v676, %v675
        %v882 = vpack.c.bf16 %v679, %v678
        %v883 = vpack.c.bf16 %v682, %v681
        %v884 = vpack.c.bf16 %v685, %v684
        %v885 = vpack.c.bf16 %v688, %v687
        %v886 = vpack.c.bf16 %v691, %v690
        %v887 = vpack.c.bf16 %v694, %v693
        %v888 = vpack.c.bf16 %v697, %v696
        %v889 = vpack.c.bf16 %v700, %v699
        %v890 = vpack.c.bf16 %v703, %v702
        %v891 = vpack.c.bf16 %v706, %v705
        %v892 = vpack.c.bf16 %v715, %v714
        %v893 = vpack.c.bf16 %v718, %v717
        %v894 = vpack.c.bf16 %v721, %v720
        %v895 = vpack.c.bf16 %v724, %v723
        %v896 = vpack.c.bf16 %v727, %v726
        %v897 = vpack.c.bf16 %v730, %v729
        %v898 = vpack.c.bf16 %v733, %v732
        %v899 = vpack.c.bf16 %v736, %v735
        %v900 = vpack.c.bf16 %v739, %v738
        %v901 = vpack.c.bf16 %v742, %v741
        %v902 = vpack.c.bf16 %v745, %v744
        %v903 = vpack.c.bf16 %v748, %v747
        %v904 = vpack.c.bf16 %v751, %v750
        %v905 = vpack.c.bf16 %v754, %v753
        %v906 = vpack.c.bf16 %v757, %v756
        %v907 = vpack.c.bf16 %v760, %v759
        %908 = vst.msk [vmem:[#allocation4] sm:$0xff] %vm595, %v876
        %909 = vst.msk [vmem:[#allocation4 + $0x18] sm:$0xff] %vm595, %v877
        %910 = vst.msk [vmem:[#allocation4 + $0x30] sm:$0xff] %vm595, %v878
        %911 = vst.msk [vmem:[#allocation4 + $0x48] sm:$0xff] %vm595, %v879
        %912 = vst.msk [vmem:[#allocation4 + $0x60] sm:$0xff] %vm595, %v880
        %913 = vst.msk [vmem:[#allocation4 + $0x78] sm:$0xff] %vm595, %v881
        %914 = vst.msk [vmem:[#allocation4 + $0x90] sm:$0xff] %vm595, %v882
        %915 = vst.msk [vmem:[#allocation4 + $0xa8] sm:$0xff] %vm595, %v883
        %916 = vst.msk [vmem:[#allocation4 + $0xc0] sm:$0xff] %vm595, %v884
        %917 = vst.msk [vmem:[#allocation4 + $0xd8] sm:$0xff] %vm595, %v885
        %918 = vst.msk [vmem:[#allocation4 + $0xf0] sm:$0xff] %vm595, %v886
        %919 = vst.msk [vmem:[#allocation4 + $0x108] sm:$0xff] %vm595, %v887
        %920 = vst.msk [vmem:[#allocation4 + $0x120] sm:$0xff] %vm595, %v888
        %921 = vst.msk [vmem:[#allocation4 + $0x138] sm:$0xff] %vm595, %v889
        %922 = vst.msk [vmem:[#allocation4 + $0x150] sm:$0xff] %vm595, %v890
        %923 = vst.msk [vmem:[#allocation4 + $0x168] sm:$0xff] %vm595, %v891
        %924 = vst.msk [vmem:[#allocation4 + $0x180] sm:$0xff] %vm595, %v892
        %925 = vst.msk [vmem:[#allocation4 + $0x198] sm:$0xff] %vm595, %v893
        %926 = vst.msk [vmem:[#allocation4 + $0x1b0] sm:$0xff] %vm595, %v894
        %927 = vst.msk [vmem:[#allocation4 + $0x1c8] sm:$0xff] %vm595, %v895
        %928 = vst.msk [vmem:[#allocation4 + $0x1e0] sm:$0xff] %vm595, %v896
        %929 = vst.msk [vmem:[#allocation4 + $0x1f8] sm:$0xff] %vm595, %v897
        %930 = vst.msk [vmem:[#allocation4 + $0x210] sm:$0xff] %vm595, %v898
        %931 = vst.msk [vmem:[#allocation4 + $0x228] sm:$0xff] %vm595, %v899
        %932 = vst.msk [vmem:[#allocation4 + $0x240] sm:$0xff] %vm595, %v900
        %933 = vst.msk [vmem:[#allocation4 + $0x258] sm:$0xff] %vm595, %v901
        %934 = vst.msk [vmem:[#allocation4 + $0x270] sm:$0xff] %vm595, %v902
        %935 = vst.msk [vmem:[#allocation4 + $0x288] sm:$0xff] %vm595, %v903
        %936 = vst.msk [vmem:[#allocation4 + $0x2a0] sm:$0xff] %vm595, %v904
        %937 = vst.msk [vmem:[#allocation4 + $0x2b8] sm:$0xff] %vm595, %v905
        %938 = vst.msk [vmem:[#allocation4 + $0x2d0] sm:$0xff] %vm595, %v906
        %939 = vst.msk [vmem:[#allocation4 + $0x2e8] sm:$0xff] %vm595, %v907
        %v940 = vpack.c.bf16 %v769, %v768
        %v941 = vpack.c.bf16 %v772, %v771
        %v942 = vpack.c.bf16 %v775, %v774
        %v943 = vpack.c.bf16 %v778, %v777
        %v944 = vpack.c.bf16 %v781, %v780
        %v945 = vpack.c.bf16 %v784, %v783
        %v946 = vpack.c.bf16 %v787, %v786
        %v947 = vpack.c.bf16 %v790, %v789
        %v948 = vpack.c.bf16 %v793, %v792
        %v949 = vpack.c.bf16 %v796, %v795
        %v950 = vpack.c.bf16 %v799, %v798
        %v951 = vpack.c.bf16 %v802, %v801
        %v952 = vpack.c.bf16 %v805, %v804
        %v953 = vpack.c.bf16 %v808, %v807
        %v954 = vpack.c.bf16 %v811, %v810
        %v955 = vpack.c.bf16 %v814, %v813
        %v956 = vpack.c.bf16 %v823, %v822
        %v957 = vpack.c.bf16 %v826, %v825
        %v958 = vpack.c.bf16 %v829, %v828
        %v959 = vpack.c.bf16 %v832, %v831
        %v960 = vpack.c.bf16 %v835, %v834
        %v961 = vpack.c.bf16 %v838, %v837
        %v962 = vpack.c.bf16 %v841, %v840
        %v963 = vpack.c.bf16 %v844, %v843
        %v964 = vpack.c.bf16 %v847, %v846
        %v965 = vpack.c.bf16 %v850, %v849
        %v966 = vpack.c.bf16 %v853, %v852
        %v967 = vpack.c.bf16 %v856, %v855
        %v968 = vpack.c.bf16 %v859, %v858
        %v969 = vpack.c.bf16 %v862, %v861
        %v970 = vpack.c.bf16 %v865, %v864
        %v971 = vpack.c.bf16 %v868, %v867
        %1004 = vrot.lane.b32.xlu0 %v940, 4
        %v1005 = vpop.permute.xlu0 %1004
        %1006 = vrot.lane.b32.xlu0 %v941, 4
        %v1007 = vpop.permute.xlu0 %1006
        %1008 = vrot.lane.b32.xlu0 %v942, 4
        %v1009 = vpop.permute.xlu0 %1008
        %1010 = vrot.lane.b32.xlu0 %v943, 4
        %v1011 = vpop.permute.xlu0 %1010
        %1012 = vrot.lane.b32.xlu0 %v944, 4
        %v1013 = vpop.permute.xlu0 %1012
        %1014 = vrot.lane.b32.xlu0 %v945, 4
        %v1015 = vpop.permute.xlu0 %1014
        %1016 = vrot.lane.b32.xlu0 %v946, 4
        %v1017 = vpop.permute.xlu0 %1016
        %1018 = vrot.lane.b32.xlu0 %v947, 4
        %v1019 = vpop.permute.xlu0 %1018
        %1020 = vrot.lane.b32.xlu0 %v948, 4
        %v1021 = vpop.permute.xlu0 %1020
        %1022 = vrot.lane.b32.xlu0 %v949, 4
        %v1023 = vpop.permute.xlu0 %1022
        %1024 = vrot.lane.b32.xlu0 %v950, 4
        %v1025 = vpop.permute.xlu0 %1024
        %1026 = vrot.lane.b32.xlu0 %v951, 4
        %v1027 = vpop.permute.xlu0 %1026
        %1028 = vrot.lane.b32.xlu0 %v952, 4
        %v1029 = vpop.permute.xlu0 %1028
        %1030 = vrot.lane.b32.xlu0 %v953, 4
        %v1031 = vpop.permute.xlu0 %1030
        %1032 = vrot.lane.b32.xlu0 %v954, 4
        %v1033 = vpop.permute.xlu0 %1032
        %1034 = vrot.lane.b32.xlu0 %v955, 4
        %v1035 = vpop.permute.xlu0 %1034
        %1036 = vrot.lane.b32.xlu0 %v956, 4
        %v1037 = vpop.permute.xlu0 %1036
        %1038 = vrot.lane.b32.xlu0 %v957, 4
        %v1039 = vpop.permute.xlu0 %1038
        %1040 = vrot.lane.b32.xlu0 %v958, 4
        %v1041 = vpop.permute.xlu0 %1040
        %1042 = vrot.lane.b32.xlu0 %v959, 4
        %v1043 = vpop.permute.xlu0 %1042
        %1044 = vrot.lane.b32.xlu0 %v960, 4
        %v1045 = vpop.permute.xlu0 %1044
        %1046 = vrot.lane.b32.xlu0 %v961, 4
        %v1047 = vpop.permute.xlu0 %1046
        %1048 = vrot.lane.b32.xlu0 %v962, 4
        %v1049 = vpop.permute.xlu0 %1048
        %1050 = vrot.lane.b32.xlu0 %v963, 4
        %v1051 = vpop.permute.xlu0 %1050
        %1052 = vrot.lane.b32.xlu0 %v964, 4
        %v1053 = vpop.permute.xlu0 %1052
        %1054 = vrot.lane.b32.xlu0 %v965, 4
        %v1055 = vpop.permute.xlu0 %1054
        %1056 = vrot.lane.b32.xlu0 %v966, 4
        %v1057 = vpop.permute.xlu0 %1056
        %1058 = vrot.lane.b32.xlu0 %v967, 4
        %v1059 = vpop.permute.xlu0 %1058
        %1060 = vrot.lane.b32.xlu0 %v968, 4
        %v1061 = vpop.permute.xlu0 %1060
        %1062 = vrot.lane.b32.xlu0 %v969, 4
        %v1063 = vpop.permute.xlu0 %1062
        %1064 = vrot.lane.b32.xlu0 %v970, 4
        %v1065 = vpop.permute.xlu0 %1064
        %1066 = vrot.lane.b32.xlu0 %v971, 4
        %v1067 = vpop.permute.xlu0 %1066
        %vm1100 = vcmask 293920
        %1101 = vst.msk [vmem:[#allocation4] sm:$0xff] %vm1100, %v1005
        %1102 = vst.msk [vmem:[#allocation4 + $0x18] sm:$0xff] %vm1100, %v1007
        %1103 = vst.msk [vmem:[#allocation4 + $0x30] sm:$0xff] %vm1100, %v1009
        %1104 = vst.msk [vmem:[#allocation4 + $0x48] sm:$0xff] %vm1100, %v1011
        %1105 = vst.msk [vmem:[#allocation4 + $0x60] sm:$0xff] %vm1100, %v1013
        %1106 = vst.msk [vmem:[#allocation4 + $0x78] sm:$0xff] %vm1100, %v1015
        %1107 = vst.msk [vmem:[#allocation4 + $0x90] sm:$0xff] %vm1100, %v1017
        %1108 = vst.msk [vmem:[#allocation4 + $0xa8] sm:$0xff] %vm1100, %v1019
        %1109 = vst.msk [vmem:[#allocation4 + $0xc0] sm:$0xff] %vm1100, %v1021
        %1110 = vst.msk [vmem:[#allocation4 + $0xd8] sm:$0xff] %vm1100, %v1023
        %1111 = vst.msk [vmem:[#allocation4 + $0xf0] sm:$0xff] %vm1100, %v1025
        %1112 = vst.msk [vmem:[#allocation4 + $0x108] sm:$0xff] %vm1100, %v1027
        %1113 = vst.msk [vmem:[#allocation4 + $0x120] sm:$0xff] %vm1100, %v1029
        %1114 = vst.msk [vmem:[#allocation4 + $0x138] sm:$0xff] %vm1100, %v1031
        %1115 = vst.msk [vmem:[#allocation4 + $0x150] sm:$0xff] %vm1100, %v1033
        %1116 = vst.msk [vmem:[#allocation4 + $0x168] sm:$0xff] %vm1100, %v1035
        %1117 = vst.msk [vmem:[#allocation4 + $0x180] sm:$0xff] %vm1100, %v1037
        %1118 = vst.msk [vmem:[#allocation4 + $0x198] sm:$0xff] %vm1100, %v1039
        %1119 = vst.msk [vmem:[#allocation4 + $0x1b0] sm:$0xff] %vm1100, %v1041
        %1120 = vst.msk [vmem:[#allocation4 + $0x1c8] sm:$0xff] %vm1100, %v1043
        %1121 = vst.msk [vmem:[#allocation4 + $0x1e0] sm:$0xff] %vm1100, %v1045
        %1122 = vst.msk [vmem:[#allocation4 + $0x1f8] sm:$0xff] %vm1100, %v1047
        %1123 = vst.msk [vmem:[#allocation4 + $0x210] sm:$0xff] %vm1100, %v1049
        %1124 = vst.msk [vmem:[#allocation4 + $0x228] sm:$0xff] %vm1100, %v1051
        %1125 = vst.msk [vmem:[#allocation4 + $0x240] sm:$0xff] %vm1100, %v1053
        %1126 = vst.msk [vmem:[#allocation4 + $0x258] sm:$0xff] %vm1100, %v1055
        %1127 = vst.msk [vmem:[#allocation4 + $0x270] sm:$0xff] %vm1100, %v1057
        %1128 = vst.msk [vmem:[#allocation4 + $0x288] sm:$0xff] %vm1100, %v1059
        %1129 = vst.msk [vmem:[#allocation4 + $0x2a0] sm:$0xff] %vm1100, %v1061
        %1130 = vst.msk [vmem:[#allocation4 + $0x2b8] sm:$0xff] %vm1100, %v1063
        %1131 = vst.msk [vmem:[#allocation4 + $0x2d0] sm:$0xff] %vm1100, %v1065
        %1132 = vst.msk [vmem:[#allocation4 + $0x2e8] sm:$0xff] %vm1100, %v1067
        %vm1229 = vcmask 1046528
        %v1230 = vrot.slane %v660, 1
        %v1231 = vrot.slane %v661, 1
        %v1232 = vsel %vm1229, %v1230, %v1231
        %v1233 = vrot.slane %v662, 1
        %v1234 = vsel %vm1229, %v1231, %v1233
        %v1235 = vrot.slane %v663, 1
        %v1236 = vrot.slane %v664, 1
        %v1237 = vsel %vm1229, %v1235, %v1236
        %v1238 = vrot.slane %v665, 1
        %v1239 = vsel %vm1229, %v1236, %v1238
        %v1240 = vrot.slane %v666, 1
        %v1241 = vrot.slane %v667, 1
        %v1242 = vsel %vm1229, %v1240, %v1241
        %v1243 = vrot.slane %v668, 1
        %v1244 = vsel %vm1229, %v1241, %v1243
        %v1245 = vrot.slane %v669, 1
        %v1246 = vrot.slane %v670, 1
        %v1247 = vsel %vm1229, %v1245, %v1246
        %v1248 = vrot.slane %v671, 1
        %v1249 = vsel %vm1229, %v1246, %v1248
        %v1250 = vrot.slane %v672, 1
        %v1251 = vrot.slane %v673, 1
        %v1252 = vsel %vm1229, %v1250, %v1251
        %v1253 = vrot.slane %v674, 1
        %v1254 = vsel %vm1229, %v1251, %v1253
        %v1255 = vrot.slane %v675, 1
        %v1256 = vrot.slane %v676, 1
        %v1257 = vsel %vm1229, %v1255, %v1256
        %v1258 = vrot.slane %v677, 1
        %v1259 = vsel %vm1229, %v1256, %v1258
        %v1260 = vrot.slane %v678, 1
        %v1261 = vrot.slane %v679, 1
        %v1262 = vsel %vm1229, %v1260, %v1261
        %v1263 = vrot.slane %v680, 1
        %v1264 = vsel %vm1229, %v1261, %v1263
        %v1265 = vrot.slane %v681, 1
        %v1266 = vrot.slane %v682, 1
        %v1267 = vsel %vm1229, %v1265, %v1266
        %v1268 = vrot.slane %v683, 1
        %v1269 = vsel %vm1229, %v1266, %v1268
        %v1270 = vrot.slane %v684, 1
        %v1271 = vrot.slane %v685, 1
        %v1272 = vsel %vm1229, %v1270, %v1271
        %v1273 = vrot.slane %v686, 1
        %v1274 = vsel %vm1229, %v1271, %v1273
        %v1275 = vrot.slane %v687, 1
        %v1276 = vrot.slane %v688, 1
        %v1277 = vsel %vm1229, %v1275, %v1276
        %v1278 = vrot.slane %v689, 1
        %v1279 = vsel %vm1229, %v1276, %v1278
        %v1280 = vrot.slane %v690, 1
        %v1281 = vrot.slane %v691, 1
        %v1282 = vsel %vm1229, %v1280, %v1281
        %v1283 = vrot.slane %v692, 1
        %v1284 = vsel %vm1229, %v1281, %v1283
        %v1285 = vrot.slane %v693, 1
        %v1286 = vrot.slane %v694, 1
        %v1287 = vsel %vm1229, %v1285, %v1286
        %v1288 = vrot.slane %v695, 1
        %v1289 = vsel %vm1229, %v1286, %v1288
        %v1290 = vrot.slane %v696, 1
        %v1291 = vrot.slane %v697, 1
        %v1292 = vsel %vm1229, %v1290, %v1291
        %v1293 = vrot.slane %v698, 1
        %v1294 = vsel %vm1229, %v1291, %v1293
        %v1295 = vrot.slane %v699, 1
        %v1296 = vrot.slane %v700, 1
        %v1297 = vsel %vm1229, %v1295, %v1296
        %v1298 = vrot.slane %v701, 1
        %v1299 = vsel %vm1229, %v1296, %v1298
        %v1300 = vrot.slane %v702, 1
        %v1301 = vrot.slane %v703, 1
        %v1302 = vsel %vm1229, %v1300, %v1301
        %v1303 = vrot.slane %v704, 1
        %v1304 = vsel %vm1229, %v1301, %v1303
        %v1305 = vrot.slane %v705, 1
        %v1306 = vrot.slane %v706, 1
        %v1307 = vsel %vm1229, %v1305, %v1306
        %v1308 = vrot.slane %v707, 1
        %v1309 = vsel %vm1229, %v1306, %v1308
        %v1310 = vrot.slane %v714, 1
        %v1311 = vrot.slane %v715, 1
        %v1312 = vsel %vm1229, %v1310, %v1311
        %v1313 = vrot.slane %v716, 1
        %v1314 = vsel %vm1229, %v1311, %v1313
        %v1315 = vrot.slane %v717, 1
        %v1316 = vrot.slane %v718, 1
        %v1317 = vsel %vm1229, %v1315, %v1316
        %v1318 = vrot.slane %v719, 1
        %v1319 = vsel %vm1229, %v1316, %v1318
        %v1320 = vrot.slane %v720, 1
        %v1321 = vrot.slane %v721, 1
        %v1322 = vsel %vm1229, %v1320, %v1321
        %v1323 = vrot.slane %v722, 1
        %v1324 = vsel %vm1229, %v1321, %v1323
        %v1325 = vrot.slane %v723, 1
        %v1326 = vrot.slane %v724, 1
        %v1327 = vsel %vm1229, %v1325, %v1326
        %v1328 = vrot.slane %v725, 1
        %v1329 = vsel %vm1229, %v1326, %v1328
        %v1330 = vrot.slane %v726, 1
        %v1331 = vrot.slane %v727, 1
        %v1332 = vsel %vm1229, %v1330, %v1331
        %v1333 = vrot.slane %v728, 1
        %v1334 = vsel %vm1229, %v1331, %v1333
        %v1335 = vrot.slane %v729, 1
        %v1336 = vrot.slane %v730, 1
        %v1337 = vsel %vm1229, %v1335, %v1336
        %v1338 = vrot.slane %v731, 1
        %v1339 = vsel %vm1229, %v1336, %v1338
        %v1340 = vrot.slane %v732, 1
        %v1341 = vrot.slane %v733, 1
        %v1342 = vsel %vm1229, %v1340, %v1341
        %v1343 = vrot.slane %v734, 1
        %v1344 = vsel %vm1229, %v1341, %v1343
        %v1345 = vrot.slane %v735, 1
        %v1346 = vrot.slane %v736, 1
        %v1347 = vsel %vm1229, %v1345, %v1346
        %v1348 = vrot.slane %v737, 1
        %v1349 = vsel %vm1229, %v1346, %v1348
        %v1350 = vrot.slane %v738, 1
        %v1351 = vrot.slane %v739, 1
        %v1352 = vsel %vm1229, %v1350, %v1351
        %v1353 = vrot.slane %v740, 1
        %v1354 = vsel %vm1229, %v1351, %v1353
        %v1355 = vrot.slane %v741, 1
        %v1356 = vrot.slane %v742, 1
        %v1357 = vsel %vm1229, %v1355, %v1356
        %v1358 = vrot.slane %v743, 1
        %v1359 = vsel %vm1229, %v1356, %v1358
        %v1360 = vrot.slane %v744, 1
        %v1361 = vrot.slane %v745, 1
        %v1362 = vsel %vm1229, %v1360, %v1361
        %v1363 = vrot.slane %v746, 1
        %v1364 = vsel %vm1229, %v1361, %v1363
        %v1365 = vrot.slane %v747, 1
        %v1366 = vrot.slane %v748, 1
        %v1367 = vsel %vm1229, %v1365, %v1366
        %v1368 = vrot.slane %v749, 1
        %v1369 = vsel %vm1229, %v1366, %v1368
        %v1370 = vrot.slane %v750, 1
        %v1371 = vrot.slane %v751, 1
        %v1372 = vsel %vm1229, %v1370, %v1371
        %v1373 = vrot.slane %v752, 1
        %v1374 = vsel %vm1229, %v1371, %v1373
        %v1375 = vrot.slane %v753, 1
        %v1376 = vrot.slane %v754, 1
        %v1377 = vsel %vm1229, %v1375, %v1376
        %v1378 = vrot.slane %v755, 1
        %v1379 = vsel %vm1229, %v1376, %v1378
        %v1380 = vrot.slane %v756, 1
        %v1381 = vrot.slane %v757, 1
        %v1382 = vsel %vm1229, %v1380, %v1381
        %v1383 = vrot.slane %v758, 1
        %v1384 = vsel %vm1229, %v1381, %v1383
        %v1385 = vrot.slane %v759, 1
        %v1386 = vrot.slane %v760, 1
        %v1387 = vsel %vm1229, %v1385, %v1386
        %v1388 = vrot.slane %v761, 1
        %v1389 = vsel %vm1229, %v1386, %v1388
        %v1454 = vpack.c.bf16 %v1234, %v1232
        %v1455 = vpack.c.bf16 %v1239, %v1237
        %v1456 = vpack.c.bf16 %v1244, %v1242
        %v1457 = vpack.c.bf16 %v1249, %v1247
        %v1458 = vpack.c.bf16 %v1254, %v1252
        %v1459 = vpack.c.bf16 %v1259, %v1257
        %v1460 = vpack.c.bf16 %v1264, %v1262
        %v1461 = vpack.c.bf16 %v1269, %v1267
        %v1462 = vpack.c.bf16 %v1274, %v1272
        %v1463 = vpack.c.bf16 %v1279, %v1277
        %v1464 = vpack.c.bf16 %v1284, %v1282
        %v1465 = vpack.c.bf16 %v1289, %v1287
        %v1466 = vpack.c.bf16 %v1294, %v1292
        %v1467 = vpack.c.bf16 %v1299, %v1297
        %v1468 = vpack.c.bf16 %v1304, %v1302
        %v1469 = vpack.c.bf16 %v1309, %v1307
        %v1470 = vpack.c.bf16 %v1314, %v1312
        %v1471 = vpack.c.bf16 %v1319, %v1317
        %v1472 = vpack.c.bf16 %v1324, %v1322
        %v1473 = vpack.c.bf16 %v1329, %v1327
        %v1474 = vpack.c.bf16 %v1334, %v1332
        %v1475 = vpack.c.bf16 %v1339, %v1337
        %v1476 = vpack.c.bf16 %v1344, %v1342
        %v1477 = vpack.c.bf16 %v1349, %v1347
        %v1478 = vpack.c.bf16 %v1354, %v1352
        %v1479 = vpack.c.bf16 %v1359, %v1357
        %v1480 = vpack.c.bf16 %v1364, %v1362
        %v1481 = vpack.c.bf16 %v1369, %v1367
        %v1482 = vpack.c.bf16 %v1374, %v1372
        %v1483 = vpack.c.bf16 %v1379, %v1377
        %v1484 = vpack.c.bf16 %v1384, %v1382
        %v1485 = vpack.c.bf16 %v1389, %v1387
        %1518 = vrot.lane.b32.xlu0 %v1454, 36
        %v1519 = vpop.permute.xlu0 %1518
        %1520 = vrot.lane.b32.xlu0 %v1455, 36
        %v1521 = vpop.permute.xlu0 %1520
        %1522 = vrot.lane.b32.xlu0 %v1456, 36
        %v1523 = vpop.permute.xlu0 %1522
        %1524 = vrot.lane.b32.xlu0 %v1457, 36
        %v1525 = vpop.permute.xlu0 %1524
        %1526 = vrot.lane.b32.xlu0 %v1458, 36
        %v1527 = vpop.permute.xlu0 %1526
        %1528 = vrot.lane.b32.xlu0 %v1459, 36
        %v1529 = vpop.permute.xlu0 %1528
        %1530 = vrot.lane.b32.xlu0 %v1460, 36
        %v1531 = vpop.permute.xlu0 %1530
        %1532 = vrot.lane.b32.xlu0 %v1461, 36
        %v1533 = vpop.permute.xlu0 %1532
        %1534 = vrot.lane.b32.xlu0 %v1462, 36
        %v1535 = vpop.permute.xlu0 %1534
        %1536 = vrot.lane.b32.xlu0 %v1463, 36
        %v1537 = vpop.permute.xlu0 %1536
        %1538 = vrot.lane.b32.xlu0 %v1464, 36
        %v1539 = vpop.permute.xlu0 %1538
        %1540 = vrot.lane.b32.xlu0 %v1465, 36
        %v1541 = vpop.permute.xlu0 %1540
        %1542 = vrot.lane.b32.xlu0 %v1466, 36
        %v1543 = vpop.permute.xlu0 %1542
        %1544 = vrot.lane.b32.xlu0 %v1467, 36
        %v1545 = vpop.permute.xlu0 %1544
        %1546 = vrot.lane.b32.xlu0 %v1468, 36
        %v1547 = vpop.permute.xlu0 %1546
        %1548 = vrot.lane.b32.xlu0 %v1469, 36
        %v1549 = vpop.permute.xlu0 %1548
        %1550 = vrot.lane.b32.xlu0 %v1470, 36
        %v1551 = vpop.permute.xlu0 %1550
        %1552 = vrot.lane.b32.xlu0 %v1471, 36
        %v1553 = vpop.permute.xlu0 %1552
        %1554 = vrot.lane.b32.xlu0 %v1472, 36
        %v1555 = vpop.permute.xlu0 %1554
        %1556 = vrot.lane.b32.xlu0 %v1473, 36
        %v1557 = vpop.permute.xlu0 %1556
        %1558 = vrot.lane.b32.xlu0 %v1474, 36
        %v1559 = vpop.permute.xlu0 %1558
        %1560 = vrot.lane.b32.xlu0 %v1475, 36
        %v1561 = vpop.permute.xlu0 %1560
        %1562 = vrot.lane.b32.xlu0 %v1476, 36
        %v1563 = vpop.permute.xlu0 %1562
        %1564 = vrot.lane.b32.xlu0 %v1477, 36
        %v1565 = vpop.permute.xlu0 %1564
        %1566 = vrot.lane.b32.xlu0 %v1478, 36
        %v1567 = vpop.permute.xlu0 %1566
        %1568 = vrot.lane.b32.xlu0 %v1479, 36
        %v1569 = vpop.permute.xlu0 %1568
        %1570 = vrot.lane.b32.xlu0 %v1480, 36
        %v1571 = vpop.permute.xlu0 %1570
        %1572 = vrot.lane.b32.xlu0 %v1481, 36
        %v1573 = vpop.permute.xlu0 %1572
        %1574 = vrot.lane.b32.xlu0 %v1482, 36
        %v1575 = vpop.permute.xlu0 %1574
        %1576 = vrot.lane.b32.xlu0 %v1483, 36
        %v1577 = vpop.permute.xlu0 %1576
        %1578 = vrot.lane.b32.xlu0 %v1484, 36
        %v1579 = vpop.permute.xlu0 %1578
        %1580 = vrot.lane.b32.xlu0 %v1485, 36
        %v1581 = vpop.permute.xlu0 %1580
        %vm1614 = vcmask 326944
        %1615 = vst.msk [vmem:[#allocation4] sm:$0xff] %vm1614, %v1519
        %1616 = vst.msk [vmem:[#allocation4 + $0x18] sm:$0xff] %vm1614, %v1521
        %1617 = vst.msk [vmem:[#allocation4 + $0x30] sm:$0xff] %vm1614, %v1523
        %1618 = vst.msk [vmem:[#allocation4 + $0x48] sm:$0xff] %vm1614, %v1525
        %1619 = vst.msk [vmem:[#allocation4 + $0x60] sm:$0xff] %vm1614, %v1527
        %1620 = vst.msk [vmem:[#allocation4 + $0x78] sm:$0xff] %vm1614, %v1529
        %1621 = vst.msk [vmem:[#allocation4 + $0x90] sm:$0xff] %vm1614, %v1531
        %1622 = vst.msk [vmem:[#allocation4 + $0xa8] sm:$0xff] %vm1614, %v1533
        %1623 = vst.msk [vmem:[#allocation4 + $0xc0] sm:$0xff] %vm1614, %v1535
        %1624 = vst.msk [vmem:[#allocation4 + $0xd8] sm:$0xff] %vm1614, %v1537
        %1625 = vst.msk [vmem:[#allocation4 + $0xf0] sm:$0xff] %vm1614, %v1539
        %1626 = vst.msk [vmem:[#allocation4 + $0x108] sm:$0xff] %vm1614, %v1541
        %1627 = vst.msk [vmem:[#allocation4 + $0x120] sm:$0xff] %vm1614, %v1543
        %1628 = vst.msk [vmem:[#allocation4 + $0x138] sm:$0xff] %vm1614, %v1545
        %1629 = vst.msk [vmem:[#allocation4 + $0x150] sm:$0xff] %vm1614, %v1547
        %1630 = vst.msk [vmem:[#allocation4 + $0x168] sm:$0xff] %vm1614, %v1549
        %1631 = vst.msk [vmem:[#allocation4 + $0x180] sm:$0xff] %vm1614, %v1551
        %1632 = vst.msk [vmem:[#allocation4 + $0x198] sm:$0xff] %vm1614, %v1553
        %1633 = vst.msk [vmem:[#allocation4 + $0x1b0] sm:$0xff] %vm1614, %v1555
        %1634 = vst.msk [vmem:[#allocation4 + $0x1c8] sm:$0xff] %vm1614, %v1557
        %1635 = vst.msk [vmem:[#allocation4 + $0x1e0] sm:$0xff] %vm1614, %v1559
        %1636 = vst.msk [vmem:[#allocation4 + $0x1f8] sm:$0xff] %vm1614, %v1561
        %1637 = vst.msk [vmem:[#allocation4 + $0x210] sm:$0xff] %vm1614, %v1563
        %1638 = vst.msk [vmem:[#allocation4 + $0x228] sm:$0xff] %vm1614, %v1565
        %1639 = vst.msk [vmem:[#allocation4 + $0x240] sm:$0xff] %vm1614, %v1567
        %1640 = vst.msk [vmem:[#allocation4 + $0x258] sm:$0xff] %vm1614, %v1569
        %1641 = vst.msk [vmem:[#allocation4 + $0x270] sm:$0xff] %vm1614, %v1571
        %1642 = vst.msk [vmem:[#allocation4 + $0x288] sm:$0xff] %vm1614, %v1573
        %1643 = vst.msk [vmem:[#allocation4 + $0x2a0] sm:$0xff] %vm1614, %v1575
        %1644 = vst.msk [vmem:[#allocation4 + $0x2b8] sm:$0xff] %vm1614, %v1577
        %1645 = vst.msk [vmem:[#allocation4 + $0x2d0] sm:$0xff] %vm1614, %v1579
        %1646 = vst.msk [vmem:[#allocation4 + $0x2e8] sm:$0xff] %vm1614, %v1581
        %v1743 = vrot.slane %v768, 1
        %v1744 = vrot.slane %v769, 1
        %v1745 = vsel %vm1229, %v1743, %v1744
        %v1746 = vrot.slane %v770, 1
        %v1747 = vsel %vm1229, %v1744, %v1746
        %v1748 = vrot.slane %v771, 1
        %v1749 = vrot.slane %v772, 1
        %v1750 = vsel %vm1229, %v1748, %v1749
        %v1751 = vrot.slane %v773, 1
        %v1752 = vsel %vm1229, %v1749, %v1751
        %v1753 = vrot.slane %v774, 1
        %v1754 = vrot.slane %v775, 1
        %v1755 = vsel %vm1229, %v1753, %v1754
        %v1756 = vrot.slane %v776, 1
        %v1757 = vsel %vm1229, %v1754, %v1756
        %v1758 = vrot.slane %v777, 1
        %v1759 = vrot.slane %v778, 1
        %v1760 = vsel %vm1229, %v1758, %v1759
        %v1761 = vrot.slane %v779, 1
        %v1762 = vsel %vm1229, %v1759, %v1761
        %v1763 = vrot.slane %v780, 1
        %v1764 = vrot.slane %v781, 1
        %v1765 = vsel %vm1229, %v1763, %v1764
        %v1766 = vrot.slane %v782, 1
        %v1767 = vsel %vm1229, %v1764, %v1766
        %v1768 = vrot.slane %v783, 1
        %v1769 = vrot.slane %v784, 1
        %v1770 = vsel %vm1229, %v1768, %v1769
        %v1771 = vrot.slane %v785, 1
        %v1772 = vsel %vm1229, %v1769, %v1771
        %v1773 = vrot.slane %v786, 1
        %v1774 = vrot.slane %v787, 1
        %v1775 = vsel %vm1229, %v1773, %v1774
        %v1776 = vrot.slane %v788, 1
        %v1777 = vsel %vm1229, %v1774, %v1776
        %v1778 = vrot.slane %v789, 1
        %v1779 = vrot.slane %v790, 1
        %v1780 = vsel %vm1229, %v1778, %v1779
        %v1781 = vrot.slane %v791, 1
        %v1782 = vsel %vm1229, %v1779, %v1781
        %v1783 = vrot.slane %v792, 1
        %v1784 = vrot.slane %v793, 1
        %v1785 = vsel %vm1229, %v1783, %v1784
        %v1786 = vrot.slane %v794, 1
        %v1787 = vsel %vm1229, %v1784, %v1786
        %v1788 = vrot.slane %v795, 1
        %v1789 = vrot.slane %v796, 1
        %v1790 = vsel %vm1229, %v1788, %v1789
        %v1791 = vrot.slane %v797, 1
        %v1792 = vsel %vm1229, %v1789, %v1791
        %v1793 = vrot.slane %v798, 1
        %v1794 = vrot.slane %v799, 1
        %v1795 = vsel %vm1229, %v1793, %v1794
        %v1796 = vrot.slane %v800, 1
        %v1797 = vsel %vm1229, %v1794, %v1796
        %v1798 = vrot.slane %v801, 1
        %v1799 = vrot.slane %v802, 1
        %v1800 = vsel %vm1229, %v1798, %v1799
        %v1801 = vrot.slane %v803, 1
        %v1802 = vsel %vm1229, %v1799, %v1801
        %v1803 = vrot.slane %v804, 1
        %v1804 = vrot.slane %v805, 1
        %v1805 = vsel %vm1229, %v1803, %v1804
        %v1806 = vrot.slane %v806, 1
        %v1807 = vsel %vm1229, %v1804, %v1806
        %v1808 = vrot.slane %v807, 1
        %v1809 = vrot.slane %v808, 1
        %v1810 = vsel %vm1229, %v1808, %v1809
        %v1811 = vrot.slane %v809, 1
        %v1812 = vsel %vm1229, %v1809, %v1811
        %v1813 = vrot.slane %v810, 1
        %v1814 = vrot.slane %v811, 1
        %v1815 = vsel %vm1229, %v1813, %v1814
        %v1816 = vrot.slane %v812, 1
        %v1817 = vsel %vm1229, %v1814, %v1816
        %v1818 = vrot.slane %v813, 1
        %v1819 = vrot.slane %v814, 1
        %v1820 = vsel %vm1229, %v1818, %v1819
        %v1821 = vrot.slane %v815, 1
        %v1822 = vsel %vm1229, %v1819, %v1821
        %v1823 = vrot.slane %v822, 1
        %v1824 = vrot.slane %v823, 1
        %v1825 = vsel %vm1229, %v1823, %v1824
        %v1826 = vrot.slane %v824, 1
        %v1827 = vsel %vm1229, %v1824, %v1826
        %v1828 = vrot.slane %v825, 1
        %v1829 = vrot.slane %v826, 1
        %v1830 = vsel %vm1229, %v1828, %v1829
        %v1831 = vrot.slane %v827, 1
        %v1832 = vsel %vm1229, %v1829, %v1831
        %v1833 = vrot.slane %v828, 1
        %v1834 = vrot.slane %v829, 1
        %v1835 = vsel %vm1229, %v1833, %v1834
        %v1836 = vrot.slane %v830, 1
        %v1837 = vsel %vm1229, %v1834, %v1836
        %v1838 = vrot.slane %v831, 1
        %v1839 = vrot.slane %v832, 1
        %v1840 = vsel %vm1229, %v1838, %v1839
        %v1841 = vrot.slane %v833, 1
        %v1842 = vsel %vm1229, %v1839, %v1841
        %v1843 = vrot.slane %v834, 1
        %v1844 = vrot.slane %v835, 1
        %v1845 = vsel %vm1229, %v1843, %v1844
        %v1846 = vrot.slane %v836, 1
        %v1847 = vsel %vm1229, %v1844, %v1846
        %v1848 = vrot.slane %v837, 1
        %v1849 = vrot.slane %v838, 1
        %v1850 = vsel %vm1229, %v1848, %v1849
        %v1851 = vrot.slane %v839, 1
        %v1852 = vsel %vm1229, %v1849, %v1851
        %v1853 = vrot.slane %v840, 1
        %v1854 = vrot.slane %v841, 1
        %v1855 = vsel %vm1229, %v1853, %v1854
        %v1856 = vrot.slane %v842, 1
        %v1857 = vsel %vm1229, %v1854, %v1856
        %v1858 = vrot.slane %v843, 1
        %v1859 = vrot.slane %v844, 1
        %v1860 = vsel %vm1229, %v1858, %v1859
        %v1861 = vrot.slane %v845, 1
        %v1862 = vsel %vm1229, %v1859, %v1861
        %v1863 = vrot.slane %v846, 1
        %v1864 = vrot.slane %v847, 1
        %v1865 = vsel %vm1229, %v1863, %v1864
        %v1866 = vrot.slane %v848, 1
        %v1867 = vsel %vm1229, %v1864, %v1866
        %v1868 = vrot.slane %v849, 1
        %v1869 = vrot.slane %v850, 1
        %v1870 = vsel %vm1229, %v1868, %v1869
        %v1871 = vrot.slane %v851, 1
        %v1872 = vsel %vm1229, %v1869, %v1871
        %v1873 = vrot.slane %v852, 1
        %v1874 = vrot.slane %v853, 1
        %v1875 = vsel %vm1229, %v1873, %v1874
        %v1876 = vrot.slane %v854, 1
        %v1877 = vsel %vm1229, %v1874, %v1876
        %v1878 = vrot.slane %v855, 1
        %v1879 = vrot.slane %v856, 1
        %v1880 = vsel %vm1229, %v1878, %v1879
        %v1881 = vrot.slane %v857, 1
        %v1882 = vsel %vm1229, %v1879, %v1881
        %v1883 = vrot.slane %v858, 1
        %v1884 = vrot.slane %v859, 1
        %v1885 = vsel %vm1229, %v1883, %v1884
        %v1886 = vrot.slane %v860, 1
        %v1887 = vsel %vm1229, %v1884, %v1886
        %v1888 = vrot.slane %v861, 1
        %v1889 = vrot.slane %v862, 1
        %v1890 = vsel %vm1229, %v1888, %v1889
        %v1891 = vrot.slane %v863, 1
        %v1892 = vsel %vm1229, %v1889, %v1891
        %v1893 = vrot.slane %v864, 1
        %v1894 = vrot.slane %v865, 1
        %v1895 = vsel %vm1229, %v1893, %v1894
        %v1896 = vrot.slane %v866, 1
        %v1897 = vsel %vm1229, %v1894, %v1896
        %v1898 = vrot.slane %v867, 1
        %v1899 = vrot.slane %v868, 1
        %v1900 = vsel %vm1229, %v1898, %v1899
        %v1901 = vrot.slane %v869, 1
        %v1902 = vsel %vm1229, %v1899, %v1901
        %v1967 = vpack.c.bf16 %v1747, %v1745
        %v1968 = vpack.c.bf16 %v1752, %v1750
        %v1969 = vpack.c.bf16 %v1757, %v1755
        %v1970 = vpack.c.bf16 %v1762, %v1760
        %v1971 = vpack.c.bf16 %v1767, %v1765
        %v1972 = vpack.c.bf16 %v1772, %v1770
        %v1973 = vpack.c.bf16 %v1777, %v1775
        %v1974 = vpack.c.bf16 %v1782, %v1780
        %v1975 = vpack.c.bf16 %v1787, %v1785
        %v1976 = vpack.c.bf16 %v1792, %v1790
        %v1977 = vpack.c.bf16 %v1797, %v1795
        %v1978 = vpack.c.bf16 %v1802, %v1800
        %v1979 = vpack.c.bf16 %v1807, %v1805
        %v1980 = vpack.c.bf16 %v1812, %v1810
        %v1981 = vpack.c.bf16 %v1817, %v1815
        %v1982 = vpack.c.bf16 %v1822, %v1820
        %v1983 = vpack.c.bf16 %v1827, %v1825
        %v1984 = vpack.c.bf16 %v1832, %v1830
        %v1985 = vpack.c.bf16 %v1837, %v1835
        %v1986 = vpack.c.bf16 %v1842, %v1840
        %v1987 = vpack.c.bf16 %v1847, %v1845
        %v1988 = vpack.c.bf16 %v1852, %v1850
        %v1989 = vpack.c.bf16 %v1857, %v1855
        %v1990 = vpack.c.bf16 %v1862, %v1860
        %v1991 = vpack.c.bf16 %v1867, %v1865
        %v1992 = vpack.c.bf16 %v1872, %v1870
        %v1993 = vpack.c.bf16 %v1877, %v1875
        %v1994 = vpack.c.bf16 %v1882, %v1880
        %v1995 = vpack.c.bf16 %v1887, %v1885
        %v1996 = vpack.c.bf16 %v1892, %v1890
        %v1997 = vpack.c.bf16 %v1897, %v1895
        %v1998 = vpack.c.bf16 %v1902, %v1900
        %2031 = vrot.lane.b32.xlu0 %v1967, 40
        %v2032 = vpop.permute.xlu0 %2031
        %2033 = vrot.lane.b32.xlu0 %v1968, 40
        %v2034 = vpop.permute.xlu0 %2033
        %2035 = vrot.lane.b32.xlu0 %v1969, 40
        %v2036 = vpop.permute.xlu0 %2035
        %2037 = vrot.lane.b32.xlu0 %v1970, 40
        %v2038 = vpop.permute.xlu0 %2037
        %2039 = vrot.lane.b32.xlu0 %v1971, 40
        %v2040 = vpop.permute.xlu0 %2039
        %2041 = vrot.lane.b32.xlu0 %v1972, 40
        %v2042 = vpop.permute.xlu0 %2041
        %2043 = vrot.lane.b32.xlu0 %v1973, 40
        %v2044 = vpop.permute.xlu0 %2043
        %2045 = vrot.lane.b32.xlu0 %v1974, 40
        %v2046 = vpop.permute.xlu0 %2045
        %2047 = vrot.lane.b32.xlu0 %v1975, 40
        %v2048 = vpop.permute.xlu0 %2047
        %2049 = vrot.lane.b32.xlu0 %v1976, 40
        %v2050 = vpop.permute.xlu0 %2049
        %2051 = vrot.lane.b32.xlu0 %v1977, 40
        %v2052 = vpop.permute.xlu0 %2051
        %2053 = vrot.lane.b32.xlu0 %v1978, 40
        %v2054 = vpop.permute.xlu0 %2053
        %2055 = vrot.lane.b32.xlu0 %v1979, 40
        %v2056 = vpop.permute.xlu0 %2055
        %2057 = vrot.lane.b32.xlu0 %v1980, 40
        %v2058 = vpop.permute.xlu0 %2057
        %2059 = vrot.lane.b32.xlu0 %v1981, 40
        %v2060 = vpop.permute.xlu0 %2059
        %2061 = vrot.lane.b32.xlu0 %v1982, 40
        %v2062 = vpop.permute.xlu0 %2061
        %2063 = vrot.lane.b32.xlu0 %v1983, 40
        %v2064 = vpop.permute.xlu0 %2063
        %2065 = vrot.lane.b32.xlu0 %v1984, 40
        %v2066 = vpop.permute.xlu0 %2065
        %2067 = vrot.lane.b32.xlu0 %v1985, 40
        %v2068 = vpop.permute.xlu0 %2067
        %2069 = vrot.lane.b32.xlu0 %v1986, 40
        %v2070 = vpop.permute.xlu0 %2069
        %2071 = vrot.lane.b32.xlu0 %v1987, 40
        %v2072 = vpop.permute.xlu0 %2071
        %2073 = vrot.lane.b32.xlu0 %v1988, 40
        %v2074 = vpop.permute.xlu0 %2073
        %2075 = vrot.lane.b32.xlu0 %v1989, 40
        %v2076 = vpop.permute.xlu0 %2075
        %2077 = vrot.lane.b32.xlu0 %v1990, 40
        %v2078 = vpop.permute.xlu0 %2077
        %2079 = vrot.lane.b32.xlu0 %v1991, 40
        %v2080 = vpop.permute.xlu0 %2079
        %2081 = vrot.lane.b32.xlu0 %v1992, 40
        %v2082 = vpop.permute.xlu0 %2081
        %2083 = vrot.lane.b32.xlu0 %v1993, 40
        %v2084 = vpop.permute.xlu0 %2083
        %2085 = vrot.lane.b32.xlu0 %v1994, 40
        %v2086 = vpop.permute.xlu0 %2085
        %2087 = vrot.lane.b32.xlu0 %v1995, 40
        %v2088 = vpop.permute.xlu0 %2087
        %2089 = vrot.lane.b32.xlu0 %v1996, 40
        %v2090 = vpop.permute.xlu0 %2089
        %2091 = vrot.lane.b32.xlu0 %v1997, 40
        %v2092 = vpop.permute.xlu0 %2091
        %2093 = vrot.lane.b32.xlu0 %v1998, 40
        %v2094 = vpop.permute.xlu0 %2093
        %vm2127 = vcmask 589120
        %2128 = vst.msk [vmem:[#allocation4] sm:$0xff] %vm2127, %v2032
        %2129 = vst.msk [vmem:[#allocation4 + $0x18] sm:$0xff] %vm2127, %v2034
        %2130 = vst.msk [vmem:[#allocation4 + $0x30] sm:$0xff] %vm2127, %v2036
        %2131 = vst.msk [vmem:[#allocation4 + $0x48] sm:$0xff] %vm2127, %v2038
        %2132 = vst.msk [vmem:[#allocation4 + $0x60] sm:$0xff] %vm2127, %v2040
        %2133 = vst.msk [vmem:[#allocation4 + $0x78] sm:$0xff] %vm2127, %v2042
        %2134 = vst.msk [vmem:[#allocation4 + $0x90] sm:$0xff] %vm2127, %v2044
        %2135 = vst.msk [vmem:[#allocation4 + $0xa8] sm:$0xff] %vm2127, %v2046
        %2136 = vst.msk [vmem:[#allocation4 + $0xc0] sm:$0xff] %vm2127, %v2048
        %2137 = vst.msk [vmem:[#allocation4 + $0xd8] sm:$0xff] %vm2127, %v2050
        %2138 = vst.msk [vmem:[#allocation4 + $0xf0] sm:$0xff] %vm2127, %v2052
        %2139 = vst.msk [vmem:[#allocation4 + $0x108] sm:$0xff] %vm2127, %v2054
        %2140 = vst.msk [vmem:[#allocation4 + $0x120] sm:$0xff] %vm2127, %v2056
        %2141 = vst.msk [vmem:[#allocation4 + $0x138] sm:$0xff] %vm2127, %v2058
        %2142 = vst.msk [vmem:[#allocation4 + $0x150] sm:$0xff] %vm2127, %v2060
        %2143 = vst.msk [vmem:[#allocation4 + $0x168] sm:$0xff] %vm2127, %v2062
        %2144 = vst.msk [vmem:[#allocation4 + $0x180] sm:$0xff] %vm2127, %v2064
        %2145 = vst.msk [vmem:[#allocation4 + $0x198] sm:$0xff] %vm2127, %v2066
        %2146 = vst.msk [vmem:[#allocation4 + $0x1b0] sm:$0xff] %vm2127, %v2068
        %2147 = vst.msk [vmem:[#allocation4 + $0x1c8] sm:$0xff] %vm2127, %v2070
        %2148 = vst.msk [vmem:[#allocation4 + $0x1e0] sm:$0xff] %vm2127, %v2072
        %2149 = vst.msk [vmem:[#allocation4 + $0x1f8] sm:$0xff] %vm2127, %v2074
        %2150 = vst.msk [vmem:[#allocation4 + $0x210] sm:$0xff] %vm2127, %v2076
        %2151 = vst.msk [vmem:[#allocation4 + $0x228] sm:$0xff] %vm2127, %v2078
        %2152 = vst.msk [vmem:[#allocation4 + $0x240] sm:$0xff] %vm2127, %v2080
        %2153 = vst.msk [vmem:[#allocation4 + $0x258] sm:$0xff] %vm2127, %v2082
        %2154 = vst.msk [vmem:[#allocation4 + $0x270] sm:$0xff] %vm2127, %v2084
        %2155 = vst.msk [vmem:[#allocation4 + $0x288] sm:$0xff] %vm2127, %v2086
        %2156 = vst.msk [vmem:[#allocation4 + $0x2a0] sm:$0xff] %vm2127, %v2088
        %2157 = vst.msk [vmem:[#allocation4 + $0x2b8] sm:$0xff] %vm2127, %v2090
        %2158 = vst.msk [vmem:[#allocation4 + $0x2d0] sm:$0xff] %vm2127, %v2092
        %2159 = vst.msk [vmem:[#allocation4 + $0x2e8] sm:$0xff] %vm2127, %v2094
        %vm2160 = vcmask 1045504
        %v2161 = vrot.slane %v660, 2
        %v2162 = vrot.slane %v661, 2
        %v2163 = vsel %vm2160, %v2161, %v2162
        %v2164 = vrot.slane %v662, 2
        %v2165 = vsel %vm2160, %v2162, %v2164
        %v2166 = vrot.slane %v663, 2
        %v2167 = vrot.slane %v664, 2
        %v2168 = vsel %vm2160, %v2166, %v2167
        %v2169 = vrot.slane %v665, 2
        %v2170 = vsel %vm2160, %v2167, %v2169
        %v2171 = vrot.slane %v666, 2
        %v2172 = vrot.slane %v667, 2
        %v2173 = vsel %vm2160, %v2171, %v2172
        %v2174 = vrot.slane %v668, 2
        %v2175 = vsel %vm2160, %v2172, %v2174
        %v2176 = vrot.slane %v669, 2
        %v2177 = vrot.slane %v670, 2
        %v2178 = vsel %vm2160, %v2176, %v2177
        %v2179 = vrot.slane %v671, 2
        %v2180 = vsel %vm2160, %v2177, %v2179
        %v2181 = vrot.slane %v672, 2
        %v2182 = vrot.slane %v673, 2
        %v2183 = vsel %vm2160, %v2181, %v2182
        %v2184 = vrot.slane %v674, 2
        %v2185 = vsel %vm2160, %v2182, %v2184
        %v2186 = vrot.slane %v675, 2
        %v2187 = vrot.slane %v676, 2
        %v2188 = vsel %vm2160, %v2186, %v2187
        %v2189 = vrot.slane %v677, 2
        %v2190 = vsel %vm2160, %v2187, %v2189
        %v2191 = vrot.slane %v678, 2
        %v2192 = vrot.slane %v679, 2
        %v2193 = vsel %vm2160, %v2191, %v2192
        %v2194 = vrot.slane %v680, 2
        %v2195 = vsel %vm2160, %v2192, %v2194
        %v2196 = vrot.slane %v681, 2
        %v2197 = vrot.slane %v682, 2
        %v2198 = vsel %vm2160, %v2196, %v2197
        %v2199 = vrot.slane %v683, 2
        %v2200 = vsel %vm2160, %v2197, %v2199
        %v2201 = vrot.slane %v684, 2
        %v2202 = vrot.slane %v685, 2
        %v2203 = vsel %vm2160, %v2201, %v2202
        %v2204 = vrot.slane %v686, 2
        %v2205 = vsel %vm2160, %v2202, %v2204
        %v2206 = vrot.slane %v687, 2
        %v2207 = vrot.slane %v688, 2
        %v2208 = vsel %vm2160, %v2206, %v2207
        %v2209 = vrot.slane %v689, 2
        %v2210 = vsel %vm2160, %v2207, %v2209
        %v2211 = vrot.slane %v690, 2
        %v2212 = vrot.slane %v691, 2
        %v2213 = vsel %vm2160, %v2211, %v2212
        %v2214 = vrot.slane %v692, 2
        %v2215 = vsel %vm2160, %v2212, %v2214
        %v2216 = vrot.slane %v693, 2
        %v2217 = vrot.slane %v694, 2
        %v2218 = vsel %vm2160, %v2216, %v2217
        %v2219 = vrot.slane %v695, 2
        %v2220 = vsel %vm2160, %v2217, %v2219
        %v2221 = vrot.slane %v696, 2
        %v2222 = vrot.slane %v697, 2
        %v2223 = vsel %vm2160, %v2221, %v2222
        %v2224 = vrot.slane %v698, 2
        %v2225 = vsel %vm2160, %v2222, %v2224
        %v2226 = vrot.slane %v699, 2
        %v2227 = vrot.slane %v700, 2
        %v2228 = vsel %vm2160, %v2226, %v2227
        %v2229 = vrot.slane %v701, 2
        %v2230 = vsel %vm2160, %v2227, %v2229
        %v2231 = vrot.slane %v702, 2
        %v2232 = vrot.slane %v703, 2
        %v2233 = vsel %vm2160, %v2231, %v2232
        %v2234 = vrot.slane %v704, 2
        %v2235 = vsel %vm2160, %v2232, %v2234
        %v2236 = vrot.slane %v705, 2
        %v2237 = vrot.slane %v706, 2
        %v2238 = vsel %vm2160, %v2236, %v2237
        %v2239 = vrot.slane %v707, 2
        %v2240 = vsel %vm2160, %v2237, %v2239
        %v2241 = vrot.slane %v714, 2
        %v2242 = vrot.slane %v715, 2
        %v2243 = vsel %vm2160, %v2241, %v2242
        %v2244 = vrot.slane %v716, 2
        %v2245 = vsel %vm2160, %v2242, %v2244
        %v2246 = vrot.slane %v717, 2
        %v2247 = vrot.slane %v718, 2
        %v2248 = vsel %vm2160, %v2246, %v2247
        %v2249 = vrot.slane %v719, 2
        %v2250 = vsel %vm2160, %v2247, %v2249
        %v2251 = vrot.slane %v720, 2
        %v2252 = vrot.slane %v721, 2
        %v2253 = vsel %vm2160, %v2251, %v2252
        %v2254 = vrot.slane %v722, 2
        %v2255 = vsel %vm2160, %v2252, %v2254
        %v2256 = vrot.slane %v723, 2
        %v2257 = vrot.slane %v724, 2
        %v2258 = vsel %vm2160, %v2256, %v2257
        %v2259 = vrot.slane %v725, 2
        %v2260 = vsel %vm2160, %v2257, %v2259
        %v2261 = vrot.slane %v726, 2
        %v2262 = vrot.slane %v727, 2
        %v2263 = vsel %vm2160, %v2261, %v2262
        %v2264 = vrot.slane %v728, 2
        %v2265 = vsel %vm2160, %v2262, %v2264
        %v2266 = vrot.slane %v729, 2
        %v2267 = vrot.slane %v730, 2
        %v2268 = vsel %vm2160, %v2266, %v2267
        %v2269 = vrot.slane %v731, 2
        %v2270 = vsel %vm2160, %v2267, %v2269
        %v2271 = vrot.slane %v732, 2
        %v2272 = vrot.slane %v733, 2
        %v2273 = vsel %vm2160, %v2271, %v2272
        %v2274 = vrot.slane %v734, 2
        %v2275 = vsel %vm2160, %v2272, %v2274
        %v2276 = vrot.slane %v735, 2
        %v2277 = vrot.slane %v736, 2
        %v2278 = vsel %vm2160, %v2276, %v2277
        %v2279 = vrot.slane %v737, 2
        %v2280 = vsel %vm2160, %v2277, %v2279
        %v2281 = vrot.slane %v738, 2
        %v2282 = vrot.slane %v739, 2
        %v2283 = vsel %vm2160, %v2281, %v2282
        %v2284 = vrot.slane %v740, 2
        %v2285 = vsel %vm2160, %v2282, %v2284
        %v2286 = vrot.slane %v741, 2
        %v2287 = vrot.slane %v742, 2
        %v2288 = vsel %vm2160, %v2286, %v2287
        %v2289 = vrot.slane %v743, 2
        %v2290 = vsel %vm2160, %v2287, %v2289
        %v2291 = vrot.slane %v744, 2
        %v2292 = vrot.slane %v745, 2
        %v2293 = vsel %vm2160, %v2291, %v2292
        %v2294 = vrot.slane %v746, 2
        %v2295 = vsel %vm2160, %v2292, %v2294
        %v2296 = vrot.slane %v747, 2
        %v2297 = vrot.slane %v748, 2
        %v2298 = vsel %vm2160, %v2296, %v2297
        %v2299 = vrot.slane %v749, 2
        %v2300 = vsel %vm2160, %v2297, %v2299
        %v2301 = vrot.slane %v750, 2
        %v2302 = vrot.slane %v751, 2
        %v2303 = vsel %vm2160, %v2301, %v2302
        %v2304 = vrot.slane %v752, 2
        %v2305 = vsel %vm2160, %v2302, %v2304
        %v2306 = vrot.slane %v753, 2
        %v2307 = vrot.slane %v754, 2
        %v2308 = vsel %vm2160, %v2306, %v2307
        %v2309 = vrot.slane %v755, 2
        %v2310 = vsel %vm2160, %v2307, %v2309
        %v2311 = vrot.slane %v756, 2
        %v2312 = vrot.slane %v757, 2
        %v2313 = vsel %vm2160, %v2311, %v2312
        %v2314 = vrot.slane %v758, 2
        %v2315 = vsel %vm2160, %v2312, %v2314
        %v2316 = vrot.slane %v759, 2
        %v2317 = vrot.slane %v760, 2
        %v2318 = vsel %vm2160, %v2316, %v2317
        %v2319 = vrot.slane %v761, 2
        %v2320 = vsel %vm2160, %v2317, %v2319
        %v2385 = vpack.c.bf16 %v2165, %v2163
        %v2386 = vpack.c.bf16 %v2170, %v2168
        %v2387 = vpack.c.bf16 %v2175, %v2173
        %v2388 = vpack.c.bf16 %v2180, %v2178
        %v2389 = vpack.c.bf16 %v2185, %v2183
        %v2390 = vpack.c.bf16 %v2190, %v2188
        %v2391 = vpack.c.bf16 %v2195, %v2193
        %v2392 = vpack.c.bf16 %v2200, %v2198
        %v2393 = vpack.c.bf16 %v2205, %v2203
        %v2394 = vpack.c.bf16 %v2210, %v2208
        %v2395 = vpack.c.bf16 %v2215, %v2213
        %v2396 = vpack.c.bf16 %v2220, %v2218
        %v2397 = vpack.c.bf16 %v2225, %v2223
        %v2398 = vpack.c.bf16 %v2230, %v2228
        %v2399 = vpack.c.bf16 %v2235, %v2233
        %v2400 = vpack.c.bf16 %v2240, %v2238
        %v2401 = vpack.c.bf16 %v2245, %v2243
        %v2402 = vpack.c.bf16 %v2250, %v2248
        %v2403 = vpack.c.bf16 %v2255, %v2253
        %v2404 = vpack.c.bf16 %v2260, %v2258
        %v2405 = vpack.c.bf16 %v2265, %v2263
        %v2406 = vpack.c.bf16 %v2270, %v2268
        %v2407 = vpack.c.bf16 %v2275, %v2273
        %v2408 = vpack.c.bf16 %v2280, %v2278
        %v2409 = vpack.c.bf16 %v2285, %v2283
        %v2410 = vpack.c.bf16 %v2290, %v2288
        %v2411 = vpack.c.bf16 %v2295, %v2293
        %v2412 = vpack.c.bf16 %v2300, %v2298
        %v2413 = vpack.c.bf16 %v2305, %v2303
        %v2414 = vpack.c.bf16 %v2310, %v2308
        %v2415 = vpack.c.bf16 %v2315, %v2313
        %v2416 = vpack.c.bf16 %v2320, %v2318
        %2449 = vrot.lane.b32.xlu0 %v2385, 72
        %v2450 = vpop.permute.xlu0 %2449
        %2451 = vrot.lane.b32.xlu0 %v2386, 72
        %v2452 = vpop.permute.xlu0 %2451
        %2453 = vrot.lane.b32.xlu0 %v2387, 72
        %v2454 = vpop.permute.xlu0 %2453
        %2455 = vrot.lane.b32.xlu0 %v2388, 72
        %v2456 = vpop.permute.xlu0 %2455
        %2457 = vrot.lane.b32.xlu0 %v2389, 72
        %v2458 = vpop.permute.xlu0 %2457
        %2459 = vrot.lane.b32.xlu0 %v2390, 72
        %v2460 = vpop.permute.xlu0 %2459
        %2461 = vrot.lane.b32.xlu0 %v2391, 72
        %v2462 = vpop.permute.xlu0 %2461
        %2463 = vrot.lane.b32.xlu0 %v2392, 72
        %v2464 = vpop.permute.xlu0 %2463
        %2465 = vrot.lane.b32.xlu0 %v2393, 72
        %v2466 = vpop.permute.xlu0 %2465
        %2467 = vrot.lane.b32.xlu0 %v2394, 72
        %v2468 = vpop.permute.xlu0 %2467
        %2469 = vrot.lane.b32.xlu0 %v2395, 72
        %v2470 = vpop.permute.xlu0 %2469
        %2471 = vrot.lane.b32.xlu0 %v2396, 72
        %v2472 = vpop.permute.xlu0 %2471
        %2473 = vrot.lane.b32.xlu0 %v2397, 72
        %v2474 = vpop.permute.xlu0 %2473
        %2475 = vrot.lane.b32.xlu0 %v2398, 72
        %v2476 = vpop.permute.xlu0 %2475
        %2477 = vrot.lane.b32.xlu0 %v2399, 72
        %v2478 = vpop.permute.xlu0 %2477
        %2479 = vrot.lane.b32.xlu0 %v2400, 72
        %v2480 = vpop.permute.xlu0 %2479
        %2481 = vrot.lane.b32.xlu0 %v2401, 72
        %v2482 = vpop.permute.xlu0 %2481
        %2483 = vrot.lane.b32.xlu0 %v2402, 72
        %v2484 = vpop.permute.xlu0 %2483
        %2485 = vrot.lane.b32.xlu0 %v2403, 72
        %v2486 = vpop.permute.xlu0 %2485
        %2487 = vrot.lane.b32.xlu0 %v2404, 72
        %v2488 = vpop.permute.xlu0 %2487
        %2489 = vrot.lane.b32.xlu0 %v2405, 72
        %v2490 = vpop.permute.xlu0 %2489
        %2491 = vrot.lane.b32.xlu0 %v2406, 72
        %v2492 = vpop.permute.xlu0 %2491
        %2493 = vrot.lane.b32.xlu0 %v2407, 72
        %v2494 = vpop.permute.xlu0 %2493
        %2495 = vrot.lane.b32.xlu0 %v2408, 72
        %v2496 = vpop.permute.xlu0 %2495
        %2497 = vrot.lane.b32.xlu0 %v2409, 72
        %v2498 = vpop.permute.xlu0 %2497
        %2499 = vrot.lane.b32.xlu0 %v2410, 72
        %v2500 = vpop.permute.xlu0 %2499
        %2501 = vrot.lane.b32.xlu0 %v2411, 72
        %v2502 = vpop.permute.xlu0 %2501
        %2503 = vrot.lane.b32.xlu0 %v2412, 72
        %v2504 = vpop.permute.xlu0 %2503
        %2505 = vrot.lane.b32.xlu0 %v2413, 72
        %v2506 = vpop.permute.xlu0 %2505
        %2507 = vrot.lane.b32.xlu0 %v2414, 72
        %v2508 = vpop.permute.xlu0 %2507
        %2509 = vrot.lane.b32.xlu0 %v2415, 72
        %v2510 = vpop.permute.xlu0 %2509
        %2511 = vrot.lane.b32.xlu0 %v2416, 72
        %v2512 = vpop.permute.xlu0 %2511
        %vm2545 = vcmask 622144
        %2546 = vst.msk [vmem:[#allocation4] sm:$0xff] %vm2545, %v2450
        %2547 = vst.msk [vmem:[#allocation4 + $0x18] sm:$0xff] %vm2545, %v2452
        %2548 = vst.msk [vmem:[#allocation4 + $0x30] sm:$0xff] %vm2545, %v2454
        %2549 = vst.msk [vmem:[#allocation4 + $0x48] sm:$0xff] %vm2545, %v2456
        %2550 = vst.msk [vmem:[#allocation4 + $0x60] sm:$0xff] %vm2545, %v2458
        %2551 = vst.msk [vmem:[#allocation4 + $0x78] sm:$0xff] %vm2545, %v2460
        %2552 = vst.msk [vmem:[#allocation4 + $0x90] sm:$0xff] %vm2545, %v2462
        %2553 = vst.msk [vmem:[#allocation4 + $0xa8] sm:$0xff] %vm2545, %v2464
        %2554 = vst.msk [vmem:[#allocation4 + $0xc0] sm:$0xff] %vm2545, %v2466
        %2555 = vst.msk [vmem:[#allocation4 + $0xd8] sm:$0xff] %vm2545, %v2468
        %2556 = vst.msk [vmem:[#allocation4 + $0xf0] sm:$0xff] %vm2545, %v2470
        %2557 = vst.msk [vmem:[#allocation4 + $0x108] sm:$0xff] %vm2545, %v2472
        %2558 = vst.msk [vmem:[#allocation4 + $0x120] sm:$0xff] %vm2545, %v2474
        %2559 = vst.msk [vmem:[#allocation4 + $0x138] sm:$0xff] %vm2545, %v2476
        %2560 = vst.msk [vmem:[#allocation4 + $0x150] sm:$0xff] %vm2545, %v2478
        %2561 = vst.msk [vmem:[#allocation4 + $0x168] sm:$0xff] %vm2545, %v2480
        %2562 = vst.msk [vmem:[#allocation4 + $0x180] sm:$0xff] %vm2545, %v2482
        %2563 = vst.msk [vmem:[#allocation4 + $0x198] sm:$0xff] %vm2545, %v2484
        %2564 = vst.msk [vmem:[#allocation4 + $0x1b0] sm:$0xff] %vm2545, %v2486
        %2565 = vst.msk [vmem:[#allocation4 + $0x1c8] sm:$0xff] %vm2545, %v2488
        %2566 = vst.msk [vmem:[#allocation4 + $0x1e0] sm:$0xff] %vm2545, %v2490
        %2567 = vst.msk [vmem:[#allocation4 + $0x1f8] sm:$0xff] %vm2545, %v2492
        %2568 = vst.msk [vmem:[#allocation4 + $0x210] sm:$0xff] %vm2545, %v2494
        %2569 = vst.msk [vmem:[#allocation4 + $0x228] sm:$0xff] %vm2545, %v2496
        %2570 = vst.msk [vmem:[#allocation4 + $0x240] sm:$0xff] %vm2545, %v2498
        %2571 = vst.msk [vmem:[#allocation4 + $0x258] sm:$0xff] %vm2545, %v2500
        %2572 = vst.msk [vmem:[#allocation4 + $0x270] sm:$0xff] %vm2545, %v2502
        %2573 = vst.msk [vmem:[#allocation4 + $0x288] sm:$0xff] %vm2545, %v2504
        %2574 = vst.msk [vmem:[#allocation4 + $0x2a0] sm:$0xff] %vm2545, %v2506
        %2575 = vst.msk [vmem:[#allocation4 + $0x2b8] sm:$0xff] %vm2545, %v2508
        %2576 = vst.msk [vmem:[#allocation4 + $0x2d0] sm:$0xff] %vm2545, %v2510
        %2577 = vst.msk [vmem:[#allocation4 + $0x2e8] sm:$0xff] %vm2545, %v2512
        %v2578 = vrot.slane %v768, 2
        %v2579 = vrot.slane %v769, 2
        %v2580 = vsel %vm2160, %v2578, %v2579
        %v2581 = vrot.slane %v770, 2
        %v2582 = vsel %vm2160, %v2579, %v2581
        %v2583 = vrot.slane %v771, 2
        %v2584 = vrot.slane %v772, 2
        %v2585 = vsel %vm2160, %v2583, %v2584
        %v2586 = vrot.slane %v773, 2
        %v2587 = vsel %vm2160, %v2584, %v2586
        %v2588 = vrot.slane %v774, 2
        %v2589 = vrot.slane %v775, 2
        %v2590 = vsel %vm2160, %v2588, %v2589
        %v2591 = vrot.slane %v776, 2
        %v2592 = vsel %vm2160, %v2589, %v2591
        %v2593 = vrot.slane %v777, 2
        %v2594 = vrot.slane %v778, 2
        %v2595 = vsel %vm2160, %v2593, %v2594
        %v2596 = vrot.slane %v779, 2
        %v2597 = vsel %vm2160, %v2594, %v2596
        %v2598 = vrot.slane %v780, 2
        %v2599 = vrot.slane %v781, 2
        %v2600 = vsel %vm2160, %v2598, %v2599
        %v2601 = vrot.slane %v782, 2
        %v2602 = vsel %vm2160, %v2599, %v2601
        %v2603 = vrot.slane %v783, 2
        %v2604 = vrot.slane %v784, 2
        %v2605 = vsel %vm2160, %v2603, %v2604
        %v2606 = vrot.slane %v785, 2
        %v2607 = vsel %vm2160, %v2604, %v2606
        %v2608 = vrot.slane %v786, 2
        %v2609 = vrot.slane %v787, 2
        %v2610 = vsel %vm2160, %v2608, %v2609
        %v2611 = vrot.slane %v788, 2
        %v2612 = vsel %vm2160, %v2609, %v2611
        %v2613 = vrot.slane %v789, 2
        %v2614 = vrot.slane %v790, 2
        %v2615 = vsel %vm2160, %v2613, %v2614
        %v2616 = vrot.slane %v791, 2
        %v2617 = vsel %vm2160, %v2614, %v2616
        %v2618 = vrot.slane %v792, 2
        %v2619 = vrot.slane %v793, 2
        %v2620 = vsel %vm2160, %v2618, %v2619
        %v2621 = vrot.slane %v794, 2
        %v2622 = vsel %vm2160, %v2619, %v2621
        %v2623 = vrot.slane %v795, 2
        %v2624 = vrot.slane %v796, 2
        %v2625 = vsel %vm2160, %v2623, %v2624
        %v2626 = vrot.slane %v797, 2
        %v2627 = vsel %vm2160, %v2624, %v2626
        %v2628 = vrot.slane %v798, 2
        %v2629 = vrot.slane %v799, 2
        %v2630 = vsel %vm2160, %v2628, %v2629
        %v2631 = vrot.slane %v800, 2
        %v2632 = vsel %vm2160, %v2629, %v2631
        %v2633 = vrot.slane %v801, 2
        %v2634 = vrot.slane %v802, 2
        %v2635 = vsel %vm2160, %v2633, %v2634
        %v2636 = vrot.slane %v803, 2
        %v2637 = vsel %vm2160, %v2634, %v2636
        %v2638 = vrot.slane %v804, 2
        %v2639 = vrot.slane %v805, 2
        %v2640 = vsel %vm2160, %v2638, %v2639
        %v2641 = vrot.slane %v806, 2
        %v2642 = vsel %vm2160, %v2639, %v2641
        %v2643 = vrot.slane %v807, 2
        %v2644 = vrot.slane %v808, 2
        %v2645 = vsel %vm2160, %v2643, %v2644
        %v2646 = vrot.slane %v809, 2
        %v2647 = vsel %vm2160, %v2644, %v2646
        %v2648 = vrot.slane %v810, 2
        %v2649 = vrot.slane %v811, 2
        %v2650 = vsel %vm2160, %v2648, %v2649
        %v2651 = vrot.slane %v812, 2
        %v2652 = vsel %vm2160, %v2649, %v2651
        %v2653 = vrot.slane %v813, 2
        %v2654 = vrot.slane %v814, 2
        %v2655 = vsel %vm2160, %v2653, %v2654
        %v2656 = vrot.slane %v815, 2
        %v2657 = vsel %vm2160, %v2654, %v2656
        %v2658 = vrot.slane %v822, 2
        %v2659 = vrot.slane %v823, 2
        %v2660 = vsel %vm2160, %v2658, %v2659
        %v2661 = vrot.slane %v824, 2
        %v2662 = vsel %vm2160, %v2659, %v2661
        %v2663 = vrot.slane %v825, 2
        %v2664 = vrot.slane %v826, 2
        %v2665 = vsel %vm2160, %v2663, %v2664
        %v2666 = vrot.slane %v827, 2
        %v2667 = vsel %vm2160, %v2664, %v2666
        %v2668 = vrot.slane %v828, 2
        %v2669 = vrot.slane %v829, 2
        %v2670 = vsel %vm2160, %v2668, %v2669
        %v2671 = vrot.slane %v830, 2
        %v2672 = vsel %vm2160, %v2669, %v2671
        %v2673 = vrot.slane %v831, 2
        %v2674 = vrot.slane %v832, 2
        %v2675 = vsel %vm2160, %v2673, %v2674
        %v2676 = vrot.slane %v833, 2
        %v2677 = vsel %vm2160, %v2674, %v2676
        %v2678 = vrot.slane %v834, 2
        %v2679 = vrot.slane %v835, 2
        %v2680 = vsel %vm2160, %v2678, %v2679
        %v2681 = vrot.slane %v836, 2
        %v2682 = vsel %vm2160, %v2679, %v2681
        %v2683 = vrot.slane %v837, 2
        %v2684 = vrot.slane %v838, 2
        %v2685 = vsel %vm2160, %v2683, %v2684
        %v2686 = vrot.slane %v839, 2
        %v2687 = vsel %vm2160, %v2684, %v2686
        %v2688 = vrot.slane %v840, 2
        %v2689 = vrot.slane %v841, 2
        %v2690 = vsel %vm2160, %v2688, %v2689
        %v2691 = vrot.slane %v842, 2
        %v2692 = vsel %vm2160, %v2689, %v2691
        %v2693 = vrot.slane %v843, 2
        %v2694 = vrot.slane %v844, 2
        %v2695 = vsel %vm2160, %v2693, %v2694
        %v2696 = vrot.slane %v845, 2
        %v2697 = vsel %vm2160, %v2694, %v2696
        %v2698 = vrot.slane %v846, 2
        %v2699 = vrot.slane %v847, 2
        %v2700 = vsel %vm2160, %v2698, %v2699
        %v2701 = vrot.slane %v848, 2
        %v2702 = vsel %vm2160, %v2699, %v2701
        %v2703 = vrot.slane %v849, 2
        %v2704 = vrot.slane %v850, 2
        %v2705 = vsel %vm2160, %v2703, %v2704
        %v2706 = vrot.slane %v851, 2
        %v2707 = vsel %vm2160, %v2704, %v2706
        %v2708 = vrot.slane %v852, 2
        %v2709 = vrot.slane %v853, 2
        %v2710 = vsel %vm2160, %v2708, %v2709
        %v2711 = vrot.slane %v854, 2
        %v2712 = vsel %vm2160, %v2709, %v2711
        %v2713 = vrot.slane %v855, 2
        %v2714 = vrot.slane %v856, 2
        %v2715 = vsel %vm2160, %v2713, %v2714
        %v2716 = vrot.slane %v857, 2
        %v2717 = vsel %vm2160, %v2714, %v2716
        %v2718 = vrot.slane %v858, 2
        %v2719 = vrot.slane %v859, 2
        %v2720 = vsel %vm2160, %v2718, %v2719
        %v2721 = vrot.slane %v860, 2
        %v2722 = vsel %vm2160, %v2719, %v2721
        %v2723 = vrot.slane %v861, 2
        %v2724 = vrot.slane %v862, 2
        %v2725 = vsel %vm2160, %v2723, %v2724
        %v2726 = vrot.slane %v863, 2
        %v2727 = vsel %vm2160, %v2724, %v2726
        %v2728 = vrot.slane %v864, 2
        %v2729 = vrot.slane %v865, 2
        %v2730 = vsel %vm2160, %v2728, %v2729
        %v2731 = vrot.slane %v866, 2
        %v2732 = vsel %vm2160, %v2729, %v2731
        %v2733 = vrot.slane %v867, 2
        %v2734 = vrot.slane %v868, 2
        %v2735 = vsel %vm2160, %v2733, %v2734
        %v2736 = vrot.slane %v869, 2
        %v2737 = vsel %vm2160, %v2734, %v2736
        %v2802 = vpack.c.bf16 %v2582, %v2580
        %v2803 = vpack.c.bf16 %v2587, %v2585
        %v2804 = vpack.c.bf16 %v2592, %v2590
        %v2805 = vpack.c.bf16 %v2597, %v2595
        %v2806 = vpack.c.bf16 %v2602, %v2600
        %v2807 = vpack.c.bf16 %v2607, %v2605
        %v2808 = vpack.c.bf16 %v2612, %v2610
        %v2809 = vpack.c.bf16 %v2617, %v2615
        %v2810 = vpack.c.bf16 %v2622, %v2620
        %v2811 = vpack.c.bf16 %v2627, %v2625
        %v2812 = vpack.c.bf16 %v2632, %v2630
        %v2813 = vpack.c.bf16 %v2637, %v2635
        %v2814 = vpack.c.bf16 %v2642, %v2640
        %v2815 = vpack.c.bf16 %v2647, %v2645
        %v2816 = vpack.c.bf16 %v2652, %v2650
        %v2817 = vpack.c.bf16 %v2657, %v2655
        %v2818 = vpack.c.bf16 %v2662, %v2660
        %v2819 = vpack.c.bf16 %v2667, %v2665
        %v2820 = vpack.c.bf16 %v2672, %v2670
        %v2821 = vpack.c.bf16 %v2677, %v2675
        %v2822 = vpack.c.bf16 %v2682, %v2680
        %v2823 = vpack.c.bf16 %v2687, %v2685
        %v2824 = vpack.c.bf16 %v2692, %v2690
        %v2825 = vpack.c.bf16 %v2697, %v2695
        %v2826 = vpack.c.bf16 %v2702, %v2700
        %v2827 = vpack.c.bf16 %v2707, %v2705
        %v2828 = vpack.c.bf16 %v2712, %v2710
        %v2829 = vpack.c.bf16 %v2717, %v2715
        %v2830 = vpack.c.bf16 %v2722, %v2720
        %v2831 = vpack.c.bf16 %v2727, %v2725
        %v2832 = vpack.c.bf16 %v2732, %v2730
        %v2833 = vpack.c.bf16 %v2737, %v2735
        %2866 = vrot.lane.b32.xlu0 %v2802, 76
        %v2867 = vpop.permute.xlu0 %2866
        %2868 = vrot.lane.b32.xlu0 %v2803, 76
        %v2869 = vpop.permute.xlu0 %2868
        %2870 = vrot.lane.b32.xlu0 %v2804, 76
        %v2871 = vpop.permute.xlu0 %2870
        %2872 = vrot.lane.b32.xlu0 %v2805, 76
        %v2873 = vpop.permute.xlu0 %2872
        %2874 = vrot.lane.b32.xlu0 %v2806, 76
        %v2875 = vpop.permute.xlu0 %2874
        %2876 = vrot.lane.b32.xlu0 %v2807, 76
        %v2877 = vpop.permute.xlu0 %2876
        %2878 = vrot.lane.b32.xlu0 %v2808, 76
        %v2879 = vpop.permute.xlu0 %2878
        %2880 = vrot.lane.b32.xlu0 %v2809, 76
        %v2881 = vpop.permute.xlu0 %2880
        %2882 = vrot.lane.b32.xlu0 %v2810, 76
        %v2883 = vpop.permute.xlu0 %2882
        %2884 = vrot.lane.b32.xlu0 %v2811, 76
        %v2885 = vpop.permute.xlu0 %2884
        %2886 = vrot.lane.b32.xlu0 %v2812, 76
        %v2887 = vpop.permute.xlu0 %2886
        %2888 = vrot.lane.b32.xlu0 %v2813, 76
        %v2889 = vpop.permute.xlu0 %2888
        %2890 = vrot.lane.b32.xlu0 %v2814, 76
        %v2891 = vpop.permute.xlu0 %2890
        %2892 = vrot.lane.b32.xlu0 %v2815, 76
        %v2893 = vpop.permute.xlu0 %2892
        %2894 = vrot.lane.b32.xlu0 %v2816, 76
        %v2895 = vpop.permute.xlu0 %2894
        %2896 = vrot.lane.b32.xlu0 %v2817, 76
        %v2897 = vpop.permute.xlu0 %2896
        %2898 = vrot.lane.b32.xlu0 %v2818, 76
        %v2899 = vpop.permute.xlu0 %2898
        %2900 = vrot.lane.b32.xlu0 %v2819, 76
        %v2901 = vpop.permute.xlu0 %2900
        %2902 = vrot.lane.b32.xlu0 %v2820, 76
        %v2903 = vpop.permute.xlu0 %2902
        %2904 = vrot.lane.b32.xlu0 %v2821, 76
        %v2905 = vpop.permute.xlu0 %2904
        %2906 = vrot.lane.b32.xlu0 %v2822, 76
        %v2907 = vpop.permute.xlu0 %2906
        %2908 = vrot.lane.b32.xlu0 %v2823, 76
        %v2909 = vpop.permute.xlu0 %2908
        %2910 = vrot.lane.b32.xlu0 %v2824, 76
        %v2911 = vpop.permute.xlu0 %2910
        %2912 = vrot.lane.b32.xlu0 %v2825, 76
        %v2913 = vpop.permute.xlu0 %2912
        %2914 = vrot.lane.b32.xlu0 %v2826, 76
        %v2915 = vpop.permute.xlu0 %2914
        %2916 = vrot.lane.b32.xlu0 %v2827, 76
        %v2917 = vpop.permute.xlu0 %2916
        %2918 = vrot.lane.b32.xlu0 %v2828, 76
        %v2919 = vpop.permute.xlu0 %2918
        %2920 = vrot.lane.b32.xlu0 %v2829, 76
        %v2921 = vpop.permute.xlu0 %2920
        %2922 = vrot.lane.b32.xlu0 %v2830, 76
        %v2923 = vpop.permute.xlu0 %2922
        %2924 = vrot.lane.b32.xlu0 %v2831, 76
        %v2925 = vpop.permute.xlu0 %2924
        %2926 = vrot.lane.b32.xlu0 %v2832, 76
        %v2927 = vpop.permute.xlu0 %2926
        %2928 = vrot.lane.b32.xlu0 %v2833, 76
        %v2929 = vpop.permute.xlu0 %2928
        %vm2962 = vcmask 884320
        %2963 = vst.msk [vmem:[#allocation4] sm:$0xff] %vm2962, %v2867
        %2964 = vst.msk [vmem:[#allocation4 + $0x18] sm:$0xff] %vm2962, %v2869
        %2965 = vst.msk [vmem:[#allocation4 + $0x30] sm:$0xff] %vm2962, %v2871
        %2966 = vst.msk [vmem:[#allocation4 + $0x48] sm:$0xff] %vm2962, %v2873
        %2967 = vst.msk [vmem:[#allocation4 + $0x60] sm:$0xff] %vm2962, %v2875
        %2968 = vst.msk [vmem:[#allocation4 + $0x78] sm:$0xff] %vm2962, %v2877
        %2969 = vst.msk [vmem:[#allocation4 + $0x90] sm:$0xff] %vm2962, %v2879
        %2970 = vst.msk [vmem:[#allocation4 + $0xa8] sm:$0xff] %vm2962, %v2881
        %2971 = vst.msk [vmem:[#allocation4 + $0xc0] sm:$0xff] %vm2962, %v2883
        %2972 = vst.msk [vmem:[#allocation4 + $0xd8] sm:$0xff] %vm2962, %v2885
        %2973 = vst.msk [vmem:[#allocation4 + $0xf0] sm:$0xff] %vm2962, %v2887
        %2974 = vst.msk [vmem:[#allocation4 + $0x108] sm:$0xff] %vm2962, %v2889
        %2975 = vst.msk [vmem:[#allocation4 + $0x120] sm:$0xff] %vm2962, %v2891
        %2976 = vst.msk [vmem:[#allocation4 + $0x138] sm:$0xff] %vm2962, %v2893
        %2977 = vst.msk [vmem:[#allocation4 + $0x150] sm:$0xff] %vm2962, %v2895
        %2978 = vst.msk [vmem:[#allocation4 + $0x168] sm:$0xff] %vm2962, %v2897
        %2979 = vst.msk [vmem:[#allocation4 + $0x180] sm:$0xff] %vm2962, %v2899
        %2980 = vst.msk [vmem:[#allocation4 + $0x198] sm:$0xff] %vm2962, %v2901
        %2981 = vst.msk [vmem:[#allocation4 + $0x1b0] sm:$0xff] %vm2962, %v2903
        %2982 = vst.msk [vmem:[#allocation4 + $0x1c8] sm:$0xff] %vm2962, %v2905
        %2983 = vst.msk [vmem:[#allocation4 + $0x1e0] sm:$0xff] %vm2962, %v2907
        %2984 = vst.msk [vmem:[#allocation4 + $0x1f8] sm:$0xff] %vm2962, %v2909
        %2985 = vst.msk [vmem:[#allocation4 + $0x210] sm:$0xff] %vm2962, %v2911
        %2986 = vst.msk [vmem:[#allocation4 + $0x228] sm:$0xff] %vm2962, %v2913
        %2987 = vst.msk [vmem:[#allocation4 + $0x240] sm:$0xff] %vm2962, %v2915
        %2988 = vst.msk [vmem:[#allocation4 + $0x258] sm:$0xff] %vm2962, %v2917
        %2989 = vst.msk [vmem:[#allocation4 + $0x270] sm:$0xff] %vm2962, %v2919
        %2990 = vst.msk [vmem:[#allocation4 + $0x288] sm:$0xff] %vm2962, %v2921
        %2991 = vst.msk [vmem:[#allocation4 + $0x2a0] sm:$0xff] %vm2962, %v2923
        %2992 = vst.msk [vmem:[#allocation4 + $0x2b8] sm:$0xff] %vm2962, %v2925
        %2993 = vst.msk [vmem:[#allocation4 + $0x2d0] sm:$0xff] %vm2962, %v2927
        %2994 = vst.msk [vmem:[#allocation4 + $0x2e8] sm:$0xff] %vm2962, %v2929
        %v2995 = vpack.c.bf16 %v709, %v708
        %v2996 = vpack.c.bf16 %v763, %v762
        %3029 = vrot.lane.b32.xlu0 %v877, 108
        %v3030 = vpop.permute.xlu0 %3029
        %3031 = vrot.lane.b32.xlu0 %v878, 108
        %v3032 = vpop.permute.xlu0 %3031
        %3033 = vrot.lane.b32.xlu0 %v879, 108
        %v3034 = vpop.permute.xlu0 %3033
        %3035 = vrot.lane.b32.xlu0 %v880, 108
        %v3036 = vpop.permute.xlu0 %3035
        %3037 = vrot.lane.b32.xlu0 %v881, 108
        %v3038 = vpop.permute.xlu0 %3037
        %3039 = vrot.lane.b32.xlu0 %v882, 108
        %v3040 = vpop.permute.xlu0 %3039
        %3041 = vrot.lane.b32.xlu0 %v883, 108
        %v3042 = vpop.permute.xlu0 %3041
        %3043 = vrot.lane.b32.xlu0 %v884, 108
        %v3044 = vpop.permute.xlu0 %3043
        %3045 = vrot.lane.b32.xlu0 %v885, 108
        %v3046 = vpop.permute.xlu0 %3045
        %3047 = vrot.lane.b32.xlu0 %v886, 108
        %v3048 = vpop.permute.xlu0 %3047
        %3049 = vrot.lane.b32.xlu0 %v887, 108
        %v3050 = vpop.permute.xlu0 %3049
        %3051 = vrot.lane.b32.xlu0 %v888, 108
        %v3052 = vpop.permute.xlu0 %3051
        %3053 = vrot.lane.b32.xlu0 %v889, 108
        %v3054 = vpop.permute.xlu0 %3053
        %3055 = vrot.lane.b32.xlu0 %v890, 108
        %v3056 = vpop.permute.xlu0 %3055
        %3057 = vrot.lane.b32.xlu0 %v891, 108
        %v3058 = vpop.permute.xlu0 %3057
        %3059 = vrot.lane.b32.xlu0 %v2995, 108
        %v3060 = vpop.permute.xlu0 %3059
        %3061 = vrot.lane.b32.xlu0 %v893, 108
        %v3062 = vpop.permute.xlu0 %3061
        %3063 = vrot.lane.b32.xlu0 %v894, 108
        %v3064 = vpop.permute.xlu0 %3063
        %3065 = vrot.lane.b32.xlu0 %v895, 108
        %v3066 = vpop.permute.xlu0 %3065
        %3067 = vrot.lane.b32.xlu0 %v896, 108
        %v3068 = vpop.permute.xlu0 %3067
        %3069 = vrot.lane.b32.xlu0 %v897, 108
        %v3070 = vpop.permute.xlu0 %3069
        %3071 = vrot.lane.b32.xlu0 %v898, 108
        %v3072 = vpop.permute.xlu0 %3071
        %3073 = vrot.lane.b32.xlu0 %v899, 108
        %v3074 = vpop.permute.xlu0 %3073
        %3075 = vrot.lane.b32.xlu0 %v900, 108
        %v3076 = vpop.permute.xlu0 %3075
        %3077 = vrot.lane.b32.xlu0 %v901, 108
        %v3078 = vpop.permute.xlu0 %3077
        %3079 = vrot.lane.b32.xlu0 %v902, 108
        %v3080 = vpop.permute.xlu0 %3079
        %3081 = vrot.lane.b32.xlu0 %v903, 108
        %v3082 = vpop.permute.xlu0 %3081
        %3083 = vrot.lane.b32.xlu0 %v904, 108
        %v3084 = vpop.permute.xlu0 %3083
        %3085 = vrot.lane.b32.xlu0 %v905, 108
        %v3086 = vpop.permute.xlu0 %3085
        %3087 = vrot.lane.b32.xlu0 %v906, 108
        %v3088 = vpop.permute.xlu0 %3087
        %3089 = vrot.lane.b32.xlu0 %v907, 108
        %v3090 = vpop.permute.xlu0 %3089
        %3091 = vrot.lane.b32.xlu0 %v2996, 108
        %v3092 = vpop.permute.xlu0 %3091
        %vm3125 = vcmask 917344
        %3126 = vst.msk [vmem:[#allocation4] sm:$0xff] %vm3125, %v3030
        %3127 = vst.msk [vmem:[#allocation4 + $0x18] sm:$0xff] %vm3125, %v3032
        %3128 = vst.msk [vmem:[#allocation4 + $0x30] sm:$0xff] %vm3125, %v3034
        %3129 = vst.msk [vmem:[#allocation4 + $0x48] sm:$0xff] %vm3125, %v3036
        %3130 = vst.msk [vmem:[#allocation4 + $0x60] sm:$0xff] %vm3125, %v3038
        %3131 = vst.msk [vmem:[#allocation4 + $0x78] sm:$0xff] %vm3125, %v3040
        %3132 = vst.msk [vmem:[#allocation4 + $0x90] sm:$0xff] %vm3125, %v3042
        %3133 = vst.msk [vmem:[#allocation4 + $0xa8] sm:$0xff] %vm3125, %v3044
        %3134 = vst.msk [vmem:[#allocation4 + $0xc0] sm:$0xff] %vm3125, %v3046
        %3135 = vst.msk [vmem:[#allocation4 + $0xd8] sm:$0xff] %vm3125, %v3048
        %3136 = vst.msk [vmem:[#allocation4 + $0xf0] sm:$0xff] %vm3125, %v3050
        %3137 = vst.msk [vmem:[#allocation4 + $0x108] sm:$0xff] %vm3125, %v3052
        %3138 = vst.msk [vmem:[#allocation4 + $0x120] sm:$0xff] %vm3125, %v3054
        %3139 = vst.msk [vmem:[#allocation4 + $0x138] sm:$0xff] %vm3125, %v3056
        %3140 = vst.msk [vmem:[#allocation4 + $0x150] sm:$0xff] %vm3125, %v3058
        %3141 = vst.msk [vmem:[#allocation4 + $0x168] sm:$0xff] %vm3125, %v3060
        %3142 = vst.msk [vmem:[#allocation4 + $0x180] sm:$0xff] %vm3125, %v3062
        %3143 = vst.msk [vmem:[#allocation4 + $0x198] sm:$0xff] %vm3125, %v3064
        %3144 = vst.msk [vmem:[#allocation4 + $0x1b0] sm:$0xff] %vm3125, %v3066
        %3145 = vst.msk [vmem:[#allocation4 + $0x1c8] sm:$0xff] %vm3125, %v3068
        %3146 = vst.msk [vmem:[#allocation4 + $0x1e0] sm:$0xff] %vm3125, %v3070
        %3147 = vst.msk [vmem:[#allocation4 + $0x1f8] sm:$0xff] %vm3125, %v3072
        %3148 = vst.msk [vmem:[#allocation4 + $0x210] sm:$0xff] %vm3125, %v3074
        %3149 = vst.msk [vmem:[#allocation4 + $0x228] sm:$0xff] %vm3125, %v3076
        %3150 = vst.msk [vmem:[#allocation4 + $0x240] sm:$0xff] %vm3125, %v3078
        %3151 = vst.msk [vmem:[#allocation4 + $0x258] sm:$0xff] %vm3125, %v3080
        %3152 = vst.msk [vmem:[#allocation4 + $0x270] sm:$0xff] %vm3125, %v3082
        %3153 = vst.msk [vmem:[#allocation4 + $0x288] sm:$0xff] %vm3125, %v3084
        %3154 = vst.msk [vmem:[#allocation4 + $0x2a0] sm:$0xff] %vm3125, %v3086
        %3155 = vst.msk [vmem:[#allocation4 + $0x2b8] sm:$0xff] %vm3125, %v3088
        %3156 = vst.msk [vmem:[#allocation4 + $0x2d0] sm:$0xff] %vm3125, %v3090
        %3157 = vst.msk [vmem:[#allocation4 + $0x2e8] sm:$0xff] %vm3125, %v3092
        %v3158 = vpack.c.bf16 %v817, %v816
        %v3159 = vpack.c.bf16 %v871, %v870
        %3162 = vrot.lane.b32.xlu0 %v941, 112
        %v3163 = vpop.permute.xlu0 %3162
        %3164 = vrot.lane.b32.xlu0 %v942, 112
        %v3165 = vpop.permute.xlu0 %3164
        %3166 = vrot.lane.b32.xlu0 %v943, 112
        %v3167 = vpop.permute.xlu0 %3166
        %3168 = vrot.lane.b32.xlu0 %v944, 112
        %v3169 = vpop.permute.xlu0 %3168
        %3170 = vrot.lane.b32.xlu0 %v945, 112
        %v3171 = vpop.permute.xlu0 %3170
        %3172 = vrot.lane.b32.xlu0 %v946, 112
        %v3173 = vpop.permute.xlu0 %3172
        %3174 = vrot.lane.b32.xlu0 %v947, 112
        %v3175 = vpop.permute.xlu0 %3174
        %3176 = vrot.lane.b32.xlu0 %v948, 112
        %v3177 = vpop.permute.xlu0 %3176
        %3178 = vrot.lane.b32.xlu0 %v949, 112
        %v3179 = vpop.permute.xlu0 %3178
        %3180 = vrot.lane.b32.xlu0 %v950, 112
        %v3181 = vpop.permute.xlu0 %3180
        %3182 = vrot.lane.b32.xlu0 %v951, 112
        %v3183 = vpop.permute.xlu0 %3182
        %3184 = vrot.lane.b32.xlu0 %v952, 112
        %v3185 = vpop.permute.xlu0 %3184
        %3186 = vrot.lane.b32.xlu0 %v953, 112
        %v3187 = vpop.permute.xlu0 %3186
        %3188 = vrot.lane.b32.xlu0 %v954, 112
        %v3189 = vpop.permute.xlu0 %3188
        %3190 = vrot.lane.b32.xlu0 %v955, 112
        %v3191 = vpop.permute.xlu0 %3190
        %3192 = vrot.lane.b32.xlu0 %v3158, 112
        %v3193 = vpop.permute.xlu0 %3192
        %3194 = vrot.lane.b32.xlu0 %v957, 112
        %v3195 = vpop.permute.xlu0 %3194
        %3196 = vrot.lane.b32.xlu0 %v958, 112
        %v3197 = vpop.permute.xlu0 %3196
        %3198 = vrot.lane.b32.xlu0 %v959, 112
        %v3199 = vpop.permute.xlu0 %3198
        %3200 = vrot.lane.b32.xlu0 %v960, 112
        %v3201 = vpop.permute.xlu0 %3200
        %3202 = vrot.lane.b32.xlu0 %v961, 112
        %v3203 = vpop.permute.xlu0 %3202
        %3204 = vrot.lane.b32.xlu0 %v962, 112
        %v3205 = vpop.permute.xlu0 %3204
        %3206 = vrot.lane.b32.xlu0 %v963, 112
        %v3207 = vpop.permute.xlu0 %3206
        %3208 = vrot.lane.b32.xlu0 %v964, 112
        %v3209 = vpop.permute.xlu0 %3208
        %3210 = vrot.lane.b32.xlu0 %v965, 112
        %v3211 = vpop.permute.xlu0 %3210
        %3212 = vrot.lane.b32.xlu0 %v966, 112
        %v3213 = vpop.permute.xlu0 %3212
        %3214 = vrot.lane.b32.xlu0 %v967, 112
        %v3215 = vpop.permute.xlu0 %3214
        %3216 = vrot.lane.b32.xlu0 %v968, 112
        %v3217 = vpop.permute.xlu0 %3216
        %3218 = vrot.lane.b32.xlu0 %v969, 112
        %v3219 = vpop.permute.xlu0 %3218
        %3220 = vrot.lane.b32.xlu0 %v970, 112
        %v3221 = vpop.permute.xlu0 %3220
        %3222 = vrot.lane.b32.xlu0 %v971, 112
        %v3223 = vpop.permute.xlu0 %3222
        %3224 = vrot.lane.b32.xlu0 %v3159, 112
        %v3225 = vpop.permute.xlu0 %3224
        %vm3258 = vcmask 1048448
        %3259 = vst.msk [vmem:[#allocation4] sm:$0xff] %vm3258, %v3163
        %vm3260 = vcmask 130048
        %3261 = vst.msk [vmem:[#allocation4 + $0x8] sm:$0xff] %vm3260, %v3163
        %3262 = vst.msk [vmem:[#allocation4 + $0x18] sm:$0xff] %vm3258, %v3165
        %3263 = vst.msk [vmem:[#allocation4 + $0x20] sm:$0xff] %vm3260, %v3165
        %3264 = vst.msk [vmem:[#allocation4 + $0x30] sm:$0xff] %vm3258, %v3167
        %3265 = vst.msk [vmem:[#allocation4 + $0x38] sm:$0xff] %vm3260, %v3167
        %3266 = vst.msk [vmem:[#allocation4 + $0x48] sm:$0xff] %vm3258, %v3169
        %3267 = vst.msk [vmem:[#allocation4 + $0x50] sm:$0xff] %vm3260, %v3169
        %3268 = vst.msk [vmem:[#allocation4 + $0x60] sm:$0xff] %vm3258, %v3171
        %3269 = vst.msk [vmem:[#allocation4 + $0x68] sm:$0xff] %vm3260, %v3171
        %3270 = vst.msk [vmem:[#allocation4 + $0x78] sm:$0xff] %vm3258, %v3173
        %3271 = vst.msk [vmem:[#allocation4 + $0x80] sm:$0xff] %vm3260, %v3173
        %3272 = vst.msk [vmem:[#allocation4 + $0x90] sm:$0xff] %vm3258, %v3175
        %3273 = vst.msk [vmem:[#allocation4 + $0x98] sm:$0xff] %vm3260, %v3175
        %3274 = vst.msk [vmem:[#allocation4 + $0xa8] sm:$0xff] %vm3258, %v3177
        %3275 = vst.msk [vmem:[#allocation4 + $0xb0] sm:$0xff] %vm3260, %v3177
        %3276 = vst.msk [vmem:[#allocation4 + $0xc0] sm:$0xff] %vm3258, %v3179
        %3277 = vst.msk [vmem:[#allocation4 + $0xc8] sm:$0xff] %vm3260, %v3179
        %3278 = vst.msk [vmem:[#allocation4 + $0xd8] sm:$0xff] %vm3258, %v3181
        %3279 = vst.msk [vmem:[#allocation4 + $0xe0] sm:$0xff] %vm3260, %v3181
        %3280 = vst.msk [vmem:[#allocation4 + $0xf0] sm:$0xff] %vm3258, %v3183
        %3281 = vst.msk [vmem:[#allocation4 + $0xf8] sm:$0xff] %vm3260, %v3183
        %3282 = vst.msk [vmem:[#allocation4 + $0x108] sm:$0xff] %vm3258, %v3185
        %3283 = vst.msk [vmem:[#allocation4 + $0x110] sm:$0xff] %vm3260, %v3185
        %3284 = vst.msk [vmem:[#allocation4 + $0x120] sm:$0xff] %vm3258, %v3187
        %3285 = vst.msk [vmem:[#allocation4 + $0x128] sm:$0xff] %vm3260, %v3187
        %3286 = vst.msk [vmem:[#allocation4 + $0x138] sm:$0xff] %vm3258, %v3189
        %3287 = vst.msk [vmem:[#allocation4 + $0x140] sm:$0xff] %vm3260, %v3189
        %3288 = vst.msk [vmem:[#allocation4 + $0x150] sm:$0xff] %vm3258, %v3191
        %3289 = vst.msk [vmem:[#allocation4 + $0x158] sm:$0xff] %vm3260, %v3191
        %3290 = vst.msk [vmem:[#allocation4 + $0x168] sm:$0xff] %vm3258, %v3193
        %3291 = vst.msk [vmem:[#allocation4 + $0x170] sm:$0xff] %vm3260, %v3193
        %3292 = vst.msk [vmem:[#allocation4 + $0x180] sm:$0xff] %vm3258, %v3195
        %3293 = vst.msk [vmem:[#allocation4 + $0x188] sm:$0xff] %vm3260, %v3195
        %3294 = vst.msk [vmem:[#allocation4 + $0x198] sm:$0xff] %vm3258, %v3197
        %3295 = vst.msk [vmem:[#allocation4 + $0x1a0] sm:$0xff] %vm3260, %v3197
        %3296 = vst.msk [vmem:[#allocation4 + $0x1b0] sm:$0xff] %vm3258, %v3199
        %3297 = vst.msk [vmem:[#allocation4 + $0x1b8] sm:$0xff] %vm3260, %v3199
        %3298 = vst.msk [vmem:[#allocation4 + $0x1c8] sm:$0xff] %vm3258, %v3201
        %3299 = vst.msk [vmem:[#allocation4 + $0x1d0] sm:$0xff] %vm3260, %v3201
        %3300 = vst.msk [vmem:[#allocation4 + $0x1e0] sm:$0xff] %vm3258, %v3203
        %3301 = vst.msk [vmem:[#allocation4 + $0x1e8] sm:$0xff] %vm3260, %v3203
        %3302 = vst.msk [vmem:[#allocation4 + $0x1f8] sm:$0xff] %vm3258, %v3205
        %3303 = vst.msk [vmem:[#allocation4 + $0x200] sm:$0xff] %vm3260, %v3205
        %3304 = vst.msk [vmem:[#allocation4 + $0x210] sm:$0xff] %vm3258, %v3207
        %3305 = vst.msk [vmem:[#allocation4 + $0x218] sm:$0xff] %vm3260, %v3207
        %3306 = vst.msk [vmem:[#allocation4 + $0x228] sm:$0xff] %vm3258, %v3209
        %3307 = vst.msk [vmem:[#allocation4 + $0x230] sm:$0xff] %vm3260, %v3209
        %3308 = vst.msk [vmem:[#allocation4 + $0x240] sm:$0xff] %vm3258, %v3211
        %3309 = vst.msk [vmem:[#allocation4 + $0x248] sm:$0xff] %vm3260, %v3211
        %3310 = vst.msk [vmem:[#allocation4 + $0x258] sm:$0xff] %vm3258, %v3213
        %3311 = vst.msk [vmem:[#allocation4 + $0x260] sm:$0xff] %vm3260, %v3213
        %3312 = vst.msk [vmem:[#allocation4 + $0x270] sm:$0xff] %vm3258, %v3215
        %3313 = vst.msk [vmem:[#allocation4 + $0x278] sm:$0xff] %vm3260, %v3215
        %3314 = vst.msk [vmem:[#allocation4 + $0x288] sm:$0xff] %vm3258, %v3217
        %3315 = vst.msk [vmem:[#allocation4 + $0x290] sm:$0xff] %vm3260, %v3217
        %3316 = vst.msk [vmem:[#allocation4 + $0x2a0] sm:$0xff] %vm3258, %v3219
        %3317 = vst.msk [vmem:[#allocation4 + $0x2a8] sm:$0xff] %vm3260, %v3219
        %3318 = vst.msk [vmem:[#allocation4 + $0x2b8] sm:$0xff] %vm3258, %v3221
        %3319 = vst.msk [vmem:[#allocation4 + $0x2c0] sm:$0xff] %vm3260, %v3221
        %3320 = vst.msk [vmem:[#allocation4 + $0x2d0] sm:$0xff] %vm3258, %v3223
        %3321 = vst.msk [vmem:[#allocation4 + $0x2d8] sm:$0xff] %vm3260, %v3223
        %3322 = vst.msk [vmem:[#allocation4 + $0x2e8] sm:$0xff] %vm3258, %v3225
        %3323 = vst.msk [vmem:[#allocation4 + $0x2f0] sm:$0xff] %vm3260, %v3225
        %v3330 = vrot.slane %v708, 1
        %v3331 = vrot.slane %v709, 1
        %v3332 = vsel %vm1229, %v3330, %v3331
        %v3333 = vrot.slane %v710, 1
        %v3334 = vsel %vm1229, %v3331, %v3333
        %v3335 = vrot.slane %v762, 1
        %v3336 = vrot.slane %v763, 1
        %v3337 = vsel %vm1229, %v3335, %v3336
        %v3338 = vrot.slane %v764, 1
        %v3339 = vsel %vm1229, %v3336, %v3338
        %v3344 = vpack.c.bf16 %v3334, %v3332
        %v3345 = vpack.c.bf16 %v3339, %v3337
        %3348 = vrot.lane.b32.xlu0 %v1455, 16
        %v3349 = vpop.permute.xlu0 %3348
        %3350 = vrot.lane.b32.xlu0 %v1456, 16
        %v3351 = vpop.permute.xlu0 %3350
        %3352 = vrot.lane.b32.xlu0 %v1457, 16
        %v3353 = vpop.permute.xlu0 %3352
        %3354 = vrot.lane.b32.xlu0 %v1458, 16
        %v3355 = vpop.permute.xlu0 %3354
        %3356 = vrot.lane.b32.xlu0 %v1459, 16
        %v3357 = vpop.permute.xlu0 %3356
        %3358 = vrot.lane.b32.xlu0 %v1460, 16
        %v3359 = vpop.permute.xlu0 %3358
        %3360 = vrot.lane.b32.xlu0 %v1461, 16
        %v3361 = vpop.permute.xlu0 %3360
        %3362 = vrot.lane.b32.xlu0 %v1462, 16
        %v3363 = vpop.permute.xlu0 %3362
        %3364 = vrot.lane.b32.xlu0 %v1463, 16
        %v3365 = vpop.permute.xlu0 %3364
        %3366 = vrot.lane.b32.xlu0 %v1464, 16
        %v3367 = vpop.permute.xlu0 %3366
        %3368 = vrot.lane.b32.xlu0 %v1465, 16
        %v3369 = vpop.permute.xlu0 %3368
        %3370 = vrot.lane.b32.xlu0 %v1466, 16
        %v3371 = vpop.permute.xlu0 %3370
        %3372 = vrot.lane.b32.xlu0 %v1467, 16
        %v3373 = vpop.permute.xlu0 %3372
        %3374 = vrot.lane.b32.xlu0 %v1468, 16
        %v3375 = vpop.permute.xlu0 %3374
        %3376 = vrot.lane.b32.xlu0 %v1469, 16
        %v3377 = vpop.permute.xlu0 %3376
        %3378 = vrot.lane.b32.xlu0 %v3344, 16
        %v3379 = vpop.permute.xlu0 %3378
        %3380 = vrot.lane.b32.xlu0 %v1471, 16
        %v3381 = vpop.permute.xlu0 %3380
        %3382 = vrot.lane.b32.xlu0 %v1472, 16
        %v3383 = vpop.permute.xlu0 %3382
        %3384 = vrot.lane.b32.xlu0 %v1473, 16
        %v3385 = vpop.permute.xlu0 %3384
        %3386 = vrot.lane.b32.xlu0 %v1474, 16
        %v3387 = vpop.permute.xlu0 %3386
        %3388 = vrot.lane.b32.xlu0 %v1475, 16
        %v3389 = vpop.permute.xlu0 %3388
        %3390 = vrot.lane.b32.xlu0 %v1476, 16
        %v3391 = vpop.permute.xlu0 %3390
        %3392 = vrot.lane.b32.xlu0 %v1477, 16
        %v3393 = vpop.permute.xlu0 %3392
        %3394 = vrot.lane.b32.xlu0 %v1478, 16
        %v3395 = vpop.permute.xlu0 %3394
        %3396 = vrot.lane.b32.xlu0 %v1479, 16
        %v3397 = vpop.permute.xlu0 %3396
        %3398 = vrot.lane.b32.xlu0 %v1480, 16
        %v3399 = vpop.permute.xlu0 %3398
        %3400 = vrot.lane.b32.xlu0 %v1481, 16
        %v3401 = vpop.permute.xlu0 %3400
        %3402 = vrot.lane.b32.xlu0 %v1482, 16
        %v3403 = vpop.permute.xlu0 %3402
        %3404 = vrot.lane.b32.xlu0 %v1483, 16
        %v3405 = vpop.permute.xlu0 %3404
        %3406 = vrot.lane.b32.xlu0 %v1484, 16
        %v3407 = vpop.permute.xlu0 %3406
        %3408 = vrot.lane.b32.xlu0 %v1485, 16
        %v3409 = vpop.permute.xlu0 %3408
        %3410 = vrot.lane.b32.xlu0 %v3345, 16
        %v3411 = vpop.permute.xlu0 %3410
        %vm3444 = vcmask 162944
        %3445 = vst.msk [vmem:[#allocation4 + $0x8] sm:$0xff] %vm3444, %v3349
        %3446 = vst.msk [vmem:[#allocation4 + $0x20] sm:$0xff] %vm3444, %v3351
        %3447 = vst.msk [vmem:[#allocation4 + $0x38] sm:$0xff] %vm3444, %v3353
        %3448 = vst.msk [vmem:[#allocation4 + $0x50] sm:$0xff] %vm3444, %v3355
        %3449 = vst.msk [vmem:[#allocation4 + $0x68] sm:$0xff] %vm3444, %v3357
        %3450 = vst.msk [vmem:[#allocation4 + $0x80] sm:$0xff] %vm3444, %v3359
        %3451 = vst.msk [vmem:[#allocation4 + $0x98] sm:$0xff] %vm3444, %v3361
        %3452 = vst.msk [vmem:[#allocation4 + $0xb0] sm:$0xff] %vm3444, %v3363
        %3453 = vst.msk [vmem:[#allocation4 + $0xc8] sm:$0xff] %vm3444, %v3365
        %3454 = vst.msk [vmem:[#allocation4 + $0xe0] sm:$0xff] %vm3444, %v3367
        %3455 = vst.msk [vmem:[#allocation4 + $0xf8] sm:$0xff] %vm3444, %v3369
        %3456 = vst.msk [vmem:[#allocation4 + $0x110] sm:$0xff] %vm3444, %v3371
        %3457 = vst.msk [vmem:[#allocation4 + $0x128] sm:$0xff] %vm3444, %v3373
        %3458 = vst.msk [vmem:[#allocation4 + $0x140] sm:$0xff] %vm3444, %v3375
        %3459 = vst.msk [vmem:[#allocation4 + $0x158] sm:$0xff] %vm3444, %v3377
        %3460 = vst.msk [vmem:[#allocation4 + $0x170] sm:$0xff] %vm3444, %v3379
        %3461 = vst.msk [vmem:[#allocation4 + $0x188] sm:$0xff] %vm3444, %v3381
        %3462 = vst.msk [vmem:[#allocation4 + $0x1a0] sm:$0xff] %vm3444, %v3383
        %3463 = vst.msk [vmem:[#allocation4 + $0x1b8] sm:$0xff] %vm3444, %v3385
        %3464 = vst.msk [vmem:[#allocation4 + $0x1d0] sm:$0xff] %vm3444, %v3387
        %3465 = vst.msk [vmem:[#allocation4 + $0x1e8] sm:$0xff] %vm3444, %v3389
        %3466 = vst.msk [vmem:[#allocation4 + $0x200] sm:$0xff] %vm3444, %v3391
        %3467 = vst.msk [vmem:[#allocation4 + $0x218] sm:$0xff] %vm3444, %v3393
        %3468 = vst.msk [vmem:[#allocation4 + $0x230] sm:$0xff] %vm3444, %v3395
        %3469 = vst.msk [vmem:[#allocation4 + $0x248] sm:$0xff] %vm3444, %v3397
        %3470 = vst.msk [vmem:[#allocation4 + $0x260] sm:$0xff] %vm3444, %v3399
        %3471 = vst.msk [vmem:[#allocation4 + $0x278] sm:$0xff] %vm3444, %v3401
        %3472 = vst.msk [vmem:[#allocation4 + $0x290] sm:$0xff] %vm3444, %v3403
        %3473 = vst.msk [vmem:[#allocation4 + $0x2a8] sm:$0xff] %vm3444, %v3405
        %3474 = vst.msk [vmem:[#allocation4 + $0x2c0] sm:$0xff] %vm3444, %v3407
        %3475 = vst.msk [vmem:[#allocation4 + $0x2d8] sm:$0xff] %vm3444, %v3409
        %3476 = vst.msk [vmem:[#allocation4 + $0x2f0] sm:$0xff] %vm3444, %v3411
        %v3483 = vrot.slane %v816, 1
        %v3484 = vrot.slane %v817, 1
        %v3485 = vsel %vm1229, %v3483, %v3484
        %v3486 = vrot.slane %v818, 1
        %v3487 = vsel %vm1229, %v3484, %v3486
        %v3488 = vrot.slane %v870, 1
        %v3489 = vrot.slane %v871, 1
        %v3490 = vsel %vm1229, %v3488, %v3489
        %v3491 = vrot.slane %v872, 1
        %v3492 = vsel %vm1229, %v3489, %v3491
        %v3497 = vpack.c.bf16 %v3487, %v3485
        %v3498 = vpack.c.bf16 %v3492, %v3490
        %3501 = vrot.lane.b32.xlu0 %v1968, 20
        %v3502 = vpop.permute.xlu0 %3501
        %3503 = vrot.lane.b32.xlu0 %v1969, 20
        %v3504 = vpop.permute.xlu0 %3503
        %3505 = vrot.lane.b32.xlu0 %v1970, 20
        %v3506 = vpop.permute.xlu0 %3505
        %3507 = vrot.lane.b32.xlu0 %v1971, 20
        %v3508 = vpop.permute.xlu0 %3507
        %3509 = vrot.lane.b32.xlu0 %v1972, 20
        %v3510 = vpop.permute.xlu0 %3509
        %3511 = vrot.lane.b32.xlu0 %v1973, 20
        %v3512 = vpop.permute.xlu0 %3511
        %3513 = vrot.lane.b32.xlu0 %v1974, 20
        %v3514 = vpop.permute.xlu0 %3513
        %3515 = vrot.lane.b32.xlu0 %v1975, 20
        %v3516 = vpop.permute.xlu0 %3515
        %3517 = vrot.lane.b32.xlu0 %v1976, 20
        %v3518 = vpop.permute.xlu0 %3517
        %3519 = vrot.lane.b32.xlu0 %v1977, 20
        %v3520 = vpop.permute.xlu0 %3519
        %3521 = vrot.lane.b32.xlu0 %v1978, 20
        %v3522 = vpop.permute.xlu0 %3521
        %3523 = vrot.lane.b32.xlu0 %v1979, 20
        %v3524 = vpop.permute.xlu0 %3523
        %3525 = vrot.lane.b32.xlu0 %v1980, 20
        %v3526 = vpop.permute.xlu0 %3525
        %3527 = vrot.lane.b32.xlu0 %v1981, 20
        %v3528 = vpop.permute.xlu0 %3527
        %3529 = vrot.lane.b32.xlu0 %v1982, 20
        %v3530 = vpop.permute.xlu0 %3529
        %3531 = vrot.lane.b32.xlu0 %v3497, 20
        %v3532 = vpop.permute.xlu0 %3531
        %3533 = vrot.lane.b32.xlu0 %v1984, 20
        %v3534 = vpop.permute.xlu0 %3533
        %3535 = vrot.lane.b32.xlu0 %v1985, 20
        %v3536 = vpop.permute.xlu0 %3535
        %3537 = vrot.lane.b32.xlu0 %v1986, 20
        %v3538 = vpop.permute.xlu0 %3537
        %3539 = vrot.lane.b32.xlu0 %v1987, 20
        %v3540 = vpop.permute.xlu0 %3539
        %3541 = vrot.lane.b32.xlu0 %v1988, 20
        %v3542 = vpop.permute.xlu0 %3541
        %3543 = vrot.lane.b32.xlu0 %v1989, 20
        %v3544 = vpop.permute.xlu0 %3543
        %3545 = vrot.lane.b32.xlu0 %v1990, 20
        %v3546 = vpop.permute.xlu0 %3545
        %3547 = vrot.lane.b32.xlu0 %v1991, 20
        %v3548 = vpop.permute.xlu0 %3547
        %3549 = vrot.lane.b32.xlu0 %v1992, 20
        %v3550 = vpop.permute.xlu0 %3549
        %3551 = vrot.lane.b32.xlu0 %v1993, 20
        %v3552 = vpop.permute.xlu0 %3551
        %3553 = vrot.lane.b32.xlu0 %v1994, 20
        %v3554 = vpop.permute.xlu0 %3553
        %3555 = vrot.lane.b32.xlu0 %v1995, 20
        %v3556 = vpop.permute.xlu0 %3555
        %3557 = vrot.lane.b32.xlu0 %v1996, 20
        %v3558 = vpop.permute.xlu0 %3557
        %3559 = vrot.lane.b32.xlu0 %v1997, 20
        %v3560 = vpop.permute.xlu0 %3559
        %3561 = vrot.lane.b32.xlu0 %v1998, 20
        %v3562 = vpop.permute.xlu0 %3561
        %3563 = vrot.lane.b32.xlu0 %v3498, 20
        %v3564 = vpop.permute.xlu0 %3563
        %vm3597 = vcmask 425120
        %3598 = vst.msk [vmem:[#allocation4 + $0x8] sm:$0xff] %vm3597, %v3502
        %3599 = vst.msk [vmem:[#allocation4 + $0x20] sm:$0xff] %vm3597, %v3504
        %3600 = vst.msk [vmem:[#allocation4 + $0x38] sm:$0xff] %vm3597, %v3506
        %3601 = vst.msk [vmem:[#allocation4 + $0x50] sm:$0xff] %vm3597, %v3508
        %3602 = vst.msk [vmem:[#allocation4 + $0x68] sm:$0xff] %vm3597, %v3510
        %3603 = vst.msk [vmem:[#allocation4 + $0x80] sm:$0xff] %vm3597, %v3512
        %3604 = vst.msk [vmem:[#allocation4 + $0x98] sm:$0xff] %vm3597, %v3514
        %3605 = vst.msk [vmem:[#allocation4 + $0xb0] sm:$0xff] %vm3597, %v3516
        %3606 = vst.msk [vmem:[#allocation4 + $0xc8] sm:$0xff] %vm3597, %v3518
        %3607 = vst.msk [vmem:[#allocation4 + $0xe0] sm:$0xff] %vm3597, %v3520
        %3608 = vst.msk [vmem:[#allocation4 + $0xf8] sm:$0xff] %vm3597, %v3522
        %3609 = vst.msk [vmem:[#allocation4 + $0x110] sm:$0xff] %vm3597, %v3524
        %3610 = vst.msk [vmem:[#allocation4 + $0x128] sm:$0xff] %vm3597, %v3526
        %3611 = vst.msk [vmem:[#allocation4 + $0x140] sm:$0xff] %vm3597, %v3528
        %3612 = vst.msk [vmem:[#allocation4 + $0x158] sm:$0xff] %vm3597, %v3530
        %3613 = vst.msk [vmem:[#allocation4 + $0x170] sm:$0xff] %vm3597, %v3532
        %3614 = vst.msk [vmem:[#allocation4 + $0x188] sm:$0xff] %vm3597, %v3534
        %3615 = vst.msk [vmem:[#allocation4 + $0x1a0] sm:$0xff] %vm3597, %v3536
        %3616 = vst.msk [vmem:[#allocation4 + $0x1b8] sm:$0xff] %vm3597, %v3538
        %3617 = vst.msk [vmem:[#allocation4 + $0x1d0] sm:$0xff] %vm3597, %v3540
        %3618 = vst.msk [vmem:[#allocation4 + $0x1e8] sm:$0xff] %vm3597, %v3542
        %3619 = vst.msk [vmem:[#allocation4 + $0x200] sm:$0xff] %vm3597, %v3544
        %3620 = vst.msk [vmem:[#allocation4 + $0x218] sm:$0xff] %vm3597, %v3546
        %3621 = vst.msk [vmem:[#allocation4 + $0x230] sm:$0xff] %vm3597, %v3548
        %3622 = vst.msk [vmem:[#allocation4 + $0x248] sm:$0xff] %vm3597, %v3550
        %3623 = vst.msk [vmem:[#allocation4 + $0x260] sm:$0xff] %vm3597, %v3552
        %3624 = vst.msk [vmem:[#allocation4 + $0x278] sm:$0xff] %vm3597, %v3554
        %3625 = vst.msk [vmem:[#allocation4 + $0x290] sm:$0xff] %vm3597, %v3556
        %3626 = vst.msk [vmem:[#allocation4 + $0x2a8] sm:$0xff] %vm3597, %v3558
        %3627 = vst.msk [vmem:[#allocation4 + $0x2c0] sm:$0xff] %vm3597, %v3560
        %3628 = vst.msk [vmem:[#allocation4 + $0x2d8] sm:$0xff] %vm3597, %v3562
        %3629 = vst.msk [vmem:[#allocation4 + $0x2f0] sm:$0xff] %vm3597, %v3564
        %v3630 = vrot.slane %v708, 2
        %v3631 = vrot.slane %v709, 2
        %v3632 = vsel %vm2160, %v3630, %v3631
        %v3633 = vrot.slane %v710, 2
        %v3634 = vsel %vm2160, %v3631, %v3633
        %v3635 = vrot.slane %v762, 2
        %v3636 = vrot.slane %v763, 2
        %v3637 = vsel %vm2160, %v3635, %v3636
        %v3638 = vrot.slane %v764, 2
        %v3639 = vsel %vm2160, %v3636, %v3638
        %v3644 = vpack.c.bf16 %v3634, %v3632
        %v3645 = vpack.c.bf16 %v3639, %v3637
        %3648 = vrot.lane.b32.xlu0 %v2386, 52
        %v3649 = vpop.permute.xlu0 %3648
        %3650 = vrot.lane.b32.xlu0 %v2387, 52
        %v3651 = vpop.permute.xlu0 %3650
        %3652 = vrot.lane.b32.xlu0 %v2388, 52
        %v3653 = vpop.permute.xlu0 %3652
        %3654 = vrot.lane.b32.xlu0 %v2389, 52
        %v3655 = vpop.permute.xlu0 %3654
        %3656 = vrot.lane.b32.xlu0 %v2390, 52
        %v3657 = vpop.permute.xlu0 %3656
        %3658 = vrot.lane.b32.xlu0 %v2391, 52
        %v3659 = vpop.permute.xlu0 %3658
        %3660 = vrot.lane.b32.xlu0 %v2392, 52
        %v3661 = vpop.permute.xlu0 %3660
        %3662 = vrot.lane.b32.xlu0 %v2393, 52
        %v3663 = vpop.permute.xlu0 %3662
        %3664 = vrot.lane.b32.xlu0 %v2394, 52
        %v3665 = vpop.permute.xlu0 %3664
        %3666 = vrot.lane.b32.xlu0 %v2395, 52
        %v3667 = vpop.permute.xlu0 %3666
        %3668 = vrot.lane.b32.xlu0 %v2396, 52
        %v3669 = vpop.permute.xlu0 %3668
        %3670 = vrot.lane.b32.xlu0 %v2397, 52
        %v3671 = vpop.permute.xlu0 %3670
        %3672 = vrot.lane.b32.xlu0 %v2398, 52
        %v3673 = vpop.permute.xlu0 %3672
        %3674 = vrot.lane.b32.xlu0 %v2399, 52
        %v3675 = vpop.permute.xlu0 %3674
        %3676 = vrot.lane.b32.xlu0 %v2400, 52
        %v3677 = vpop.permute.xlu0 %3676
        %3678 = vrot.lane.b32.xlu0 %v3644, 52
        %v3679 = vpop.permute.xlu0 %3678
        %3680 = vrot.lane.b32.xlu0 %v2402, 52
        %v3681 = vpop.permute.xlu0 %3680
        %3682 = vrot.lane.b32.xlu0 %v2403, 52
        %v3683 = vpop.permute.xlu0 %3682
        %3684 = vrot.lane.b32.xlu0 %v2404, 52
        %v3685 = vpop.permute.xlu0 %3684
        %3686 = vrot.lane.b32.xlu0 %v2405, 52
        %v3687 = vpop.permute.xlu0 %3686
        %3688 = vrot.lane.b32.xlu0 %v2406, 52
        %v3689 = vpop.permute.xlu0 %3688
        %3690 = vrot.lane.b32.xlu0 %v2407, 52
        %v3691 = vpop.permute.xlu0 %3690
        %3692 = vrot.lane.b32.xlu0 %v2408, 52
        %v3693 = vpop.permute.xlu0 %3692
        %3694 = vrot.lane.b32.xlu0 %v2409, 52
        %v3695 = vpop.permute.xlu0 %3694
        %3696 = vrot.lane.b32.xlu0 %v2410, 52
        %v3697 = vpop.permute.xlu0 %3696
        %3698 = vrot.lane.b32.xlu0 %v2411, 52
        %v3699 = vpop.permute.xlu0 %3698
        %3700 = vrot.lane.b32.xlu0 %v2412, 52
        %v3701 = vpop.permute.xlu0 %3700
        %3702 = vrot.lane.b32.xlu0 %v2413, 52
        %v3703 = vpop.permute.xlu0 %3702
        %3704 = vrot.lane.b32.xlu0 %v2414, 52
        %v3705 = vpop.permute.xlu0 %3704
        %3706 = vrot.lane.b32.xlu0 %v2415, 52
        %v3707 = vpop.permute.xlu0 %3706
        %3708 = vrot.lane.b32.xlu0 %v2416, 52
        %v3709 = vpop.permute.xlu0 %3708
        %3710 = vrot.lane.b32.xlu0 %v3645, 52
        %v3711 = vpop.permute.xlu0 %3710
        %vm3744 = vcmask 458144
        %3745 = vst.msk [vmem:[#allocation4 + $0x8] sm:$0xff] %vm3744, %v3649
        %3746 = vst.msk [vmem:[#allocation4 + $0x20] sm:$0xff] %vm3744, %v3651
        %3747 = vst.msk [vmem:[#allocation4 + $0x38] sm:$0xff] %vm3744, %v3653
        %3748 = vst.msk [vmem:[#allocation4 + $0x50] sm:$0xff] %vm3744, %v3655
        %3749 = vst.msk [vmem:[#allocation4 + $0x68] sm:$0xff] %vm3744, %v3657
        %3750 = vst.msk [vmem:[#allocation4 + $0x80] sm:$0xff] %vm3744, %v3659
        %3751 = vst.msk [vmem:[#allocation4 + $0x98] sm:$0xff] %vm3744, %v3661
        %3752 = vst.msk [vmem:[#allocation4 + $0xb0] sm:$0xff] %vm3744, %v3663
        %3753 = vst.msk [vmem:[#allocation4 + $0xc8] sm:$0xff] %vm3744, %v3665
        %3754 = vst.msk [vmem:[#allocation4 + $0xe0] sm:$0xff] %vm3744, %v3667
        %3755 = vst.msk [vmem:[#allocation4 + $0xf8] sm:$0xff] %vm3744, %v3669
        %3756 = vst.msk [vmem:[#allocation4 + $0x110] sm:$0xff] %vm3744, %v3671
        %3757 = vst.msk [vmem:[#allocation4 + $0x128] sm:$0xff] %vm3744, %v3673
        %3758 = vst.msk [vmem:[#allocation4 + $0x140] sm:$0xff] %vm3744, %v3675
        %3759 = vst.msk [vmem:[#allocation4 + $0x158] sm:$0xff] %vm3744, %v3677
        %3760 = vst.msk [vmem:[#allocation4 + $0x170] sm:$0xff] %vm3744, %v3679
        %3761 = vst.msk [vmem:[#allocation4 + $0x188] sm:$0xff] %vm3744, %v3681
        %3762 = vst.msk [vmem:[#allocation4 + $0x1a0] sm:$0xff] %vm3744, %v3683
        %3763 = vst.msk [vmem:[#allocation4 + $0x1b8] sm:$0xff] %vm3744, %v3685
        %3764 = vst.msk [vmem:[#allocation4 + $0x1d0] sm:$0xff] %vm3744, %v3687
        %3765 = vst.msk [vmem:[#allocation4 + $0x1e8] sm:$0xff] %vm3744, %v3689
        %3766 = vst.msk [vmem:[#allocation4 + $0x200] sm:$0xff] %vm3744, %v3691
        %3767 = vst.msk [vmem:[#allocation4 + $0x218] sm:$0xff] %vm3744, %v3693
        %3768 = vst.msk [vmem:[#allocation4 + $0x230] sm:$0xff] %vm3744, %v3695
        %3769 = vst.msk [vmem:[#allocation4 + $0x248] sm:$0xff] %vm3744, %v3697
        %3770 = vst.msk [vmem:[#allocation4 + $0x260] sm:$0xff] %vm3744, %v3699
        %3771 = vst.msk [vmem:[#allocation4 + $0x278] sm:$0xff] %vm3744, %v3701
        %3772 = vst.msk [vmem:[#allocation4 + $0x290] sm:$0xff] %vm3744, %v3703
        %3773 = vst.msk [vmem:[#allocation4 + $0x2a8] sm:$0xff] %vm3744, %v3705
        %3774 = vst.msk [vmem:[#allocation4 + $0x2c0] sm:$0xff] %vm3744, %v3707
        %3775 = vst.msk [vmem:[#allocation4 + $0x2d8] sm:$0xff] %vm3744, %v3709
        %3776 = vst.msk [vmem:[#allocation4 + $0x2f0] sm:$0xff] %vm3744, %v3711
        %v3777 = vrot.slane %v816, 2
        %v3778 = vrot.slane %v817, 2
        %v3779 = vsel %vm2160, %v3777, %v3778
        %v3780 = vrot.slane %v818, 2
        %v3781 = vsel %vm2160, %v3778, %v3780
        %v3782 = vrot.slane %v870, 2
        %v3783 = vrot.slane %v871, 2
        %v3784 = vsel %vm2160, %v3782, %v3783
        %v3785 = vrot.slane %v872, 2
        %v3786 = vsel %vm2160, %v3783, %v3785
        %v3791 = vpack.c.bf16 %v3781, %v3779
        %v3792 = vpack.c.bf16 %v3786, %v3784
        %3795 = vrot.lane.b32.xlu0 %v2803, 56
        %v3796 = vpop.permute.xlu0 %3795
        %3797 = vrot.lane.b32.xlu0 %v2804, 56
        %v3798 = vpop.permute.xlu0 %3797
        %3799 = vrot.lane.b32.xlu0 %v2805, 56
        %v3800 = vpop.permute.xlu0 %3799
        %3801 = vrot.lane.b32.xlu0 %v2806, 56
        %v3802 = vpop.permute.xlu0 %3801
        %3803 = vrot.lane.b32.xlu0 %v2807, 56
        %v3804 = vpop.permute.xlu0 %3803
        %3805 = vrot.lane.b32.xlu0 %v2808, 56
        %v3806 = vpop.permute.xlu0 %3805
        %3807 = vrot.lane.b32.xlu0 %v2809, 56
        %v3808 = vpop.permute.xlu0 %3807
        %3809 = vrot.lane.b32.xlu0 %v2810, 56
        %v3810 = vpop.permute.xlu0 %3809
        %3811 = vrot.lane.b32.xlu0 %v2811, 56
        %v3812 = vpop.permute.xlu0 %3811
        %3813 = vrot.lane.b32.xlu0 %v2812, 56
        %v3814 = vpop.permute.xlu0 %3813
        %3815 = vrot.lane.b32.xlu0 %v2813, 56
        %v3816 = vpop.permute.xlu0 %3815
        %3817 = vrot.lane.b32.xlu0 %v2814, 56
        %v3818 = vpop.permute.xlu0 %3817
        %3819 = vrot.lane.b32.xlu0 %v2815, 56
        %v3820 = vpop.permute.xlu0 %3819
        %3821 = vrot.lane.b32.xlu0 %v2816, 56
        %v3822 = vpop.permute.xlu0 %3821
        %3823 = vrot.lane.b32.xlu0 %v2817, 56
        %v3824 = vpop.permute.xlu0 %3823
        %3825 = vrot.lane.b32.xlu0 %v3791, 56
        %v3826 = vpop.permute.xlu0 %3825
        %3827 = vrot.lane.b32.xlu0 %v2819, 56
        %v3828 = vpop.permute.xlu0 %3827
        %3829 = vrot.lane.b32.xlu0 %v2820, 56
        %v3830 = vpop.permute.xlu0 %3829
        %3831 = vrot.lane.b32.xlu0 %v2821, 56
        %v3832 = vpop.permute.xlu0 %3831
        %3833 = vrot.lane.b32.xlu0 %v2822, 56
        %v3834 = vpop.permute.xlu0 %3833
        %3835 = vrot.lane.b32.xlu0 %v2823, 56
        %v3836 = vpop.permute.xlu0 %3835
        %3837 = vrot.lane.b32.xlu0 %v2824, 56
        %v3838 = vpop.permute.xlu0 %3837
        %3839 = vrot.lane.b32.xlu0 %v2825, 56
        %v3840 = vpop.permute.xlu0 %3839
        %3841 = vrot.lane.b32.xlu0 %v2826, 56
        %v3842 = vpop.permute.xlu0 %3841
        %3843 = vrot.lane.b32.xlu0 %v2827, 56
        %v3844 = vpop.permute.xlu0 %3843
        %3845 = vrot.lane.b32.xlu0 %v2828, 56
        %v3846 = vpop.permute.xlu0 %3845
        %3847 = vrot.lane.b32.xlu0 %v2829, 56
        %v3848 = vpop.permute.xlu0 %3847
        %3849 = vrot.lane.b32.xlu0 %v2830, 56
        %v3850 = vpop.permute.xlu0 %3849
        %3851 = vrot.lane.b32.xlu0 %v2831, 56
        %v3852 = vpop.permute.xlu0 %3851
        %3853 = vrot.lane.b32.xlu0 %v2832, 56
        %v3854 = vpop.permute.xlu0 %3853
        %3855 = vrot.lane.b32.xlu0 %v2833, 56
        %v3856 = vpop.permute.xlu0 %3855
        %3857 = vrot.lane.b32.xlu0 %v3792, 56
        %v3858 = vpop.permute.xlu0 %3857
        %vm3891 = vcmask 720320
        %3892 = vst.msk [vmem:[#allocation4 + $0x8] sm:$0xff] %vm3891, %v3796
        %3893 = vst.msk [vmem:[#allocation4 + $0x20] sm:$0xff] %vm3891, %v3798
        %3894 = vst.msk [vmem:[#allocation4 + $0x38] sm:$0xff] %vm3891, %v3800
        %3895 = vst.msk [vmem:[#allocation4 + $0x50] sm:$0xff] %vm3891, %v3802
        %3896 = vst.msk [vmem:[#allocation4 + $0x68] sm:$0xff] %vm3891, %v3804
        %3897 = vst.msk [vmem:[#allocation4 + $0x80] sm:$0xff] %vm3891, %v3806
        %3898 = vst.msk [vmem:[#allocation4 + $0x98] sm:$0xff] %vm3891, %v3808
        %3899 = vst.msk [vmem:[#allocation4 + $0xb0] sm:$0xff] %vm3891, %v3810
        %3900 = vst.msk [vmem:[#allocation4 + $0xc8] sm:$0xff] %vm3891, %v3812
        %3901 = vst.msk [vmem:[#allocation4 + $0xe0] sm:$0xff] %vm3891, %v3814
        %3902 = vst.msk [vmem:[#allocation4 + $0xf8] sm:$0xff] %vm3891, %v3816
        %3903 = vst.msk [vmem:[#allocation4 + $0x110] sm:$0xff] %vm3891, %v3818
        %3904 = vst.msk [vmem:[#allocation4 + $0x128] sm:$0xff] %vm3891, %v3820
        %3905 = vst.msk [vmem:[#allocation4 + $0x140] sm:$0xff] %vm3891, %v3822
        %3906 = vst.msk [vmem:[#allocation4 + $0x158] sm:$0xff] %vm3891, %v3824
        %3907 = vst.msk [vmem:[#allocation4 + $0x170] sm:$0xff] %vm3891, %v3826
        %3908 = vst.msk [vmem:[#allocation4 + $0x188] sm:$0xff] %vm3891, %v3828
        %3909 = vst.msk [vmem:[#allocation4 + $0x1a0] sm:$0xff] %vm3891, %v3830
        %3910 = vst.msk [vmem:[#allocation4 + $0x1b8] sm:$0xff] %vm3891, %v3832
        %3911 = vst.msk [vmem:[#allocation4 + $0x1d0] sm:$0xff] %vm3891, %v3834
        %3912 = vst.msk [vmem:[#allocation4 + $0x1e8] sm:$0xff] %vm3891, %v3836
        %3913 = vst.msk [vmem:[#allocation4 + $0x200] sm:$0xff] %vm3891, %v3838
        %3914 = vst.msk [vmem:[#allocation4 + $0x218] sm:$0xff] %vm3891, %v3840
        %3915 = vst.msk [vmem:[#allocation4 + $0x230] sm:$0xff] %vm3891, %v3842
        %3916 = vst.msk [vmem:[#allocation4 + $0x248] sm:$0xff] %vm3891, %v3844
        %3917 = vst.msk [vmem:[#allocation4 + $0x260] sm:$0xff] %vm3891, %v3846
        %3918 = vst.msk [vmem:[#allocation4 + $0x278] sm:$0xff] %vm3891, %v3848
        %3919 = vst.msk [vmem:[#allocation4 + $0x290] sm:$0xff] %vm3891, %v3850
        %3920 = vst.msk [vmem:[#allocation4 + $0x2a8] sm:$0xff] %vm3891, %v3852
        %3921 = vst.msk [vmem:[#allocation4 + $0x2c0] sm:$0xff] %vm3891, %v3854
        %3922 = vst.msk [vmem:[#allocation4 + $0x2d8] sm:$0xff] %vm3891, %v3856
        %3923 = vst.msk [vmem:[#allocation4 + $0x2f0] sm:$0xff] %vm3891, %v3858
        %v3924 = vpack.c.bf16 %v712, %v711
        %v3925 = vpack.c.bf16 %v766, %v765
        %3928 = vrot.lane.b32.xlu0 %v878, 88
        %v3929 = vpop.permute.xlu0 %3928
        %3930 = vrot.lane.b32.xlu0 %v879, 88
        %v3931 = vpop.permute.xlu0 %3930
        %3932 = vrot.lane.b32.xlu0 %v880, 88
        %v3933 = vpop.permute.xlu0 %3932
        %3934 = vrot.lane.b32.xlu0 %v881, 88
        %v3935 = vpop.permute.xlu0 %3934
        %3936 = vrot.lane.b32.xlu0 %v882, 88
        %v3937 = vpop.permute.xlu0 %3936
        %3938 = vrot.lane.b32.xlu0 %v883, 88
        %v3939 = vpop.permute.xlu0 %3938
        %3940 = vrot.lane.b32.xlu0 %v884, 88
        %v3941 = vpop.permute.xlu0 %3940
        %3942 = vrot.lane.b32.xlu0 %v885, 88
        %v3943 = vpop.permute.xlu0 %3942
        %3944 = vrot.lane.b32.xlu0 %v886, 88
        %v3945 = vpop.permute.xlu0 %3944
        %3946 = vrot.lane.b32.xlu0 %v887, 88
        %v3947 = vpop.permute.xlu0 %3946
        %3948 = vrot.lane.b32.xlu0 %v888, 88
        %v3949 = vpop.permute.xlu0 %3948
        %3950 = vrot.lane.b32.xlu0 %v889, 88
        %v3951 = vpop.permute.xlu0 %3950
        %3952 = vrot.lane.b32.xlu0 %v890, 88
        %v3953 = vpop.permute.xlu0 %3952
        %3954 = vrot.lane.b32.xlu0 %v891, 88
        %v3955 = vpop.permute.xlu0 %3954
        %3956 = vrot.lane.b32.xlu0 %v2995, 88
        %v3957 = vpop.permute.xlu0 %3956
        %3958 = vrot.lane.b32.xlu0 %v3924, 88
        %v3959 = vpop.permute.xlu0 %3958
        %3960 = vrot.lane.b32.xlu0 %v894, 88
        %v3961 = vpop.permute.xlu0 %3960
        %3962 = vrot.lane.b32.xlu0 %v895, 88
        %v3963 = vpop.permute.xlu0 %3962
        %3964 = vrot.lane.b32.xlu0 %v896, 88
        %v3965 = vpop.permute.xlu0 %3964
        %3966 = vrot.lane.b32.xlu0 %v897, 88
        %v3967 = vpop.permute.xlu0 %3966
        %3968 = vrot.lane.b32.xlu0 %v898, 88
        %v3969 = vpop.permute.xlu0 %3968
        %3970 = vrot.lane.b32.xlu0 %v899, 88
        %v3971 = vpop.permute.xlu0 %3970
        %3972 = vrot.lane.b32.xlu0 %v900, 88
        %v3973 = vpop.permute.xlu0 %3972
        %3974 = vrot.lane.b32.xlu0 %v901, 88
        %v3975 = vpop.permute.xlu0 %3974
        %3976 = vrot.lane.b32.xlu0 %v902, 88
        %v3977 = vpop.permute.xlu0 %3976
        %3978 = vrot.lane.b32.xlu0 %v903, 88
        %v3979 = vpop.permute.xlu0 %3978
        %3980 = vrot.lane.b32.xlu0 %v904, 88
        %v3981 = vpop.permute.xlu0 %3980
        %3982 = vrot.lane.b32.xlu0 %v905, 88
        %v3983 = vpop.permute.xlu0 %3982
        %3984 = vrot.lane.b32.xlu0 %v906, 88
        %v3985 = vpop.permute.xlu0 %3984
        %3986 = vrot.lane.b32.xlu0 %v907, 88
        %v3987 = vpop.permute.xlu0 %3986
        %3988 = vrot.lane.b32.xlu0 %v2996, 88
        %v3989 = vpop.permute.xlu0 %3988
        %3990 = vrot.lane.b32.xlu0 %v3925, 88
        %v3991 = vpop.permute.xlu0 %3990
        %vm4024 = vcmask 753344
        %4025 = vst.msk [vmem:[#allocation4 + $0x8] sm:$0xff] %vm4024, %v3929
        %4026 = vst.msk [vmem:[#allocation4 + $0x20] sm:$0xff] %vm4024, %v3931
        %4027 = vst.msk [vmem:[#allocation4 + $0x38] sm:$0xff] %vm4024, %v3933
        %4028 = vst.msk [vmem:[#allocation4 + $0x50] sm:$0xff] %vm4024, %v3935
        %4029 = vst.msk [vmem:[#allocation4 + $0x68] sm:$0xff] %vm4024, %v3937
        %4030 = vst.msk [vmem:[#allocation4 + $0x80] sm:$0xff] %vm4024, %v3939
        %4031 = vst.msk [vmem:[#allocation4 + $0x98] sm:$0xff] %vm4024, %v3941
        %4032 = vst.msk [vmem:[#allocation4 + $0xb0] sm:$0xff] %vm4024, %v3943
        %4033 = vst.msk [vmem:[#allocation4 + $0xc8] sm:$0xff] %vm4024, %v3945
        %4034 = vst.msk [vmem:[#allocation4 + $0xe0] sm:$0xff] %vm4024, %v3947
        %4035 = vst.msk [vmem:[#allocation4 + $0xf8] sm:$0xff] %vm4024, %v3949
        %4036 = vst.msk [vmem:[#allocation4 + $0x110] sm:$0xff] %vm4024, %v3951
        %4037 = vst.msk [vmem:[#allocation4 + $0x128] sm:$0xff] %vm4024, %v3953
        %4038 = vst.msk [vmem:[#allocation4 + $0x140] sm:$0xff] %vm4024, %v3955
        %4039 = vst.msk [vmem:[#allocation4 + $0x158] sm:$0xff] %vm4024, %v3957
        %4040 = vst.msk [vmem:[#allocation4 + $0x170] sm:$0xff] %vm4024, %v3959
        %4041 = vst.msk [vmem:[#allocation4 + $0x188] sm:$0xff] %vm4024, %v3961
        %4042 = vst.msk [vmem:[#allocation4 + $0x1a0] sm:$0xff] %vm4024, %v3963
        %4043 = vst.msk [vmem:[#allocation4 + $0x1b8] sm:$0xff] %vm4024, %v3965
        %4044 = vst.msk [vmem:[#allocation4 + $0x1d0] sm:$0xff] %vm4024, %v3967
        %4045 = vst.msk [vmem:[#allocation4 + $0x1e8] sm:$0xff] %vm4024, %v3969
        %4046 = vst.msk [vmem:[#allocation4 + $0x200] sm:$0xff] %vm4024, %v3971
        %4047 = vst.msk [vmem:[#allocation4 + $0x218] sm:$0xff] %vm4024, %v3973
        %4048 = vst.msk [vmem:[#allocation4 + $0x230] sm:$0xff] %vm4024, %v3975
        %4049 = vst.msk [vmem:[#allocation4 + $0x248] sm:$0xff] %vm4024, %v3977
        %4050 = vst.msk [vmem:[#allocation4 + $0x260] sm:$0xff] %vm4024, %v3979
        %4051 = vst.msk [vmem:[#allocation4 + $0x278] sm:$0xff] %vm4024, %v3981
        %4052 = vst.msk [vmem:[#allocation4 + $0x290] sm:$0xff] %vm4024, %v3983
        %4053 = vst.msk [vmem:[#allocation4 + $0x2a8] sm:$0xff] %vm4024, %v3985
        %4054 = vst.msk [vmem:[#allocation4 + $0x2c0] sm:$0xff] %vm4024, %v3987
        %4055 = vst.msk [vmem:[#allocation4 + $0x2d8] sm:$0xff] %vm4024, %v3989
        %4056 = vst.msk [vmem:[#allocation4 + $0x2f0] sm:$0xff] %vm4024, %v3991
        %v4057 = vpack.c.bf16 %v820, %v819
        %v4058 = vpack.c.bf16 %v874, %v873
        %4061 = vrot.lane.b32.xlu0 %v942, 92
        %v4062 = vpop.permute.xlu0 %4061
        %4063 = vrot.lane.b32.xlu0 %v943, 92
        %v4064 = vpop.permute.xlu0 %4063
        %4065 = vrot.lane.b32.xlu0 %v944, 92
        %v4066 = vpop.permute.xlu0 %4065
        %4067 = vrot.lane.b32.xlu0 %v945, 92
        %v4068 = vpop.permute.xlu0 %4067
        %4069 = vrot.lane.b32.xlu0 %v946, 92
        %v4070 = vpop.permute.xlu0 %4069
        %4071 = vrot.lane.b32.xlu0 %v947, 92
        %v4072 = vpop.permute.xlu0 %4071
        %4073 = vrot.lane.b32.xlu0 %v948, 92
        %v4074 = vpop.permute.xlu0 %4073
        %4075 = vrot.lane.b32.xlu0 %v949, 92
        %v4076 = vpop.permute.xlu0 %4075
        %4077 = vrot.lane.b32.xlu0 %v950, 92
        %v4078 = vpop.permute.xlu0 %4077
        %4079 = vrot.lane.b32.xlu0 %v951, 92
        %v4080 = vpop.permute.xlu0 %4079
        %4081 = vrot.lane.b32.xlu0 %v952, 92
        %v4082 = vpop.permute.xlu0 %4081
        %4083 = vrot.lane.b32.xlu0 %v953, 92
        %v4084 = vpop.permute.xlu0 %4083
        %4085 = vrot.lane.b32.xlu0 %v954, 92
        %v4086 = vpop.permute.xlu0 %4085
        %4087 = vrot.lane.b32.xlu0 %v955, 92
        %v4088 = vpop.permute.xlu0 %4087
        %4089 = vrot.lane.b32.xlu0 %v3158, 92
        %v4090 = vpop.permute.xlu0 %4089
        %4091 = vrot.lane.b32.xlu0 %v4057, 92
        %v4092 = vpop.permute.xlu0 %4091
        %4093 = vrot.lane.b32.xlu0 %v958, 92
        %v4094 = vpop.permute.xlu0 %4093
        %4095 = vrot.lane.b32.xlu0 %v959, 92
        %v4096 = vpop.permute.xlu0 %4095
        %4097 = vrot.lane.b32.xlu0 %v960, 92
        %v4098 = vpop.permute.xlu0 %4097
        %4099 = vrot.lane.b32.xlu0 %v961, 92
        %v4100 = vpop.permute.xlu0 %4099
        %4101 = vrot.lane.b32.xlu0 %v962, 92
        %v4102 = vpop.permute.xlu0 %4101
        %4103 = vrot.lane.b32.xlu0 %v963, 92
        %v4104 = vpop.permute.xlu0 %4103
        %4105 = vrot.lane.b32.xlu0 %v964, 92
        %v4106 = vpop.permute.xlu0 %4105
        %4107 = vrot.lane.b32.xlu0 %v965, 92
        %v4108 = vpop.permute.xlu0 %4107
        %4109 = vrot.lane.b32.xlu0 %v966, 92
        %v4110 = vpop.permute.xlu0 %4109
        %4111 = vrot.lane.b32.xlu0 %v967, 92
        %v4112 = vpop.permute.xlu0 %4111
        %4113 = vrot.lane.b32.xlu0 %v968, 92
        %v4114 = vpop.permute.xlu0 %4113
        %4115 = vrot.lane.b32.xlu0 %v969, 92
        %v4116 = vpop.permute.xlu0 %4115
        %4117 = vrot.lane.b32.xlu0 %v970, 92
        %v4118 = vpop.permute.xlu0 %4117
        %4119 = vrot.lane.b32.xlu0 %v971, 92
        %v4120 = vpop.permute.xlu0 %4119
        %4121 = vrot.lane.b32.xlu0 %v3159, 92
        %v4122 = vpop.permute.xlu0 %4121
        %4123 = vrot.lane.b32.xlu0 %v4058, 92
        %v4124 = vpop.permute.xlu0 %4123
        %vm4157 = vcmask 1015520
        %4158 = vst.msk [vmem:[#allocation4 + $0x8] sm:$0xff] %vm4157, %v4062
        %4159 = vst.msk [vmem:[#allocation4 + $0x20] sm:$0xff] %vm4157, %v4064
        %4160 = vst.msk [vmem:[#allocation4 + $0x38] sm:$0xff] %vm4157, %v4066
        %4161 = vst.msk [vmem:[#allocation4 + $0x50] sm:$0xff] %vm4157, %v4068
        %4162 = vst.msk [vmem:[#allocation4 + $0x68] sm:$0xff] %vm4157, %v4070
        %4163 = vst.msk [vmem:[#allocation4 + $0x80] sm:$0xff] %vm4157, %v4072
        %4164 = vst.msk [vmem:[#allocation4 + $0x98] sm:$0xff] %vm4157, %v4074
        %4165 = vst.msk [vmem:[#allocation4 + $0xb0] sm:$0xff] %vm4157, %v4076
        %4166 = vst.msk [vmem:[#allocation4 + $0xc8] sm:$0xff] %vm4157, %v4078
        %4167 = vst.msk [vmem:[#allocation4 + $0xe0] sm:$0xff] %vm4157, %v4080
        %4168 = vst.msk [vmem:[#allocation4 + $0xf8] sm:$0xff] %vm4157, %v4082
        %4169 = vst.msk [vmem:[#allocation4 + $0x110] sm:$0xff] %vm4157, %v4084
        %4170 = vst.msk [vmem:[#allocation4 + $0x128] sm:$0xff] %vm4157, %v4086
        %4171 = vst.msk [vmem:[#allocation4 + $0x140] sm:$0xff] %vm4157, %v4088
        %4172 = vst.msk [vmem:[#allocation4 + $0x158] sm:$0xff] %vm4157, %v4090
        %4173 = vst.msk [vmem:[#allocation4 + $0x170] sm:$0xff] %vm4157, %v4092
        %4174 = vst.msk [vmem:[#allocation4 + $0x188] sm:$0xff] %vm4157, %v4094
        %4175 = vst.msk [vmem:[#allocation4 + $0x1a0] sm:$0xff] %vm4157, %v4096
        %4176 = vst.msk [vmem:[#allocation4 + $0x1b8] sm:$0xff] %vm4157, %v4098
        %4177 = vst.msk [vmem:[#allocation4 + $0x1d0] sm:$0xff] %vm4157, %v4100
        %4178 = vst.msk [vmem:[#allocation4 + $0x1e8] sm:$0xff] %vm4157, %v4102
        %4179 = vst.msk [vmem:[#allocation4 + $0x200] sm:$0xff] %vm4157, %v4104
        %4180 = vst.msk [vmem:[#allocation4 + $0x218] sm:$0xff] %vm4157, %v4106
        %4181 = vst.msk [vmem:[#allocation4 + $0x230] sm:$0xff] %vm4157, %v4108
        %4182 = vst.msk [vmem:[#allocation4 + $0x248] sm:$0xff] %vm4157, %v4110
        %4183 = vst.msk [vmem:[#allocation4 + $0x260] sm:$0xff] %vm4157, %v4112
        %4184 = vst.msk [vmem:[#allocation4 + $0x278] sm:$0xff] %vm4157, %v4114
        %4185 = vst.msk [vmem:[#allocation4 + $0x290] sm:$0xff] %vm4157, %v4116
        %4186 = vst.msk [vmem:[#allocation4 + $0x2a8] sm:$0xff] %vm4157, %v4118
        %4187 = vst.msk [vmem:[#allocation4 + $0x2c0] sm:$0xff] %vm4157, %v4120
        %4188 = vst.msk [vmem:[#allocation4 + $0x2d8] sm:$0xff] %vm4157, %v4122
        %4189 = vst.msk [vmem:[#allocation4 + $0x2f0] sm:$0xff] %vm4157, %v4124
        %v4196 = vrot.slane %v711, 1
        %v4197 = vrot.slane %v712, 1
        %v4198 = vsel %vm1229, %v4196, %v4197
        %v4199 = vrot.slane %v713, 1
        %v4200 = vsel %vm1229, %v4197, %v4199
        %v4201 = vrot.slane %v765, 1
        %v4202 = vrot.slane %v766, 1
        %v4203 = vsel %vm1229, %v4201, %v4202
        %v4204 = vrot.slane %v767, 1
        %v4205 = vsel %vm1229, %v4202, %v4204
        %v4210 = vpack.c.bf16 %v4200, %v4198
        %v4211 = vpack.c.bf16 %v4205, %v4203
        %4214 = vrot.lane.b32.xlu0 %v1456, 124
        %v4215 = vpop.permute.xlu0 %4214
        %4216 = vrot.lane.b32.xlu0 %v1457, 124
        %v4217 = vpop.permute.xlu0 %4216
        %4218 = vrot.lane.b32.xlu0 %v1458, 124
        %v4219 = vpop.permute.xlu0 %4218
        %4220 = vrot.lane.b32.xlu0 %v1459, 124
        %v4221 = vpop.permute.xlu0 %4220
        %4222 = vrot.lane.b32.xlu0 %v1460, 124
        %v4223 = vpop.permute.xlu0 %4222
        %4224 = vrot.lane.b32.xlu0 %v1461, 124
        %v4225 = vpop.permute.xlu0 %4224
        %4226 = vrot.lane.b32.xlu0 %v1462, 124
        %v4227 = vpop.permute.xlu0 %4226
        %4228 = vrot.lane.b32.xlu0 %v1463, 124
        %v4229 = vpop.permute.xlu0 %4228
        %4230 = vrot.lane.b32.xlu0 %v1464, 124
        %v4231 = vpop.permute.xlu0 %4230
        %4232 = vrot.lane.b32.xlu0 %v1465, 124
        %v4233 = vpop.permute.xlu0 %4232
        %4234 = vrot.lane.b32.xlu0 %v1466, 124
        %v4235 = vpop.permute.xlu0 %4234
        %4236 = vrot.lane.b32.xlu0 %v1467, 124
        %v4237 = vpop.permute.xlu0 %4236
        %4238 = vrot.lane.b32.xlu0 %v1468, 124
        %v4239 = vpop.permute.xlu0 %4238
        %4240 = vrot.lane.b32.xlu0 %v1469, 124
        %v4241 = vpop.permute.xlu0 %4240
        %4242 = vrot.lane.b32.xlu0 %v3344, 124
        %v4243 = vpop.permute.xlu0 %4242
        %4244 = vrot.lane.b32.xlu0 %v4210, 124
        %v4245 = vpop.permute.xlu0 %4244
        %4246 = vrot.lane.b32.xlu0 %v1472, 124
        %v4247 = vpop.permute.xlu0 %4246
        %4248 = vrot.lane.b32.xlu0 %v1473, 124
        %v4249 = vpop.permute.xlu0 %4248
        %4250 = vrot.lane.b32.xlu0 %v1474, 124
        %v4251 = vpop.permute.xlu0 %4250
        %4252 = vrot.lane.b32.xlu0 %v1475, 124
        %v4253 = vpop.permute.xlu0 %4252
        %4254 = vrot.lane.b32.xlu0 %v1476, 124
        %v4255 = vpop.permute.xlu0 %4254
        %4256 = vrot.lane.b32.xlu0 %v1477, 124
        %v4257 = vpop.permute.xlu0 %4256
        %4258 = vrot.lane.b32.xlu0 %v1478, 124
        %v4259 = vpop.permute.xlu0 %4258
        %4260 = vrot.lane.b32.xlu0 %v1479, 124
        %v4261 = vpop.permute.xlu0 %4260
        %4262 = vrot.lane.b32.xlu0 %v1480, 124
        %v4263 = vpop.permute.xlu0 %4262
        %4264 = vrot.lane.b32.xlu0 %v1481, 124
        %v4265 = vpop.permute.xlu0 %4264
        %4266 = vrot.lane.b32.xlu0 %v1482, 124
        %v4267 = vpop.permute.xlu0 %4266
        %4268 = vrot.lane.b32.xlu0 %v1483, 124
        %v4269 = vpop.permute.xlu0 %4268
        %4270 = vrot.lane.b32.xlu0 %v1484, 124
        %v4271 = vpop.permute.xlu0 %4270
        %4272 = vrot.lane.b32.xlu0 %v1485, 124
        %v4273 = vpop.permute.xlu0 %4272
        %4274 = vrot.lane.b32.xlu0 %v3345, 124
        %v4275 = vpop.permute.xlu0 %4274
        %4276 = vrot.lane.b32.xlu0 %v4211, 124
        %v4277 = vpop.permute.xlu0 %4276
        %vm4310 = vcmask 1048544
        %4311 = vst.msk [vmem:[#allocation4 + $0x8] sm:$0xff] %vm4310, %v4215
        %4312 = vst.msk [vmem:[#allocation4 + $0x20] sm:$0xff] %vm4310, %v4217
        %4313 = vst.msk [vmem:[#allocation4 + $0x38] sm:$0xff] %vm4310, %v4219
        %4314 = vst.msk [vmem:[#allocation4 + $0x50] sm:$0xff] %vm4310, %v4221
        %4315 = vst.msk [vmem:[#allocation4 + $0x68] sm:$0xff] %vm4310, %v4223
        %4316 = vst.msk [vmem:[#allocation4 + $0x80] sm:$0xff] %vm4310, %v4225
        %4317 = vst.msk [vmem:[#allocation4 + $0x98] sm:$0xff] %vm4310, %v4227
        %4318 = vst.msk [vmem:[#allocation4 + $0xb0] sm:$0xff] %vm4310, %v4229
        %4319 = vst.msk [vmem:[#allocation4 + $0xc8] sm:$0xff] %vm4310, %v4231
        %4320 = vst.msk [vmem:[#allocation4 + $0xe0] sm:$0xff] %vm4310, %v4233
        %4321 = vst.msk [vmem:[#allocation4 + $0xf8] sm:$0xff] %vm4310, %v4235
        %4322 = vst.msk [vmem:[#allocation4 + $0x110] sm:$0xff] %vm4310, %v4237
        %4323 = vst.msk [vmem:[#allocation4 + $0x128] sm:$0xff] %vm4310, %v4239
        %4324 = vst.msk [vmem:[#allocation4 + $0x140] sm:$0xff] %vm4310, %v4241
        %4325 = vst.msk [vmem:[#allocation4 + $0x158] sm:$0xff] %vm4310, %v4243
        %4326 = vst.msk [vmem:[#allocation4 + $0x170] sm:$0xff] %vm4310, %v4245
        %4327 = vst.msk [vmem:[#allocation4 + $0x188] sm:$0xff] %vm4310, %v4247
        %4328 = vst.msk [vmem:[#allocation4 + $0x1a0] sm:$0xff] %vm4310, %v4249
        %4329 = vst.msk [vmem:[#allocation4 + $0x1b8] sm:$0xff] %vm4310, %v4251
        %4330 = vst.msk [vmem:[#allocation4 + $0x1d0] sm:$0xff] %vm4310, %v4253
        %4331 = vst.msk [vmem:[#allocation4 + $0x1e8] sm:$0xff] %vm4310, %v4255
        %4332 = vst.msk [vmem:[#allocation4 + $0x200] sm:$0xff] %vm4310, %v4257
        %4333 = vst.msk [vmem:[#allocation4 + $0x218] sm:$0xff] %vm4310, %v4259
        %4334 = vst.msk [vmem:[#allocation4 + $0x230] sm:$0xff] %vm4310, %v4261
        %4335 = vst.msk [vmem:[#allocation4 + $0x248] sm:$0xff] %vm4310, %v4263
        %4336 = vst.msk [vmem:[#allocation4 + $0x260] sm:$0xff] %vm4310, %v4265
        %4337 = vst.msk [vmem:[#allocation4 + $0x278] sm:$0xff] %vm4310, %v4267
        %4338 = vst.msk [vmem:[#allocation4 + $0x290] sm:$0xff] %vm4310, %v4269
        %4339 = vst.msk [vmem:[#allocation4 + $0x2a8] sm:$0xff] %vm4310, %v4271
        %4340 = vst.msk [vmem:[#allocation4 + $0x2c0] sm:$0xff] %vm4310, %v4273
        %4341 = vst.msk [vmem:[#allocation4 + $0x2d8] sm:$0xff] %vm4310, %v4275
        %4342 = vst.msk [vmem:[#allocation4 + $0x2f0] sm:$0xff] %vm4310, %v4277
        %v4349 = vrot.slane %v819, 1
        %v4350 = vrot.slane %v820, 1
        %v4351 = vsel %vm1229, %v4349, %v4350
        %v4352 = vrot.slane %v821, 1
        %v4353 = vsel %vm1229, %v4350, %v4352
        %v4354 = vrot.slane %v873, 1
        %v4355 = vrot.slane %v874, 1
        %v4356 = vsel %vm1229, %v4354, %v4355
        %v4357 = vrot.slane %v875, 1
        %v4358 = vsel %vm1229, %v4355, %v4357
        %v4363 = vpack.c.bf16 %v4353, %v4351
        %v4364 = vpack.c.bf16 %v4358, %v4356
        %vm4365 = vcmask 261120
        %4366 = vst.msk [vmem:[#allocation4 + $0x10] sm:$0xff] %vm4365, %v1969
        %4367 = vst.msk [vmem:[#allocation4 + $0x28] sm:$0xff] %vm4365, %v1970
        %4368 = vst.msk [vmem:[#allocation4 + $0x40] sm:$0xff] %vm4365, %v1971
        %4369 = vst.msk [vmem:[#allocation4 + $0x58] sm:$0xff] %vm4365, %v1972
        %4370 = vst.msk [vmem:[#allocation4 + $0x70] sm:$0xff] %vm4365, %v1973
        %4371 = vst.msk [vmem:[#allocation4 + $0x88] sm:$0xff] %vm4365, %v1974
        %4372 = vst.msk [vmem:[#allocation4 + $0xa0] sm:$0xff] %vm4365, %v1975
        %4373 = vst.msk [vmem:[#allocation4 + $0xb8] sm:$0xff] %vm4365, %v1976
        %4374 = vst.msk [vmem:[#allocation4 + $0xd0] sm:$0xff] %vm4365, %v1977
        %4375 = vst.msk [vmem:[#allocation4 + $0xe8] sm:$0xff] %vm4365, %v1978
        %4376 = vst.msk [vmem:[#allocation4 + $0x100] sm:$0xff] %vm4365, %v1979
        %4377 = vst.msk [vmem:[#allocation4 + $0x118] sm:$0xff] %vm4365, %v1980
        %4378 = vst.msk [vmem:[#allocation4 + $0x130] sm:$0xff] %vm4365, %v1981
        %4379 = vst.msk [vmem:[#allocation4 + $0x148] sm:$0xff] %vm4365, %v1982
        %4380 = vst.msk [vmem:[#allocation4 + $0x160] sm:$0xff] %vm4365, %v3497
        %4381 = vst.msk [vmem:[#allocation4 + $0x178] sm:$0xff] %vm4365, %v4363
        %4382 = vst.msk [vmem:[#allocation4 + $0x190] sm:$0xff] %vm4365, %v1985
        %4383 = vst.msk [vmem:[#allocation4 + $0x1a8] sm:$0xff] %vm4365, %v1986
        %4384 = vst.msk [vmem:[#allocation4 + $0x1c0] sm:$0xff] %vm4365, %v1987
        %4385 = vst.msk [vmem:[#allocation4 + $0x1d8] sm:$0xff] %vm4365, %v1988
        %4386 = vst.msk [vmem:[#allocation4 + $0x1f0] sm:$0xff] %vm4365, %v1989
        %4387 = vst.msk [vmem:[#allocation4 + $0x208] sm:$0xff] %vm4365, %v1990
        %4388 = vst.msk [vmem:[#allocation4 + $0x220] sm:$0xff] %vm4365, %v1991
        %4389 = vst.msk [vmem:[#allocation4 + $0x238] sm:$0xff] %vm4365, %v1992
        %4390 = vst.msk [vmem:[#allocation4 + $0x250] sm:$0xff] %vm4365, %v1993
        %4391 = vst.msk [vmem:[#allocation4 + $0x268] sm:$0xff] %vm4365, %v1994
        %4392 = vst.msk [vmem:[#allocation4 + $0x280] sm:$0xff] %vm4365, %v1995
        %4393 = vst.msk [vmem:[#allocation4 + $0x298] sm:$0xff] %vm4365, %v1996
        %4394 = vst.msk [vmem:[#allocation4 + $0x2b0] sm:$0xff] %vm4365, %v1997
        %4395 = vst.msk [vmem:[#allocation4 + $0x2c8] sm:$0xff] %vm4365, %v1998
        %4396 = vst.msk [vmem:[#allocation4 + $0x2e0] sm:$0xff] %vm4365, %v3498
        %4397 = vst.msk [vmem:[#allocation4 + $0x2f8] sm:$0xff] %vm4365, %v4364
        %v4398 = vrot.slane %v711, 2
        %v4399 = vrot.slane %v712, 2
        %v4400 = vsel %vm2160, %v4398, %v4399
        %v4401 = vrot.slane %v713, 2
        %v4402 = vsel %vm2160, %v4399, %v4401
        %v4403 = vrot.slane %v765, 2
        %v4404 = vrot.slane %v766, 2
        %v4405 = vsel %vm2160, %v4403, %v4404
        %v4406 = vrot.slane %v767, 2
        %v4407 = vsel %vm2160, %v4404, %v4406
        %v4412 = vpack.c.bf16 %v4402, %v4400
        %v4413 = vpack.c.bf16 %v4407, %v4405
        %4416 = vrot.lane.b32.xlu0 %v2387, 32
        %v4417 = vpop.permute.xlu0 %4416
        %4418 = vrot.lane.b32.xlu0 %v2388, 32
        %v4419 = vpop.permute.xlu0 %4418
        %4420 = vrot.lane.b32.xlu0 %v2389, 32
        %v4421 = vpop.permute.xlu0 %4420
        %4422 = vrot.lane.b32.xlu0 %v2390, 32
        %v4423 = vpop.permute.xlu0 %4422
        %4424 = vrot.lane.b32.xlu0 %v2391, 32
        %v4425 = vpop.permute.xlu0 %4424
        %4426 = vrot.lane.b32.xlu0 %v2392, 32
        %v4427 = vpop.permute.xlu0 %4426
        %4428 = vrot.lane.b32.xlu0 %v2393, 32
        %v4429 = vpop.permute.xlu0 %4428
        %4430 = vrot.lane.b32.xlu0 %v2394, 32
        %v4431 = vpop.permute.xlu0 %4430
        %4432 = vrot.lane.b32.xlu0 %v2395, 32
        %v4433 = vpop.permute.xlu0 %4432
        %4434 = vrot.lane.b32.xlu0 %v2396, 32
        %v4435 = vpop.permute.xlu0 %4434
        %4436 = vrot.lane.b32.xlu0 %v2397, 32
        %v4437 = vpop.permute.xlu0 %4436
        %4438 = vrot.lane.b32.xlu0 %v2398, 32
        %v4439 = vpop.permute.xlu0 %4438
        %4440 = vrot.lane.b32.xlu0 %v2399, 32
        %v4441 = vpop.permute.xlu0 %4440
        %4442 = vrot.lane.b32.xlu0 %v2400, 32
        %v4443 = vpop.permute.xlu0 %4442
        %4444 = vrot.lane.b32.xlu0 %v3644, 32
        %v4445 = vpop.permute.xlu0 %4444
        %4446 = vrot.lane.b32.xlu0 %v4412, 32
        %v4447 = vpop.permute.xlu0 %4446
        %4448 = vrot.lane.b32.xlu0 %v2403, 32
        %v4449 = vpop.permute.xlu0 %4448
        %4450 = vrot.lane.b32.xlu0 %v2404, 32
        %v4451 = vpop.permute.xlu0 %4450
        %4452 = vrot.lane.b32.xlu0 %v2405, 32
        %v4453 = vpop.permute.xlu0 %4452
        %4454 = vrot.lane.b32.xlu0 %v2406, 32
        %v4455 = vpop.permute.xlu0 %4454
        %4456 = vrot.lane.b32.xlu0 %v2407, 32
        %v4457 = vpop.permute.xlu0 %4456
        %4458 = vrot.lane.b32.xlu0 %v2408, 32
        %v4459 = vpop.permute.xlu0 %4458
        %4460 = vrot.lane.b32.xlu0 %v2409, 32
        %v4461 = vpop.permute.xlu0 %4460
        %4462 = vrot.lane.b32.xlu0 %v2410, 32
        %v4463 = vpop.permute.xlu0 %4462
        %4464 = vrot.lane.b32.xlu0 %v2411, 32
        %v4465 = vpop.permute.xlu0 %4464
        %4466 = vrot.lane.b32.xlu0 %v2412, 32
        %v4467 = vpop.permute.xlu0 %4466
        %4468 = vrot.lane.b32.xlu0 %v2413, 32
        %v4469 = vpop.permute.xlu0 %4468
        %4470 = vrot.lane.b32.xlu0 %v2414, 32
        %v4471 = vpop.permute.xlu0 %4470
        %4472 = vrot.lane.b32.xlu0 %v2415, 32
        %v4473 = vpop.permute.xlu0 %4472
        %4474 = vrot.lane.b32.xlu0 %v2416, 32
        %v4475 = vpop.permute.xlu0 %4474
        %4476 = vrot.lane.b32.xlu0 %v3645, 32
        %v4477 = vpop.permute.xlu0 %4476
        %4478 = vrot.lane.b32.xlu0 %v4413, 32
        %v4479 = vpop.permute.xlu0 %4478
        %vm4512 = vcmask 294144
        %4513 = vst.msk [vmem:[#allocation4 + $0x10] sm:$0xff] %vm4512, %v4417
        %4514 = vst.msk [vmem:[#allocation4 + $0x28] sm:$0xff] %vm4512, %v4419
        %4515 = vst.msk [vmem:[#allocation4 + $0x40] sm:$0xff] %vm4512, %v4421
        %4516 = vst.msk [vmem:[#allocation4 + $0x58] sm:$0xff] %vm4512, %v4423
        %4517 = vst.msk [vmem:[#allocation4 + $0x70] sm:$0xff] %vm4512, %v4425
        %4518 = vst.msk [vmem:[#allocation4 + $0x88] sm:$0xff] %vm4512, %v4427
        %4519 = vst.msk [vmem:[#allocation4 + $0xa0] sm:$0xff] %vm4512, %v4429
        %4520 = vst.msk [vmem:[#allocation4 + $0xb8] sm:$0xff] %vm4512, %v4431
        %4521 = vst.msk [vmem:[#allocation4 + $0xd0] sm:$0xff] %vm4512, %v4433
        %4522 = vst.msk [vmem:[#allocation4 + $0xe8] sm:$0xff] %vm4512, %v4435
        %4523 = vst.msk [vmem:[#allocation4 + $0x100] sm:$0xff] %vm4512, %v4437
        %4524 = vst.msk [vmem:[#allocation4 + $0x118] sm:$0xff] %vm4512, %v4439
        %4525 = vst.msk [vmem:[#allocation4 + $0x130] sm:$0xff] %vm4512, %v4441
        %4526 = vst.msk [vmem:[#allocation4 + $0x148] sm:$0xff] %vm4512, %v4443
        %4527 = vst.msk [vmem:[#allocation4 + $0x160] sm:$0xff] %vm4512, %v4445
        %4528 = vst.msk [vmem:[#allocation4 + $0x178] sm:$0xff] %vm4512, %v4447
        %4529 = vst.msk [vmem:[#allocation4 + $0x190] sm:$0xff] %vm4512, %v4449
        %4530 = vst.msk [vmem:[#allocation4 + $0x1a8] sm:$0xff] %vm4512, %v4451
        %4531 = vst.msk [vmem:[#allocation4 + $0x1c0] sm:$0xff] %vm4512, %v4453
        %4532 = vst.msk [vmem:[#allocation4 + $0x1d8] sm:$0xff] %vm4512, %v4455
        %4533 = vst.msk [vmem:[#allocation4 + $0x1f0] sm:$0xff] %vm4512, %v4457
        %4534 = vst.msk [vmem:[#allocation4 + $0x208] sm:$0xff] %vm4512, %v4459
        %4535 = vst.msk [vmem:[#allocation4 + $0x220] sm:$0xff] %vm4512, %v4461
        %4536 = vst.msk [vmem:[#allocation4 + $0x238] sm:$0xff] %vm4512, %v4463
        %4537 = vst.msk [vmem:[#allocation4 + $0x250] sm:$0xff] %vm4512, %v4465
        %4538 = vst.msk [vmem:[#allocation4 + $0x268] sm:$0xff] %vm4512, %v4467
        %4539 = vst.msk [vmem:[#allocation4 + $0x280] sm:$0xff] %vm4512, %v4469
        %4540 = vst.msk [vmem:[#allocation4 + $0x298] sm:$0xff] %vm4512, %v4471
        %4541 = vst.msk [vmem:[#allocation4 + $0x2b0] sm:$0xff] %vm4512, %v4473
        %4542 = vst.msk [vmem:[#allocation4 + $0x2c8] sm:$0xff] %vm4512, %v4475
        %4543 = vst.msk [vmem:[#allocation4 + $0x2e0] sm:$0xff] %vm4512, %v4477
        %4544 = vst.msk [vmem:[#allocation4 + $0x2f8] sm:$0xff] %vm4512, %v4479
        %v4545 = vrot.slane %v819, 2
        %v4546 = vrot.slane %v820, 2
        %v4547 = vsel %vm2160, %v4545, %v4546
        %v4548 = vrot.slane %v821, 2
        %v4549 = vsel %vm2160, %v4546, %v4548
        %v4550 = vrot.slane %v873, 2
        %v4551 = vrot.slane %v874, 2
        %v4552 = vsel %vm2160, %v4550, %v4551
        %v4553 = vrot.slane %v875, 2
        %v4554 = vsel %vm2160, %v4551, %v4553
        %v4559 = vpack.c.bf16 %v4549, %v4547
        %v4560 = vpack.c.bf16 %v4554, %v4552
        %4563 = vrot.lane.b32.xlu0 %v2804, 36
        %v4564 = vpop.permute.xlu0 %4563
        %4565 = vrot.lane.b32.xlu0 %v2805, 36
        %v4566 = vpop.permute.xlu0 %4565
        %4567 = vrot.lane.b32.xlu0 %v2806, 36
        %v4568 = vpop.permute.xlu0 %4567
        %4569 = vrot.lane.b32.xlu0 %v2807, 36
        %v4570 = vpop.permute.xlu0 %4569
        %4571 = vrot.lane.b32.xlu0 %v2808, 36
        %v4572 = vpop.permute.xlu0 %4571
        %4573 = vrot.lane.b32.xlu0 %v2809, 36
        %v4574 = vpop.permute.xlu0 %4573
        %4575 = vrot.lane.b32.xlu0 %v2810, 36
        %v4576 = vpop.permute.xlu0 %4575
        %4577 = vrot.lane.b32.xlu0 %v2811, 36
        %v4578 = vpop.permute.xlu0 %4577
        %4579 = vrot.lane.b32.xlu0 %v2812, 36
        %v4580 = vpop.permute.xlu0 %4579
        %4581 = vrot.lane.b32.xlu0 %v2813, 36
        %v4582 = vpop.permute.xlu0 %4581
        %4583 = vrot.lane.b32.xlu0 %v2814, 36
        %v4584 = vpop.permute.xlu0 %4583
        %4585 = vrot.lane.b32.xlu0 %v2815, 36
        %v4586 = vpop.permute.xlu0 %4585
        %4587 = vrot.lane.b32.xlu0 %v2816, 36
        %v4588 = vpop.permute.xlu0 %4587
        %4589 = vrot.lane.b32.xlu0 %v2817, 36
        %v4590 = vpop.permute.xlu0 %4589
        %4591 = vrot.lane.b32.xlu0 %v3791, 36
        %v4592 = vpop.permute.xlu0 %4591
        %4593 = vrot.lane.b32.xlu0 %v4559, 36
        %v4594 = vpop.permute.xlu0 %4593
        %4595 = vrot.lane.b32.xlu0 %v2820, 36
        %v4596 = vpop.permute.xlu0 %4595
        %4597 = vrot.lane.b32.xlu0 %v2821, 36
        %v4598 = vpop.permute.xlu0 %4597
        %4599 = vrot.lane.b32.xlu0 %v2822, 36
        %v4600 = vpop.permute.xlu0 %4599
        %4601 = vrot.lane.b32.xlu0 %v2823, 36
        %v4602 = vpop.permute.xlu0 %4601
        %4603 = vrot.lane.b32.xlu0 %v2824, 36
        %v4604 = vpop.permute.xlu0 %4603
        %4605 = vrot.lane.b32.xlu0 %v2825, 36
        %v4606 = vpop.permute.xlu0 %4605
        %4607 = vrot.lane.b32.xlu0 %v2826, 36
        %v4608 = vpop.permute.xlu0 %4607
        %4609 = vrot.lane.b32.xlu0 %v2827, 36
        %v4610 = vpop.permute.xlu0 %4609
        %4611 = vrot.lane.b32.xlu0 %v2828, 36
        %v4612 = vpop.permute.xlu0 %4611
        %4613 = vrot.lane.b32.xlu0 %v2829, 36
        %v4614 = vpop.permute.xlu0 %4613
        %4615 = vrot.lane.b32.xlu0 %v2830, 36
        %v4616 = vpop.permute.xlu0 %4615
        %4617 = vrot.lane.b32.xlu0 %v2831, 36
        %v4618 = vpop.permute.xlu0 %4617
        %4619 = vrot.lane.b32.xlu0 %v2832, 36
        %v4620 = vpop.permute.xlu0 %4619
        %4621 = vrot.lane.b32.xlu0 %v2833, 36
        %v4622 = vpop.permute.xlu0 %4621
        %4623 = vrot.lane.b32.xlu0 %v3792, 36
        %v4624 = vpop.permute.xlu0 %4623
        %4625 = vrot.lane.b32.xlu0 %v4560, 36
        %v4626 = vpop.permute.xlu0 %4625
        %vm4659 = vcmask 556320
        %4660 = vst.msk [vmem:[#allocation4 + $0x10] sm:$0xff] %vm4659, %v4564
        %4661 = vst.msk [vmem:[#allocation4 + $0x28] sm:$0xff] %vm4659, %v4566
        %4662 = vst.msk [vmem:[#allocation4 + $0x40] sm:$0xff] %vm4659, %v4568
        %4663 = vst.msk [vmem:[#allocation4 + $0x58] sm:$0xff] %vm4659, %v4570
        %4664 = vst.msk [vmem:[#allocation4 + $0x70] sm:$0xff] %vm4659, %v4572
        %4665 = vst.msk [vmem:[#allocation4 + $0x88] sm:$0xff] %vm4659, %v4574
        %4666 = vst.msk [vmem:[#allocation4 + $0xa0] sm:$0xff] %vm4659, %v4576
        %4667 = vst.msk [vmem:[#allocation4 + $0xb8] sm:$0xff] %vm4659, %v4578
        %4668 = vst.msk [vmem:[#allocation4 + $0xd0] sm:$0xff] %vm4659, %v4580
        %4669 = vst.msk [vmem:[#allocation4 + $0xe8] sm:$0xff] %vm4659, %v4582
        %4670 = vst.msk [vmem:[#allocation4 + $0x100] sm:$0xff] %vm4659, %v4584
        %4671 = vst.msk [vmem:[#allocation4 + $0x118] sm:$0xff] %vm4659, %v4586
        %4672 = vst.msk [vmem:[#allocation4 + $0x130] sm:$0xff] %vm4659, %v4588
        %4673 = vst.msk [vmem:[#allocation4 + $0x148] sm:$0xff] %vm4659, %v4590
        %4674 = vst.msk [vmem:[#allocation4 + $0x160] sm:$0xff] %vm4659, %v4592
        %4675 = vst.msk [vmem:[#allocation4 + $0x178] sm:$0xff] %vm4659, %v4594
        %4676 = vst.msk [vmem:[#allocation4 + $0x190] sm:$0xff] %vm4659, %v4596
        %4677 = vst.msk [vmem:[#allocation4 + $0x1a8] sm:$0xff] %vm4659, %v4598
        %4678 = vst.msk [vmem:[#allocation4 + $0x1c0] sm:$0xff] %vm4659, %v4600
        %4679 = vst.msk [vmem:[#allocation4 + $0x1d8] sm:$0xff] %vm4659, %v4602
        %4680 = vst.msk [vmem:[#allocation4 + $0x1f0] sm:$0xff] %vm4659, %v4604
        %4681 = vst.msk [vmem:[#allocation4 + $0x208] sm:$0xff] %vm4659, %v4606
        %4682 = vst.msk [vmem:[#allocation4 + $0x220] sm:$0xff] %vm4659, %v4608
        %4683 = vst.msk [vmem:[#allocation4 + $0x238] sm:$0xff] %vm4659, %v4610
        %4684 = vst.msk [vmem:[#allocation4 + $0x250] sm:$0xff] %vm4659, %v4612
        %4685 = vst.msk [vmem:[#allocation4 + $0x268] sm:$0xff] %vm4659, %v4614
        %4686 = vst.msk [vmem:[#allocation4 + $0x280] sm:$0xff] %vm4659, %v4616
        %4687 = vst.msk [vmem:[#allocation4 + $0x298] sm:$0xff] %vm4659, %v4618
        %4688 = vst.msk [vmem:[#allocation4 + $0x2b0] sm:$0xff] %vm4659, %v4620
        %4689 = vst.msk [vmem:[#allocation4 + $0x2c8] sm:$0xff] %vm4659, %v4622
        %4690 = vst.msk [vmem:[#allocation4 + $0x2e0] sm:$0xff] %vm4659, %v4624
        %4691 = vst.msk [vmem:[#allocation4 + $0x2f8] sm:$0xff] %vm4659, %v4626
        %v4692 = vld [vmem:[#allocation4] sm:$0xff]
        %v4693 = vld [vmem:[#allocation4 + $0x8] sm:$0xff]
        %v4694 = vld [vmem:[#allocation4 + $0x10] sm:$0xff]
        %v4695 = vld [vmem:[#allocation4 + $0x18] sm:$0xff]
        %v4696 = vld [vmem:[#allocation4 + $0x20] sm:$0xff]
        %v4697 = vld [vmem:[#allocation4 + $0x28] sm:$0xff]
        %v4698 = vld [vmem:[#allocation4 + $0x30] sm:$0xff]
        %v4699 = vld [vmem:[#allocation4 + $0x38] sm:$0xff]
        %v4700 = vld [vmem:[#allocation4 + $0x40] sm:$0xff]
        %v4701 = vld [vmem:[#allocation4 + $0x48] sm:$0xff]
        %v4702 = vld [vmem:[#allocation4 + $0x50] sm:$0xff]
        %v4703 = vld [vmem:[#allocation4 + $0x58] sm:$0xff]
        %v4704 = vld [vmem:[#allocation4 + $0x60] sm:$0xff]
        %v4705 = vld [vmem:[#allocation4 + $0x68] sm:$0xff]
        %v4706 = vld [vmem:[#allocation4 + $0x70] sm:$0xff]
        %v4707 = vld [vmem:[#allocation4 + $0x78] sm:$0xff]
        %v4708 = vld [vmem:[#allocation4 + $0x80] sm:$0xff]
        %v4709 = vld [vmem:[#allocation4 + $0x88] sm:$0xff]
        %v4710 = vld [vmem:[#allocation4 + $0x90] sm:$0xff]
        %v4711 = vld [vmem:[#allocation4 + $0x98] sm:$0xff]
        %v4712 = vld [vmem:[#allocation4 + $0xa0] sm:$0xff]
        %v4713 = vld [vmem:[#allocation4 + $0xa8] sm:$0xff]
        %v4714 = vld [vmem:[#allocation4 + $0xb0] sm:$0xff]
        %v4715 = vld [vmem:[#allocation4 + $0xb8] sm:$0xff]
        %v4716 = vld [vmem:[#allocation4 + $0xc0] sm:$0xff]
        %v4717 = vld [vmem:[#allocation4 + $0xc8] sm:$0xff]
        %v4718 = vld [vmem:[#allocation4 + $0xd0] sm:$0xff]
        %v4719 = vld [vmem:[#allocation4 + $0xd8] sm:$0xff]
        %v4720 = vld [vmem:[#allocation4 + $0xe0] sm:$0xff]
        %v4721 = vld [vmem:[#allocation4 + $0xe8] sm:$0xff]
        %v4722 = vld [vmem:[#allocation4 + $0xf0] sm:$0xff]
        %v4723 = vld [vmem:[#allocation4 + $0xf8] sm:$0xff]
        %v4724 = vld [vmem:[#allocation4 + $0x100] sm:$0xff]
        %v4725 = vld [vmem:[#allocation4 + $0x108] sm:$0xff]
        %v4726 = vld [vmem:[#allocation4 + $0x110] sm:$0xff]
        %v4727 = vld [vmem:[#allocation4 + $0x118] sm:$0xff]
        %v4728 = vld [vmem:[#allocation4 + $0x120] sm:$0xff]
        %v4729 = vld [vmem:[#allocation4 + $0x128] sm:$0xff]
        %v4730 = vld [vmem:[#allocation4 + $0x130] sm:$0xff]
        %v4731 = vld [vmem:[#allocation4 + $0x138] sm:$0xff]
        %v4732 = vld [vmem:[#allocation4 + $0x140] sm:$0xff]
        %v4733 = vld [vmem:[#allocation4 + $0x148] sm:$0xff]
        %v4734 = vld [vmem:[#allocation4 + $0x150] sm:$0xff]
        %v4735 = vld [vmem:[#allocation4 + $0x158] sm:$0xff]
        %v4736 = vld [vmem:[#allocation4 + $0x160] sm:$0xff]
        %v4737 = vld [vmem:[#allocation4 + $0x168] sm:$0xff]
        %v4738 = vld [vmem:[#allocation4 + $0x170] sm:$0xff]
        %v4739 = vld [vmem:[#allocation4 + $0x178] sm:$0xff]
        %v4740 = vld [vmem:[#allocation4 + $0x180] sm:$0xff]
        %v4741 = vld [vmem:[#allocation4 + $0x188] sm:$0xff]
        %v4742 = vld [vmem:[#allocation4 + $0x190] sm:$0xff]
        %v4743 = vld [vmem:[#allocation4 + $0x198] sm:$0xff]
        %v4744 = vld [vmem:[#allocation4 + $0x1a0] sm:$0xff]
        %v4745 = vld [vmem:[#allocation4 + $0x1a8] sm:$0xff]
        %v4746 = vld [vmem:[#allocation4 + $0x1b0] sm:$0xff]
        %v4747 = vld [vmem:[#allocation4 + $0x1b8] sm:$0xff]
        %v4748 = vld [vmem:[#allocation4 + $0x1c0] sm:$0xff]
        %v4749 = vld [vmem:[#allocation4 + $0x1c8] sm:$0xff]
        %v4750 = vld [vmem:[#allocation4 + $0x1d0] sm:$0xff]
        %v4751 = vld [vmem:[#allocation4 + $0x1d8] sm:$0xff]
        %v4752 = vld [vmem:[#allocation4 + $0x1e0] sm:$0xff]
        %v4753 = vld [vmem:[#allocation4 + $0x1e8] sm:$0xff]
        %v4754 = vld [vmem:[#allocation4 + $0x1f0] sm:$0xff]
        %v4755 = vld [vmem:[#allocation4 + $0x1f8] sm:$0xff]
        %v4756 = vld [vmem:[#allocation4 + $0x200] sm:$0xff]
        %v4757 = vld [vmem:[#allocation4 + $0x208] sm:$0xff]
        %v4758 = vld [vmem:[#allocation4 + $0x210] sm:$0xff]
        %v4759 = vld [vmem:[#allocation4 + $0x218] sm:$0xff]
        %v4760 = vld [vmem:[#allocation4 + $0x220] sm:$0xff]
        %v4761 = vld [vmem:[#allocation4 + $0x228] sm:$0xff]
        %v4762 = vld [vmem:[#allocation4 + $0x230] sm:$0xff]
        %v4763 = vld [vmem:[#allocation4 + $0x238] sm:$0xff]
        %v4764 = vld [vmem:[#allocation4 + $0x240] sm:$0xff]
        %v4765 = vld [vmem:[#allocation4 + $0x248] sm:$0xff]
        %v4766 = vld [vmem:[#allocation4 + $0x250] sm:$0xff]
        %v4767 = vld [vmem:[#allocation4 + $0x258] sm:$0xff]
        %v4768 = vld [vmem:[#allocation4 + $0x260] sm:$0xff]
        %v4769 = vld [vmem:[#allocation4 + $0x268] sm:$0xff]
        %v4770 = vld [vmem:[#allocation4 + $0x270] sm:$0xff]
        %v4771 = vld [vmem:[#allocation4 + $0x278] sm:$0xff]
        %v4772 = vld [vmem:[#allocation4 + $0x280] sm:$0xff]
        %v4773 = vld [vmem:[#allocation4 + $0x288] sm:$0xff]
        %v4774 = vld [vmem:[#allocation4 + $0x290] sm:$0xff]
        %v4775 = vld [vmem:[#allocation4 + $0x298] sm:$0xff]
        %v4776 = vld [vmem:[#allocation4 + $0x2a0] sm:$0xff]
        %v4777 = vld [vmem:[#allocation4 + $0x2a8] sm:$0xff]
        %v4778 = vld [vmem:[#allocation4 + $0x2b0] sm:$0xff]
        %v4779 = vld [vmem:[#allocation4 + $0x2b8] sm:$0xff]
        %v4780 = vld [vmem:[#allocation4 + $0x2c0] sm:$0xff]
        %v4781 = vld [vmem:[#allocation4 + $0x2c8] sm:$0xff]
        %v4782 = vld [vmem:[#allocation4 + $0x2d0] sm:$0xff]
        %v4783 = vld [vmem:[#allocation4 + $0x2d8] sm:$0xff]
        %v4784 = vld [vmem:[#allocation4 + $0x2e0] sm:$0xff]
        %v4785 = vld [vmem:[#allocation4 + $0x2e8] sm:$0xff]
        %v4786 = vld [vmem:[#allocation4 + $0x2f0] sm:$0xff]
        %v4787 = vld [vmem:[#allocation4 + $0x2f8] sm:$0xff]
        %v4788 = vld [vmem:[%s234] sm:$0xf]
        %v4789 = vld [vmem:[%s234 + $0x4] sm:$0xf]
        %v4790 = vld [vmem:[%s234 + $0x8] sm:$0xf]
        %v4791 = vld [vmem:[%s234 + $0xc] sm:$0xf]
        %v4792 = vld [vmem:[%s234 + $0x10] sm:$0xf]
        %v4793 = vld [vmem:[%s234 + $0x14] sm:$0xf]
        %v4794 = vld [vmem:[%s234 + $0x18] sm:$0xf]
        %v4795 = vld [vmem:[%s234 + $0x1c] sm:$0xf]
        %v4796 = vld [vmem:[%s234 + $0x20] sm:$0xf]
        %v4797 = vld [vmem:[%s234 + $0x24] sm:$0xf]
        %v4798 = vld [vmem:[%s234 + $0x28] sm:$0xf]
        %v4799 = vld [vmem:[%s234 + $0x2c] sm:$0xf]
        %v4800 = vld [vmem:[%s234 + $0x30] sm:$0xf]
        %v4801 = vld [vmem:[%s234 + $0x34] sm:$0xf]
        %v4802 = vld [vmem:[%s234 + $0x38] sm:$0xf]
        %v4803 = vld [vmem:[%s234 + $0x3c] sm:$0xf]
        %v4804 = vld [vmem:[%s234 + $0x40] sm:$0xf]
        %v4805 = vld [vmem:[%s234 + $0x44] sm:$0xf]
        %v4806 = vld [vmem:[%s234 + $0x48] sm:$0xf]
        %v4807 = vld [vmem:[%s234 + $0x4c] sm:$0xf]
        %v4808 = vld [vmem:[%s234 + $0x50] sm:$0xf]
        %v4809 = vld [vmem:[%s234 + $0x54] sm:$0xf]
        %v4810 = vld [vmem:[%s234 + $0x58] sm:$0xf]
        %v4811 = vld [vmem:[%s234 + $0x5c] sm:$0xf]
        %v4812 = vld [vmem:[%s234 + $0x60] sm:$0xf]
        %v4813 = vld [vmem:[%s234 + $0x64] sm:$0xf]
        %v4814 = vld [vmem:[%s234 + $0x68] sm:$0xf]
        %v4815 = vld [vmem:[%s234 + $0x6c] sm:$0xf]
        %v4816 = vld [vmem:[%s234 + $0x70] sm:$0xf]
        %v4817 = vld [vmem:[%s234 + $0x74] sm:$0xf]
        %v4818 = vld [vmem:[%s234 + $0x78] sm:$0xf]
        %v4819 = vld [vmem:[%s234 + $0x7c] sm:$0xf]
        %v4820 = vld [vmem:[%s234 + $0x80] sm:$0xf]
        %v4821 = vld [vmem:[%s234 + $0x84] sm:$0xf]
        %v4822 = vld [vmem:[%s234 + $0x88] sm:$0xf]
        %v4823 = vld [vmem:[%s234 + $0x8c] sm:$0xf]
        %v4824 = vld [vmem:[%s234 + $0x90] sm:$0xf]
        %v4825 = vld [vmem:[%s234 + $0x94] sm:$0xf]
        %v4826 = vld [vmem:[%s234 + $0x98] sm:$0xf]
        %v4827 = vld [vmem:[%s234 + $0x9c] sm:$0xf]
        %v4828 = vld [vmem:[%s234 + $0xa0] sm:$0x3]
        %v4829 = vld [vmem:[%s237] sm:$0x1]
        %v4831 = vlaneseq
        %v4832 = vshrl.u32 %v4831, 7
        %v4833 = vsub.s32 0, %v4832
        %v4834 = vrot.slane %v4829, %v4833
        %v4877 = vunpack.c.l.b16 %v4788
        %v4878 = vunpack.c.l.b16 %v4789
        %v4879 = vunpack.c.l.b16 %v4790
        %v4880 = vunpack.c.l.b16 %v4791
        %v4881 = vunpack.c.l.b16 %v4792
        %v4882 = vunpack.c.l.b16 %v4793
        %v4883 = vunpack.c.l.b16 %v4794
        %v4884 = vunpack.c.l.b16 %v4795
        %v4885 = vunpack.c.l.b16 %v4796
        %v4886 = vunpack.c.l.b16 %v4797
        %v4887 = vunpack.c.l.b16 %v4798
        %v4888 = vunpack.c.l.b16 %v4799
        %v4889 = vunpack.c.l.b16 %v4800
        %v4890 = vunpack.c.l.b16 %v4801
        %v4891 = vunpack.c.l.b16 %v4802
        %v4892 = vunpack.c.l.b16 %v4803
        %v4893 = vunpack.c.l.b16 %v4804
        %v4894 = vunpack.c.l.b16 %v4805
        %v4895 = vunpack.c.l.b16 %v4806
        %v4896 = vunpack.c.l.b16 %v4807
        %v4897 = vunpack.c.l.b16 %v4808
        %v4898 = vunpack.c.l.b16 %v4809
        %v4899 = vunpack.c.l.b16 %v4810
        %v4900 = vunpack.c.l.b16 %v4811
        %v4901 = vunpack.c.l.b16 %v4812
        %v4902 = vunpack.c.l.b16 %v4813
        %v4903 = vunpack.c.l.b16 %v4814
        %v4904 = vunpack.c.l.b16 %v4815
        %v4905 = vunpack.c.l.b16 %v4816
        %v4906 = vunpack.c.l.b16 %v4817
        %v4907 = vunpack.c.l.b16 %v4818
        %v4908 = vunpack.c.l.b16 %v4819
        %v4909 = vunpack.c.l.b16 %v4820
        %v4910 = vunpack.c.l.b16 %v4821
        %v4911 = vunpack.c.l.b16 %v4822
        %v4912 = vunpack.c.l.b16 %v4823
        %v4913 = vunpack.c.l.b16 %v4824
        %v4914 = vunpack.c.l.b16 %v4825
        %v4915 = vunpack.c.l.b16 %v4826
        %v4916 = vunpack.c.l.b16 %v4827
        %v4917 = vunpack.c.l.b16 %v4828
        %v4918 = vpack.c.b16 %v4878, %v4877
        %v4919 = vpack.c.b16 %v4880, %v4879
        %v4920 = vpack.c.b16 %v4882, %v4881
        %v4921 = vpack.c.b16 %v4884, %v4883
        %v4922 = vpack.c.b16 %v4886, %v4885
        %v4923 = vpack.c.b16 %v4888, %v4887
        %v4924 = vpack.c.b16 %v4890, %v4889
        %v4925 = vpack.c.b16 %v4892, %v4891
        %v4926 = vpack.c.b16 %v4894, %v4893
        %v4927 = vpack.c.b16 %v4896, %v4895
        %v4928 = vpack.c.b16 %v4898, %v4897
        %v4929 = vpack.c.b16 %v4900, %v4899
        %v4930 = vpack.c.b16 %v4902, %v4901
        %v4931 = vpack.c.b16 %v4904, %v4903
        %v4932 = vpack.c.b16 %v4906, %v4905
        %v4933 = vpack.c.b16 %v4908, %v4907
        %v4934 = vpack.c.b16 %v4910, %v4909
        %v4935 = vpack.c.b16 %v4912, %v4911
        %v4936 = vpack.c.b16 %v4914, %v4913
        %v4937 = vpack.c.b16 %v4916, %v4915
        %v4938 = vpack.c.b16 %v4917, %v4917
        %vm4959 = vcmask 556032
        %v4961 = vsel %vm4959, %v4694, 0
        %v4964 = vsel %vm4959, %v4697, 0
        %v4967 = vsel %vm4959, %v4700, 0
        %v4970 = vsel %vm4959, %v4703, 0
        %v4973 = vsel %vm4959, %v4706, 0
        %v4976 = vsel %vm4959, %v4709, 0
        %v4979 = vsel %vm4959, %v4712, 0
        %v4982 = vsel %vm4959, %v4715, 0
        %v4985 = vsel %vm4959, %v4718, 0
        %v4988 = vsel %vm4959, %v4721, 0
        %v4991 = vsel %vm4959, %v4724, 0
        %v4994 = vsel %vm4959, %v4727, 0
        %v4997 = vsel %vm4959, %v4730, 0
        %v5000 = vsel %vm4959, %v4733, 0
        %v5003 = vsel %vm4959, %v4736, 0
        %v5006 = vsel %vm4959, %v4739, 0
        %v5009 = vsel %vm4959, %v4742, 0
        %v5012 = vsel %vm4959, %v4745, 0
        %v5015 = vsel %vm4959, %v4748, 0
        %v5018 = vsel %vm4959, %v4751, 0
        %v5021 = vsel %vm4959, %v4754, 0
        %v5024 = vsel %vm4959, %v4757, 0
        %v5027 = vsel %vm4959, %v4760, 0
        %v5030 = vsel %vm4959, %v4763, 0
        %v5033 = vsel %vm4959, %v4766, 0
        %v5036 = vsel %vm4959, %v4769, 0
        %v5039 = vsel %vm4959, %v4772, 0
        %v5042 = vsel %vm4959, %v4775, 0
        %v5045 = vsel %vm4959, %v4778, 0
        %v5048 = vsel %vm4959, %v4781, 0
        %v5051 = vsel %vm4959, %v4784, 0
        %v5054 = vsel %vm4959, %v4787, 0
        %vm5056 = vcmask 1041408
        %v5058 = vsel %vm5056, %v4938, 0
        %5060 = vmatprep.subr.bf16.mxu0 0
        %5061 = vmatpush1.bf16.msra.mxu0 %v4918
        %5062 = vmatprep.subr.bf16.mxu0 0
        %5063 = vmatpush1.bf16.msra.mxu0 %v4919
        %5064 = vmatprep.subr.bf16.mxu0 0
        %5065 = vmatpush1.bf16.msra.mxu0 %v4920
        %5066 = vmatprep.subr.bf16.mxu0 0
        %5067 = vmatpush1.bf16.msra.mxu0 %v4921
        %5068 = vmatprep.subr.bf16.mxu0 0
        %5069 = vmatpush1.bf16.msra.mxu0 %v4922
        %5070 = vmatprep.subr.bf16.mxu0 0
        %5071 = vmatpush1.bf16.msra.mxu0 %v4923
        %5072 = vmatprep.subr.bf16.mxu0 0
        %5073 = vmatpush1.bf16.msra.mxu0 %v4924
        %5074 = vmatprep.subr.bf16.mxu0 0
        %5075 = vmatpush1.bf16.msra.mxu0 %v4925
        %5076 = vmatprep.subr.bf16.mxu0 0
        %5077 = vmatpush1.bf16.msra.mxu0 %v4926
        %5078 = vmatprep.subr.bf16.mxu0 0
        %5079 = vmatpush1.bf16.msra.mxu0 %v4927
        %5080 = vmatprep.subr.bf16.mxu0 0
        %5081 = vmatpush1.bf16.msra.mxu0 %v4928
        %5082 = vmatprep.subr.bf16.mxu0 0
        %5083 = vmatpush1.bf16.msra.mxu0 %v4929
        %5084 = vmatprep.subr.bf16.mxu0 0
        %5085 = vmatpush1.bf16.msra.mxu0 %v4930
        %5086 = vmatprep.subr.bf16.mxu0 0
        %5087 = vmatpush1.bf16.msra.mxu0 %v4931
        %5088 = vmatprep.subr.bf16.mxu0 0
        %5089 = vmatpush1.bf16.msra.mxu0 %v4932
        %5090 = vmatprep.subr.bf16.mxu0 0
        %5091 = vmatpush1.bf16.msra.mxu0 %v4933
        %5092 = vmatprep.mubr.bf16.mxu0 %v4693
        %5093 = vmatmul.mubr.bf16.gmra.mrb[0].mxu0 %v4692
        %v5094 = vpop.f32.mrb[0].mxu0
        %v5095 = vadd.f32 %v4834, %v5094
        %v5096 = vpop.f32.mrb[0].mxu0
        %v5097 = vpop.f32.mrb[0].mxu0
        %v5098 = vadd.f32 %v4834, %v5097
        %v5099 = vpop.f32.mrb[0].mxu0
        %5100 = vmatprep.mubr.bf16.mxu0 %v4696
        %5101 = vmatmul.mubr.bf16.gmra.mrb[0].mxu0 %v4695
        %v5102 = vpop.f32.mrb[0].mxu0
        %v5103 = vadd.f32 %v4834, %v5102
        %v5104 = vpop.f32.mrb[0].mxu0
        %v5105 = vpop.f32.mrb[0].mxu0
        %v5106 = vadd.f32 %v4834, %v5105
        %v5107 = vpop.f32.mrb[0].mxu0
        %5108 = vmatprep.mubr.bf16.mxu0 %v4699
        %5109 = vmatmul.mubr.bf16.gmra.mrb[0].mxu0 %v4698
        %v5110 = vpop.f32.mrb[0].mxu0
        %v5111 = vadd.f32 %v4834, %v5110
        %v5112 = vpop.f32.mrb[0].mxu0
        %v5113 = vpop.f32.mrb[0].mxu0
        %v5114 = vadd.f32 %v4834, %v5113
        %v5115 = vpop.f32.mrb[0].mxu0
        %5116 = vmatprep.mubr.bf16.mxu0 %v4702
        %5117 = vmatmul.mubr.bf16.gmra.mrb[0].mxu0 %v4701
        %v5118 = vpop.f32.mrb[0].mxu0
        %v5119 = vadd.f32 %v4834, %v5118
        %v5120 = vpop.f32.mrb[0].mxu0
        %v5121 = vpop.f32.mrb[0].mxu0
        %v5122 = vadd.f32 %v4834, %v5121
        %v5123 = vpop.f32.mrb[0].mxu0
        %5124 = vmatprep.mubr.bf16.mxu0 %v4705
        %5125 = vmatmul.mubr.bf16.gmra.mrb[0].mxu0 %v4704
        %v5126 = vpop.f32.mrb[0].mxu0
        %v5127 = vadd.f32 %v4834, %v5126
        %v5128 = vpop.f32.mrb[0].mxu0
        %v5129 = vpop.f32.mrb[0].mxu0
        %v5130 = vadd.f32 %v4834, %v5129
        %v5131 = vpop.f32.mrb[0].mxu0
        %5132 = vmatprep.mubr.bf16.mxu0 %v4708
        %5133 = vmatmul.mubr.bf16.gmra.mrb[0].mxu0 %v4707
        %v5134 = vpop.f32.mrb[0].mxu0
        %v5135 = vadd.f32 %v4834, %v5134
        %v5136 = vpop.f32.mrb[0].mxu0
        %v5137 = vpop.f32.mrb[0].mxu0
        %v5138 = vadd.f32 %v4834, %v5137
        %v5139 = vpop.f32.mrb[0].mxu0
        %5140 = vmatprep.mubr.bf16.mxu0 %v4711
        %5141 = vmatmul.mubr.bf16.gmra.mrb[0].mxu0 %v4710
        %v5142 = vpop.f32.mrb[0].mxu0
        %v5143 = vadd.f32 %v4834, %v5142
        %v5144 = vpop.f32.mrb[0].mxu0
        %v5145 = vpop.f32.mrb[0].mxu0
        %v5146 = vadd.f32 %v4834, %v5145
        %v5147 = vpop.f32.mrb[0].mxu0
        %5148 = vmatprep.mubr.bf16.mxu0 %v4714
        %5149 = vmatmul.mubr.bf16.gmra.mrb[0].mxu0 %v4713
        %v5150 = vpop.f32.mrb[0].mxu0
        %v5151 = vadd.f32 %v4834, %v5150
        %v5152 = vpop.f32.mrb[0].mxu0
        %v5153 = vpop.f32.mrb[0].mxu0
        %v5154 = vadd.f32 %v4834, %v5153
        %v5155 = vpop.f32.mrb[0].mxu0
        %5156 = vmatprep.mubr.bf16.mxu0 %v4717
        %5157 = vmatmul.mubr.bf16.gmra.mrb[0].mxu0 %v4716
        %v5158 = vpop.f32.mrb[0].mxu0
        %v5159 = vadd.f32 %v4834, %v5158
        %v5160 = vpop.f32.mrb[0].mxu0
        %v5161 = vpop.f32.mrb[0].mxu0
        %v5162 = vadd.f32 %v4834, %v5161
        %v5163 = vpop.f32.mrb[0].mxu0
        %5164 = vmatprep.mubr.bf16.mxu0 %v4720
        %5165 = vmatmul.mubr.bf16.gmra.mrb[0].mxu0 %v4719
        %v5166 = vpop.f32.mrb[0].mxu0
        %v5167 = vadd.f32 %v4834, %v5166
        %v5168 = vpop.f32.mrb[0].mxu0
        %v5169 = vpop.f32.mrb[0].mxu0
        %v5170 = vadd.f32 %v4834, %v5169
        %v5171 = vpop.f32.mrb[0].mxu0
        %5172 = vmatprep.mubr.bf16.mxu0 %v4723
        %5173 = vmatmul.mubr.bf16.gmra.mrb[0].mxu0 %v4722
        %v5174 = vpop.f32.mrb[0].mxu0
        %v5175 = vadd.f32 %v4834, %v5174
        %v5176 = vpop.f32.mrb[0].mxu0
        %v5177 = vpop.f32.mrb[0].mxu0
        %v5178 = vadd.f32 %v4834, %v5177
        %v5179 = vpop.f32.mrb[0].mxu0
        %5180 = vmatprep.mubr.bf16.mxu0 %v4726
        %5181 = vmatmul.mubr.bf16.gmra.mrb[0].mxu0 %v4725
        %v5182 = vpop.f32.mrb[0].mxu0
        %v5183 = vadd.f32 %v4834, %v5182
        %v5184 = vpop.f32.mrb[0].mxu0
        %v5185 = vpop.f32.mrb[0].mxu0
        %v5186 = vadd.f32 %v4834, %v5185
        %v5187 = vpop.f32.mrb[0].mxu0
        %5188 = vmatprep.mubr.bf16.mxu0 %v4729
        %5189 = vmatmul.mubr.bf16.gmra.mrb[0].mxu0 %v4728
        %v5190 = vpop.f32.mrb[0].mxu0
        %v5191 = vadd.f32 %v4834, %v5190
        %v5192 = vpop.f32.mrb[0].mxu0
        %v5193 = vpop.f32.mrb[0].mxu0
        %v5194 = vadd.f32 %v4834, %v5193
        %v5195 = vpop.f32.mrb[0].mxu0
        %5196 = vmatprep.mubr.bf16.mxu0 %v4732
        %5197 = vmatmul.mubr.bf16.gmra.mrb[0].mxu0 %v4731
        %v5198 = vpop.f32.mrb[0].mxu0
        %v5199 = vadd.f32 %v4834, %v5198
        %v5200 = vpop.f32.mrb[0].mxu0
        %v5201 = vpop.f32.mrb[0].mxu0
        %v5202 = vadd.f32 %v4834, %v5201
        %v5203 = vpop.f32.mrb[0].mxu0
        %5204 = vmatprep.mubr.bf16.mxu0 %v4735
        %5205 = vmatmul.mubr.bf16.gmra.mrb[0].mxu0 %v4734
        %v5206 = vpop.f32.mrb[0].mxu0
        %v5207 = vadd.f32 %v4834, %v5206
        %v5208 = vpop.f32.mrb[0].mxu0
        %v5209 = vpop.f32.mrb[0].mxu0
        %v5210 = vadd.f32 %v4834, %v5209
        %v5211 = vpop.f32.mrb[0].mxu0
        %5212 = vmatprep.mubr.bf16.mxu0 %v4738
        %5213 = vmatmul.mubr.bf16.gmra.mrb[0].mxu0 %v4737
        %v5214 = vpop.f32.mrb[0].mxu0
        %v5215 = vadd.f32 %v4834, %v5214
        %v5216 = vpop.f32.mrb[0].mxu0
        %v5217 = vpop.f32.mrb[0].mxu0
        %v5218 = vadd.f32 %v4834, %v5217
        %v5219 = vpop.f32.mrb[0].mxu0
        %5220 = vmatprep.mubr.bf16.mxu0 %v4741
        %5221 = vmatmul.mubr.bf16.gmra.mrb[0].mxu0 %v4740
        %v5222 = vpop.f32.mrb[0].mxu0
        %v5223 = vadd.f32 %v4834, %v5222
        %v5224 = vpop.f32.mrb[0].mxu0
        %v5225 = vpop.f32.mrb[0].mxu0
        %v5226 = vadd.f32 %v4834, %v5225
        %v5227 = vpop.f32.mrb[0].mxu0
        %5228 = vmatprep.mubr.bf16.mxu0 %v4744
        %5229 = vmatmul.mubr.bf16.gmra.mrb[0].mxu0 %v4743
        %v5230 = vpop.f32.mrb[0].mxu0
        %v5231 = vadd.f32 %v4834, %v5230
        %v5232 = vpop.f32.mrb[0].mxu0
        %v5233 = vpop.f32.mrb[0].mxu0
        %v5234 = vadd.f32 %v4834, %v5233
        %v5235 = vpop.f32.mrb[0].mxu0
        %5236 = vmatprep.mubr.bf16.mxu0 %v4747
        %5237 = vmatmul.mubr.bf16.gmra.mrb[0].mxu0 %v4746
        %v5238 = vpop.f32.mrb[0].mxu0
        %v5239 = vadd.f32 %v4834, %v5238
        %v5240 = vpop.f32.mrb[0].mxu0
        %v5241 = vpop.f32.mrb[0].mxu0
        %v5242 = vadd.f32 %v4834, %v5241
        %v5243 = vpop.f32.mrb[0].mxu0
        %5244 = vmatprep.mubr.bf16.mxu0 %v4750
        %5245 = vmatmul.mubr.bf16.gmra.mrb[0].mxu0 %v4749
        %v5246 = vpop.f32.mrb[0].mxu0
        %v5247 = vadd.f32 %v4834, %v5246
        %v5248 = vpop.f32.mrb[0].mxu0
        %v5249 = vpop.f32.mrb[0].mxu0
        %v5250 = vadd.f32 %v4834, %v5249
        %v5251 = vpop.f32.mrb[0].mxu0
        %5252 = vmatprep.mubr.bf16.mxu0 %v4753
        %5253 = vmatmul.mubr.bf16.gmra.mrb[0].mxu0 %v4752
        %v5254 = vpop.f32.mrb[0].mxu0
        %v5255 = vadd.f32 %v4834, %v5254
        %v5256 = vpop.f32.mrb[0].mxu0
        %v5257 = vpop.f32.mrb[0].mxu0
        %v5258 = vadd.f32 %v4834, %v5257
        %v5259 = vpop.f32.mrb[0].mxu0
        %5260 = vmatprep.mubr.bf16.mxu0 %v4756
        %5261 = vmatmul.mubr.bf16.gmra.mrb[0].mxu0 %v4755
        %v5262 = vpop.f32.mrb[0].mxu0
        %v5263 = vadd.f32 %v4834, %v5262
        %v5264 = vpop.f32.mrb[0].mxu0
        %v5265 = vpop.f32.mrb[0].mxu0
        %v5266 = vadd.f32 %v4834, %v5265
        %v5267 = vpop.f32.mrb[0].mxu0
        %5268 = vmatprep.mubr.bf16.mxu0 %v4759
        %5269 = vmatmul.mubr.bf16.gmra.mrb[0].mxu0 %v4758
        %v5270 = vpop.f32.mrb[0].mxu0
        %v5271 = vadd.f32 %v4834, %v5270
        %v5272 = vpop.f32.mrb[0].mxu0
        %v5273 = vpop.f32.mrb[0].mxu0
        %v5274 = vadd.f32 %v4834, %v5273
        %v5275 = vpop.f32.mrb[0].mxu0
        %5276 = vmatprep.mubr.bf16.mxu0 %v4762
        %5277 = vmatmul.mubr.bf16.gmra.mrb[0].mxu0 %v4761
        %v5278 = vpop.f32.mrb[0].mxu0
        %v5279 = vadd.f32 %v4834, %v5278
        %v5280 = vpop.f32.mrb[0].mxu0
        %v5281 = vpop.f32.mrb[0].mxu0
        %v5282 = vadd.f32 %v4834, %v5281
        %v5283 = vpop.f32.mrb[0].mxu0
        %5284 = vmatprep.mubr.bf16.mxu0 %v4765
        %5285 = vmatmul.mubr.bf16.gmra.mrb[0].mxu0 %v4764
        %v5286 = vpop.f32.mrb[0].mxu0
        %v5287 = vadd.f32 %v4834, %v5286
        %v5288 = vpop.f32.mrb[0].mxu0
        %v5289 = vpop.f32.mrb[0].mxu0
        %v5290 = vadd.f32 %v4834, %v5289
        %v5291 = vpop.f32.mrb[0].mxu0
        %5292 = vmatprep.mubr.bf16.mxu0 %v4768
        %5293 = vmatmul.mubr.bf16.gmra.mrb[0].mxu0 %v4767
        %v5294 = vpop.f32.mrb[0].mxu0
        %v5295 = vadd.f32 %v4834, %v5294
        %v5296 = vpop.f32.mrb[0].mxu0
        %v5297 = vpop.f32.mrb[0].mxu0
        %v5298 = vadd.f32 %v4834, %v5297
        %v5299 = vpop.f32.mrb[0].mxu0
        %5300 = vmatprep.mubr.bf16.mxu0 %v4771
        %5301 = vmatmul.mubr.bf16.gmra.mrb[0].mxu0 %v4770
        %v5302 = vpop.f32.mrb[0].mxu0
        %v5303 = vadd.f32 %v4834, %v5302
        %v5304 = vpop.f32.mrb[0].mxu0
        %v5305 = vpop.f32.mrb[0].mxu0
        %v5306 = vadd.f32 %v4834, %v5305
        %v5307 = vpop.f32.mrb[0].mxu0
        %5308 = vmatprep.mubr.bf16.mxu0 %v4774
        %5309 = vmatmul.mubr.bf16.gmra.mrb[0].mxu0 %v4773
        %v5310 = vpop.f32.mrb[0].mxu0
        %v5311 = vadd.f32 %v4834, %v5310
        %v5312 = vpop.f32.mrb[0].mxu0
        %v5313 = vpop.f32.mrb[0].mxu0
        %v5314 = vadd.f32 %v4834, %v5313
        %v5315 = vpop.f32.mrb[0].mxu0
        %5316 = vmatprep.mubr.bf16.mxu0 %v4777
        %5317 = vmatmul.mubr.bf16.gmra.mrb[0].mxu0 %v4776
        %v5318 = vpop.f32.mrb[0].mxu0
        %v5319 = vadd.f32 %v4834, %v5318
        %v5320 = vpop.f32.mrb[0].mxu0
        %v5321 = vpop.f32.mrb[0].mxu0
        %v5322 = vadd.f32 %v4834, %v5321
        %v5323 = vpop.f32.mrb[0].mxu0
        %5324 = vmatprep.mubr.bf16.mxu0 %v4780
        %5325 = vmatmul.mubr.bf16.gmra.mrb[0].mxu0 %v4779
        %v5326 = vpop.f32.mrb[0].mxu0
        %v5327 = vadd.f32 %v4834, %v5326
        %v5328 = vpop.f32.mrb[0].mxu0
        %v5329 = vpop.f32.mrb[0].mxu0
        %v5330 = vadd.f32 %v4834, %v5329
        %v5331 = vpop.f32.mrb[0].mxu0
        %5332 = vmatprep.mubr.bf16.mxu0 %v4783
        %5333 = vmatmul.mubr.bf16.gmra.mrb[0].mxu0 %v4782
        %v5334 = vpop.f32.mrb[0].mxu0
        %v5335 = vadd.f32 %v4834, %v5334
        %v5336 = vpop.f32.mrb[0].mxu0
        %v5337 = vpop.f32.mrb[0].mxu0
        %v5338 = vadd.f32 %v4834, %v5337
        %v5339 = vpop.f32.mrb[0].mxu0
        %5340 = vmatprep.mubr.bf16.mxu0 %v4786
        %5341 = vmatmul.mubr.bf16.gmra.mrb[0].mxu0 %v4785
        %v5342 = vpop.f32.mrb[0].mxu0
        %v5343 = vadd.f32 %v4834, %v5342
        %v5344 = vpop.f32.mrb[0].mxu0
        %v5345 = vpop.f32.mrb[0].mxu0
        %v5346 = vadd.f32 %v4834, %v5345
        %v5347 = vpop.f32.mrb[0].mxu0
        %5348 = vdwg.mxu0
        %5349 = vmatprep.subr.bf16.mxu0 0
        %5350 = vmatpush1.bf16.msra.mxu0 %v4934
        %5351 = vmatprep.subr.bf16.mxu0 0
        %5352 = vmatpush1.bf16.msra.mxu0 %v4935
        %5353 = vmatprep.subr.bf16.mxu0 0
        %5354 = vmatpush1.bf16.msra.mxu0 %v4936
        %5355 = vmatprep.subr.bf16.mxu0 0
        %5356 = vmatpush1.bf16.msra.mxu0 %v4937
        %5357 = vmatprep.subr.bf16.mxu0 0
        %5358 = vmatpush1.bf16.msra.mxu0 %v5058
        %5359 = vmatprep.subr.bf16.mxu0 0
        %5360 = vmatpush1.bf16.msra.mxu0 0
        %5361 = vmatprep.subr.bf16.mxu0 0
        %5362 = vmatpush1.bf16.msra.mxu0 0
        %5363 = vmatprep.subr.bf16.mxu0 0
        %5364 = vmatpush1.bf16.msra.mxu0 0
        %5365 = vmatprep.subr.bf16.mxu0 0
        %5366 = vmatpush1.bf16.msra.mxu0 0
        %5367 = vmatprep.subr.bf16.mxu0 0
        %5368 = vmatpush1.bf16.msra.mxu0 0
        %5369 = vmatprep.subr.bf16.mxu0 0
        %5370 = vmatpush1.bf16.msra.mxu0 0
        %5371 = vmatprep.subr.bf16.mxu0 0
        %5372 = vmatpush1.bf16.msra.mxu0 0
        %5373 = vmatprep.subr.bf16.mxu0 0
        %5374 = vmatpush1.bf16.msra.mxu0 0
        %5375 = vmatprep.subr.bf16.mxu0 0
        %5376 = vmatpush1.bf16.msra.mxu0 0
        %5377 = vmatprep.subr.bf16.mxu0 0
        %5378 = vmatpush1.bf16.msra.mxu0 0
        %5379 = vmatprep.subr.bf16.mxu0 0
        %5380 = vmatpush1.bf16.msra.mxu0 0
        %5381 = vmatprep.mubr.bf16.mxu0 0
        %5382 = vmatmul.mubr.bf16.gmra.mrb[0].mxu0 %v4961
        %v5383 = vpop.f32.mrb[0].mxu0
        %v5384 = vadd.f32 %v5095, %v5383
        %v5385 = vpop.f32.mrb[0].mxu0
        %v5386 = vpop.f32.mrb[0].mxu0
        %v5387 = vadd.f32 %v5098, %v5386
        %v5388 = vpop.f32.mrb[0].mxu0
        %5389 = vmatprep.mubr.bf16.mxu0 0
        %5390 = vmatmul.mubr.bf16.gmra.mrb[0].mxu0 %v4964
        %v5391 = vpop.f32.mrb[0].mxu0
        %v5392 = vadd.f32 %v5103, %v5391
        %v5393 = vpop.f32.mrb[0].mxu0
        %v5394 = vpop.f32.mrb[0].mxu0
        %v5395 = vadd.f32 %v5106, %v5394
        %v5396 = vpop.f32.mrb[0].mxu0
        %5397 = vmatprep.mubr.bf16.mxu0 0
        %5398 = vmatmul.mubr.bf16.gmra.mrb[0].mxu0 %v4967
        %v5399 = vpop.f32.mrb[0].mxu0
        %v5400 = vadd.f32 %v5111, %v5399
        %v5401 = vpop.f32.mrb[0].mxu0
        %v5402 = vpop.f32.mrb[0].mxu0
        %v5403 = vadd.f32 %v5114, %v5402
        %v5404 = vpop.f32.mrb[0].mxu0
        %5405 = vmatprep.mubr.bf16.mxu0 0
        %5406 = vmatmul.mubr.bf16.gmra.mrb[0].mxu0 %v4970
        %v5407 = vpop.f32.mrb[0].mxu0
        %v5408 = vadd.f32 %v5119, %v5407
        %v5409 = vpop.f32.mrb[0].mxu0
        %v5410 = vpop.f32.mrb[0].mxu0
        %v5411 = vadd.f32 %v5122, %v5410
        %v5412 = vpop.f32.mrb[0].mxu0
        %5413 = vmatprep.mubr.bf16.mxu0 0
        %5414 = vmatmul.mubr.bf16.gmra.mrb[0].mxu0 %v4973
        %v5415 = vpop.f32.mrb[0].mxu0
        %v5416 = vadd.f32 %v5127, %v5415
        %v5417 = vpop.f32.mrb[0].mxu0
        %v5418 = vpop.f32.mrb[0].mxu0
        %v5419 = vadd.f32 %v5130, %v5418
        %v5420 = vpop.f32.mrb[0].mxu0
        %5421 = vmatprep.mubr.bf16.mxu0 0
        %5422 = vmatmul.mubr.bf16.gmra.mrb[0].mxu0 %v4976
        %v5423 = vpop.f32.mrb[0].mxu0
        %v5424 = vadd.f32 %v5135, %v5423
        %v5425 = vpop.f32.mrb[0].mxu0
        %v5426 = vpop.f32.mrb[0].mxu0
        %v5427 = vadd.f32 %v5138, %v5426
        %v5428 = vpop.f32.mrb[0].mxu0
        %5429 = vmatprep.mubr.bf16.mxu0 0
        %5430 = vmatmul.mubr.bf16.gmra.mrb[0].mxu0 %v4979
        %v5431 = vpop.f32.mrb[0].mxu0
        %v5432 = vadd.f32 %v5143, %v5431
        %v5433 = vpop.f32.mrb[0].mxu0
        %v5434 = vpop.f32.mrb[0].mxu0
        %v5435 = vadd.f32 %v5146, %v5434
        %v5436 = vpop.f32.mrb[0].mxu0
        %5437 = vmatprep.mubr.bf16.mxu0 0
        %5438 = vmatmul.mubr.bf16.gmra.mrb[0].mxu0 %v4982
        %v5439 = vpop.f32.mrb[0].mxu0
        %v5440 = vadd.f32 %v5151, %v5439
        %v5441 = vpop.f32.mrb[0].mxu0
        %v5442 = vpop.f32.mrb[0].mxu0
        %v5443 = vadd.f32 %v5154, %v5442
        %v5444 = vpop.f32.mrb[0].mxu0
        %5445 = vmatprep.mubr.bf16.mxu0 0
        %5446 = vmatmul.mubr.bf16.gmra.mrb[0].mxu0 %v4985
        %v5447 = vpop.f32.mrb[0].mxu0
        %v5448 = vadd.f32 %v5159, %v5447
        %v5449 = vpop.f32.mrb[0].mxu0
        %v5450 = vpop.f32.mrb[0].mxu0
        %v5451 = vadd.f32 %v5162, %v5450
        %v5452 = vpop.f32.mrb[0].mxu0
        %5453 = vmatprep.mubr.bf16.mxu0 0
        %5454 = vmatmul.mubr.bf16.gmra.mrb[0].mxu0 %v4988
        %v5455 = vpop.f32.mrb[0].mxu0
        %v5456 = vadd.f32 %v5167, %v5455
        %v5457 = vpop.f32.mrb[0].mxu0
        %v5458 = vpop.f32.mrb[0].mxu0
        %v5459 = vadd.f32 %v5170, %v5458
        %v5460 = vpop.f32.mrb[0].mxu0
        %5461 = vmatprep.mubr.bf16.mxu0 0
        %5462 = vmatmul.mubr.bf16.gmra.mrb[0].mxu0 %v4991
        %v5463 = vpop.f32.mrb[0].mxu0
        %v5464 = vadd.f32 %v5175, %v5463
        %v5465 = vpop.f32.mrb[0].mxu0
        %v5466 = vpop.f32.mrb[0].mxu0
        %v5467 = vadd.f32 %v5178, %v5466
        %v5468 = vpop.f32.mrb[0].mxu0
        %5469 = vmatprep.mubr.bf16.mxu0 0
        %5470 = vmatmul.mubr.bf16.gmra.mrb[0].mxu0 %v4994
        %v5471 = vpop.f32.mrb[0].mxu0
        %v5472 = vadd.f32 %v5183, %v5471
        %v5473 = vpop.f32.mrb[0].mxu0
        %v5474 = vpop.f32.mrb[0].mxu0
        %v5475 = vadd.f32 %v5186, %v5474
        %v5476 = vpop.f32.mrb[0].mxu0
        %5477 = vmatprep.mubr.bf16.mxu0 0
        %5478 = vmatmul.mubr.bf16.gmra.mrb[0].mxu0 %v4997
        %v5479 = vpop.f32.mrb[0].mxu0
        %v5480 = vadd.f32 %v5191, %v5479
        %v5481 = vpop.f32.mrb[0].mxu0
        %v5482 = vpop.f32.mrb[0].mxu0
        %v5483 = vadd.f32 %v5194, %v5482
        %v5484 = vpop.f32.mrb[0].mxu0
        %5485 = vmatprep.mubr.bf16.mxu0 0
        %5486 = vmatmul.mubr.bf16.gmra.mrb[0].mxu0 %v5000
        %v5487 = vpop.f32.mrb[0].mxu0
        %v5488 = vadd.f32 %v5199, %v5487
        %v5489 = vpop.f32.mrb[0].mxu0
        %v5490 = vpop.f32.mrb[0].mxu0
        %v5491 = vadd.f32 %v5202, %v5490
        %v5492 = vpop.f32.mrb[0].mxu0
        %5493 = vmatprep.mubr.bf16.mxu0 0
        %5494 = vmatmul.mubr.bf16.gmra.mrb[0].mxu0 %v5003
        %v5495 = vpop.f32.mrb[0].mxu0
        %v5496 = vadd.f32 %v5207, %v5495
        %v5497 = vpop.f32.mrb[0].mxu0
        %v5498 = vpop.f32.mrb[0].mxu0
        %v5499 = vadd.f32 %v5210, %v5498
        %v5500 = vpop.f32.mrb[0].mxu0
        %5501 = vmatprep.mubr.bf16.mxu0 0
        %5502 = vmatmul.mubr.bf16.gmra.mrb[0].mxu0 %v5006
        %v5503 = vpop.f32.mrb[0].mxu0
        %v5504 = vadd.f32 %v5215, %v5503
        %v5505 = vpop.f32.mrb[0].mxu0
        %v5506 = vpop.f32.mrb[0].mxu0
        %v5507 = vadd.f32 %v5218, %v5506
        %v5508 = vpop.f32.mrb[0].mxu0
        %5509 = vmatprep.mubr.bf16.mxu0 0
        %5510 = vmatmul.mubr.bf16.gmra.mrb[0].mxu0 %v5009
        %v5511 = vpop.f32.mrb[0].mxu0
        %v5512 = vadd.f32 %v5223, %v5511
        %v5513 = vpop.f32.mrb[0].mxu0
        %v5514 = vpop.f32.mrb[0].mxu0
        %v5515 = vadd.f32 %v5226, %v5514
        %v5516 = vpop.f32.mrb[0].mxu0
        %5517 = vmatprep.mubr.bf16.mxu0 0
        %5518 = vmatmul.mubr.bf16.gmra.mrb[0].mxu0 %v5012
        %v5519 = vpop.f32.mrb[0].mxu0
        %v5520 = vadd.f32 %v5231, %v5519
        %v5521 = vpop.f32.mrb[0].mxu0
        %v5522 = vpop.f32.mrb[0].mxu0
        %v5523 = vadd.f32 %v5234, %v5522
        %v5524 = vpop.f32.mrb[0].mxu0
        %5525 = vmatprep.mubr.bf16.mxu0 0
        %5526 = vmatmul.mubr.bf16.gmra.mrb[0].mxu0 %v5015
        %v5527 = vpop.f32.mrb[0].mxu0
        %v5528 = vadd.f32 %v5239, %v5527
        %v5529 = vpop.f32.mrb[0].mxu0
        %v5530 = vpop.f32.mrb[0].mxu0
        %v5531 = vadd.f32 %v5242, %v5530
        %v5532 = vpop.f32.mrb[0].mxu0
        %5533 = vmatprep.mubr.bf16.mxu0 0
        %5534 = vmatmul.mubr.bf16.gmra.mrb[0].mxu0 %v5018
        %v5535 = vpop.f32.mrb[0].mxu0
        %v5536 = vadd.f32 %v5247, %v5535
        %v5537 = vpop.f32.mrb[0].mxu0
        %v5538 = vpop.f32.mrb[0].mxu0
        %v5539 = vadd.f32 %v5250, %v5538
        %v5540 = vpop.f32.mrb[0].mxu0
        %5541 = vmatprep.mubr.bf16.mxu0 0
        %5542 = vmatmul.mubr.bf16.gmra.mrb[0].mxu0 %v5021
        %v5543 = vpop.f32.mrb[0].mxu0
        %v5544 = vadd.f32 %v5255, %v5543
        %v5545 = vpop.f32.mrb[0].mxu0
        %v5546 = vpop.f32.mrb[0].mxu0
        %v5547 = vadd.f32 %v5258, %v5546
        %v5548 = vpop.f32.mrb[0].mxu0
        %5549 = vmatprep.mubr.bf16.mxu0 0
        %5550 = vmatmul.mubr.bf16.gmra.mrb[0].mxu0 %v5024
        %v5551 = vpop.f32.mrb[0].mxu0
        %v5552 = vadd.f32 %v5263, %v5551
        %v5553 = vpop.f32.mrb[0].mxu0
        %v5554 = vpop.f32.mrb[0].mxu0
        %v5555 = vadd.f32 %v5266, %v5554
        %v5556 = vpop.f32.mrb[0].mxu0
        %5557 = vmatprep.mubr.bf16.mxu0 0
        %5558 = vmatmul.mubr.bf16.gmra.mrb[0].mxu0 %v5027
        %v5559 = vpop.f32.mrb[0].mxu0
        %v5560 = vadd.f32 %v5271, %v5559
        %v5561 = vpop.f32.mrb[0].mxu0
        %v5562 = vpop.f32.mrb[0].mxu0
        %v5563 = vadd.f32 %v5274, %v5562
        %v5564 = vpop.f32.mrb[0].mxu0
        %5565 = vmatprep.mubr.bf16.mxu0 0
        %5566 = vmatmul.mubr.bf16.gmra.mrb[0].mxu0 %v5030
        %v5567 = vpop.f32.mrb[0].mxu0
        %v5568 = vadd.f32 %v5279, %v5567
        %v5569 = vpop.f32.mrb[0].mxu0
        %v5570 = vpop.f32.mrb[0].mxu0
        %v5571 = vadd.f32 %v5282, %v5570
        %v5572 = vpop.f32.mrb[0].mxu0
        %5573 = vmatprep.mubr.bf16.mxu0 0
        %5574 = vmatmul.mubr.bf16.gmra.mrb[0].mxu0 %v5033
        %v5575 = vpop.f32.mrb[0].mxu0
        %v5576 = vadd.f32 %v5287, %v5575
        %v5577 = vpop.f32.mrb[0].mxu0
        %v5578 = vpop.f32.mrb[0].mxu0
        %v5579 = vadd.f32 %v5290, %v5578
        %v5580 = vpop.f32.mrb[0].mxu0
        %5581 = vmatprep.mubr.bf16.mxu0 0
        %5582 = vmatmul.mubr.bf16.gmra.mrb[0].mxu0 %v5036
        %v5583 = vpop.f32.mrb[0].mxu0
        %v5584 = vadd.f32 %v5295, %v5583
        %v5585 = vpop.f32.mrb[0].mxu0
        %v5586 = vpop.f32.mrb[0].mxu0
        %v5587 = vadd.f32 %v5298, %v5586
        %v5588 = vpop.f32.mrb[0].mxu0
        %5589 = vmatprep.mubr.bf16.mxu0 0
        %5590 = vmatmul.mubr.bf16.gmra.mrb[0].mxu0 %v5039
        %v5591 = vpop.f32.mrb[0].mxu0
        %v5592 = vadd.f32 %v5303, %v5591
        %v5593 = vpop.f32.mrb[0].mxu0
        %v5594 = vpop.f32.mrb[0].mxu0
        %v5595 = vadd.f32 %v5306, %v5594
        %v5596 = vpop.f32.mrb[0].mxu0
        %5597 = vmatprep.mubr.bf16.mxu0 0
        %5598 = vmatmul.mubr.bf16.gmra.mrb[0].mxu0 %v5042
        %v5599 = vpop.f32.mrb[0].mxu0
        %v5600 = vadd.f32 %v5311, %v5599
        %v5601 = vpop.f32.mrb[0].mxu0
        %v5602 = vpop.f32.mrb[0].mxu0
        %v5603 = vadd.f32 %v5314, %v5602
        %v5604 = vpop.f32.mrb[0].mxu0
        %5605 = vmatprep.mubr.bf16.mxu0 0
        %5606 = vmatmul.mubr.bf16.gmra.mrb[0].mxu0 %v5045
        %v5607 = vpop.f32.mrb[0].mxu0
        %v5608 = vadd.f32 %v5319, %v5607
        %v5609 = vpop.f32.mrb[0].mxu0
        %v5610 = vpop.f32.mrb[0].mxu0
        %v5611 = vadd.f32 %v5322, %v5610
        %v5612 = vpop.f32.mrb[0].mxu0
        %5613 = vmatprep.mubr.bf16.mxu0 0
        %5614 = vmatmul.mubr.bf16.gmra.mrb[0].mxu0 %v5048
        %v5615 = vpop.f32.mrb[0].mxu0
        %v5616 = vadd.f32 %v5327, %v5615
        %v5617 = vpop.f32.mrb[0].mxu0
        %v5618 = vpop.f32.mrb[0].mxu0
        %v5619 = vadd.f32 %v5330, %v5618
        %v5620 = vpop.f32.mrb[0].mxu0
        %5621 = vmatprep.mubr.bf16.mxu0 0
        %5622 = vmatmul.mubr.bf16.gmra.mrb[0].mxu0 %v5051
        %v5623 = vpop.f32.mrb[0].mxu0
        %v5624 = vadd.f32 %v5335, %v5623
        %v5625 = vpop.f32.mrb[0].mxu0
        %v5626 = vpop.f32.mrb[0].mxu0
        %v5627 = vadd.f32 %v5338, %v5626
        %v5628 = vpop.f32.mrb[0].mxu0
        %5629 = vmatprep.mubr.bf16.mxu0 0
        %5630 = vmatmul.mubr.bf16.gmra.mrb[0].mxu0 %v5054
        %v5631 = vpop.f32.mrb[0].mxu0
        %v5632 = vadd.f32 %v5343, %v5631
        %v5633 = vpop.f32.mrb[0].mxu0
        %v5634 = vpop.f32.mrb[0].mxu0
        %v5635 = vadd.f32 %v5346, %v5634
        %v5636 = vpop.f32.mrb[0].mxu0
        %5637 = vdwg.mxu0
        %v5638 = vxor.u32 %v5384, 2147483648
        %v5639 = vxor.u32 %v5387, 2147483648
        %v5640 = vxor.u32 %v5392, 2147483648
        %v5641 = vxor.u32 %v5395, 2147483648
        %v5642 = vxor.u32 %v5400, 2147483648
        %v5643 = vxor.u32 %v5403, 2147483648
        %v5644 = vxor.u32 %v5408, 2147483648
        %v5645 = vxor.u32 %v5411, 2147483648
        %v5646 = vxor.u32 %v5416, 2147483648
        %v5647 = vxor.u32 %v5419, 2147483648
        %v5648 = vxor.u32 %v5424, 2147483648
        %v5649 = vxor.u32 %v5427, 2147483648
        %v5650 = vxor.u32 %v5432, 2147483648
        %v5651 = vxor.u32 %v5435, 2147483648
        %v5652 = vxor.u32 %v5440, 2147483648
        %v5653 = vxor.u32 %v5443, 2147483648
        %v5654 = vxor.u32 %v5448, 2147483648
        %v5655 = vxor.u32 %v5451, 2147483648
        %v5656 = vxor.u32 %v5456, 2147483648
        %v5657 = vxor.u32 %v5459, 2147483648
        %v5658 = vxor.u32 %v5464, 2147483648
        %v5659 = vxor.u32 %v5467, 2147483648
        %v5660 = vxor.u32 %v5472, 2147483648
        %v5661 = vxor.u32 %v5475, 2147483648
        %v5662 = vxor.u32 %v5480, 2147483648
        %v5663 = vxor.u32 %v5483, 2147483648
        %v5664 = vxor.u32 %v5488, 2147483648
        %v5665 = vxor.u32 %v5491, 2147483648
        %v5666 = vxor.u32 %v5496, 2147483648
        %v5667 = vxor.u32 %v5499, 2147483648
        %v5668 = vxor.u32 %v5504, 2147483648
        %v5669 = vxor.u32 %v5507, 2147483648
        %v5670 = vxor.u32 %v5512, 2147483648
        %v5671 = vxor.u32 %v5515, 2147483648
        %v5672 = vxor.u32 %v5520, 2147483648
        %v5673 = vxor.u32 %v5523, 2147483648
        %v5674 = vxor.u32 %v5528, 2147483648
        %v5675 = vxor.u32 %v5531, 2147483648
        %v5676 = vxor.u32 %v5536, 2147483648
        %v5677 = vxor.u32 %v5539, 2147483648
        %v5678 = vxor.u32 %v5544, 2147483648
        %v5679 = vxor.u32 %v5547, 2147483648
        %v5680 = vxor.u32 %v5552, 2147483648
        %v5681 = vxor.u32 %v5555, 2147483648
        %v5682 = vxor.u32 %v5560, 2147483648
        %v5683 = vxor.u32 %v5563, 2147483648
        %v5684 = vxor.u32 %v5568, 2147483648
        %v5685 = vxor.u32 %v5571, 2147483648
        %v5686 = vxor.u32 %v5576, 2147483648
        %v5687 = vxor.u32 %v5579, 2147483648
        %v5688 = vxor.u32 %v5584, 2147483648
        %v5689 = vxor.u32 %v5587, 2147483648
        %v5690 = vxor.u32 %v5592, 2147483648
        %v5691 = vxor.u32 %v5595, 2147483648
        %v5692 = vxor.u32 %v5600, 2147483648
        %v5693 = vxor.u32 %v5603, 2147483648
        %v5694 = vxor.u32 %v5608, 2147483648
        %v5695 = vxor.u32 %v5611, 2147483648
        %v5696 = vxor.u32 %v5616, 2147483648
        %v5697 = vxor.u32 %v5619, 2147483648
        %v5698 = vxor.u32 %v5624, 2147483648
        %v5699 = vxor.u32 %v5627, 2147483648
        %v5700 = vxor.u32 %v5632, 2147483648
        %v5701 = vxor.u32 %v5635, 2147483648
        %v5702 = vmul.f32 %v5638, 1.442695
        %v5703 = vpow.pop %v5702
        %v5704 = vmul.f32 %v5639, 1.442695
        %v5705 = vpow.pop %v5704
        %v5706 = vmul.f32 %v5640, 1.442695
        %v5707 = vpow.pop %v5706
        %v5708 = vmul.f32 %v5641, 1.442695
        %v5709 = vpow.pop %v5708
        %v5710 = vmul.f32 %v5642, 1.442695
        %v5711 = vpow.pop %v5710
        %v5712 = vmul.f32 %v5643, 1.442695
        %v5713 = vpow.pop %v5712
        %v5714 = vmul.f32 %v5644, 1.442695
        %v5715 = vpow.pop %v5714
        %v5716 = vmul.f32 %v5645, 1.442695
        %v5717 = vpow.pop %v5716
        %v5718 = vmul.f32 %v5646, 1.442695
        %v5719 = vpow.pop %v5718
        %v5720 = vmul.f32 %v5647, 1.442695
        %v5721 = vpow.pop %v5720
        %v5722 = vmul.f32 %v5648, 1.442695
        %v5723 = vpow.pop %v5722
        %v5724 = vmul.f32 %v5649, 1.442695
        %v5725 = vpow.pop %v5724
        %v5726 = vmul.f32 %v5650, 1.442695
        %v5727 = vpow.pop %v5726
        %v5728 = vmul.f32 %v5651, 1.442695
        %v5729 = vpow.pop %v5728
        %v5730 = vmul.f32 %v5652, 1.442695
        %v5731 = vpow.pop %v5730
        %v5732 = vmul.f32 %v5653, 1.442695
        %v5733 = vpow.pop %v5732
        %v5734 = vmul.f32 %v5654, 1.442695
        %v5735 = vpow.pop %v5734
        %v5736 = vmul.f32 %v5655, 1.442695
        %v5737 = vpow.pop %v5736
        %v5738 = vmul.f32 %v5656, 1.442695
        %v5739 = vpow.pop %v5738
        %v5740 = vmul.f32 %v5657, 1.442695
        %v5741 = vpow.pop %v5740
        %v5742 = vmul.f32 %v5658, 1.442695
        %v5743 = vpow.pop %v5742
        %v5744 = vmul.f32 %v5659, 1.442695
        %v5745 = vpow.pop %v5744
        %v5746 = vmul.f32 %v5660, 1.442695
        %v5747 = vpow.pop %v5746
        %v5748 = vmul.f32 %v5661, 1.442695
        %v5749 = vpow.pop %v5748
        %v5750 = vmul.f32 %v5662, 1.442695
        %v5751 = vpow.pop %v5750
        %v5752 = vmul.f32 %v5663, 1.442695
        %v5753 = vpow.pop %v5752
        %v5754 = vmul.f32 %v5664, 1.442695
        %v5755 = vpow.pop %v5754
        %v5756 = vmul.f32 %v5665, 1.442695
        %v5757 = vpow.pop %v5756
        %v5758 = vmul.f32 %v5666, 1.442695
        %v5759 = vpow.pop %v5758
        %v5760 = vmul.f32 %v5667, 1.442695
        %v5761 = vpow.pop %v5760
        %v5762 = vmul.f32 %v5668, 1.442695
        %v5763 = vpow.pop %v5762
        %v5764 = vmul.f32 %v5669, 1.442695
        %v5765 = vpow.pop %v5764
        %v5766 = vmul.f32 %v5670, 1.442695
        %v5767 = vpow.pop %v5766
        %v5768 = vmul.f32 %v5671, 1.442695
        %v5769 = vpow.pop %v5768
        %v5770 = vmul.f32 %v5672, 1.442695
        %v5771 = vpow.pop %v5770
        %v5772 = vmul.f32 %v5673, 1.442695
        %v5773 = vpow.pop %v5772
        %v5774 = vmul.f32 %v5674, 1.442695
        %v5775 = vpow.pop %v5774
        %v5776 = vmul.f32 %v5675, 1.442695
        %v5777 = vpow.pop %v5776
        %v5778 = vmul.f32 %v5676, 1.442695
        %v5779 = vpow.pop %v5778
        %v5780 = vmul.f32 %v5677, 1.442695
        %v5781 = vpow.pop %v5780
        %v5782 = vmul.f32 %v5678, 1.442695
        %v5783 = vpow.pop %v5782
        %v5784 = vmul.f32 %v5679, 1.442695
        %v5785 = vpow.pop %v5784
        %v5786 = vmul.f32 %v5680, 1.442695
        %v5787 = vpow.pop %v5786
        %v5788 = vmul.f32 %v5681, 1.442695
        %v5789 = vpow.pop %v5788
        %v5790 = vmul.f32 %v5682, 1.442695
        %v5791 = vpow.pop %v5790
        %v5792 = vmul.f32 %v5683, 1.442695
        %v5793 = vpow.pop %v5792
        %v5794 = vmul.f32 %v5684, 1.442695
        %v5795 = vpow.pop %v5794
        %v5796 = vmul.f32 %v5685, 1.442695
        %v5797 = vpow.pop %v5796
        %v5798 = vmul.f32 %v5686, 1.442695
        %v5799 = vpow.pop %v5798
        %v5800 = vmul.f32 %v5687, 1.442695
        %v5801 = vpow.pop %v5800
        %v5802 = vmul.f32 %v5688, 1.442695
        %v5803 = vpow.pop %v5802
        %v5804 = vmul.f32 %v5689, 1.442695
        %v5805 = vpow.pop %v5804
        %v5806 = vmul.f32 %v5690, 1.442695
        %v5807 = vpow.pop %v5806
        %v5808 = vmul.f32 %v5691, 1.442695
        %v5809 = vpow.pop %v5808
        %v5810 = vmul.f32 %v5692, 1.442695
        %v5811 = vpow.pop %v5810
        %v5812 = vmul.f32 %v5693, 1.442695
        %v5813 = vpow.pop %v5812
        %v5814 = vmul.f32 %v5694, 1.442695
        %v5815 = vpow.pop %v5814
        %v5816 = vmul.f32 %v5695, 1.442695
        %v5817 = vpow.pop %v5816
        %v5818 = vmul.f32 %v5696, 1.442695
        %v5819 = vpow.pop %v5818
        %v5820 = vmul.f32 %v5697, 1.442695
        %v5821 = vpow.pop %v5820
        %v5822 = vmul.f32 %v5698, 1.442695
        %v5823 = vpow.pop %v5822
        %v5824 = vmul.f32 %v5699, 1.442695
        %v5825 = vpow.pop %v5824
        %v5826 = vmul.f32 %v5700, 1.442695
        %v5827 = vpow.pop %v5826
        %v5828 = vmul.f32 %v5701, 1.442695
        %v5829 = vpow.pop %v5828
        %v5830 = vadd.f32 %v5703, 1.0
        %v5831 = vadd.f32 %v5705, 1.0
        %v5832 = vadd.f32 %v5707, 1.0
        %v5833 = vadd.f32 %v5709, 1.0
        %v5834 = vadd.f32 %v5711, 1.0
        %v5835 = vadd.f32 %v5713, 1.0
        %v5836 = vadd.f32 %v5715, 1.0
        %v5837 = vadd.f32 %v5717, 1.0
        %v5838 = vadd.f32 %v5719, 1.0
        %v5839 = vadd.f32 %v5721, 1.0
        %v5840 = vadd.f32 %v5723, 1.0
        %v5841 = vadd.f32 %v5725, 1.0
        %v5842 = vadd.f32 %v5727, 1.0
        %v5843 = vadd.f32 %v5729, 1.0
        %v5844 = vadd.f32 %v5731, 1.0
        %v5845 = vadd.f32 %v5733, 1.0
        %v5846 = vadd.f32 %v5735, 1.0
        %v5847 = vadd.f32 %v5737, 1.0
        %v5848 = vadd.f32 %v5739, 1.0
        %v5849 = vadd.f32 %v5741, 1.0
        %v5850 = vadd.f32 %v5743, 1.0
        %v5851 = vadd.f32 %v5745, 1.0
        %v5852 = vadd.f32 %v5747, 1.0
        %v5853 = vadd.f32 %v5749, 1.0
        %v5854 = vadd.f32 %v5751, 1.0
        %v5855 = vadd.f32 %v5753, 1.0
        %v5856 = vadd.f32 %v5755, 1.0
        %v5857 = vadd.f32 %v5757, 1.0
        %v5858 = vadd.f32 %v5759, 1.0
        %v5859 = vadd.f32 %v5761, 1.0
        %v5860 = vadd.f32 %v5763, 1.0
        %v5861 = vadd.f32 %v5765, 1.0
        %v5862 = vadd.f32 %v5767, 1.0
        %v5863 = vadd.f32 %v5769, 1.0
        %v5864 = vadd.f32 %v5771, 1.0
        %v5865 = vadd.f32 %v5773, 1.0
        %v5866 = vadd.f32 %v5775, 1.0
        %v5867 = vadd.f32 %v5777, 1.0
        %v5868 = vadd.f32 %v5779, 1.0
        %v5869 = vadd.f32 %v5781, 1.0
        %v5870 = vadd.f32 %v5783, 1.0
        %v5871 = vadd.f32 %v5785, 1.0
        %v5872 = vadd.f32 %v5787, 1.0
        %v5873 = vadd.f32 %v5789, 1.0
        %v5874 = vadd.f32 %v5791, 1.0
        %v5875 = vadd.f32 %v5793, 1.0
        %v5876 = vadd.f32 %v5795, 1.0
        %v5877 = vadd.f32 %v5797, 1.0
        %v5878 = vadd.f32 %v5799, 1.0
        %v5879 = vadd.f32 %v5801, 1.0
        %v5880 = vadd.f32 %v5803, 1.0
        %v5881 = vadd.f32 %v5805, 1.0
        %v5882 = vadd.f32 %v5807, 1.0
        %v5883 = vadd.f32 %v5809, 1.0
        %v5884 = vadd.f32 %v5811, 1.0
        %v5885 = vadd.f32 %v5813, 1.0
        %v5886 = vadd.f32 %v5815, 1.0
        %v5887 = vadd.f32 %v5817, 1.0
        %v5888 = vadd.f32 %v5819, 1.0
        %v5889 = vadd.f32 %v5821, 1.0
        %v5890 = vadd.f32 %v5823, 1.0
        %v5891 = vadd.f32 %v5825, 1.0
        %v5892 = vadd.f32 %v5827, 1.0
        %v5893 = vadd.f32 %v5829, 1.0
        %v5894 = vrcp.pop %v5830
        %v5895 = vmul.f32 1.0, %v5894
        %v5896 = vrcp.pop %v5831
        %v5897 = vmul.f32 1.0, %v5896
        %v5898 = vrcp.pop %v5832
        %v5899 = vmul.f32 1.0, %v5898
        %v5900 = vrcp.pop %v5833
        %v5901 = vmul.f32 1.0, %v5900
        %v5902 = vrcp.pop %v5834
        %v5903 = vmul.f32 1.0, %v5902
        %v5904 = vrcp.pop %v5835
        %v5905 = vmul.f32 1.0, %v5904
        %v5906 = vrcp.pop %v5836
        %v5907 = vmul.f32 1.0, %v5906
        %v5908 = vrcp.pop %v5837
        %v5909 = vmul.f32 1.0, %v5908
        %v5910 = vrcp.pop %v5838
        %v5911 = vmul.f32 1.0, %v5910
        %v5912 = vrcp.pop %v5839
        %v5913 = vmul.f32 1.0, %v5912
        %v5914 = vrcp.pop %v5840
        %v5915 = vmul.f32 1.0, %v5914
        %v5916 = vrcp.pop %v5841
        %v5917 = vmul.f32 1.0, %v5916
        %v5918 = vrcp.pop %v5842
        %v5919 = vmul.f32 1.0, %v5918
        %v5920 = vrcp.pop %v5843
        %v5921 = vmul.f32 1.0, %v5920
        %v5922 = vrcp.pop %v5844
        %v5923 = vmul.f32 1.0, %v5922
        %v5924 = vrcp.pop %v5845
        %v5925 = vmul.f32 1.0, %v5924
        %v5926 = vrcp.pop %v5846
        %v5927 = vmul.f32 1.0, %v5926
        %v5928 = vrcp.pop %v5847
        %v5929 = vmul.f32 1.0, %v5928
        %v5930 = vrcp.pop %v5848
        %v5931 = vmul.f32 1.0, %v5930
        %v5932 = vrcp.pop %v5849
        %v5933 = vmul.f32 1.0, %v5932
        %v5934 = vrcp.pop %v5850
        %v5935 = vmul.f32 1.0, %v5934
        %v5936 = vrcp.pop %v5851
        %v5937 = vmul.f32 1.0, %v5936
        %v5938 = vrcp.pop %v5852
        %v5939 = vmul.f32 1.0, %v5938
        %v5940 = vrcp.pop %v5853
        %v5941 = vmul.f32 1.0, %v5940
        %v5942 = vrcp.pop %v5854
        %v5943 = vmul.f32 1.0, %v5942
        %v5944 = vrcp.pop %v5855
        %v5945 = vmul.f32 1.0, %v5944
        %v5946 = vrcp.pop %v5856
        %v5947 = vmul.f32 1.0, %v5946
        %v5948 = vrcp.pop %v5857
        %v5949 = vmul.f32 1.0, %v5948
        %v5950 = vrcp.pop %v5858
        %v5951 = vmul.f32 1.0, %v5950
        %v5952 = vrcp.pop %v5859
        %v5953 = vmul.f32 1.0, %v5952
        %v5954 = vrcp.pop %v5860
        %v5955 = vmul.f32 1.0, %v5954
        %v5956 = vrcp.pop %v5861
        %v5957 = vmul.f32 1.0, %v5956
        %v5958 = vrcp.pop %v5862
        %v5959 = vmul.f32 1.0, %v5958
        %v5960 = vrcp.pop %v5863
        %v5961 = vmul.f32 1.0, %v5960
        %v5962 = vrcp.pop %v5864
        %v5963 = vmul.f32 1.0, %v5962
        %v5964 = vrcp.pop %v5865
        %v5965 = vmul.f32 1.0, %v5964
        %v5966 = vrcp.pop %v5866
        %v5967 = vmul.f32 1.0, %v5966
        %v5968 = vrcp.pop %v5867
        %v5969 = vmul.f32 1.0, %v5968
        %v5970 = vrcp.pop %v5868
        %v5971 = vmul.f32 1.0, %v5970
        %v5972 = vrcp.pop %v5869
        %v5973 = vmul.f32 1.0, %v5972
        %v5974 = vrcp.pop %v5870
        %v5975 = vmul.f32 1.0, %v5974
        %v5976 = vrcp.pop %v5871
        %v5977 = vmul.f32 1.0, %v5976
        %v5978 = vrcp.pop %v5872
        %v5979 = vmul.f32 1.0, %v5978
        %v5980 = vrcp.pop %v5873
        %v5981 = vmul.f32 1.0, %v5980
        %v5982 = vrcp.pop %v5874
        %v5983 = vmul.f32 1.0, %v5982
        %v5984 = vrcp.pop %v5875
        %v5985 = vmul.f32 1.0, %v5984
        %v5986 = vrcp.pop %v5876
        %v5987 = vmul.f32 1.0, %v5986
        %v5988 = vrcp.pop %v5877
        %v5989 = vmul.f32 1.0, %v5988
        %v5990 = vrcp.pop %v5878
        %v5991 = vmul.f32 1.0, %v5990
        %v5992 = vrcp.pop %v5879
        %v5993 = vmul.f32 1.0, %v5992
        %v5994 = vrcp.pop %v5880
        %v5995 = vmul.f32 1.0, %v5994
        %v5996 = vrcp.pop %v5881
        %v5997 = vmul.f32 1.0, %v5996
        %v5998 = vrcp.pop %v5882
        %v5999 = vmul.f32 1.0, %v5998
        %v6000 = vrcp.pop %v5883
        %v6001 = vmul.f32 1.0, %v6000
        %v6002 = vrcp.pop %v5884
        %v6003 = vmul.f32 1.0, %v6002
        %v6004 = vrcp.pop %v5885
        %v6005 = vmul.f32 1.0, %v6004
        %v6006 = vrcp.pop %v5886
        %v6007 = vmul.f32 1.0, %v6006
        %v6008 = vrcp.pop %v5887
        %v6009 = vmul.f32 1.0, %v6008
        %v6010 = vrcp.pop %v5888
        %v6011 = vmul.f32 1.0, %v6010
        %v6012 = vrcp.pop %v5889
        %v6013 = vmul.f32 1.0, %v6012
        %v6014 = vrcp.pop %v5890
        %v6015 = vmul.f32 1.0, %v6014
        %v6016 = vrcp.pop %v5891
        %v6017 = vmul.f32 1.0, %v6016
        %v6018 = vrcp.pop %v5892
        %v6019 = vmul.f32 1.0, %v6018
        %v6020 = vrcp.pop %v5893
        %v6021 = vmul.f32 1.0, %v6020
        %v6022 = vtanh.pop %v5384
        %v6023 = vtanh.pop %v5387
        %v6024 = vtanh.pop %v5392
        %v6025 = vtanh.pop %v5395
        %v6026 = vtanh.pop %v5400
        %v6027 = vtanh.pop %v5403
        %v6028 = vtanh.pop %v5408
        %v6029 = vtanh.pop %v5411
        %v6030 = vtanh.pop %v5416
        %v6031 = vtanh.pop %v5419
        %v6032 = vtanh.pop %v5424
        %v6033 = vtanh.pop %v5427
        %v6034 = vtanh.pop %v5432
        %v6035 = vtanh.pop %v5435
        %v6036 = vtanh.pop %v5440
        %v6037 = vtanh.pop %v5443
        %v6038 = vtanh.pop %v5448
        %v6039 = vtanh.pop %v5451
        %v6040 = vtanh.pop %v5456
        %v6041 = vtanh.pop %v5459
        %v6042 = vtanh.pop %v5464
        %v6043 = vtanh.pop %v5467
        %v6044 = vtanh.pop %v5472
        %v6045 = vtanh.pop %v5475
        %v6046 = vtanh.pop %v5480
        %v6047 = vtanh.pop %v5483
        %v6048 = vtanh.pop %v5488
        %v6049 = vtanh.pop %v5491
        %v6050 = vtanh.pop %v5496
        %v6051 = vtanh.pop %v5499
        %v6052 = vtanh.pop %v5504
        %v6053 = vtanh.pop %v5507
        %v6054 = vtanh.pop %v5512
        %v6055 = vtanh.pop %v5515
        %v6056 = vtanh.pop %v5520
        %v6057 = vtanh.pop %v5523
        %v6058 = vtanh.pop %v5528
        %v6059 = vtanh.pop %v5531
        %v6060 = vtanh.pop %v5536
        %v6061 = vtanh.pop %v5539
        %v6062 = vtanh.pop %v5544
        %v6063 = vtanh.pop %v5547
        %v6064 = vtanh.pop %v5552
        %v6065 = vtanh.pop %v5555
        %v6066 = vtanh.pop %v5560
        %v6067 = vtanh.pop %v5563
        %v6068 = vtanh.pop %v5568
        %v6069 = vtanh.pop %v5571
        %v6070 = vtanh.pop %v5576
        %v6071 = vtanh.pop %v5579
        %v6072 = vtanh.pop %v5584
        %v6073 = vtanh.pop %v5587
        %v6074 = vtanh.pop %v5592
        %v6075 = vtanh.pop %v5595
        %v6076 = vtanh.pop %v5600
        %v6077 = vtanh.pop %v5603
        %v6078 = vtanh.pop %v5608
        %v6079 = vtanh.pop %v5611
        %v6080 = vtanh.pop %v5616
        %v6081 = vtanh.pop %v5619
        %v6082 = vtanh.pop %v5624
        %v6083 = vtanh.pop %v5627
        %v6084 = vtanh.pop %v5632
        %v6085 = vtanh.pop %v5635
        %v6086 = vld [vmem:[#allocation5] sm:$0xff]
        %v6087 = vld [vmem:[#allocation5 + $0x8] sm:$0xff]
        %v6088 = vld [vmem:[#allocation5 + $0x10] sm:$0xff]
        %v6089 = vld [vmem:[#allocation5 + $0x18] sm:$0xff]
        %v6090 = vld [vmem:[#allocation5 + $0x20] sm:$0xff]
        %v6091 = vld [vmem:[#allocation5 + $0x28] sm:$0xff]
        %v6092 = vld [vmem:[#allocation5 + $0x30] sm:$0xff]
        %v6093 = vld [vmem:[#allocation5 + $0x38] sm:$0xff]
        %v6094 = vld [vmem:[#allocation5 + $0x40] sm:$0xff]
        %v6095 = vld [vmem:[#allocation5 + $0x48] sm:$0xff]
        %v6096 = vld [vmem:[#allocation5 + $0x50] sm:$0xff]
        %v6097 = vld [vmem:[#allocation5 + $0x58] sm:$0xff]
        %v6098 = vld [vmem:[#allocation5 + $0x60] sm:$0xff]
        %v6099 = vld [vmem:[#allocation5 + $0x68] sm:$0xff]
        %v6100 = vld [vmem:[#allocation5 + $0x70] sm:$0xff]
        %v6101 = vld [vmem:[#allocation5 + $0x78] sm:$0xff]
        %v6102 = vld [vmem:[#allocation5 + $0x80] sm:$0xff]
        %v6103 = vld [vmem:[#allocation5 + $0x88] sm:$0xff]
        %v6104 = vld [vmem:[#allocation5 + $0x90] sm:$0xff]
        %v6105 = vld [vmem:[#allocation5 + $0x98] sm:$0xff]
        %v6106 = vld [vmem:[#allocation5 + $0xa0] sm:$0xff]
        %v6107 = vld [vmem:[#allocation5 + $0xa8] sm:$0xff]
        %v6108 = vld [vmem:[#allocation5 + $0xb0] sm:$0xff]
        %v6109 = vld [vmem:[#allocation5 + $0xb8] sm:$0xff]
        %v6110 = vld [vmem:[#allocation5 + $0xc0] sm:$0xff]
        %v6111 = vld [vmem:[#allocation5 + $0xc8] sm:$0xff]
        %v6112 = vld [vmem:[#allocation5 + $0xd0] sm:$0xff]
        %v6113 = vld [vmem:[#allocation5 + $0xd8] sm:$0xff]
        %v6114 = vld [vmem:[#allocation5 + $0xe0] sm:$0xff]
        %v6115 = vld [vmem:[#allocation5 + $0xe8] sm:$0xff]
        %v6116 = vld [vmem:[#allocation5 + $0xf0] sm:$0xff]
        %v6117 = vld [vmem:[#allocation5 + $0xf8] sm:$0xff]
        %v6118 = vld [vmem:[#allocation5 + $0x100] sm:$0xff]
        %v6119 = vld [vmem:[#allocation5 + $0x108] sm:$0xff]
        %v6120 = vld [vmem:[#allocation5 + $0x110] sm:$0xff]
        %v6121 = vld [vmem:[#allocation5 + $0x118] sm:$0xff]
        %v6122 = vld [vmem:[#allocation5 + $0x120] sm:$0xff]
        %v6123 = vld [vmem:[#allocation5 + $0x128] sm:$0xff]
        %v6124 = vld [vmem:[#allocation5 + $0x130] sm:$0xff]
        %v6125 = vld [vmem:[#allocation5 + $0x138] sm:$0xff]
        %v6126 = vld [vmem:[#allocation5 + $0x140] sm:$0xff]
        %v6127 = vld [vmem:[#allocation5 + $0x148] sm:$0xff]
        %v6128 = vld [vmem:[#allocation5 + $0x150] sm:$0xff]
        %v6129 = vld [vmem:[#allocation5 + $0x158] sm:$0xff]
        %v6130 = vld [vmem:[#allocation5 + $0x160] sm:$0xff]
        %v6131 = vld [vmem:[#allocation5 + $0x168] sm:$0xff]
        %v6132 = vld [vmem:[#allocation5 + $0x170] sm:$0xff]
        %v6133 = vld [vmem:[#allocation5 + $0x178] sm:$0xff]
        %v6134 = vld [vmem:[#allocation5 + $0x180] sm:$0xff]
        %v6135 = vld [vmem:[#allocation5 + $0x188] sm:$0xff]
        %v6136 = vld [vmem:[#allocation5 + $0x190] sm:$0xff]
        %v6137 = vld [vmem:[#allocation5 + $0x198] sm:$0xff]
        %v6138 = vld [vmem:[#allocation5 + $0x1a0] sm:$0xff]
        %v6139 = vld [vmem:[#allocation5 + $0x1a8] sm:$0xff]
        %v6140 = vld [vmem:[#allocation5 + $0x1b0] sm:$0xff]
        %v6141 = vld [vmem:[#allocation5 + $0x1b8] sm:$0xff]
        %v6142 = vld [vmem:[#allocation5 + $0x1c0] sm:$0xff]
        %v6143 = vld [vmem:[#allocation5 + $0x1c8] sm:$0xff]
        %v6144 = vld [vmem:[#allocation5 + $0x1d0] sm:$0xff]
        %v6145 = vld [vmem:[#allocation5 + $0x1d8] sm:$0xff]
        %v6146 = vld [vmem:[#allocation5 + $0x1e0] sm:$0xff]
        %v6147 = vld [vmem:[#allocation5 + $0x1e8] sm:$0xff]
        %v6148 = vld [vmem:[#allocation5 + $0x1f0] sm:$0xff]
        %v6149 = vld [vmem:[#allocation5 + $0x1f8] sm:$0xff]
        %6214 = vrot.lane.b32.xlu0 %v6086, 32
        %v6215 = vpop.permute.xlu0 %6214
        %6216 = vrot.lane.b32.xlu0 %v6087, 32
        %v6217 = vpop.permute.xlu0 %6216
        %6218 = vrot.lane.b32.xlu0 %v6088, 32
        %v6219 = vpop.permute.xlu0 %6218
        %6220 = vrot.lane.b32.xlu0 %v6089, 32
        %v6221 = vpop.permute.xlu0 %6220
        %6222 = vrot.lane.b32.xlu0 %v6090, 32
        %v6223 = vpop.permute.xlu0 %6222
        %6224 = vrot.lane.b32.xlu0 %v6091, 32
        %v6225 = vpop.permute.xlu0 %6224
        %6226 = vrot.lane.b32.xlu0 %v6092, 32
        %v6227 = vpop.permute.xlu0 %6226
        %6228 = vrot.lane.b32.xlu0 %v6093, 32
        %v6229 = vpop.permute.xlu0 %6228
        %6230 = vrot.lane.b32.xlu0 %v6094, 32
        %v6231 = vpop.permute.xlu0 %6230
        %6232 = vrot.lane.b32.xlu0 %v6095, 32
        %v6233 = vpop.permute.xlu0 %6232
        %6234 = vrot.lane.b32.xlu0 %v6096, 32
        %v6235 = vpop.permute.xlu0 %6234
        %6236 = vrot.lane.b32.xlu0 %v6097, 32
        %v6237 = vpop.permute.xlu0 %6236
        %6238 = vrot.lane.b32.xlu0 %v6098, 32
        %v6239 = vpop.permute.xlu0 %6238
        %6240 = vrot.lane.b32.xlu0 %v6099, 32
        %v6241 = vpop.permute.xlu0 %6240
        %6242 = vrot.lane.b32.xlu0 %v6100, 32
        %v6243 = vpop.permute.xlu0 %6242
        %6244 = vrot.lane.b32.xlu0 %v6101, 32
        %v6245 = vpop.permute.xlu0 %6244
        %6246 = vrot.lane.b32.xlu0 %v6102, 32
        %v6247 = vpop.permute.xlu0 %6246
        %6248 = vrot.lane.b32.xlu0 %v6103, 32
        %v6249 = vpop.permute.xlu0 %6248
        %6250 = vrot.lane.b32.xlu0 %v6104, 32
        %v6251 = vpop.permute.xlu0 %6250
        %6252 = vrot.lane.b32.xlu0 %v6105, 32
        %v6253 = vpop.permute.xlu0 %6252
        %6254 = vrot.lane.b32.xlu0 %v6106, 32
        %v6255 = vpop.permute.xlu0 %6254
        %6256 = vrot.lane.b32.xlu0 %v6107, 32
        %v6257 = vpop.permute.xlu0 %6256
        %6258 = vrot.lane.b32.xlu0 %v6108, 32
        %v6259 = vpop.permute.xlu0 %6258
        %6260 = vrot.lane.b32.xlu0 %v6109, 32
        %v6261 = vpop.permute.xlu0 %6260
        %6262 = vrot.lane.b32.xlu0 %v6110, 32
        %v6263 = vpop.permute.xlu0 %6262
        %6264 = vrot.lane.b32.xlu0 %v6111, 32
        %v6265 = vpop.permute.xlu0 %6264
        %6266 = vrot.lane.b32.xlu0 %v6112, 32
        %v6267 = vpop.permute.xlu0 %6266
        %6268 = vrot.lane.b32.xlu0 %v6113, 32
        %v6269 = vpop.permute.xlu0 %6268
        %6270 = vrot.lane.b32.xlu0 %v6114, 32
        %v6271 = vpop.permute.xlu0 %6270
        %6272 = vrot.lane.b32.xlu0 %v6115, 32
        %v6273 = vpop.permute.xlu0 %6272
        %6274 = vrot.lane.b32.xlu0 %v6116, 32
        %v6275 = vpop.permute.xlu0 %6274
        %6276 = vrot.lane.b32.xlu0 %v6117, 32
        %v6277 = vpop.permute.xlu0 %6276
        %6278 = vrot.lane.b32.xlu0 %v6118, 32
        %v6279 = vpop.permute.xlu0 %6278
        %6280 = vrot.lane.b32.xlu0 %v6119, 32
        %v6281 = vpop.permute.xlu0 %6280
        %6282 = vrot.lane.b32.xlu0 %v6120, 32
        %v6283 = vpop.permute.xlu0 %6282
        %6284 = vrot.lane.b32.xlu0 %v6121, 32
        %v6285 = vpop.permute.xlu0 %6284
        %6286 = vrot.lane.b32.xlu0 %v6122, 32
        %v6287 = vpop.permute.xlu0 %6286
        %6288 = vrot.lane.b32.xlu0 %v6123, 32
        %v6289 = vpop.permute.xlu0 %6288
        %6290 = vrot.lane.b32.xlu0 %v6124, 32
        %v6291 = vpop.permute.xlu0 %6290
        %6292 = vrot.lane.b32.xlu0 %v6125, 32
        %v6293 = vpop.permute.xlu0 %6292
        %6294 = vrot.lane.b32.xlu0 %v6126, 32
        %v6295 = vpop.permute.xlu0 %6294
        %6296 = vrot.lane.b32.xlu0 %v6127, 32
        %v6297 = vpop.permute.xlu0 %6296
        %6298 = vrot.lane.b32.xlu0 %v6128, 32
        %v6299 = vpop.permute.xlu0 %6298
        %6300 = vrot.lane.b32.xlu0 %v6129, 32
        %v6301 = vpop.permute.xlu0 %6300
        %6302 = vrot.lane.b32.xlu0 %v6130, 32
        %v6303 = vpop.permute.xlu0 %6302
        %6304 = vrot.lane.b32.xlu0 %v6131, 32
        %v6305 = vpop.permute.xlu0 %6304
        %6306 = vrot.lane.b32.xlu0 %v6132, 32
        %v6307 = vpop.permute.xlu0 %6306
        %6308 = vrot.lane.b32.xlu0 %v6133, 32
        %v6309 = vpop.permute.xlu0 %6308
        %6310 = vrot.lane.b32.xlu0 %v6134, 32
        %v6311 = vpop.permute.xlu0 %6310
        %6312 = vrot.lane.b32.xlu0 %v6135, 32
        %v6313 = vpop.permute.xlu0 %6312
        %6314 = vrot.lane.b32.xlu0 %v6136, 32
        %v6315 = vpop.permute.xlu0 %6314
        %6316 = vrot.lane.b32.xlu0 %v6137, 32
        %v6317 = vpop.permute.xlu0 %6316
        %6318 = vrot.lane.b32.xlu0 %v6138, 32
        %v6319 = vpop.permute.xlu0 %6318
        %6320 = vrot.lane.b32.xlu0 %v6139, 32
        %v6321 = vpop.permute.xlu0 %6320
        %6322 = vrot.lane.b32.xlu0 %v6140, 32
        %v6323 = vpop.permute.xlu0 %6322
        %6324 = vrot.lane.b32.xlu0 %v6141, 32
        %v6325 = vpop.permute.xlu0 %6324
        %6326 = vrot.lane.b32.xlu0 %v6142, 32
        %v6327 = vpop.permute.xlu0 %6326
        %6328 = vrot.lane.b32.xlu0 %v6143, 32
        %v6329 = vpop.permute.xlu0 %6328
        %6330 = vrot.lane.b32.xlu0 %v6144, 32
        %v6331 = vpop.permute.xlu0 %6330
        %6332 = vrot.lane.b32.xlu0 %v6145, 32
        %v6333 = vpop.permute.xlu0 %6332
        %6334 = vrot.lane.b32.xlu0 %v6146, 32
        %v6335 = vpop.permute.xlu0 %6334
        %6336 = vrot.lane.b32.xlu0 %v6147, 32
        %v6337 = vpop.permute.xlu0 %6336
        %6338 = vrot.lane.b32.xlu0 %v6148, 32
        %v6339 = vpop.permute.xlu0 %6338
        %6340 = vrot.lane.b32.xlu0 %v6149, 32
        %v6341 = vpop.permute.xlu0 %6340
        %v6406 = vmul.f32 %v5895, %v6215
        %v6407 = vmul.f32 %v5897, %v6217
        %v6408 = vmul.f32 %v5899, %v6219
        %v6409 = vmul.f32 %v5901, %v6221
        %v6410 = vmul.f32 %v5903, %v6223
        %v6411 = vmul.f32 %v5905, %v6225
        %v6412 = vmul.f32 %v5907, %v6227
        %v6413 = vmul.f32 %v5909, %v6229
        %v6414 = vmul.f32 %v5911, %v6231
        %v6415 = vmul.f32 %v5913, %v6233
        %v6416 = vmul.f32 %v5915, %v6235
        %v6417 = vmul.f32 %v5917, %v6237
        %v6418 = vmul.f32 %v5919, %v6239
        %v6419 = vmul.f32 %v5921, %v6241
        %v6420 = vmul.f32 %v5923, %v6243
        %v6421 = vmul.f32 %v5925, %v6245
        %v6422 = vmul.f32 %v5927, %v6247
        %v6423 = vmul.f32 %v5929, %v6249
        %v6424 = vmul.f32 %v5931, %v6251
        %v6425 = vmul.f32 %v5933, %v6253
        %v6426 = vmul.f32 %v5935, %v6255
        %v6427 = vmul.f32 %v5937, %v6257
        %v6428 = vmul.f32 %v5939, %v6259
        %v6429 = vmul.f32 %v5941, %v6261
        %v6430 = vmul.f32 %v5943, %v6263
        %v6431 = vmul.f32 %v5945, %v6265
        %v6432 = vmul.f32 %v5947, %v6267
        %v6433 = vmul.f32 %v5949, %v6269
        %v6434 = vmul.f32 %v5951, %v6271
        %v6435 = vmul.f32 %v5953, %v6273
        %v6436 = vmul.f32 %v5955, %v6275
        %v6437 = vmul.f32 %v5957, %v6277
        %v6438 = vmul.f32 %v5959, %v6279
        %v6439 = vmul.f32 %v5961, %v6281
        %v6440 = vmul.f32 %v5963, %v6283
        %v6441 = vmul.f32 %v5965, %v6285
        %v6442 = vmul.f32 %v5967, %v6287
        %v6443 = vmul.f32 %v5969, %v6289
        %v6444 = vmul.f32 %v5971, %v6291
        %v6445 = vmul.f32 %v5973, %v6293
        %v6446 = vmul.f32 %v5975, %v6295
        %v6447 = vmul.f32 %v5977, %v6297
        %v6448 = vmul.f32 %v5979, %v6299
        %v6449 = vmul.f32 %v5981, %v6301
        %v6450 = vmul.f32 %v5983, %v6303
        %v6451 = vmul.f32 %v5985, %v6305
        %v6452 = vmul.f32 %v5987, %v6307
        %v6453 = vmul.f32 %v5989, %v6309
        %v6454 = vmul.f32 %v5991, %v6311
        %v6455 = vmul.f32 %v5993, %v6313
        %v6456 = vmul.f32 %v5995, %v6315
        %v6457 = vmul.f32 %v5997, %v6317
        %v6458 = vmul.f32 %v5999, %v6319
        %v6459 = vmul.f32 %v6001, %v6321
        %v6460 = vmul.f32 %v6003, %v6323
        %v6461 = vmul.f32 %v6005, %v6325
        %v6462 = vmul.f32 %v6007, %v6327
        %v6463 = vmul.f32 %v6009, %v6329
        %v6464 = vmul.f32 %v6011, %v6331
        %v6465 = vmul.f32 %v6013, %v6333
        %v6466 = vmul.f32 %v6015, %v6335
        %v6467 = vmul.f32 %v6017, %v6337
        %v6468 = vmul.f32 %v6019, %v6339
        %v6469 = vmul.f32 %v6021, %v6341
        %6534 = vrot.lane.b32.xlu0 %v6022, 32
        %v6535 = vpop.permute.xlu0 %6534
        %6536 = vrot.lane.b32.xlu0 %v6023, 32
        %v6537 = vpop.permute.xlu0 %6536
        %6538 = vrot.lane.b32.xlu0 %v6024, 32
        %v6539 = vpop.permute.xlu0 %6538
        %6540 = vrot.lane.b32.xlu0 %v6025, 32
        %v6541 = vpop.permute.xlu0 %6540
        %6542 = vrot.lane.b32.xlu0 %v6026, 32
        %v6543 = vpop.permute.xlu0 %6542
        %6544 = vrot.lane.b32.xlu0 %v6027, 32
        %v6545 = vpop.permute.xlu0 %6544
        %6546 = vrot.lane.b32.xlu0 %v6028, 32
        %v6547 = vpop.permute.xlu0 %6546
        %6548 = vrot.lane.b32.xlu0 %v6029, 32
        %v6549 = vpop.permute.xlu0 %6548
        %6550 = vrot.lane.b32.xlu0 %v6030, 32
        %v6551 = vpop.permute.xlu0 %6550
        %6552 = vrot.lane.b32.xlu0 %v6031, 32
        %v6553 = vpop.permute.xlu0 %6552
        %6554 = vrot.lane.b32.xlu0 %v6032, 32
        %v6555 = vpop.permute.xlu0 %6554
        %6556 = vrot.lane.b32.xlu0 %v6033, 32
        %v6557 = vpop.permute.xlu0 %6556
        %6558 = vrot.lane.b32.xlu0 %v6034, 32
        %v6559 = vpop.permute.xlu0 %6558
        %6560 = vrot.lane.b32.xlu0 %v6035, 32
        %v6561 = vpop.permute.xlu0 %6560
        %6562 = vrot.lane.b32.xlu0 %v6036, 32
        %v6563 = vpop.permute.xlu0 %6562
        %6564 = vrot.lane.b32.xlu0 %v6037, 32
        %v6565 = vpop.permute.xlu0 %6564
        %6566 = vrot.lane.b32.xlu0 %v6038, 32
        %v6567 = vpop.permute.xlu0 %6566
        %6568 = vrot.lane.b32.xlu0 %v6039, 32
        %v6569 = vpop.permute.xlu0 %6568
        %6570 = vrot.lane.b32.xlu0 %v6040, 32
        %v6571 = vpop.permute.xlu0 %6570
        %6572 = vrot.lane.b32.xlu0 %v6041, 32
        %v6573 = vpop.permute.xlu0 %6572
        %6574 = vrot.lane.b32.xlu0 %v6042, 32
        %v6575 = vpop.permute.xlu0 %6574
        %6576 = vrot.lane.b32.xlu0 %v6043, 32
        %v6577 = vpop.permute.xlu0 %6576
        %6578 = vrot.lane.b32.xlu0 %v6044, 32
        %v6579 = vpop.permute.xlu0 %6578
        %6580 = vrot.lane.b32.xlu0 %v6045, 32
        %v6581 = vpop.permute.xlu0 %6580
        %6582 = vrot.lane.b32.xlu0 %v6046, 32
        %v6583 = vpop.permute.xlu0 %6582
        %6584 = vrot.lane.b32.xlu0 %v6047, 32
        %v6585 = vpop.permute.xlu0 %6584
        %6586 = vrot.lane.b32.xlu0 %v6048, 32
        %v6587 = vpop.permute.xlu0 %6586
        %6588 = vrot.lane.b32.xlu0 %v6049, 32
        %v6589 = vpop.permute.xlu0 %6588
        %6590 = vrot.lane.b32.xlu0 %v6050, 32
        %v6591 = vpop.permute.xlu0 %6590
        %6592 = vrot.lane.b32.xlu0 %v6051, 32
        %v6593 = vpop.permute.xlu0 %6592
        %6594 = vrot.lane.b32.xlu0 %v6052, 32
        %v6595 = vpop.permute.xlu0 %6594
        %6596 = vrot.lane.b32.xlu0 %v6053, 32
        %v6597 = vpop.permute.xlu0 %6596
        %6598 = vrot.lane.b32.xlu0 %v6054, 32
        %v6599 = vpop.permute.xlu0 %6598
        %6600 = vrot.lane.b32.xlu0 %v6055, 32
        %v6601 = vpop.permute.xlu0 %6600
        %6602 = vrot.lane.b32.xlu0 %v6056, 32
        %v6603 = vpop.permute.xlu0 %6602
        %6604 = vrot.lane.b32.xlu0 %v6057, 32
        %v6605 = vpop.permute.xlu0 %6604
        %6606 = vrot.lane.b32.xlu0 %v6058, 32
        %v6607 = vpop.permute.xlu0 %6606
        %6608 = vrot.lane.b32.xlu0 %v6059, 32
        %v6609 = vpop.permute.xlu0 %6608
        %6610 = vrot.lane.b32.xlu0 %v6060, 32
        %v6611 = vpop.permute.xlu0 %6610
        %6612 = vrot.lane.b32.xlu0 %v6061, 32
        %v6613 = vpop.permute.xlu0 %6612
        %6614 = vrot.lane.b32.xlu0 %v6062, 32
        %v6615 = vpop.permute.xlu0 %6614
        %6616 = vrot.lane.b32.xlu0 %v6063, 32
        %v6617 = vpop.permute.xlu0 %6616
        %6618 = vrot.lane.b32.xlu0 %v6064, 32
        %v6619 = vpop.permute.xlu0 %6618
        %6620 = vrot.lane.b32.xlu0 %v6065, 32
        %v6621 = vpop.permute.xlu0 %6620
        %6622 = vrot.lane.b32.xlu0 %v6066, 32
        %v6623 = vpop.permute.xlu0 %6622
        %6624 = vrot.lane.b32.xlu0 %v6067, 32
        %v6625 = vpop.permute.xlu0 %6624
        %6626 = vrot.lane.b32.xlu0 %v6068, 32
        %v6627 = vpop.permute.xlu0 %6626
        %6628 = vrot.lane.b32.xlu0 %v6069, 32
        %v6629 = vpop.permute.xlu0 %6628
        %6630 = vrot.lane.b32.xlu0 %v6070, 32
        %v6631 = vpop.permute.xlu0 %6630
        %6632 = vrot.lane.b32.xlu0 %v6071, 32
        %v6633 = vpop.permute.xlu0 %6632
        %6634 = vrot.lane.b32.xlu0 %v6072, 32
        %v6635 = vpop.permute.xlu0 %6634
        %6636 = vrot.lane.b32.xlu0 %v6073, 32
        %v6637 = vpop.permute.xlu0 %6636
        %6638 = vrot.lane.b32.xlu0 %v6074, 32
        %v6639 = vpop.permute.xlu0 %6638
        %6640 = vrot.lane.b32.xlu0 %v6075, 32
        %v6641 = vpop.permute.xlu0 %6640
        %6642 = vrot.lane.b32.xlu0 %v6076, 32
        %v6643 = vpop.permute.xlu0 %6642
        %6644 = vrot.lane.b32.xlu0 %v6077, 32
        %v6645 = vpop.permute.xlu0 %6644
        %6646 = vrot.lane.b32.xlu0 %v6078, 32
        %v6647 = vpop.permute.xlu0 %6646
        %6648 = vrot.lane.b32.xlu0 %v6079, 32
        %v6649 = vpop.permute.xlu0 %6648
        %6650 = vrot.lane.b32.xlu0 %v6080, 32
        %v6651 = vpop.permute.xlu0 %6650
        %6652 = vrot.lane.b32.xlu0 %v6081, 32
        %v6653 = vpop.permute.xlu0 %6652
        %6654 = vrot.lane.b32.xlu0 %v6082, 32
        %v6655 = vpop.permute.xlu0 %6654
        %6656 = vrot.lane.b32.xlu0 %v6083, 32
        %v6657 = vpop.permute.xlu0 %6656
        %6658 = vrot.lane.b32.xlu0 %v6084, 32
        %v6659 = vpop.permute.xlu0 %6658
        %6660 = vrot.lane.b32.xlu0 %v6085, 32
        %v6661 = vpop.permute.xlu0 %6660
        %v6726 = vmul.f32 %v5895, %v6535
        %v6727 = vmul.f32 %v5897, %v6537
        %v6728 = vmul.f32 %v5899, %v6539
        %v6729 = vmul.f32 %v5901, %v6541
        %v6730 = vmul.f32 %v5903, %v6543
        %v6731 = vmul.f32 %v5905, %v6545
        %v6732 = vmul.f32 %v5907, %v6547
        %v6733 = vmul.f32 %v5909, %v6549
        %v6734 = vmul.f32 %v5911, %v6551
        %v6735 = vmul.f32 %v5913, %v6553
        %v6736 = vmul.f32 %v5915, %v6555
        %v6737 = vmul.f32 %v5917, %v6557
        %v6738 = vmul.f32 %v5919, %v6559
        %v6739 = vmul.f32 %v5921, %v6561
        %v6740 = vmul.f32 %v5923, %v6563
        %v6741 = vmul.f32 %v5925, %v6565
        %v6742 = vmul.f32 %v5927, %v6567
        %v6743 = vmul.f32 %v5929, %v6569
        %v6744 = vmul.f32 %v5931, %v6571
        %v6745 = vmul.f32 %v5933, %v6573
        %v6746 = vmul.f32 %v5935, %v6575
        %v6747 = vmul.f32 %v5937, %v6577
        %v6748 = vmul.f32 %v5939, %v6579
        %v6749 = vmul.f32 %v5941, %v6581
        %v6750 = vmul.f32 %v5943, %v6583
        %v6751 = vmul.f32 %v5945, %v6585
        %v6752 = vmul.f32 %v5947, %v6587
        %v6753 = vmul.f32 %v5949, %v6589
        %v6754 = vmul.f32 %v5951, %v6591
        %v6755 = vmul.f32 %v5953, %v6593
        %v6756 = vmul.f32 %v5955, %v6595
        %v6757 = vmul.f32 %v5957, %v6597
        %v6758 = vmul.f32 %v5959, %v6599
        %v6759 = vmul.f32 %v5961, %v6601
        %v6760 = vmul.f32 %v5963, %v6603
        %v6761 = vmul.f32 %v5965, %v6605
        %v6762 = vmul.f32 %v5967, %v6607
        %v6763 = vmul.f32 %v5969, %v6609
        %v6764 = vmul.f32 %v5971, %v6611
        %v6765 = vmul.f32 %v5973, %v6613
        %v6766 = vmul.f32 %v5975, %v6615
        %v6767 = vmul.f32 %v5977, %v6617
        %v6768 = vmul.f32 %v5979, %v6619
        %v6769 = vmul.f32 %v5981, %v6621
        %v6770 = vmul.f32 %v5983, %v6623
        %v6771 = vmul.f32 %v5985, %v6625
        %v6772 = vmul.f32 %v5987, %v6627
        %v6773 = vmul.f32 %v5989, %v6629
        %v6774 = vmul.f32 %v5991, %v6631
        %v6775 = vmul.f32 %v5993, %v6633
        %v6776 = vmul.f32 %v5995, %v6635
        %v6777 = vmul.f32 %v5997, %v6637
        %v6778 = vmul.f32 %v5999, %v6639
        %v6779 = vmul.f32 %v6001, %v6641
        %v6780 = vmul.f32 %v6003, %v6643
        %v6781 = vmul.f32 %v6005, %v6645
        %v6782 = vmul.f32 %v6007, %v6647
        %v6783 = vmul.f32 %v6009, %v6649
        %v6784 = vmul.f32 %v6011, %v6651
        %v6785 = vmul.f32 %v6013, %v6653
        %v6786 = vmul.f32 %v6015, %v6655
        %v6787 = vmul.f32 %v6017, %v6657
        %v6788 = vmul.f32 %v6019, %v6659
        %v6789 = vmul.f32 %v6021, %v6661
        %6854 = vrot.lane.b32.xlu0 %v6726, 32
        %v6855 = vpop.permute.xlu0 %6854
        %6856 = vrot.lane.b32.xlu0 %v6727, 32
        %v6857 = vpop.permute.xlu0 %6856
        %6858 = vrot.lane.b32.xlu0 %v6728, 32
        %v6859 = vpop.permute.xlu0 %6858
        %6860 = vrot.lane.b32.xlu0 %v6729, 32
        %v6861 = vpop.permute.xlu0 %6860
        %6862 = vrot.lane.b32.xlu0 %v6730, 32
        %v6863 = vpop.permute.xlu0 %6862
        %6864 = vrot.lane.b32.xlu0 %v6731, 32
        %v6865 = vpop.permute.xlu0 %6864
        %6866 = vrot.lane.b32.xlu0 %v6732, 32
        %v6867 = vpop.permute.xlu0 %6866
        %6868 = vrot.lane.b32.xlu0 %v6733, 32
        %v6869 = vpop.permute.xlu0 %6868
        %6870 = vrot.lane.b32.xlu0 %v6734, 32
        %v6871 = vpop.permute.xlu0 %6870
        %6872 = vrot.lane.b32.xlu0 %v6735, 32
        %v6873 = vpop.permute.xlu0 %6872
        %6874 = vrot.lane.b32.xlu0 %v6736, 32
        %v6875 = vpop.permute.xlu0 %6874
        %6876 = vrot.lane.b32.xlu0 %v6737, 32
        %v6877 = vpop.permute.xlu0 %6876
        %6878 = vrot.lane.b32.xlu0 %v6738, 32
        %v6879 = vpop.permute.xlu0 %6878
        %6880 = vrot.lane.b32.xlu0 %v6739, 32
        %v6881 = vpop.permute.xlu0 %6880
        %6882 = vrot.lane.b32.xlu0 %v6740, 32
        %v6883 = vpop.permute.xlu0 %6882
        %6884 = vrot.lane.b32.xlu0 %v6741, 32
        %v6885 = vpop.permute.xlu0 %6884
        %6886 = vrot.lane.b32.xlu0 %v6742, 32
        %v6887 = vpop.permute.xlu0 %6886
        %6888 = vrot.lane.b32.xlu0 %v6743, 32
        %v6889 = vpop.permute.xlu0 %6888
        %6890 = vrot.lane.b32.xlu0 %v6744, 32
        %v6891 = vpop.permute.xlu0 %6890
        %6892 = vrot.lane.b32.xlu0 %v6745, 32
        %v6893 = vpop.permute.xlu0 %6892
        %6894 = vrot.lane.b32.xlu0 %v6746, 32
        %v6895 = vpop.permute.xlu0 %6894
        %6896 = vrot.lane.b32.xlu0 %v6747, 32
        %v6897 = vpop.permute.xlu0 %6896
        %6898 = vrot.lane.b32.xlu0 %v6748, 32
        %v6899 = vpop.permute.xlu0 %6898
        %6900 = vrot.lane.b32.xlu0 %v6749, 32
        %v6901 = vpop.permute.xlu0 %6900
        %6902 = vrot.lane.b32.xlu0 %v6750, 32
        %v6903 = vpop.permute.xlu0 %6902
        %6904 = vrot.lane.b32.xlu0 %v6751, 32
        %v6905 = vpop.permute.xlu0 %6904
        %6906 = vrot.lane.b32.xlu0 %v6752, 32
        %v6907 = vpop.permute.xlu0 %6906
        %6908 = vrot.lane.b32.xlu0 %v6753, 32
        %v6909 = vpop.permute.xlu0 %6908
        %6910 = vrot.lane.b32.xlu0 %v6754, 32
        %v6911 = vpop.permute.xlu0 %6910
        %6912 = vrot.lane.b32.xlu0 %v6755, 32
        %v6913 = vpop.permute.xlu0 %6912
        %6914 = vrot.lane.b32.xlu0 %v6756, 32
        %v6915 = vpop.permute.xlu0 %6914
        %6916 = vrot.lane.b32.xlu0 %v6757, 32
        %v6917 = vpop.permute.xlu0 %6916
        %6918 = vrot.lane.b32.xlu0 %v6758, 32
        %v6919 = vpop.permute.xlu0 %6918
        %6920 = vrot.lane.b32.xlu0 %v6759, 32
        %v6921 = vpop.permute.xlu0 %6920
        %6922 = vrot.lane.b32.xlu0 %v6760, 32
        %v6923 = vpop.permute.xlu0 %6922
        %6924 = vrot.lane.b32.xlu0 %v6761, 32
        %v6925 = vpop.permute.xlu0 %6924
        %6926 = vrot.lane.b32.xlu0 %v6762, 32
        %v6927 = vpop.permute.xlu0 %6926
        %6928 = vrot.lane.b32.xlu0 %v6763, 32
        %v6929 = vpop.permute.xlu0 %6928
        %6930 = vrot.lane.b32.xlu0 %v6764, 32
        %v6931 = vpop.permute.xlu0 %6930
        %6932 = vrot.lane.b32.xlu0 %v6765, 32
        %v6933 = vpop.permute.xlu0 %6932
        %6934 = vrot.lane.b32.xlu0 %v6766, 32
        %v6935 = vpop.permute.xlu0 %6934
        %6936 = vrot.lane.b32.xlu0 %v6767, 32
        %v6937 = vpop.permute.xlu0 %6936
        %6938 = vrot.lane.b32.xlu0 %v6768, 32
        %v6939 = vpop.permute.xlu0 %6938
        %6940 = vrot.lane.b32.xlu0 %v6769, 32
        %v6941 = vpop.permute.xlu0 %6940
        %6942 = vrot.lane.b32.xlu0 %v6770, 32
        %v6943 = vpop.permute.xlu0 %6942
        %6944 = vrot.lane.b32.xlu0 %v6771, 32
        %v6945 = vpop.permute.xlu0 %6944
        %6946 = vrot.lane.b32.xlu0 %v6772, 32
        %v6947 = vpop.permute.xlu0 %6946
        %6948 = vrot.lane.b32.xlu0 %v6773, 32
        %v6949 = vpop.permute.xlu0 %6948
        %6950 = vrot.lane.b32.xlu0 %v6774, 32
        %v6951 = vpop.permute.xlu0 %6950
        %6952 = vrot.lane.b32.xlu0 %v6775, 32
        %v6953 = vpop.permute.xlu0 %6952
        %6954 = vrot.lane.b32.xlu0 %v6776, 32
        %v6955 = vpop.permute.xlu0 %6954
        %6956 = vrot.lane.b32.xlu0 %v6777, 32
        %v6957 = vpop.permute.xlu0 %6956
        %6958 = vrot.lane.b32.xlu0 %v6778, 32
        %v6959 = vpop.permute.xlu0 %6958
        %6960 = vrot.lane.b32.xlu0 %v6779, 32
        %v6961 = vpop.permute.xlu0 %6960
        %6962 = vrot.lane.b32.xlu0 %v6780, 32
        %v6963 = vpop.permute.xlu0 %6962
        %6964 = vrot.lane.b32.xlu0 %v6781, 32
        %v6965 = vpop.permute.xlu0 %6964
        %6966 = vrot.lane.b32.xlu0 %v6782, 32
        %v6967 = vpop.permute.xlu0 %6966
        %6968 = vrot.lane.b32.xlu0 %v6783, 32
        %v6969 = vpop.permute.xlu0 %6968
        %6970 = vrot.lane.b32.xlu0 %v6784, 32
        %v6971 = vpop.permute.xlu0 %6970
        %6972 = vrot.lane.b32.xlu0 %v6785, 32
        %v6973 = vpop.permute.xlu0 %6972
        %6974 = vrot.lane.b32.xlu0 %v6786, 32
        %v6975 = vpop.permute.xlu0 %6974
        %6976 = vrot.lane.b32.xlu0 %v6787, 32
        %v6977 = vpop.permute.xlu0 %6976
        %6978 = vrot.lane.b32.xlu0 %v6788, 32
        %v6979 = vpop.permute.xlu0 %6978
        %6980 = vrot.lane.b32.xlu0 %v6789, 32
        %v6981 = vpop.permute.xlu0 %6980
        %v7046 = vadd.f32 %v6406, %v6855
        %v7047 = vadd.f32 %v6407, %v6857
        %v7048 = vadd.f32 %v6408, %v6859
        %v7049 = vadd.f32 %v6409, %v6861
        %v7050 = vadd.f32 %v6410, %v6863
        %v7051 = vadd.f32 %v6411, %v6865
        %v7052 = vadd.f32 %v6412, %v6867
        %v7053 = vadd.f32 %v6413, %v6869
        %v7054 = vadd.f32 %v6414, %v6871
        %v7055 = vadd.f32 %v6415, %v6873
        %v7056 = vadd.f32 %v6416, %v6875
        %v7057 = vadd.f32 %v6417, %v6877
        %v7058 = vadd.f32 %v6418, %v6879
        %v7059 = vadd.f32 %v6419, %v6881
        %v7060 = vadd.f32 %v6420, %v6883
        %v7061 = vadd.f32 %v6421, %v6885
        %v7062 = vadd.f32 %v6422, %v6887
        %v7063 = vadd.f32 %v6423, %v6889
        %v7064 = vadd.f32 %v6424, %v6891
        %v7065 = vadd.f32 %v6425, %v6893
        %v7066 = vadd.f32 %v6426, %v6895
        %v7067 = vadd.f32 %v6427, %v6897
        %v7068 = vadd.f32 %v6428, %v6899
        %v7069 = vadd.f32 %v6429, %v6901
        %v7070 = vadd.f32 %v6430, %v6903
        %v7071 = vadd.f32 %v6431, %v6905
        %v7072 = vadd.f32 %v6432, %v6907
        %v7073 = vadd.f32 %v6433, %v6909
        %v7074 = vadd.f32 %v6434, %v6911
        %v7075 = vadd.f32 %v6435, %v6913
        %v7076 = vadd.f32 %v6436, %v6915
        %v7077 = vadd.f32 %v6437, %v6917
        %v7078 = vadd.f32 %v6438, %v6919
        %v7079 = vadd.f32 %v6439, %v6921
        %v7080 = vadd.f32 %v6440, %v6923
        %v7081 = vadd.f32 %v6441, %v6925
        %v7082 = vadd.f32 %v6442, %v6927
        %v7083 = vadd.f32 %v6443, %v6929
        %v7084 = vadd.f32 %v6444, %v6931
        %v7085 = vadd.f32 %v6445, %v6933
        %v7086 = vadd.f32 %v6446, %v6935
        %v7087 = vadd.f32 %v6447, %v6937
        %v7088 = vadd.f32 %v6448, %v6939
        %v7089 = vadd.f32 %v6449, %v6941
        %v7090 = vadd.f32 %v6450, %v6943
        %v7091 = vadd.f32 %v6451, %v6945
        %v7092 = vadd.f32 %v6452, %v6947
        %v7093 = vadd.f32 %v6453, %v6949
        %v7094 = vadd.f32 %v6454, %v6951
        %v7095 = vadd.f32 %v6455, %v6953
        %v7096 = vadd.f32 %v6456, %v6955
        %v7097 = vadd.f32 %v6457, %v6957
        %v7098 = vadd.f32 %v6458, %v6959
        %v7099 = vadd.f32 %v6459, %v6961
        %v7100 = vadd.f32 %v6460, %v6963
        %v7101 = vadd.f32 %v6461, %v6965
        %v7102 = vadd.f32 %v6462, %v6967
        %v7103 = vadd.f32 %v6463, %v6969
        %v7104 = vadd.f32 %v6464, %v6971
        %v7105 = vadd.f32 %v6465, %v6973
        %v7106 = vadd.f32 %v6466, %v6975
        %v7107 = vadd.f32 %v6467, %v6977
        %v7108 = vadd.f32 %v6468, %v6979
        %v7109 = vadd.f32 %v6469, %v6981
        %v7110 = vtanh.pop %v7046
        %v7111 = vtanh.pop %v7047
        %v7112 = vtanh.pop %v7048
        %v7113 = vtanh.pop %v7049
        %v7114 = vtanh.pop %v7050
        %v7115 = vtanh.pop %v7051
        %v7116 = vtanh.pop %v7052
        %v7117 = vtanh.pop %v7053
        %v7118 = vtanh.pop %v7054
        %v7119 = vtanh.pop %v7055
        %v7120 = vtanh.pop %v7056
        %v7121 = vtanh.pop %v7057
        %v7122 = vtanh.pop %v7058
        %v7123 = vtanh.pop %v7059
        %v7124 = vtanh.pop %v7060
        %v7125 = vtanh.pop %v7061
        %v7126 = vtanh.pop %v7062
        %v7127 = vtanh.pop %v7063
        %v7128 = vtanh.pop %v7064
        %v7129 = vtanh.pop %v7065
        %v7130 = vtanh.pop %v7066
        %v7131 = vtanh.pop %v7067
        %v7132 = vtanh.pop %v7068
        %v7133 = vtanh.pop %v7069
        %v7134 = vtanh.pop %v7070
        %v7135 = vtanh.pop %v7071
        %v7136 = vtanh.pop %v7072
        %v7137 = vtanh.pop %v7073
        %v7138 = vtanh.pop %v7074
        %v7139 = vtanh.pop %v7075
        %v7140 = vtanh.pop %v7076
        %v7141 = vtanh.pop %v7077
        %v7142 = vtanh.pop %v7078
        %v7143 = vtanh.pop %v7079
        %v7144 = vtanh.pop %v7080
        %v7145 = vtanh.pop %v7081
        %v7146 = vtanh.pop %v7082
        %v7147 = vtanh.pop %v7083
        %v7148 = vtanh.pop %v7084
        %v7149 = vtanh.pop %v7085
        %v7150 = vtanh.pop %v7086
        %v7151 = vtanh.pop %v7087
        %v7152 = vtanh.pop %v7088
        %v7153 = vtanh.pop %v7089
        %v7154 = vtanh.pop %v7090
        %v7155 = vtanh.pop %v7091
        %v7156 = vtanh.pop %v7092
        %v7157 = vtanh.pop %v7093
        %v7158 = vtanh.pop %v7094
        %v7159 = vtanh.pop %v7095
        %v7160 = vtanh.pop %v7096
        %v7161 = vtanh.pop %v7097
        %v7162 = vtanh.pop %v7098
        %v7163 = vtanh.pop %v7099
        %v7164 = vtanh.pop %v7100
        %v7165 = vtanh.pop %v7101
        %v7166 = vtanh.pop %v7102
        %v7167 = vtanh.pop %v7103
        %v7168 = vtanh.pop %v7104
        %v7169 = vtanh.pop %v7105
        %v7170 = vtanh.pop %v7106
        %v7171 = vtanh.pop %v7107
        %v7172 = vtanh.pop %v7108
        %v7173 = vtanh.pop %v7109
        %7238 = vrot.lane.b32.xlu0 %v7110, 32
        %v7239 = vpop.permute.xlu0 %7238
        %7240 = vrot.lane.b32.xlu0 %v7111, 32
        %v7241 = vpop.permute.xlu0 %7240
        %7242 = vrot.lane.b32.xlu0 %v7112, 32
        %v7243 = vpop.permute.xlu0 %7242
        %7244 = vrot.lane.b32.xlu0 %v7113, 32
        %v7245 = vpop.permute.xlu0 %7244
        %7246 = vrot.lane.b32.xlu0 %v7114, 32
        %v7247 = vpop.permute.xlu0 %7246
        %7248 = vrot.lane.b32.xlu0 %v7115, 32
        %v7249 = vpop.permute.xlu0 %7248
        %7250 = vrot.lane.b32.xlu0 %v7116, 32
        %v7251 = vpop.permute.xlu0 %7250
        %7252 = vrot.lane.b32.xlu0 %v7117, 32
        %v7253 = vpop.permute.xlu0 %7252
        %7254 = vrot.lane.b32.xlu0 %v7118, 32
        %v7255 = vpop.permute.xlu0 %7254
        %7256 = vrot.lane.b32.xlu0 %v7119, 32
        %v7257 = vpop.permute.xlu0 %7256
        %7258 = vrot.lane.b32.xlu0 %v7120, 32
        %v7259 = vpop.permute.xlu0 %7258
        %7260 = vrot.lane.b32.xlu0 %v7121, 32
        %v7261 = vpop.permute.xlu0 %7260
        %7262 = vrot.lane.b32.xlu0 %v7122, 32
        %v7263 = vpop.permute.xlu0 %7262
        %7264 = vrot.lane.b32.xlu0 %v7123, 32
        %v7265 = vpop.permute.xlu0 %7264
        %7266 = vrot.lane.b32.xlu0 %v7124, 32
        %v7267 = vpop.permute.xlu0 %7266
        %7268 = vrot.lane.b32.xlu0 %v7125, 32
        %v7269 = vpop.permute.xlu0 %7268
        %7270 = vrot.lane.b32.xlu0 %v7126, 32
        %v7271 = vpop.permute.xlu0 %7270
        %7272 = vrot.lane.b32.xlu0 %v7127, 32
        %v7273 = vpop.permute.xlu0 %7272
        %7274 = vrot.lane.b32.xlu0 %v7128, 32
        %v7275 = vpop.permute.xlu0 %7274
        %7276 = vrot.lane.b32.xlu0 %v7129, 32
        %v7277 = vpop.permute.xlu0 %7276
        %7278 = vrot.lane.b32.xlu0 %v7130, 32
        %v7279 = vpop.permute.xlu0 %7278
        %7280 = vrot.lane.b32.xlu0 %v7131, 32
        %v7281 = vpop.permute.xlu0 %7280
        %7282 = vrot.lane.b32.xlu0 %v7132, 32
        %v7283 = vpop.permute.xlu0 %7282
        %7284 = vrot.lane.b32.xlu0 %v7133, 32
        %v7285 = vpop.permute.xlu0 %7284
        %7286 = vrot.lane.b32.xlu0 %v7134, 32
        %v7287 = vpop.permute.xlu0 %7286
        %7288 = vrot.lane.b32.xlu0 %v7135, 32
        %v7289 = vpop.permute.xlu0 %7288
        %7290 = vrot.lane.b32.xlu0 %v7136, 32
        %v7291 = vpop.permute.xlu0 %7290
        %7292 = vrot.lane.b32.xlu0 %v7137, 32
        %v7293 = vpop.permute.xlu0 %7292
        %7294 = vrot.lane.b32.xlu0 %v7138, 32
        %v7295 = vpop.permute.xlu0 %7294
        %7296 = vrot.lane.b32.xlu0 %v7139, 32
        %v7297 = vpop.permute.xlu0 %7296
        %7298 = vrot.lane.b32.xlu0 %v7140, 32
        %v7299 = vpop.permute.xlu0 %7298
        %7300 = vrot.lane.b32.xlu0 %v7141, 32
        %v7301 = vpop.permute.xlu0 %7300
        %7302 = vrot.lane.b32.xlu0 %v7142, 32
        %v7303 = vpop.permute.xlu0 %7302
        %7304 = vrot.lane.b32.xlu0 %v7143, 32
        %v7305 = vpop.permute.xlu0 %7304
        %7306 = vrot.lane.b32.xlu0 %v7144, 32
        %v7307 = vpop.permute.xlu0 %7306
        %7308 = vrot.lane.b32.xlu0 %v7145, 32
        %v7309 = vpop.permute.xlu0 %7308
        %7310 = vrot.lane.b32.xlu0 %v7146, 32
        %v7311 = vpop.permute.xlu0 %7310
        %7312 = vrot.lane.b32.xlu0 %v7147, 32
        %v7313 = vpop.permute.xlu0 %7312
        %7314 = vrot.lane.b32.xlu0 %v7148, 32
        %v7315 = vpop.permute.xlu0 %7314
        %7316 = vrot.lane.b32.xlu0 %v7149, 32
        %v7317 = vpop.permute.xlu0 %7316
        %7318 = vrot.lane.b32.xlu0 %v7150, 32
        %v7319 = vpop.permute.xlu0 %7318
        %7320 = vrot.lane.b32.xlu0 %v7151, 32
        %v7321 = vpop.permute.xlu0 %7320
        %7322 = vrot.lane.b32.xlu0 %v7152, 32
        %v7323 = vpop.permute.xlu0 %7322
        %7324 = vrot.lane.b32.xlu0 %v7153, 32
        %v7325 = vpop.permute.xlu0 %7324
        %7326 = vrot.lane.b32.xlu0 %v7154, 32
        %v7327 = vpop.permute.xlu0 %7326
        %7328 = vrot.lane.b32.xlu0 %v7155, 32
        %v7329 = vpop.permute.xlu0 %7328
        %7330 = vrot.lane.b32.xlu0 %v7156, 32
        %v7331 = vpop.permute.xlu0 %7330
        %7332 = vrot.lane.b32.xlu0 %v7157, 32
        %v7333 = vpop.permute.xlu0 %7332
        %7334 = vrot.lane.b32.xlu0 %v7158, 32
        %v7335 = vpop.permute.xlu0 %7334
        %7336 = vrot.lane.b32.xlu0 %v7159, 32
        %v7337 = vpop.permute.xlu0 %7336
        %7338 = vrot.lane.b32.xlu0 %v7160, 32
        %v7339 = vpop.permute.xlu0 %7338
        %7340 = vrot.lane.b32.xlu0 %v7161, 32
        %v7341 = vpop.permute.xlu0 %7340
        %7342 = vrot.lane.b32.xlu0 %v7162, 32
        %v7343 = vpop.permute.xlu0 %7342
        %7344 = vrot.lane.b32.xlu0 %v7163, 32
        %v7345 = vpop.permute.xlu0 %7344
        %7346 = vrot.lane.b32.xlu0 %v7164, 32
        %v7347 = vpop.permute.xlu0 %7346
        %7348 = vrot.lane.b32.xlu0 %v7165, 32
        %v7349 = vpop.permute.xlu0 %7348
        %7350 = vrot.lane.b32.xlu0 %v7166, 32
        %v7351 = vpop.permute.xlu0 %7350
        %7352 = vrot.lane.b32.xlu0 %v7167, 32
        %v7353 = vpop.permute.xlu0 %7352
        %7354 = vrot.lane.b32.xlu0 %v7168, 32
        %v7355 = vpop.permute.xlu0 %7354
        %7356 = vrot.lane.b32.xlu0 %v7169, 32
        %v7357 = vpop.permute.xlu0 %7356
        %7358 = vrot.lane.b32.xlu0 %v7170, 32
        %v7359 = vpop.permute.xlu0 %7358
        %7360 = vrot.lane.b32.xlu0 %v7171, 32
        %v7361 = vpop.permute.xlu0 %7360
        %7362 = vrot.lane.b32.xlu0 %v7172, 32
        %v7363 = vpop.permute.xlu0 %7362
        %7364 = vrot.lane.b32.xlu0 %v7173, 32
        %v7365 = vpop.permute.xlu0 %7364
        %v7430 = vmul.f32 %v5895, %v7239
        %v7431 = vmul.f32 %v5897, %v7241
        %v7432 = vmul.f32 %v5899, %v7243
        %v7433 = vmul.f32 %v5901, %v7245
        %v7434 = vmul.f32 %v5903, %v7247
        %v7435 = vmul.f32 %v5905, %v7249
        %v7436 = vmul.f32 %v5907, %v7251
        %v7437 = vmul.f32 %v5909, %v7253
        %v7438 = vmul.f32 %v5911, %v7255
        %v7439 = vmul.f32 %v5913, %v7257
        %v7440 = vmul.f32 %v5915, %v7259
        %v7441 = vmul.f32 %v5917, %v7261
        %v7442 = vmul.f32 %v5919, %v7263
        %v7443 = vmul.f32 %v5921, %v7265
        %v7444 = vmul.f32 %v5923, %v7267
        %v7445 = vmul.f32 %v5925, %v7269
        %v7446 = vmul.f32 %v5927, %v7271
        %v7447 = vmul.f32 %v5929, %v7273
        %v7448 = vmul.f32 %v5931, %v7275
        %v7449 = vmul.f32 %v5933, %v7277
        %v7450 = vmul.f32 %v5935, %v7279
        %v7451 = vmul.f32 %v5937, %v7281
        %v7452 = vmul.f32 %v5939, %v7283
        %v7453 = vmul.f32 %v5941, %v7285
        %v7454 = vmul.f32 %v5943, %v7287
        %v7455 = vmul.f32 %v5945, %v7289
        %v7456 = vmul.f32 %v5947, %v7291
        %v7457 = vmul.f32 %v5949, %v7293
        %v7458 = vmul.f32 %v5951, %v7295
        %v7459 = vmul.f32 %v5953, %v7297
        %v7460 = vmul.f32 %v5955, %v7299
        %v7461 = vmul.f32 %v5957, %v7301
        %v7462 = vmul.f32 %v5959, %v7303
        %v7463 = vmul.f32 %v5961, %v7305
        %v7464 = vmul.f32 %v5963, %v7307
        %v7465 = vmul.f32 %v5965, %v7309
        %v7466 = vmul.f32 %v5967, %v7311
        %v7467 = vmul.f32 %v5969, %v7313
        %v7468 = vmul.f32 %v5971, %v7315
        %v7469 = vmul.f32 %v5973, %v7317
        %v7470 = vmul.f32 %v5975, %v7319
        %v7471 = vmul.f32 %v5977, %v7321
        %v7472 = vmul.f32 %v5979, %v7323
        %v7473 = vmul.f32 %v5981, %v7325
        %v7474 = vmul.f32 %v5983, %v7327
        %v7475 = vmul.f32 %v5985, %v7329
        %v7476 = vmul.f32 %v5987, %v7331
        %v7477 = vmul.f32 %v5989, %v7333
        %v7478 = vmul.f32 %v5991, %v7335
        %v7479 = vmul.f32 %v5993, %v7337
        %v7480 = vmul.f32 %v5995, %v7339
        %v7481 = vmul.f32 %v5997, %v7341
        %v7482 = vmul.f32 %v5999, %v7343
        %v7483 = vmul.f32 %v6001, %v7345
        %v7484 = vmul.f32 %v6003, %v7347
        %v7485 = vmul.f32 %v6005, %v7349
        %v7486 = vmul.f32 %v6007, %v7351
        %v7487 = vmul.f32 %v6009, %v7353
        %v7488 = vmul.f32 %v6011, %v7355
        %v7489 = vmul.f32 %v6013, %v7357
        %v7490 = vmul.f32 %v6015, %v7359
        %v7491 = vmul.f32 %v6017, %v7361
        %v7492 = vmul.f32 %v6019, %v7363
        %v7493 = vmul.f32 %v6021, %v7365
        %7558 = vrot.lane.b32.xlu0 %v7046, 96
        %v7559 = vpop.permute.xlu0 %7558
        %7560 = vrot.lane.b32.xlu0 %v7047, 96
        %v7561 = vpop.permute.xlu0 %7560
        %7562 = vrot.lane.b32.xlu0 %v7048, 96
        %v7563 = vpop.permute.xlu0 %7562
        %7564 = vrot.lane.b32.xlu0 %v7049, 96
        %v7565 = vpop.permute.xlu0 %7564
        %7566 = vrot.lane.b32.xlu0 %v7050, 96
        %v7567 = vpop.permute.xlu0 %7566
        %7568 = vrot.lane.b32.xlu0 %v7051, 96
        %v7569 = vpop.permute.xlu0 %7568
        %7570 = vrot.lane.b32.xlu0 %v7052, 96
        %v7571 = vpop.permute.xlu0 %7570
        %7572 = vrot.lane.b32.xlu0 %v7053, 96
        %v7573 = vpop.permute.xlu0 %7572
        %7574 = vrot.lane.b32.xlu0 %v7054, 96
        %v7575 = vpop.permute.xlu0 %7574
        %7576 = vrot.lane.b32.xlu0 %v7055, 96
        %v7577 = vpop.permute.xlu0 %7576
        %7578 = vrot.lane.b32.xlu0 %v7056, 96
        %v7579 = vpop.permute.xlu0 %7578
        %7580 = vrot.lane.b32.xlu0 %v7057, 96
        %v7581 = vpop.permute.xlu0 %7580
        %7582 = vrot.lane.b32.xlu0 %v7058, 96
        %v7583 = vpop.permute.xlu0 %7582
        %7584 = vrot.lane.b32.xlu0 %v7059, 96
        %v7585 = vpop.permute.xlu0 %7584
        %7586 = vrot.lane.b32.xlu0 %v7060, 96
        %v7587 = vpop.permute.xlu0 %7586
        %7588 = vrot.lane.b32.xlu0 %v7061, 96
        %v7589 = vpop.permute.xlu0 %7588
        %7590 = vrot.lane.b32.xlu0 %v7062, 96
        %v7591 = vpop.permute.xlu0 %7590
        %7592 = vrot.lane.b32.xlu0 %v7063, 96
        %v7593 = vpop.permute.xlu0 %7592
        %7594 = vrot.lane.b32.xlu0 %v7064, 96
        %v7595 = vpop.permute.xlu0 %7594
        %7596 = vrot.lane.b32.xlu0 %v7065, 96
        %v7597 = vpop.permute.xlu0 %7596
        %7598 = vrot.lane.b32.xlu0 %v7066, 96
        %v7599 = vpop.permute.xlu0 %7598
        %7600 = vrot.lane.b32.xlu0 %v7067, 96
        %v7601 = vpop.permute.xlu0 %7600
        %7602 = vrot.lane.b32.xlu0 %v7068, 96
        %v7603 = vpop.permute.xlu0 %7602
        %7604 = vrot.lane.b32.xlu0 %v7069, 96
        %v7605 = vpop.permute.xlu0 %7604
        %7606 = vrot.lane.b32.xlu0 %v7070, 96
        %v7607 = vpop.permute.xlu0 %7606
        %7608 = vrot.lane.b32.xlu0 %v7071, 96
        %v7609 = vpop.permute.xlu0 %7608
        %7610 = vrot.lane.b32.xlu0 %v7072, 96
        %v7611 = vpop.permute.xlu0 %7610
        %7612 = vrot.lane.b32.xlu0 %v7073, 96
        %v7613 = vpop.permute.xlu0 %7612
        %7614 = vrot.lane.b32.xlu0 %v7074, 96
        %v7615 = vpop.permute.xlu0 %7614
        %7616 = vrot.lane.b32.xlu0 %v7075, 96
        %v7617 = vpop.permute.xlu0 %7616
        %7618 = vrot.lane.b32.xlu0 %v7076, 96
        %v7619 = vpop.permute.xlu0 %7618
        %7620 = vrot.lane.b32.xlu0 %v7077, 96
        %v7621 = vpop.permute.xlu0 %7620
        %7622 = vrot.lane.b32.xlu0 %v7078, 96
        %v7623 = vpop.permute.xlu0 %7622
        %7624 = vrot.lane.b32.xlu0 %v7079, 96
        %v7625 = vpop.permute.xlu0 %7624
        %7626 = vrot.lane.b32.xlu0 %v7080, 96
        %v7627 = vpop.permute.xlu0 %7626
        %7628 = vrot.lane.b32.xlu0 %v7081, 96
        %v7629 = vpop.permute.xlu0 %7628
        %7630 = vrot.lane.b32.xlu0 %v7082, 96
        %v7631 = vpop.permute.xlu0 %7630
        %7632 = vrot.lane.b32.xlu0 %v7083, 96
        %v7633 = vpop.permute.xlu0 %7632
        %7634 = vrot.lane.b32.xlu0 %v7084, 96
        %v7635 = vpop.permute.xlu0 %7634
        %7636 = vrot.lane.b32.xlu0 %v7085, 96
        %v7637 = vpop.permute.xlu0 %7636
        %7638 = vrot.lane.b32.xlu0 %v7086, 96
        %v7639 = vpop.permute.xlu0 %7638
        %7640 = vrot.lane.b32.xlu0 %v7087, 96
        %v7641 = vpop.permute.xlu0 %7640
        %7642 = vrot.lane.b32.xlu0 %v7088, 96
        %v7643 = vpop.permute.xlu0 %7642
        %7644 = vrot.lane.b32.xlu0 %v7089, 96
        %v7645 = vpop.permute.xlu0 %7644
        %7646 = vrot.lane.b32.xlu0 %v7090, 96
        %v7647 = vpop.permute.xlu0 %7646
        %7648 = vrot.lane.b32.xlu0 %v7091, 96
        %v7649 = vpop.permute.xlu0 %7648
        %7650 = vrot.lane.b32.xlu0 %v7092, 96
        %v7651 = vpop.permute.xlu0 %7650
        %7652 = vrot.lane.b32.xlu0 %v7093, 96
        %v7653 = vpop.permute.xlu0 %7652
        %7654 = vrot.lane.b32.xlu0 %v7094, 96
        %v7655 = vpop.permute.xlu0 %7654
        %7656 = vrot.lane.b32.xlu0 %v7095, 96
        %v7657 = vpop.permute.xlu0 %7656
        %7658 = vrot.lane.b32.xlu0 %v7096, 96
        %v7659 = vpop.permute.xlu0 %7658
        %7660 = vrot.lane.b32.xlu0 %v7097, 96
        %v7661 = vpop.permute.xlu0 %7660
        %7662 = vrot.lane.b32.xlu0 %v7098, 96
        %v7663 = vpop.permute.xlu0 %7662
        %7664 = vrot.lane.b32.xlu0 %v7099, 96
        %v7665 = vpop.permute.xlu0 %7664
        %7666 = vrot.lane.b32.xlu0 %v7100, 96
        %v7667 = vpop.permute.xlu0 %7666
        %7668 = vrot.lane.b32.xlu0 %v7101, 96
        %v7669 = vpop.permute.xlu0 %7668
        %7670 = vrot.lane.b32.xlu0 %v7102, 96
        %v7671 = vpop.permute.xlu0 %7670
        %7672 = vrot.lane.b32.xlu0 %v7103, 96
        %v7673 = vpop.permute.xlu0 %7672
        %7674 = vrot.lane.b32.xlu0 %v7104, 96
        %v7675 = vpop.permute.xlu0 %7674
        %7676 = vrot.lane.b32.xlu0 %v7105, 96
        %v7677 = vpop.permute.xlu0 %7676
        %7678 = vrot.lane.b32.xlu0 %v7106, 96
        %v7679 = vpop.permute.xlu0 %7678
        %7680 = vrot.lane.b32.xlu0 %v7107, 96
        %v7681 = vpop.permute.xlu0 %7680
        %7682 = vrot.lane.b32.xlu0 %v7108, 96
        %v7683 = vpop.permute.xlu0 %7682
        %7684 = vrot.lane.b32.xlu0 %v7109, 96
        %v7685 = vpop.permute.xlu0 %7684
        %7750 = vst.msk [vmem:[#allocation5] sm:$0xff] %vm4365, %v7559
        %7751 = vst.msk [vmem:[#allocation5 + $0x8] sm:$0xff] %vm4365, %v7561
        %7752 = vst.msk [vmem:[#allocation5 + $0x10] sm:$0xff] %vm4365, %v7563
        %7753 = vst.msk [vmem:[#allocation5 + $0x18] sm:$0xff] %vm4365, %v7565
        %7754 = vst.msk [vmem:[#allocation5 + $0x20] sm:$0xff] %vm4365, %v7567
        %7755 = vst.msk [vmem:[#allocation5 + $0x28] sm:$0xff] %vm4365, %v7569
        %7756 = vst.msk [vmem:[#allocation5 + $0x30] sm:$0xff] %vm4365, %v7571
        %7757 = vst.msk [vmem:[#allocation5 + $0x38] sm:$0xff] %vm4365, %v7573
        %7758 = vst.msk [vmem:[#allocation5 + $0x40] sm:$0xff] %vm4365, %v7575
        %7759 = vst.msk [vmem:[#allocation5 + $0x48] sm:$0xff] %vm4365, %v7577
        %7760 = vst.msk [vmem:[#allocation5 + $0x50] sm:$0xff] %vm4365, %v7579
        %7761 = vst.msk [vmem:[#allocation5 + $0x58] sm:$0xff] %vm4365, %v7581
        %7762 = vst.msk [vmem:[#allocation5 + $0x60] sm:$0xff] %vm4365, %v7583
        %7763 = vst.msk [vmem:[#allocation5 + $0x68] sm:$0xff] %vm4365, %v7585
        %7764 = vst.msk [vmem:[#allocation5 + $0x70] sm:$0xff] %vm4365, %v7587
        %7765 = vst.msk [vmem:[#allocation5 + $0x78] sm:$0xff] %vm4365, %v7589
        %7766 = vst.msk [vmem:[#allocation5 + $0x80] sm:$0xff] %vm4365, %v7591
        %7767 = vst.msk [vmem:[#allocation5 + $0x88] sm:$0xff] %vm4365, %v7593
        %7768 = vst.msk [vmem:[#allocation5 + $0x90] sm:$0xff] %vm4365, %v7595
        %7769 = vst.msk [vmem:[#allocation5 + $0x98] sm:$0xff] %vm4365, %v7597
        %7770 = vst.msk [vmem:[#allocation5 + $0xa0] sm:$0xff] %vm4365, %v7599
        %7771 = vst.msk [vmem:[#allocation5 + $0xa8] sm:$0xff] %vm4365, %v7601
        %7772 = vst.msk [vmem:[#allocation5 + $0xb0] sm:$0xff] %vm4365, %v7603
        %7773 = vst.msk [vmem:[#allocation5 + $0xb8] sm:$0xff] %vm4365, %v7605
        %7774 = vst.msk [vmem:[#allocation5 + $0xc0] sm:$0xff] %vm4365, %v7607
        %7775 = vst.msk [vmem:[#allocation5 + $0xc8] sm:$0xff] %vm4365, %v7609
        %7776 = vst.msk [vmem:[#allocation5 + $0xd0] sm:$0xff] %vm4365, %v7611
        %7777 = vst.msk [vmem:[#allocation5 + $0xd8] sm:$0xff] %vm4365, %v7613
        %7778 = vst.msk [vmem:[#allocation5 + $0xe0] sm:$0xff] %vm4365, %v7615
        %7779 = vst.msk [vmem:[#allocation5 + $0xe8] sm:$0xff] %vm4365, %v7617
        %7780 = vst.msk [vmem:[#allocation5 + $0xf0] sm:$0xff] %vm4365, %v7619
        %7781 = vst.msk [vmem:[#allocation5 + $0xf8] sm:$0xff] %vm4365, %v7621
        %7782 = vst.msk [vmem:[#allocation5 + $0x100] sm:$0xff] %vm4365, %v7623
        %7783 = vst.msk [vmem:[#allocation5 + $0x108] sm:$0xff] %vm4365, %v7625
        %7784 = vst.msk [vmem:[#allocation5 + $0x110] sm:$0xff] %vm4365, %v7627
        %7785 = vst.msk [vmem:[#allocation5 + $0x118] sm:$0xff] %vm4365, %v7629
        %7786 = vst.msk [vmem:[#allocation5 + $0x120] sm:$0xff] %vm4365, %v7631
        %7787 = vst.msk [vmem:[#allocation5 + $0x128] sm:$0xff] %vm4365, %v7633
        %7788 = vst.msk [vmem:[#allocation5 + $0x130] sm:$0xff] %vm4365, %v7635
        %7789 = vst.msk [vmem:[#allocation5 + $0x138] sm:$0xff] %vm4365, %v7637
        %7790 = vst.msk [vmem:[#allocation5 + $0x140] sm:$0xff] %vm4365, %v7639
        %7791 = vst.msk [vmem:[#allocation5 + $0x148] sm:$0xff] %vm4365, %v7641
        %7792 = vst.msk [vmem:[#allocation5 + $0x150] sm:$0xff] %vm4365, %v7643
        %7793 = vst.msk [vmem:[#allocation5 + $0x158] sm:$0xff] %vm4365, %v7645
        %7794 = vst.msk [vmem:[#allocation5 + $0x160] sm:$0xff] %vm4365, %v7647
        %7795 = vst.msk [vmem:[#allocation5 + $0x168] sm:$0xff] %vm4365, %v7649
        %7796 = vst.msk [vmem:[#allocation5 + $0x170] sm:$0xff] %vm4365, %v7651
        %7797 = vst.msk [vmem:[#allocation5 + $0x178] sm:$0xff] %vm4365, %v7653
        %7798 = vst.msk [vmem:[#allocation5 + $0x180] sm:$0xff] %vm4365, %v7655
        %7799 = vst.msk [vmem:[#allocation5 + $0x188] sm:$0xff] %vm4365, %v7657
        %7800 = vst.msk [vmem:[#allocation5 + $0x190] sm:$0xff] %vm4365, %v7659
        %7801 = vst.msk [vmem:[#allocation5 + $0x198] sm:$0xff] %vm4365, %v7661
        %7802 = vst.msk [vmem:[#allocation5 + $0x1a0] sm:$0xff] %vm4365, %v7663
        %7803 = vst.msk [vmem:[#allocation5 + $0x1a8] sm:$0xff] %vm4365, %v7665
        %7804 = vst.msk [vmem:[#allocation5 + $0x1b0] sm:$0xff] %vm4365, %v7667
        %7805 = vst.msk [vmem:[#allocation5 + $0x1b8] sm:$0xff] %vm4365, %v7669
        %7806 = vst.msk [vmem:[#allocation5 + $0x1c0] sm:$0xff] %vm4365, %v7671
        %7807 = vst.msk [vmem:[#allocation5 + $0x1c8] sm:$0xff] %vm4365, %v7673
        %7808 = vst.msk [vmem:[#allocation5 + $0x1d0] sm:$0xff] %vm4365, %v7675
        %7809 = vst.msk [vmem:[#allocation5 + $0x1d8] sm:$0xff] %vm4365, %v7677
        %7810 = vst.msk [vmem:[#allocation5 + $0x1e0] sm:$0xff] %vm4365, %v7679
        %7811 = vst.msk [vmem:[#allocation5 + $0x1e8] sm:$0xff] %vm4365, %v7681
        %7812 = vst.msk [vmem:[#allocation5 + $0x1f0] sm:$0xff] %vm4365, %v7683
        %7813 = vst.msk [vmem:[#allocation5 + $0x1f8] sm:$0xff] %vm4365, %v7685
        %7878 = vrot.lane.b32.xlu0 %v7430, 64
        %v7879 = vpop.permute.xlu0 %7878
        %7880 = vrot.lane.b32.xlu0 %v7431, 64
        %v7881 = vpop.permute.xlu0 %7880
        %7882 = vrot.lane.b32.xlu0 %v7432, 64
        %v7883 = vpop.permute.xlu0 %7882
        %7884 = vrot.lane.b32.xlu0 %v7433, 64
        %v7885 = vpop.permute.xlu0 %7884
        %7886 = vrot.lane.b32.xlu0 %v7434, 64
        %v7887 = vpop.permute.xlu0 %7886
        %7888 = vrot.lane.b32.xlu0 %v7435, 64
        %v7889 = vpop.permute.xlu0 %7888
        %7890 = vrot.lane.b32.xlu0 %v7436, 64
        %v7891 = vpop.permute.xlu0 %7890
        %7892 = vrot.lane.b32.xlu0 %v7437, 64
        %v7893 = vpop.permute.xlu0 %7892
        %7894 = vrot.lane.b32.xlu0 %v7438, 64
        %v7895 = vpop.permute.xlu0 %7894
        %7896 = vrot.lane.b32.xlu0 %v7439, 64
        %v7897 = vpop.permute.xlu0 %7896
        %7898 = vrot.lane.b32.xlu0 %v7440, 64
        %v7899 = vpop.permute.xlu0 %7898
        %7900 = vrot.lane.b32.xlu0 %v7441, 64
        %v7901 = vpop.permute.xlu0 %7900
        %7902 = vrot.lane.b32.xlu0 %v7442, 64
        %v7903 = vpop.permute.xlu0 %7902
        %7904 = vrot.lane.b32.xlu0 %v7443, 64
        %v7905 = vpop.permute.xlu0 %7904
        %7906 = vrot.lane.b32.xlu0 %v7444, 64
        %v7907 = vpop.permute.xlu0 %7906
        %7908 = vrot.lane.b32.xlu0 %v7445, 64
        %v7909 = vpop.permute.xlu0 %7908
        %7910 = vrot.lane.b32.xlu0 %v7446, 64
        %v7911 = vpop.permute.xlu0 %7910
        %7912 = vrot.lane.b32.xlu0 %v7447, 64
        %v7913 = vpop.permute.xlu0 %7912
        %7914 = vrot.lane.b32.xlu0 %v7448, 64
        %v7915 = vpop.permute.xlu0 %7914
        %7916 = vrot.lane.b32.xlu0 %v7449, 64
        %v7917 = vpop.permute.xlu0 %7916
        %7918 = vrot.lane.b32.xlu0 %v7450, 64
        %v7919 = vpop.permute.xlu0 %7918
        %7920 = vrot.lane.b32.xlu0 %v7451, 64
        %v7921 = vpop.permute.xlu0 %7920
        %7922 = vrot.lane.b32.xlu0 %v7452, 64
        %v7923 = vpop.permute.xlu0 %7922
        %7924 = vrot.lane.b32.xlu0 %v7453, 64
        %v7925 = vpop.permute.xlu0 %7924
        %7926 = vrot.lane.b32.xlu0 %v7454, 64
        %v7927 = vpop.permute.xlu0 %7926
        %7928 = vrot.lane.b32.xlu0 %v7455, 64
        %v7929 = vpop.permute.xlu0 %7928
        %7930 = vrot.lane.b32.xlu0 %v7456, 64
        %v7931 = vpop.permute.xlu0 %7930
        %7932 = vrot.lane.b32.xlu0 %v7457, 64
        %v7933 = vpop.permute.xlu0 %7932
        %7934 = vrot.lane.b32.xlu0 %v7458, 64
        %v7935 = vpop.permute.xlu0 %7934
        %7936 = vrot.lane.b32.xlu0 %v7459, 64
        %v7937 = vpop.permute.xlu0 %7936
        %7938 = vrot.lane.b32.xlu0 %v7460, 64
        %v7939 = vpop.permute.xlu0 %7938
        %7940 = vrot.lane.b32.xlu0 %v7461, 64
        %v7941 = vpop.permute.xlu0 %7940
        %7942 = vrot.lane.b32.xlu0 %v7462, 64
        %v7943 = vpop.permute.xlu0 %7942
        %7944 = vrot.lane.b32.xlu0 %v7463, 64
        %v7945 = vpop.permute.xlu0 %7944
        %7946 = vrot.lane.b32.xlu0 %v7464, 64
        %v7947 = vpop.permute.xlu0 %7946
        %7948 = vrot.lane.b32.xlu0 %v7465, 64
        %v7949 = vpop.permute.xlu0 %7948
        %7950 = vrot.lane.b32.xlu0 %v7466, 64
        %v7951 = vpop.permute.xlu0 %7950
        %7952 = vrot.lane.b32.xlu0 %v7467, 64
        %v7953 = vpop.permute.xlu0 %7952
        %7954 = vrot.lane.b32.xlu0 %v7468, 64
        %v7955 = vpop.permute.xlu0 %7954
        %7956 = vrot.lane.b32.xlu0 %v7469, 64
        %v7957 = vpop.permute.xlu0 %7956
        %7958 = vrot.lane.b32.xlu0 %v7470, 64
        %v7959 = vpop.permute.xlu0 %7958
        %7960 = vrot.lane.b32.xlu0 %v7471, 64
        %v7961 = vpop.permute.xlu0 %7960
        %7962 = vrot.lane.b32.xlu0 %v7472, 64
        %v7963 = vpop.permute.xlu0 %7962
        %7964 = vrot.lane.b32.xlu0 %v7473, 64
        %v7965 = vpop.permute.xlu0 %7964
        %7966 = vrot.lane.b32.xlu0 %v7474, 64
        %v7967 = vpop.permute.xlu0 %7966
        %7968 = vrot.lane.b32.xlu0 %v7475, 64
        %v7969 = vpop.permute.xlu0 %7968
        %7970 = vrot.lane.b32.xlu0 %v7476, 64
        %v7971 = vpop.permute.xlu0 %7970
        %7972 = vrot.lane.b32.xlu0 %v7477, 64
        %v7973 = vpop.permute.xlu0 %7972
        %7974 = vrot.lane.b32.xlu0 %v7478, 64
        %v7975 = vpop.permute.xlu0 %7974
        %7976 = vrot.lane.b32.xlu0 %v7479, 64
        %v7977 = vpop.permute.xlu0 %7976
        %7978 = vrot.lane.b32.xlu0 %v7480, 64
        %v7979 = vpop.permute.xlu0 %7978
        %7980 = vrot.lane.b32.xlu0 %v7481, 64
        %v7981 = vpop.permute.xlu0 %7980
        %7982 = vrot.lane.b32.xlu0 %v7482, 64
        %v7983 = vpop.permute.xlu0 %7982
        %7984 = vrot.lane.b32.xlu0 %v7483, 64
        %v7985 = vpop.permute.xlu0 %7984
        %7986 = vrot.lane.b32.xlu0 %v7484, 64
        %v7987 = vpop.permute.xlu0 %7986
        %7988 = vrot.lane.b32.xlu0 %v7485, 64
        %v7989 = vpop.permute.xlu0 %7988
        %7990 = vrot.lane.b32.xlu0 %v7486, 64
        %v7991 = vpop.permute.xlu0 %7990
        %7992 = vrot.lane.b32.xlu0 %v7487, 64
        %v7993 = vpop.permute.xlu0 %7992
        %7994 = vrot.lane.b32.xlu0 %v7488, 64
        %v7995 = vpop.permute.xlu0 %7994
        %7996 = vrot.lane.b32.xlu0 %v7489, 64
        %v7997 = vpop.permute.xlu0 %7996
        %7998 = vrot.lane.b32.xlu0 %v7490, 64
        %v7999 = vpop.permute.xlu0 %7998
        %8000 = vrot.lane.b32.xlu0 %v7491, 64
        %v8001 = vpop.permute.xlu0 %8000
        %8002 = vrot.lane.b32.xlu0 %v7492, 64
        %v8003 = vpop.permute.xlu0 %8002
        %8004 = vrot.lane.b32.xlu0 %v7493, 64
        %v8005 = vpop.permute.xlu0 %8004
        %s8070 = scalar_lea.vmem [#allocation3], 24
        %8071 = vst.msk [vmem:[%s8070 + $0x1] sm:$0xff] %vm4365, %v7879
        %8072 = vst.msk [vmem:[%s8070 + $0x9] sm:$0xff] %vm4365, %v7881
        %8073 = vst.msk [vmem:[%s8070 + $0x19] sm:$0xff] %vm4365, %v7883
        %8074 = vst.msk [vmem:[%s8070 + $0x21] sm:$0xff] %vm4365, %v7885
        %8075 = vst.msk [vmem:[%s8070 + $0x31] sm:$0xff] %vm4365, %v7887
        %8076 = vst.msk [vmem:[%s8070 + $0x39] sm:$0xff] %vm4365, %v7889
        %8077 = vst.msk [vmem:[%s8070 + $0x49] sm:$0xff] %vm4365, %v7891
        %8078 = vst.msk [vmem:[%s8070 + $0x51] sm:$0xff] %vm4365, %v7893
        %8079 = vst.msk [vmem:[%s8070 + $0x61] sm:$0xff] %vm4365, %v7895
        %8080 = vst.msk [vmem:[%s8070 + $0x69] sm:$0xff] %vm4365, %v7897
        %8081 = vst.msk [vmem:[%s8070 + $0x79] sm:$0xff] %vm4365, %v7899
        %8082 = vst.msk [vmem:[%s8070 + $0x81] sm:$0xff] %vm4365, %v7901
        %8083 = vst.msk [vmem:[%s8070 + $0x91] sm:$0xff] %vm4365, %v7903
        %8084 = vst.msk [vmem:[%s8070 + $0x99] sm:$0xff] %vm4365, %v7905
        %8085 = vst.msk [vmem:[%s8070 + $0xa9] sm:$0xff] %vm4365, %v7907
        %8086 = vst.msk [vmem:[%s8070 + $0xb1] sm:$0xff] %vm4365, %v7909
        %8087 = vst.msk [vmem:[%s8070 + $0xc1] sm:$0xff] %vm4365, %v7911
        %8088 = vst.msk [vmem:[%s8070 + $0xc9] sm:$0xff] %vm4365, %v7913
        %8089 = vst.msk [vmem:[%s8070 + $0xd9] sm:$0xff] %vm4365, %v7915
        %8090 = vst.msk [vmem:[%s8070 + $0xe1] sm:$0xff] %vm4365, %v7917
        %8091 = vst.msk [vmem:[%s8070 + $0xf1] sm:$0xff] %vm4365, %v7919
        %8092 = vst.msk [vmem:[%s8070 + $0xf9] sm:$0xff] %vm4365, %v7921
        %8093 = vst.msk [vmem:[%s8070 + $0x109] sm:$0xff] %vm4365, %v7923
        %8094 = vst.msk [vmem:[%s8070 + $0x111] sm:$0xff] %vm4365, %v7925
        %8095 = vst.msk [vmem:[%s8070 + $0x121] sm:$0xff] %vm4365, %v7927
        %8096 = vst.msk [vmem:[%s8070 + $0x129] sm:$0xff] %vm4365, %v7929
        %8097 = vst.msk [vmem:[%s8070 + $0x139] sm:$0xff] %vm4365, %v7931
        %8098 = vst.msk [vmem:[%s8070 + $0x141] sm:$0xff] %vm4365, %v7933
        %8099 = vst.msk [vmem:[%s8070 + $0x151] sm:$0xff] %vm4365, %v7935
        %8100 = vst.msk [vmem:[%s8070 + $0x159] sm:$0xff] %vm4365, %v7937
        %8101 = vst.msk [vmem:[%s8070 + $0x169] sm:$0xff] %vm4365, %v7939
        %8102 = vst.msk [vmem:[%s8070 + $0x171] sm:$0xff] %vm4365, %v7941
        %8103 = vst.msk [vmem:[%s8070 + $0x1b1] sm:$0xff] %vm4365, %v7943
        %8104 = vst.msk [vmem:[%s8070 + $0x1b9] sm:$0xff] %vm4365, %v7945
        %8105 = vst.msk [vmem:[%s8070 + $0x1c9] sm:$0xff] %vm4365, %v7947
        %8106 = vst.msk [vmem:[%s8070 + $0x1d1] sm:$0xff] %vm4365, %v7949
        %8107 = vst.msk [vmem:[%s8070 + $0x1e1] sm:$0xff] %vm4365, %v7951
        %8108 = vst.msk [vmem:[%s8070 + $0x1e9] sm:$0xff] %vm4365, %v7953
        %8109 = vst.msk [vmem:[%s8070 + $0x1f9] sm:$0xff] %vm4365, %v7955
        %8110 = vst.msk [vmem:[%s8070 + $0x201] sm:$0xff] %vm4365, %v7957
        %8111 = vst.msk [vmem:[%s8070 + $0x211] sm:$0xff] %vm4365, %v7959
        %8112 = vst.msk [vmem:[%s8070 + $0x219] sm:$0xff] %vm4365, %v7961
        %8113 = vst.msk [vmem:[%s8070 + $0x229] sm:$0xff] %vm4365, %v7963
        %8114 = vst.msk [vmem:[%s8070 + $0x231] sm:$0xff] %vm4365, %v7965
        %8115 = vst.msk [vmem:[%s8070 + $0x241] sm:$0xff] %vm4365, %v7967
        %8116 = vst.msk [vmem:[%s8070 + $0x249] sm:$0xff] %vm4365, %v7969
        %8117 = vst.msk [vmem:[%s8070 + $0x259] sm:$0xff] %vm4365, %v7971
        %8118 = vst.msk [vmem:[%s8070 + $0x261] sm:$0xff] %vm4365, %v7973
        %8119 = vst.msk [vmem:[%s8070 + $0x271] sm:$0xff] %vm4365, %v7975
        %8120 = vst.msk [vmem:[%s8070 + $0x279] sm:$0xff] %vm4365, %v7977
        %8121 = vst.msk [vmem:[%s8070 + $0x289] sm:$0xff] %vm4365, %v7979
        %8122 = vst.msk [vmem:[%s8070 + $0x291] sm:$0xff] %vm4365, %v7981
        %8123 = vst.msk [vmem:[%s8070 + $0x2a1] sm:$0xff] %vm4365, %v7983
        %8124 = vst.msk [vmem:[%s8070 + $0x2a9] sm:$0xff] %vm4365, %v7985
        %8125 = vst.msk [vmem:[%s8070 + $0x2b9] sm:$0xff] %vm4365, %v7987
        %8126 = vst.msk [vmem:[%s8070 + $0x2c1] sm:$0xff] %vm4365, %v7989
        %8127 = vst.msk [vmem:[%s8070 + $0x2d1] sm:$0xff] %vm4365, %v7991
        %8128 = vst.msk [vmem:[%s8070 + $0x2d9] sm:$0xff] %vm4365, %v7993
        %8129 = vst.msk [vmem:[%s8070 + $0x2e9] sm:$0xff] %vm4365, %v7995
        %8130 = vst.msk [vmem:[%s8070 + $0x2f1] sm:$0xff] %vm4365, %v7997
        %8131 = vst.msk [vmem:[%s8070 + $0x301] sm:$0xff] %vm4365, %v7999
        %8132 = vst.msk [vmem:[%s8070 + $0x309] sm:$0xff] %vm4365, %v8001
        %8133 = vst.msk [vmem:[%s8070 + $0x319] sm:$0xff] %vm4365, %v8003
        %8134 = vst.msk [vmem:[%s8070 + $0x321] sm:$0xff] %vm4365, %v8005
        %v8135 = vpack.c.bf16 %v7431, %v7430
        %v8136 = vpack.c.bf16 %v7433, %v7432
        %v8137 = vpack.c.bf16 %v7435, %v7434
        %v8138 = vpack.c.bf16 %v7437, %v7436
        %v8139 = vpack.c.bf16 %v7439, %v7438
        %v8140 = vpack.c.bf16 %v7441, %v7440
        %v8141 = vpack.c.bf16 %v7443, %v7442
        %v8142 = vpack.c.bf16 %v7445, %v7444
        %v8143 = vpack.c.bf16 %v7447, %v7446
        %v8144 = vpack.c.bf16 %v7449, %v7448
        %v8145 = vpack.c.bf16 %v7451, %v7450
        %v8146 = vpack.c.bf16 %v7453, %v7452
        %v8147 = vpack.c.bf16 %v7455, %v7454
        %v8148 = vpack.c.bf16 %v7457, %v7456
        %v8149 = vpack.c.bf16 %v7459, %v7458
        %v8150 = vpack.c.bf16 %v7461, %v7460
        %v8151 = vpack.c.bf16 %v7463, %v7462
        %v8152 = vpack.c.bf16 %v7465, %v7464
        %v8153 = vpack.c.bf16 %v7467, %v7466
        %v8154 = vpack.c.bf16 %v7469, %v7468
        %v8155 = vpack.c.bf16 %v7471, %v7470
        %v8156 = vpack.c.bf16 %v7473, %v7472
        %v8157 = vpack.c.bf16 %v7475, %v7474
        %v8158 = vpack.c.bf16 %v7477, %v7476
        %v8159 = vpack.c.bf16 %v7479, %v7478
        %v8160 = vpack.c.bf16 %v7481, %v7480
        %v8161 = vpack.c.bf16 %v7483, %v7482
        %v8162 = vpack.c.bf16 %v7485, %v7484
        %v8163 = vpack.c.bf16 %v7487, %v7486
        %v8164 = vpack.c.bf16 %v7489, %v7488
        %v8165 = vpack.c.bf16 %v7491, %v7490
        %v8166 = vpack.c.bf16 %v7493, %v7492
        %v8199 = vunpack.c.l.b16 %v8135
        %v8200 = vunpack.c.h.b16 %v8135
        %v8201 = vunpack.c.l.b16 %v8136
        %v8202 = vunpack.c.h.b16 %v8136
        %v8203 = vunpack.c.l.b16 %v8137
        %v8204 = vunpack.c.h.b16 %v8137
        %v8205 = vunpack.c.l.b16 %v8138
        %v8206 = vunpack.c.h.b16 %v8138
        %v8207 = vunpack.c.l.b16 %v8139
        %v8208 = vunpack.c.h.b16 %v8139
        %v8209 = vunpack.c.l.b16 %v8140
        %v8210 = vunpack.c.h.b16 %v8140
        %v8211 = vunpack.c.l.b16 %v8141
        %v8212 = vunpack.c.h.b16 %v8141
        %v8213 = vunpack.c.l.b16 %v8142
        %v8214 = vunpack.c.h.b16 %v8142
        %v8215 = vunpack.c.l.b16 %v8143
        %v8216 = vunpack.c.h.b16 %v8143
        %v8217 = vunpack.c.l.b16 %v8144
        %v8218 = vunpack.c.h.b16 %v8144
        %v8219 = vunpack.c.l.b16 %v8145
        %v8220 = vunpack.c.h.b16 %v8145
        %v8221 = vunpack.c.l.b16 %v8146
        %v8222 = vunpack.c.h.b16 %v8146
        %v8223 = vunpack.c.l.b16 %v8147
        %v8224 = vunpack.c.h.b16 %v8147
        %v8225 = vunpack.c.l.b16 %v8148
        %v8226 = vunpack.c.h.b16 %v8148
        %v8227 = vunpack.c.l.b16 %v8149
        %v8228 = vunpack.c.h.b16 %v8149
        %v8229 = vunpack.c.l.b16 %v8150
        %v8230 = vunpack.c.h.b16 %v8150
        %v8231 = vunpack.c.l.b16 %v8151
        %v8232 = vunpack.c.h.b16 %v8151
        %v8233 = vunpack.c.l.b16 %v8152
        %v8234 = vunpack.c.h.b16 %v8152
        %v8235 = vunpack.c.l.b16 %v8153
        %v8236 = vunpack.c.h.b16 %v8153
        %v8237 = vunpack.c.l.b16 %v8154
        %v8238 = vunpack.c.h.b16 %v8154
        %v8239 = vunpack.c.l.b16 %v8155
        %v8240 = vunpack.c.h.b16 %v8155
        %v8241 = vunpack.c.l.b16 %v8156
        %v8242 = vunpack.c.h.b16 %v8156
        %v8243 = vunpack.c.l.b16 %v8157
        %v8244 = vunpack.c.h.b16 %v8157
        %v8245 = vunpack.c.l.b16 %v8158
        %v8246 = vunpack.c.h.b16 %v8158
        %v8247 = vunpack.c.l.b16 %v8159
        %v8248 = vunpack.c.h.b16 %v8159
        %v8249 = vunpack.c.l.b16 %v8160
        %v8250 = vunpack.c.h.b16 %v8160
        %v8251 = vunpack.c.l.b16 %v8161
        %v8252 = vunpack.c.h.b16 %v8161
        %v8253 = vunpack.c.l.b16 %v8162
        %v8254 = vunpack.c.h.b16 %v8162
        %v8255 = vunpack.c.l.b16 %v8163
        %v8256 = vunpack.c.h.b16 %v8163
        %v8257 = vunpack.c.l.b16 %v8164
        %v8258 = vunpack.c.h.b16 %v8164
        %v8259 = vunpack.c.l.b16 %v8165
        %v8260 = vunpack.c.h.b16 %v8165
        %v8261 = vunpack.c.l.b16 %v8166
        %v8262 = vunpack.c.h.b16 %v8166
        %v8263 = vpack.c.b16 %v8199, %v8199
        %v8264 = vpack.c.b16 %v8200, %v8200
        %v8265 = vpack.c.b16 %v8201, %v8201
        %v8266 = vpack.c.b16 %v8202, %v8202
        %v8267 = vpack.c.b16 %v8203, %v8203
        %v8268 = vpack.c.b16 %v8204, %v8204
        %v8269 = vpack.c.b16 %v8205, %v8205
        %v8270 = vpack.c.b16 %v8206, %v8206
        %v8271 = vpack.c.b16 %v8207, %v8207
        %v8272 = vpack.c.b16 %v8208, %v8208
        %v8273 = vpack.c.b16 %v8209, %v8209
        %v8274 = vpack.c.b16 %v8210, %v8210
        %v8275 = vpack.c.b16 %v8211, %v8211
        %v8276 = vpack.c.b16 %v8212, %v8212
        %v8277 = vpack.c.b16 %v8213, %v8213
        %v8278 = vpack.c.b16 %v8214, %v8214
        %v8279 = vpack.c.b16 %v8215, %v8215
        %v8280 = vpack.c.b16 %v8216, %v8216
        %v8281 = vpack.c.b16 %v8217, %v8217
        %v8282 = vpack.c.b16 %v8218, %v8218
        %v8283 = vpack.c.b16 %v8219, %v8219
        %v8284 = vpack.c.b16 %v8220, %v8220
        %v8285 = vpack.c.b16 %v8221, %v8221
        %v8286 = vpack.c.b16 %v8222, %v8222
        %v8287 = vpack.c.b16 %v8223, %v8223
        %v8288 = vpack.c.b16 %v8224, %v8224
        %v8289 = vpack.c.b16 %v8225, %v8225
        %v8290 = vpack.c.b16 %v8226, %v8226
        %v8291 = vpack.c.b16 %v8227, %v8227
        %v8292 = vpack.c.b16 %v8228, %v8228
        %v8293 = vpack.c.b16 %v8229, %v8229
        %v8294 = vpack.c.b16 %v8230, %v8230
        %v8295 = vpack.c.b16 %v8231, %v8231
        %v8296 = vpack.c.b16 %v8232, %v8232
        %v8297 = vpack.c.b16 %v8233, %v8233
        %v8298 = vpack.c.b16 %v8234, %v8234
        %v8299 = vpack.c.b16 %v8235, %v8235
        %v8300 = vpack.c.b16 %v8236, %v8236
        %v8301 = vpack.c.b16 %v8237, %v8237
        %v8302 = vpack.c.b16 %v8238, %v8238
        %v8303 = vpack.c.b16 %v8239, %v8239
        %v8304 = vpack.c.b16 %v8240, %v8240
        %v8305 = vpack.c.b16 %v8241, %v8241
        %v8306 = vpack.c.b16 %v8242, %v8242
        %v8307 = vpack.c.b16 %v8243, %v8243
        %v8308 = vpack.c.b16 %v8244, %v8244
        %v8309 = vpack.c.b16 %v8245, %v8245
        %v8310 = vpack.c.b16 %v8246, %v8246
        %v8311 = vpack.c.b16 %v8247, %v8247
        %v8312 = vpack.c.b16 %v8248, %v8248
        %v8313 = vpack.c.b16 %v8249, %v8249
        %v8314 = vpack.c.b16 %v8250, %v8250
        %v8315 = vpack.c.b16 %v8251, %v8251
        %v8316 = vpack.c.b16 %v8252, %v8252
        %v8317 = vpack.c.b16 %v8253, %v8253
        %v8318 = vpack.c.b16 %v8254, %v8254
        %v8319 = vpack.c.b16 %v8255, %v8255
        %v8320 = vpack.c.b16 %v8256, %v8256
        %v8321 = vpack.c.b16 %v8257, %v8257
        %v8322 = vpack.c.b16 %v8258, %v8258
        %v8323 = vpack.c.b16 %v8259, %v8259
        %v8324 = vpack.c.b16 %v8260, %v8260
        %v8325 = vpack.c.b16 %v8261, %v8261
        %v8326 = vpack.c.b16 %v8262, %v8262
        %8327 = vrot.lane.b32.xlu0 %v8263, 64
        %v8328 = vpop.permute.xlu0 %8327
        %8329 = vrot.lane.b32.xlu0 %v8264, 64
        %v8330 = vpop.permute.xlu0 %8329
        %8331 = vrot.lane.b32.xlu0 %v8265, 64
        %v8332 = vpop.permute.xlu0 %8331
        %8333 = vrot.lane.b32.xlu0 %v8266, 64
        %v8334 = vpop.permute.xlu0 %8333
        %8335 = vrot.lane.b32.xlu0 %v8267, 64
        %v8336 = vpop.permute.xlu0 %8335
        %8337 = vrot.lane.b32.xlu0 %v8268, 64
        %v8338 = vpop.permute.xlu0 %8337
        %8339 = vrot.lane.b32.xlu0 %v8269, 64
        %v8340 = vpop.permute.xlu0 %8339
        %8341 = vrot.lane.b32.xlu0 %v8270, 64
        %v8342 = vpop.permute.xlu0 %8341
        %8343 = vrot.lane.b32.xlu0 %v8271, 64
        %v8344 = vpop.permute.xlu0 %8343
        %8345 = vrot.lane.b32.xlu0 %v8272, 64
        %v8346 = vpop.permute.xlu0 %8345
        %8347 = vrot.lane.b32.xlu0 %v8273, 64
        %v8348 = vpop.permute.xlu0 %8347
        %8349 = vrot.lane.b32.xlu0 %v8274, 64
        %v8350 = vpop.permute.xlu0 %8349
        %8351 = vrot.lane.b32.xlu0 %v8275, 64
        %v8352 = vpop.permute.xlu0 %8351
        %8353 = vrot.lane.b32.xlu0 %v8276, 64
        %v8354 = vpop.permute.xlu0 %8353
        %8355 = vrot.lane.b32.xlu0 %v8277, 64
        %v8356 = vpop.permute.xlu0 %8355
        %8357 = vrot.lane.b32.xlu0 %v8278, 64
        %v8358 = vpop.permute.xlu0 %8357
        %8359 = vrot.lane.b32.xlu0 %v8279, 64
        %v8360 = vpop.permute.xlu0 %8359
        %8361 = vrot.lane.b32.xlu0 %v8280, 64
        %v8362 = vpop.permute.xlu0 %8361
        %8363 = vrot.lane.b32.xlu0 %v8281, 64
        %v8364 = vpop.permute.xlu0 %8363
        %8365 = vrot.lane.b32.xlu0 %v8282, 64
        %v8366 = vpop.permute.xlu0 %8365
        %8367 = vrot.lane.b32.xlu0 %v8283, 64
        %v8368 = vpop.permute.xlu0 %8367
        %8369 = vrot.lane.b32.xlu0 %v8284, 64
        %v8370 = vpop.permute.xlu0 %8369
        %8371 = vrot.lane.b32.xlu0 %v8285, 64
        %v8372 = vpop.permute.xlu0 %8371
        %8373 = vrot.lane.b32.xlu0 %v8286, 64
        %v8374 = vpop.permute.xlu0 %8373
        %8375 = vrot.lane.b32.xlu0 %v8287, 64
        %v8376 = vpop.permute.xlu0 %8375
        %8377 = vrot.lane.b32.xlu0 %v8288, 64
        %v8378 = vpop.permute.xlu0 %8377
        %8379 = vrot.lane.b32.xlu0 %v8289, 64
        %v8380 = vpop.permute.xlu0 %8379
        %8381 = vrot.lane.b32.xlu0 %v8290, 64
        %v8382 = vpop.permute.xlu0 %8381
        %8383 = vrot.lane.b32.xlu0 %v8291, 64
        %v8384 = vpop.permute.xlu0 %8383
        %8385 = vrot.lane.b32.xlu0 %v8292, 64
        %v8386 = vpop.permute.xlu0 %8385
        %8387 = vrot.lane.b32.xlu0 %v8293, 64
        %v8388 = vpop.permute.xlu0 %8387
        %8389 = vrot.lane.b32.xlu0 %v8294, 64
        %v8390 = vpop.permute.xlu0 %8389
        %8391 = vrot.lane.b32.xlu0 %v8295, 64
        %v8392 = vpop.permute.xlu0 %8391
        %8393 = vrot.lane.b32.xlu0 %v8296, 64
        %v8394 = vpop.permute.xlu0 %8393
        %8395 = vrot.lane.b32.xlu0 %v8297, 64
        %v8396 = vpop.permute.xlu0 %8395
        %8397 = vrot.lane.b32.xlu0 %v8298, 64
        %v8398 = vpop.permute.xlu0 %8397
        %8399 = vrot.lane.b32.xlu0 %v8299, 64
        %v8400 = vpop.permute.xlu0 %8399
        %8401 = vrot.lane.b32.xlu0 %v8300, 64
        %v8402 = vpop.permute.xlu0 %8401
        %8403 = vrot.lane.b32.xlu0 %v8301, 64
        %v8404 = vpop.permute.xlu0 %8403
        %8405 = vrot.lane.b32.xlu0 %v8302, 64
        %v8406 = vpop.permute.xlu0 %8405
        %8407 = vrot.lane.b32.xlu0 %v8303, 64
        %v8408 = vpop.permute.xlu0 %8407
        %8409 = vrot.lane.b32.xlu0 %v8304, 64
        %v8410 = vpop.permute.xlu0 %8409
        %8411 = vrot.lane.b32.xlu0 %v8305, 64
        %v8412 = vpop.permute.xlu0 %8411
        %8413 = vrot.lane.b32.xlu0 %v8306, 64
        %v8414 = vpop.permute.xlu0 %8413
        %8415 = vrot.lane.b32.xlu0 %v8307, 64
        %v8416 = vpop.permute.xlu0 %8415
        %8417 = vrot.lane.b32.xlu0 %v8308, 64
        %v8418 = vpop.permute.xlu0 %8417
        %8419 = vrot.lane.b32.xlu0 %v8309, 64
        %v8420 = vpop.permute.xlu0 %8419
        %8421 = vrot.lane.b32.xlu0 %v8310, 64
        %v8422 = vpop.permute.xlu0 %8421
        %8423 = vrot.lane.b32.xlu0 %v8311, 64
        %v8424 = vpop.permute.xlu0 %8423
        %8425 = vrot.lane.b32.xlu0 %v8312, 64
        %v8426 = vpop.permute.xlu0 %8425
        %8427 = vrot.lane.b32.xlu0 %v8313, 64
        %v8428 = vpop.permute.xlu0 %8427
        %8429 = vrot.lane.b32.xlu0 %v8314, 64
        %v8430 = vpop.permute.xlu0 %8429
        %8431 = vrot.lane.b32.xlu0 %v8315, 64
        %v8432 = vpop.permute.xlu0 %8431
        %8433 = vrot.lane.b32.xlu0 %v8316, 64
        %v8434 = vpop.permute.xlu0 %8433
        %8435 = vrot.lane.b32.xlu0 %v8317, 64
        %v8436 = vpop.permute.xlu0 %8435
        %8437 = vrot.lane.b32.xlu0 %v8318, 64
        %v8438 = vpop.permute.xlu0 %8437
        %8439 = vrot.lane.b32.xlu0 %v8319, 64
        %v8440 = vpop.permute.xlu0 %8439
        %8441 = vrot.lane.b32.xlu0 %v8320, 64
        %v8442 = vpop.permute.xlu0 %8441
        %8443 = vrot.lane.b32.xlu0 %v8321, 64
        %v8444 = vpop.permute.xlu0 %8443
        %8445 = vrot.lane.b32.xlu0 %v8322, 64
        %v8446 = vpop.permute.xlu0 %8445
        %8447 = vrot.lane.b32.xlu0 %v8323, 64
        %v8448 = vpop.permute.xlu0 %8447
        %8449 = vrot.lane.b32.xlu0 %v8324, 64
        %v8450 = vpop.permute.xlu0 %8449
        %8451 = vrot.lane.b32.xlu0 %v8325, 64
        %v8452 = vpop.permute.xlu0 %8451
        %8453 = vrot.lane.b32.xlu0 %v8326, 64
        %v8454 = vpop.permute.xlu0 %8453
        %vm8519 = vcmask 257024
        %8520 = vst.msk [vmem:[%s218] sm:$0xf] %vm8519, %v8328
        %8521 = vst.msk [vmem:[%s218 + $0x4] sm:$0xf] %vm8519, %v8330
        %8522 = vst.msk [vmem:[%s218 + $0x8] sm:$0xf] %vm8519, %v8332
        %8523 = vst.msk [vmem:[%s218 + $0xc] sm:$0xf] %vm8519, %v8334
        %8524 = vst.msk [vmem:[%s218 + $0x10] sm:$0xf] %vm8519, %v8336
        %8525 = vst.msk [vmem:[%s218 + $0x14] sm:$0xf] %vm8519, %v8338
        %8526 = vst.msk [vmem:[%s218 + $0x18] sm:$0xf] %vm8519, %v8340
        %8527 = vst.msk [vmem:[%s218 + $0x1c] sm:$0xf] %vm8519, %v8342
        %8528 = vst.msk [vmem:[%s218 + $0x20] sm:$0xf] %vm8519, %v8344
        %8529 = vst.msk [vmem:[%s218 + $0x24] sm:$0xf] %vm8519, %v8346
        %8530 = vst.msk [vmem:[%s218 + $0x28] sm:$0xf] %vm8519, %v8348
        %8531 = vst.msk [vmem:[%s218 + $0x2c] sm:$0xf] %vm8519, %v8350
        %8532 = vst.msk [vmem:[%s218 + $0x30] sm:$0xf] %vm8519, %v8352
        %8533 = vst.msk [vmem:[%s218 + $0x34] sm:$0xf] %vm8519, %v8354
        %8534 = vst.msk [vmem:[%s218 + $0x38] sm:$0xf] %vm8519, %v8356
        %8535 = vst.msk [vmem:[%s218 + $0x3c] sm:$0xf] %vm8519, %v8358
        %8536 = vst.msk [vmem:[%s218 + $0x40] sm:$0xf] %vm8519, %v8360
        %8537 = vst.msk [vmem:[%s218 + $0x44] sm:$0xf] %vm8519, %v8362
        %8538 = vst.msk [vmem:[%s218 + $0x48] sm:$0xf] %vm8519, %v8364
        %8539 = vst.msk [vmem:[%s218 + $0x4c] sm:$0xf] %vm8519, %v8366
        %8540 = vst.msk [vmem:[%s218 + $0x50] sm:$0xf] %vm8519, %v8368
        %8541 = vst.msk [vmem:[%s218 + $0x54] sm:$0xf] %vm8519, %v8370
        %8542 = vst.msk [vmem:[%s218 + $0x58] sm:$0xf] %vm8519, %v8372
        %8543 = vst.msk [vmem:[%s218 + $0x5c] sm:$0xf] %vm8519, %v8374
        %8544 = vst.msk [vmem:[%s218 + $0x60] sm:$0xf] %vm8519, %v8376
        %8545 = vst.msk [vmem:[%s218 + $0x64] sm:$0xf] %vm8519, %v8378
        %8546 = vst.msk [vmem:[%s218 + $0x68] sm:$0xf] %vm8519, %v8380
        %8547 = vst.msk [vmem:[%s218 + $0x6c] sm:$0xf] %vm8519, %v8382
        %8548 = vst.msk [vmem:[%s218 + $0x70] sm:$0xf] %vm8519, %v8384
        %8549 = vst.msk [vmem:[%s218 + $0x74] sm:$0xf] %vm8519, %v8386
        %8550 = vst.msk [vmem:[%s218 + $0x78] sm:$0xf] %vm8519, %v8388
        %8551 = vst.msk [vmem:[%s218 + $0x7c] sm:$0xf] %vm8519, %v8390
        %8552 = vst.msk [vmem:[%s218 + $0x80] sm:$0xf] %vm8519, %v8392
        %8553 = vst.msk [vmem:[%s218 + $0x84] sm:$0xf] %vm8519, %v8394
        %8554 = vst.msk [vmem:[%s218 + $0x88] sm:$0xf] %vm8519, %v8396
        %8555 = vst.msk [vmem:[%s218 + $0x8c] sm:$0xf] %vm8519, %v8398
        %8556 = vst.msk [vmem:[%s218 + $0x90] sm:$0xf] %vm8519, %v8400
        %8557 = vst.msk [vmem:[%s218 + $0x94] sm:$0xf] %vm8519, %v8402
        %8558 = vst.msk [vmem:[%s218 + $0x98] sm:$0xf] %vm8519, %v8404
        %8559 = vst.msk [vmem:[%s218 + $0x9c] sm:$0xf] %vm8519, %v8406
        %8560 = vst.msk [vmem:[%s218 + $0xa0] sm:$0xf] %vm8519, %v8408
        %8561 = vst.msk [vmem:[%s218 + $0xa4] sm:$0xf] %vm8519, %v8410
        %8562 = vst.msk [vmem:[%s218 + $0xa8] sm:$0xf] %vm8519, %v8412
        %8563 = vst.msk [vmem:[%s218 + $0xac] sm:$0xf] %vm8519, %v8414
        %8564 = vst.msk [vmem:[%s218 + $0xb0] sm:$0xf] %vm8519, %v8416
        %8565 = vst.msk [vmem:[%s218 + $0xb4] sm:$0xf] %vm8519, %v8418
        %8566 = vst.msk [vmem:[%s218 + $0xb8] sm:$0xf] %vm8519, %v8420
        %8567 = vst.msk [vmem:[%s218 + $0xbc] sm:$0xf] %vm8519, %v8422
        %8568 = vst.msk [vmem:[%s218 + $0xc0] sm:$0xf] %vm8519, %v8424
        %8569 = vst.msk [vmem:[%s218 + $0xc4] sm:$0xf] %vm8519, %v8426
        %8570 = vst.msk [vmem:[%s218 + $0xc8] sm:$0xf] %vm8519, %v8428
        %8571 = vst.msk [vmem:[%s218 + $0xcc] sm:$0xf] %vm8519, %v8430
        %8572 = vst.msk [vmem:[%s218 + $0xd0] sm:$0xf] %vm8519, %v8432
        %8573 = vst.msk [vmem:[%s218 + $0xd4] sm:$0xf] %vm8519, %v8434
        %8574 = vst.msk [vmem:[%s218 + $0xd8] sm:$0xf] %vm8519, %v8436
        %8575 = vst.msk [vmem:[%s218 + $0xdc] sm:$0xf] %vm8519, %v8438
        %8576 = vst.msk [vmem:[%s218 + $0xe0] sm:$0xf] %vm8519, %v8440
        %8577 = vst.msk [vmem:[%s218 + $0xe4] sm:$0xf] %vm8519, %v8442
        %8578 = vst.msk [vmem:[%s218 + $0xe8] sm:$0xf] %vm8519, %v8444
        %8579 = vst.msk [vmem:[%s218 + $0xec] sm:$0xf] %vm8519, %v8446
        %8580 = vst.msk [vmem:[%s218 + $0xf0] sm:$0xf] %vm8519, %v8448
        %8581 = vst.msk [vmem:[%s218 + $0xf4] sm:$0xf] %vm8519, %v8450
        %8582 = vst.msk [vmem:[%s218 + $0xf8] sm:$0xf] %vm8519, %v8452
        %8583 = vst.msk [vmem:[%s218 + $0xfc] sm:$0xf] %vm8519, %v8454
        %s8584 = sand.u32 %s123, 1
        %s8585 = scalar_lea.sflag [#allocation7], %s8584
        %s8586 = sand.u32 %s123, 1
        %s8587 = smul.addr %s8586, 256
        %s8588 = scalar_lea.vmem [#allocation6], %s8587
        // Predicated region
        $region37: #{tpu_custom_call.1} parent=31 // pred_check
          %p8589 = pneg %p133
        $region38: #{tpu_custom_call.1} parent=31 // pred_check_branch
          %8591 = sbr.rel (%p8589) target = $region40
        $region39: #{tpu_custom_call.1} parent=31 // pred_region
          %s8592 = smul.u32 %s21, 8
          %s8593 = sadd.s32 %s8592, %s22
          %s8594 = smul.u32 2, %s8593
          %s8596 = ssub.s32 4096, 4096
          %8597 = vsyncadd %s8585, %s8596
          %s8598 = smul.addr %s8594, 32
          %s8599 = smul.addr %s8598, 64
          %s8600 = scalar_lea.hbm %s3, %s8599
          %s8601 = sshll.u32 %s8588, 4
          %s8602 = int_to_ptr.vmem [resolvable:$true] %s8601
          %8607 = dma.vmem_to_hbm [thread:$0]  %s8602, 4096, %s8600, %s8585, 64, 64, 4
        $region40: #{tpu_custom_call.1} parent=31 // pred_fallthru
          _
      $region32: #{tpu_custom_call.1} parent=5 // pred_fallthru
        _
      %p8608 = scmp.le.s32.totalorder 2, %s12
      // Predicated region
      $region41: #{tpu_custom_call.1} parent=5 // pred_check
        %p8609 = pneg %p8608
      $region42: #{tpu_custom_call.1} parent=5 // pred_check_branch
        %8611 = sbr.rel (%p8609) target = $region44
      $region43: #{tpu_custom_call.1} parent=5 // pred_region
        %s8612 = ssub.s32 %s12, 2
        // Predicated region
        $region45: #{tpu_custom_call.1} parent=43 // pred_check
          %p8613 = pneg %p139
        $region46: #{tpu_custom_call.1} parent=43 // pred_check_branch
          %8615 = sbr.rel (%p8613) target = $region48
        $region47: #{tpu_custom_call.1} parent=43 // pred_region
          %s8616 = sand.u32 %s124, 1
          %s8617 = scalar_lea.sflag [#allocation7], %s8616
          %s8618 = sand.u32 %s124, 1
          %s8619 = smul.addr %s8618, 256
          %s8620 = scalar_lea.vmem [#allocation6], %s8619
          %8621 = dma.done %s8617, 4096
        $region48: #{tpu_custom_call.1} parent=43 // pred_fallthru
          _
      $region44: #{tpu_custom_call.1} parent=5 // pred_fallthru
        _
    $region6: #{tpu_custom_call.1} parent=1 // loop_footer
      %s16 = sadd.s32 1, %s12
    $region7: #{tpu_custom_call.1} parent=1 // loop_footer_branch
      %11 = sbr.rel target = $region3
    $region8: #{tpu_custom_call.1} parent=1 // loop_exit
      _
    %8622 = vsyncpa [#allocation7], 1
    %s8623 = scalar_lea.sflag [#allocation7], 1
    %8624 = vsyncpa %s8623, 1

</llo_original>
